<compile_context>
chip_gen: v5e
topology: v5e:2x2
jax: 0.10.0
libtpu: 0.0.40
codegen_flags: <defaults>
</compile_context>

<pallas_src>
import functools
import math

import jax
import jax.numpy as jnp
from jax.experimental import pallas as pl
from jax.experimental.pallas import tpu as pltpu

EPS = 1e-5  # nn.BatchNorm2d default eps


def _round_up(x, m):
    return ((x + m - 1) // m) * m


def _vmem_limit_bytes():
    try:
        cap = int(pltpu.get_tpu_info().vmem_capacity_bytes)
    except Exception:
        cap = 64 * 1024 * 1024
    return min(int(cap * 0.75), 100 * 1024 * 1024)


_VMEM_LIMIT = _vmem_limit_bytes()   # ~96 MiB on v5e/v6e, ~48 MiB on v7x


def _divisor_tile(total, maximum, step=8):
    """Largest multiple of `step` <= maximum that divides `total` (fallback: total)."""
    t = min(maximum, total)
    t -= t % step
    while t >= step:
        if total % t == 0:
            return t
        t -= step
    return total


# ----------------------------------------------------------------------------
# Fully fused kernel: conv (in-VMEM im2col) + bias + BN + ReLU, one pallas_call
# ----------------------------------------------------------------------------

def _fused_conv_bn_relu_kernel(x_ref, w_ref, cb_ref, g_ref, b_ref, o_ref,
                               col_ref, sum_ref, sq_ref, *,
                               KH, KW, OH, OW, dilation, relu, train_bn,
                               m_total, eps, n_imgs):
    """One grid step = one image.  Output block (M, Cout) f32 is VMEM-resident.

    train_bn=True : raw conv(+bias) rows are stored, per-channel sum / sum^2 are
                    accumulated in scratch, and the BN affine + ReLU is applied
                    in-place on the resident output at the last grid step.
    train_bn=False: g/b already hold the folded (eval-BN or identity) affine and
                    are applied immediately.
    """
    bidx = pl.program_id(0)
    rows = OH * OW
    cout = o_ref.shape[1]

    if train_bn:
        @pl.when(bidx == 0)
        def _init():
            sum_ref[...] = jnp.zeros_like(sum_ref)
            sq_ref[...] = jnp.zeros_like(sq_ref)

    # ---- conv for this image: in-VMEM im2col, one matmul per kernel tap ----
    acc = jnp.zeros((rows, cout), jnp.float32)
    for i in range(KH):
        for j in range(KW):
            h0 = i * dilation
            w0 = j * dilation
            # Gather the shifted window into a (OH*OW, Cin) col scratch using
            # plain row copies (no value reshapes -> layout-safe).
            for oh in range(OH):
                col_ref[oh * OW:(oh + 1) * OW, :] = x_ref[0, h0 + oh, w0:w0 + OW, :]
            acc = acc + jnp.dot(col_ref[...], w_ref[i * KW + j],
                                preferred_element_type=jnp.float32)
    acc = acc + cb_ref[...]                       # conv bias (zeros if absent)

    row_start = bidx * rows
    if rows % 8 == 0:
        row_start = pl.multiple_of(row_start, 8)

    if train_bn:
        # Raw conv output stays resident in the output block; stats in scratch.
        o_ref[pl.ds(row_start, rows), :] = acc
        sum_ref[...] += jnp.sum(acc, axis=0, keepdims=True)
        sq_ref[...] += jnp.sum(acc * acc, axis=0, keepdims=True)

        @pl.when(bidx == pl.num_programs(0) - 1)
        def _finish():
            inv_m = 1.0 / m_total
            mean = sum_ref[...] * inv_m
            var = jnp.maximum(sq_ref[...] * inv_m - mean * mean, 0.0)  # biased var
            scale = g_ref[...] * jax.lax.rsqrt(var + eps)
            shift = b_ref[...] - mean * scale
            for c in range(n_imgs):               # chunked: bounds live vregs
                seg = o_ref[c * rows:(c + 1) * rows, :] * scale + shift
                if relu:
                    seg = jnp.maximum(seg, 0.0)
                o_ref[c * rows:(c + 1) * rows, :] = seg
    else:
        y = acc * g_ref[...] + b_ref[...]
        if relu:
            y = jnp.maximum(y, 0.0)
        o_ref[pl.ds(row_start, rows), :] = y


def fused_conv_bn_act(x_pad, w_taps, cb, g, b, *, KH, KW, OH, OW, dilation,
                      relu, train_bn):
    """x_pad: (N, Hp, Wp, Cin) f32 (spatially padded NHWC).
    w_taps: (KH*KW, Cin, Cout) f32.  cb/g/b: (1, Cout) f32.
    Returns (N*OH*OW, Cout) f32 rows ordered (n, oh, ow)."""
    Nb, Hp, Wp, Cin = x_pad.shape
    T, _, Cout = w_taps.shape
    M = Nb * OH * OW

    kernel = functools.partial(
        _fused_conv_bn_relu_kernel, KH=KH, KW=KW, OH=OH, OW=OW,
        dilation=dilation, relu=relu, train_bn=train_bn,
        m_total=float(M), eps=EPS, n_imgs=Nb)

    cost = pl.CostEstimate(
        flops=2 * M * KH * KW * Cin * Cout,
        transcendentals=0,
        bytes_accessed=x_pad.size * 4 + w_taps.size * 4 + M * Cout * 4,
    )

    return pl.pallas_call(
        kernel,
        out_shape=jax.ShapeDtypeStruct((M, Cout), jnp.float32),
        grid=(Nb,),
        in_specs=[
            pl.BlockSpec((1, Hp, Wp, Cin), lambda n: (n, 0, 0, 0)),
            pl.BlockSpec((T, Cin, Cout), lambda n: (0, 0, 0)),
            pl.BlockSpec((1, Cout), lambda n: (0, 0)),
            pl.BlockSpec((1, Cout), lambda n: (0, 0)),
            pl.BlockSpec((1, Cout), lambda n: (0, 0)),
        ],
        out_specs=pl.BlockSpec((M, Cout), lambda n: (0, 0)),   # VMEM-resident
        scratch_shapes=[
            pltpu.VMEM((OH * OW, Cin), jnp.float32),   # in-kernel im2col buffer
            pltpu.VMEM((1, Cout), jnp.float32),        # per-channel sum
            pltpu.VMEM((1, Cout), jnp.float32),        # per-channel sum of squares
        ],
        compiler_params=pltpu.CompilerParams(
            dimension_semantics=("arbitrary",),
            vmem_limit_bytes=_VMEM_LIMIT,
        ),
        cost_estimate=cost,
    )(x_pad, w_taps, cb, g, b)


def _use_fused_path(Nb, Hp, Wp, Cin, OH, OW, Cout, KH, KW, stride):
    if stride != 1:
        return False
    lane = lambda c: _round_up(max(c, 1), 128)
    sub = lambda s: _round_up(max(s, 1), 8)
    vmem = (2 * Hp * sub(Wp) * lane(Cin) * 4          # double-buffered image
            + 2 * KH * KW * sub(Cin) * lane(Cout) * 4
            + 2 * sub(Nb * OH * OW) * lane(Cout) * 4  # resident f32 output
            + sub(OH * OW) * lane(Cin) * 4            # col scratch
            + 4 * sub(OH * OW) * lane(Cout) * 4)      # accumulator / temps
    return vmem <= _VMEM_LIMIT // 2


# ----------------------------------------------------------------------------
# Fallback path (large shapes that do not fit the fused kernel's VMEM budget)
# ----------------------------------------------------------------------------

def _matmul_tiles(M, N, K, tm_max=256, tn_max=256, tk_max=512):
    """bf16-friendly tiles; K is NOT zero-padded when small (full-extent block)."""
    Mp16 = _round_up(M, 16)
    tm = min(tm_max, Mp16)
    if Mp16 // tm < 2 and Mp16 >= 32:       # keep >= 2 M tiles: both v7x TCs busy
        tm = _round_up((Mp16 + 1) // 2, 16)
    Mp = _round_up(Mp16, tm)
    Np128 = _round_up(N, 128)
    tn = min(tn_max, Np128)
    Np = _round_up(Np128, tn)
    if K <= 512:
        Kp, tk = K, K                        # no zero-padding of tiny contractions
    else:
        Kp = _round_up(K, 256)               # 256-aligned tk fills v6e/v7x MXU depth
        tk = 256
        for t in (512, 256):
            if t <= tk_max and Kp % t == 0:
                tk = t
                break
    return Mp, Np, Kp, tm, tn, tk


def _conv_matmul_kernel(a_ref, b_ref, scale_ref, bias_ref, o_ref, *, apply_affine, relu):
    """o = act((sum_k A_ik @ B_kj) * scale + bias); f32 output block is the accumulator."""
    k = pl.program_id(2)

    @pl.when(k == 0)
    def _():
        o_ref[...] = jnp.zeros_like(o_ref)

    o_ref[...] += jnp.dot(a_ref[...], b_ref[...], preferred_element_type=jnp.float32)

    if apply_affine or relu:
        @pl.when(k == pl.num_programs(2) - 1)
        def _():
            out = o_ref[...]
            if apply_affine:
                out = out * scale_ref[...] + bias_ref[...]
            if relu:
                out = jnp.maximum(out, 0.0)
            o_ref[...] = out


def _channel_stats_kernel(y_ref, sum_ref, sq_ref, *, m_valid):
    i = pl.program_id(0)

    @pl.when(i == 0)
    def _():
        sum_ref[...] = jnp.zeros_like(sum_ref)
        sq_ref[...] = jnp.zeros_like(sq_ref)

    y = y_ref[...]
    row = jax.lax.broadcasted_iota(jnp.int32, y.shape, 0) + i * y.shape[0]
    y = jnp.where(row < m_valid, y, 0.0)
    sum_ref[...] += jnp.sum(y, axis=0, keepdims=True)
    sq_ref[...] += jnp.sum(y * y, axis=0, keepdims=True)


def _affine_act_kernel(y_ref, scale_ref, bias_ref, o_ref, *, relu):
    out = y_ref[...] * scale_ref[...] + bias_ref[...]
    if relu:
        out = jnp.maximum(out, 0.0)
    o_ref[...] = out


def fused_matmul(a, b, scale, bias, *, apply_affine, relu):
    """act((a @ b) * scale + bias); a:[M,K], b:[K,N] (bf16 MXU operands, f32 acc).
    Returns the PADDED f32 result (Mp, Np); caller slices [:M, :N]."""
    M, K = a.shape
    _, N = b.shape
    Mp, Np, Kp, tm, tn, tk = _matmul_tiles(M, N, K)

    a_p = jnp.pad(a.astype(jnp.bfloat16), ((0, Mp - M), (0, Kp - K)))
    b_p = jnp.pad(b.astype(jnp.bfloat16), ((0, Kp - K), (0, Np - N)))
    s_p = jnp.pad(scale.astype(jnp.float32).reshape(1, -1), ((0, 0), (0, Np - N)))
    z_p = jnp.pad(bias.astype(jnp.float32).reshape(1, -1), ((0, 0), (0, Np - N)))

    kernel = functools.partial(_conv_matmul_kernel, apply_affine=apply_affine, relu=relu)
    cost = pl.CostEstimate(flops=2 * Mp * Np * Kp, transcendentals=0,
                           bytes_accessed=Mp * Kp * 2 + Kp * Np * 2 + Mp * Np * 4)
    return pl.pallas_call(
        kernel,
        out_shape=jax.ShapeDtypeStruct((Mp, Np), jnp.float32),
        grid=(Mp // tm, Np // tn, Kp // tk),
        in_specs=[
            pl.BlockSpec((tm, tk), lambda i, j, k: (i, k)),
            pl.BlockSpec((tk, tn), lambda i, j, k: (k, j)),
            pl.BlockSpec((1, tn), lambda i, j, k: (0, j)),
            pl.BlockSpec((1, tn), lambda i, j, k: (0, j)),
        ],
        out_specs=pl.BlockSpec((tm, tn), lambda i, j, k: (i, j)),
        compiler_params=pltpu.CompilerParams(
            dimension_semantics=("parallel", "parallel", "arbitrary"),
            vmem_limit_bytes=_VMEM_LIMIT,
        ),
        cost_estimate=cost,
    )(a_p, b_p, s_p, z_p)


def channel_sums(y_padded, m_valid, tm_max=1024):
    Mp, Np = y_padded.shape
    tm = _divisor_tile(Mp, tm_max)
    kernel = functools.partial(_channel_stats_kernel, m_valid=m_valid)
    return pl.pallas_call(
        kernel,
        out_shape=(jax.ShapeDtypeStruct((1, Np), jnp.float32),
                   jax.ShapeDtypeStruct((1, Np), jnp.float32)),
        grid=(Mp // tm,),
        in_specs=[pl.BlockSpec((tm, Np), lambda i: (i, 0))],
        out_specs=(pl.BlockSpec((1, Np), lambda i: (0, 0)),
                   pl.BlockSpec((1, Np), lambda i: (0, 0))),
        compiler_params=pltpu.CompilerParams(
            dimension_semantics=("arbitrary",), vmem_limit_bytes=_VMEM_LIMIT),
    )(y_padded)


def affine_act(y_padded, scale_p, bias_p, relu, tm_max=1024):
    Mp, Np = y_padded.shape
    tm = _divisor_tile(Mp, tm_max)
    kernel = functools.partial(_affine_act_kernel, relu=relu)
    return pl.pallas_call(
        kernel,
        out_shape=jax.ShapeDtypeStruct((Mp, Np), jnp.float32),
        grid=(Mp // tm,),
        in_specs=[pl.BlockSpec((tm, Np), lambda i: (i, 0)),
                  pl.BlockSpec((1, Np), lambda i: (0, 0)),
                  pl.BlockSpec((1, Np), lambda i: (0, 0))],
        out_specs=pl.BlockSpec((tm, Np), lambda i: (i, 0)),
        compiler_params=pltpu.CompilerParams(
            dimension_semantics=("parallel",), vmem_limit_bytes=_VMEM_LIMIT),
    )(y_padded, scale_p, bias_p)


def im2col(x, kh, kw, stride, padding, dilation):
    """x: [N, H, W, C] -> ([N*OH*OW, kh*kw*C], OH, OW).  Fallback path only."""
    N, H, W, C = x.shape
    xp = jnp.pad(x, ((0, 0), (padding, padding), (padding, padding), (0, 0)))
    OH = (H + 2 * padding - dilation * (kh - 1) - 1) // stride + 1
    OW = (W + 2 * padding - dilation * (kw - 1) - 1) // stride + 1
    cols = []
    for i in range(kh):
        for j in range(kw):
            hs, ws = i * dilation, j * dilation
            cols.append(xp[:, hs:hs + (OH - 1) * stride + 1:stride,
                           ws:ws + (OW - 1) * stride + 1:stride, :])
    col = jnp.concatenate(cols, axis=-1)
    return col.reshape(N * OH * OW, kh * kw * C), OH, OW


# ----------------------------------------------------------------------------
# BasicConv forward
# ----------------------------------------------------------------------------

def basic_conv_forward(params, x_nchw, *, stride=1, padding=0, dilation=1,
                       groups=1, relu=True, bn=True, training=True):
    """BasicConv.forward: Conv2d -> (BatchNorm2d) -> (ReLU).
    x_nchw: [N, Cin, H, W].  Returns [N, Cout, OH, OW].  training=True matches the
    PyTorch module's default train() mode (BN uses this batch's biased statistics)."""
    if groups != 1:
        raise NotImplementedError("groups != 1 not implemented")  # TODO(synk)

    w = params['conv_w']                                  # [Cout, Cin, KH, KW]
    Cout, Cin, KH, KW = w.shape
    conv_b = params.get('conv_b', None)

    Nb, _, H, W = x_nchw.shape
    OH = (H + 2 * padding - dilation * (KH - 1) - 1) // stride + 1
    OW = (W + 2 * padding - dilation * (KW - 1) - 1) // stride + 1
    Hp, Wp = H + 2 * padding, W + 2 * padding
    M = Nb * OH * OW

    train_bn = bool(bn and training)
    cb = (jnp.zeros((1, Cout), jnp.float32) if conv_b is None
          else conv_b.reshape(1, Cout).astype(jnp.float32))
    if train_bn:
        g = params['bn_gamma'].reshape(1, Cout).astype(jnp.float32)
        bta = params['bn_beta'].reshape(1, Cout).astype(jnp.float32)
    elif bn:   # eval-mode BN folds into a per-channel affine
        scale = params['bn_gamma'] * jax.lax.rsqrt(params['bn_running_var'] + EPS)
        g = scale.reshape(1, Cout).astype(jnp.float32)
        bta = (params['bn_beta'] - params['bn_running_mean'] * scale
               ).reshape(1, Cout).astype(jnp.float32)
    else:
        g = jnp.ones((1, Cout), jnp.float32)
        bta = jnp.zeros((1, Cout), jnp.float32)

    if _use_fused_path(Nb, Hp, Wp, Cin, OH, OW, Cout, KH, KW, stride):
        # Single pallas_call: conv (in-VMEM im2col) + bias + BN + ReLU.
        x_pad = jnp.pad(jnp.transpose(x_nchw, (0, 2, 3, 1)).astype(jnp.float32),
                        ((0, 0), (padding, padding), (padding, padding), (0, 0)))
        w_taps = jnp.transpose(w, (2, 3, 1, 0)).reshape(KH * KW, Cin, Cout
                                                        ).astype(jnp.float32)
        out2d = fused_conv_bn_act(x_pad, w_taps, cb, g, bta, KH=KH, KW=KW,
                                  OH=OH, OW=OW, dilation=dilation,
                                  relu=relu, train_bn=train_bn)
        out = out2d.reshape(Nb, OH, OW, Cout)
        return jnp.transpose(out, (0, 3, 1, 2))

    # -------- fallback: tiled matmul over a host-built col matrix --------
    x_bf = jnp.transpose(x_nchw, (0, 2, 3, 1)).astype(jnp.bfloat16)
    col, OH, OW = im2col(x_bf, KH, KW, stride, padding, dilation)
    wmat = jnp.transpose(w, (2, 3, 1, 0)).reshape(KH * KW * Cin, Cout)

    if train_bn:
        ones = jnp.ones((Cout,), jnp.float32)
        y = fused_matmul(col, wmat, ones, cb[0],
                         apply_affine=conv_b is not None, relu=False)
        s, sq = channel_sums(y, m_valid=M)
        mean = s[0, :Cout] / M
        var = jnp.maximum(sq[0, :Cout] / M - mean * mean, 0.0)
        scale = params['bn_gamma'] * jax.lax.rsqrt(var + EPS)
        shift = params['bn_beta'] - mean * scale
        Np = y.shape[1]
        scale_p = jnp.pad(scale.reshape(1, -1), ((0, 0), (0, Np - Cout)))
        shift_p = jnp.pad(shift.reshape(1, -1), ((0, 0), (0, Np - Cout)))
        out = affine_act(y, scale_p, shift_p, relu)
    else:
        out = fused_matmul(col, wmat, g[0], (bta + cb * g)[0],
                           apply_affine=True, relu=relu)

    out = out[:M, :Cout].reshape(Nb, OH, OW, Cout)
    return jnp.transpose(out, (0, 3, 1, 2))


# ----------------------------------------------------------------------------
# Parameters (PyTorch defaults: gamma=1, beta=0, bias absent) and reference
# ----------------------------------------------------------------------------

def make_params(in_planes, out_planes, kernel_size, key, bias=False, bn=True):
    fan_out = out_planes * kernel_size * kernel_size
    p = {'conv_w': jax.random.normal(
        key, (out_planes, in_planes, kernel_size, kernel_size),
        jnp.float32) * math.sqrt(2.0 / fan_out)}
    if bias:
        p['conv_b'] = jnp.zeros((out_planes,), jnp.float32)
    if bn:
        p['bn_gamma'] = jnp.ones((out_planes,), jnp.float32)
        p['bn_beta'] = jnp.zeros((out_planes,), jnp.float32)
        p['bn_running_mean'] = jnp.zeros((out_planes,), jnp.float32)
        p['bn_running_var'] = jnp.ones((out_planes,), jnp.float32)
    return p


def reference_forward(params, x, *, stride, padding, dilation, relu, bn, training):
    """Plain-JAX (XLA) reference matching the PyTorch module's forward."""
    y = jax.lax.conv_general_dilated(
        x, params['conv_w'], window_strides=(stride, stride),
        padding=[(padding, padding), (padding, padding)],
        rhs_dilation=(dilation, dilation),
        dimension_numbers=('NCHW', 'OIHW', 'NCHW'))
    if 'conv_b' in params:
        y = y + params['conv_b'][None, :, None, None]
    if bn:
        if training:
            mean = jnp.mean(y, axis=(0, 2, 3))
            var = jnp.var(y, axis=(0, 2, 3))
        else:
            mean = params['bn_running_mean']
            var = params['bn_running_var']
        y = (y - mean[None, :, None, None]) * jax.lax.rsqrt(var[None, :, None, None] + EPS)
        y = y * params['bn_gamma'][None, :, None, None] + params['bn_beta'][None, :, None, None]
    if relu:
        y = jnp.maximum(y, 0.0)
    return y


if __name__ == "__main__":
    key = jax.random.PRNGKey(0)
    kp, kx = jax.random.split(key)

    in_planes, out_planes, ksize = 4, 32, 3
    params = make_params(in_planes, out_planes, ksize, kp)
    x = jax.random.normal(kx, (2, in_planes, 16, 16), jnp.float32)

    # Default PyTorch module state: train() mode (BN uses batch statistics).
    fwd_train = jax.jit(functools.partial(
        basic_conv_forward, stride=1, padding=1, dilation=1,
        relu=True, bn=True, training=True))
    out = fwd_train(params, x)
    jax.block_until_ready(out)
    ref = reference_forward(params, x, stride=1, padding=1, dilation=1,
                            relu=True, bn=True, training=True)
    assert out.shape == (2, out_planes, 16, 16), out.shape
    assert bool(jnp.all(jnp.isfinite(out)))
    assert bool(jnp.all(out >= 0.0))
    assert bool(jnp.allclose(out, ref, atol=5e-3, rtol=5e-3)), \
        float(jnp.max(jnp.abs(out - ref)))

    # Eval-mode path: BN (running stats) folded into the fused epilogue affine.
    fwd_eval = jax.jit(functools.partial(
        basic_conv_forward, stride=1, padding=1, dilation=1,
        relu=True, bn=True, training=False))
    out_e = fwd_eval(params, x)
    jax.block_until_ready(out_e)
    ref_e = reference_forward(params, x, stride=1, padding=1, dilation=1,
                              relu=True, bn=True, training=False)
    assert out_e.shape == (2, out_planes, 16, 16), out_e.shape
    assert bool(jnp.all(jnp.isfinite(out_e)))
    assert bool(jnp.allclose(out_e, ref_e, atol=5e-3, rtol=5e-3)), \
        float(jnp.max(jnp.abs(out_e - ref_e)))

    print("KERNEL_OK")
</pallas_src>

<mosaic_0001>
module attributes {stable_mosaic.version = 11 : i64} {
  func.func @_fused_conv_bn_relu_kernel(%arg0: i32, %arg1: memref<1x18x18x4xf32, #tpu.memory_space<vmem>>, %arg2: memref<9x4x32xf32, #tpu.memory_space<vmem>>, %arg3: memref<1x32xf32, #tpu.memory_space<vmem>>, %arg4: memref<1x32xf32, #tpu.memory_space<vmem>>, %arg5: memref<1x32xf32, #tpu.memory_space<vmem>>, %arg6: memref<512x32xf32, #tpu.memory_space<vmem>>, %arg7: memref<256x4xf32, #tpu.memory_space<vmem>>, %arg8: memref<1x32xf32, #tpu.memory_space<vmem>>, %arg9: memref<1x32xf32, #tpu.memory_space<vmem>>) attributes {dimension_semantics = [#tpu.dimension_semantics<arbitrary>], iteration_bounds = array<i64: 2>, scalar_prefetch = 0 : i64, scratch_operands = 3 : i64, tpu.core_type = #tpu.core_type<tc>, window_params = [{transform_indices = @transform_0, window_bounds = array<i64: 1, 18, 18, 4>}, {pipeline_mode = #tpu.pipeline_mode<synchronous>, transform_indices = @transform_1, window_bounds = array<i64: 9, 4, 32>}, {pipeline_mode = #tpu.pipeline_mode<synchronous>, transform_indices = @transform_2, window_bounds = array<i64: 1, 32>}, {pipeline_mode = #tpu.pipeline_mode<synchronous>, transform_indices = @transform_3, window_bounds = array<i64: 1, 32>}, {pipeline_mode = #tpu.pipeline_mode<synchronous>, transform_indices = @transform_4, window_bounds = array<i64: 1, 32>}, {pipeline_mode = #tpu.pipeline_mode<synchronous>, transform_indices = @transform_5, window_bounds = array<i64: 512, 32>}]} {
    %c0_i32 = arith.constant 0 : i32
    %0 = arith.cmpi eq, %arg0, %c0_i32 : i32
    %1 = arith.extui %0 : i1 to i32
    %c0_i32_0 = arith.constant 0 : i32
    %2 = arith.cmpi ne, %1, %c0_i32_0 : i32
    scf.if %2 {
      %cst_901 = arith.constant 0.000000e+00 : f32
      %502 = vector.broadcast %cst_901 : f32 to vector<1x32xf32>
      %c0_902 = arith.constant 0 : index
      %c0_903 = arith.constant 0 : index
      %503 = vector.load %arg8[%c0_902, %c0_903] : memref<1x32xf32, #tpu.memory_space<vmem>>, vector<1x32xf32>
      tpu.vector_store %arg8[%c0_902, %c0_903], %502 {strides = array<i32>} : memref<1x32xf32, #tpu.memory_space<vmem>>, vector<1x32xf32>,
      %cst_904 = arith.constant 0.000000e+00 : f32
      %504 = vector.broadcast %cst_904 : f32 to vector<1x32xf32>
      %c0_905 = arith.constant 0 : index
      %c0_906 = arith.constant 0 : index
      %505 = vector.load %arg9[%c0_905, %c0_906] : memref<1x32xf32, #tpu.memory_space<vmem>>, vector<1x32xf32>
      tpu.vector_store %arg9[%c0_905, %c0_906], %504 {strides = array<i32>} : memref<1x32xf32, #tpu.memory_space<vmem>>, vector<1x32xf32>,
    } else {
    }
    %cst = arith.constant 0.000000e+00 : f32
    %3 = vector.broadcast %cst : f32 to vector<256x32xf32>
    %c0 = arith.constant 0 : index
    %c0_1 = arith.constant 0 : index
    %c0_2 = arith.constant 0 : index
    %c0_3 = arith.constant 0 : index
    %4 = vector.load %arg1[%c0, %c0_1, %c0_2, %c0_3] : memref<1x18x18x4xf32, #tpu.memory_space<vmem>>, vector<1x1x16x4xf32>
    %5 = vector.shape_cast %4 : vector<1x1x16x4xf32> to vector<16x4xf32>
    %c0_4 = arith.constant 0 : index
    %c0_5 = arith.constant 0 : index
    %6 = vector.load %arg7[%c0_4, %c0_5] : memref<256x4xf32, #tpu.memory_space<vmem>>, vector<16x4xf32>
    tpu.vector_store %arg7[%c0_4, %c0_5], %5 {strides = array<i32>} : memref<256x4xf32, #tpu.memory_space<vmem>>, vector<16x4xf32>,
    %c0_6 = arith.constant 0 : index
    %c1 = arith.constant 1 : index
    %c0_7 = arith.constant 0 : index
    %c0_8 = arith.constant 0 : index
    %7 = vector.load %arg1[%c0_6, %c1, %c0_7, %c0_8] : memref<1x18x18x4xf32, #tpu.memory_space<vmem>>, vector<1x1x16x4xf32>
    %8 = vector.shape_cast %7 : vector<1x1x16x4xf32> to vector<16x4xf32>
    %c16 = arith.constant 16 : index
    %c0_9 = arith.constant 0 : index
    %9 = vector.load %arg7[%c16, %c0_9] : memref<256x4xf32, #tpu.memory_space<vmem>>, vector<16x4xf32>
    tpu.vector_store %arg7[%c16, %c0_9], %8 {strides = array<i32>} : memref<256x4xf32, #tpu.memory_space<vmem>>, vector<16x4xf32>,
    %c0_10 = arith.constant 0 : index
    %c2 = arith.constant 2 : index
    %c0_11 = arith.constant 0 : index
    %c0_12 = arith.constant 0 : index
    %10 = vector.load %arg1[%c0_10, %c2, %c0_11, %c0_12] : memref<1x18x18x4xf32, #tpu.memory_space<vmem>>, vector<1x1x16x4xf32>
    %11 = vector.shape_cast %10 : vector<1x1x16x4xf32> to vector<16x4xf32>
    %c32 = arith.constant 32 : index
    %c0_13 = arith.constant 0 : index
    %12 = vector.load %arg7[%c32, %c0_13] : memref<256x4xf32, #tpu.memory_space<vmem>>, vector<16x4xf32>
    tpu.vector_store %arg7[%c32, %c0_13], %11 {strides = array<i32>} : memref<256x4xf32, #tpu.memory_space<vmem>>, vector<16x4xf32>,
    %c0_14 = arith.constant 0 : index
    %c3 = arith.constant 3 : index
    %c0_15 = arith.constant 0 : index
    %c0_16 = arith.constant 0 : index
    %13 = vector.load %arg1[%c0_14, %c3, %c0_15, %c0_16] : memref<1x18x18x4xf32, #tpu.memory_space<vmem>>, vector<1x1x16x4xf32>
    %14 = vector.shape_cast %13 : vector<1x1x16x4xf32> to vector<16x4xf32>
    %c48 = arith.constant 48 : index
    %c0_17 = arith.constant 0 : index
    %15 = vector.load %arg7[%c48, %c0_17] : memref<256x4xf32, #tpu.memory_space<vmem>>, vector<16x4xf32>
    tpu.vector_store %arg7[%c48, %c0_17], %14 {strides = array<i32>} : memref<256x4xf32, #tpu.memory_space<vmem>>, vector<16x4xf32>,
    %c0_18 = arith.constant 0 : index
    %c4 = arith.constant 4 : index
    %c0_19 = arith.constant 0 : index
    %c0_20 = arith.constant 0 : index
    %16 = vector.load %arg1[%c0_18, %c4, %c0_19, %c0_20] : memref<1x18x18x4xf32, #tpu.memory_space<vmem>>, vector<1x1x16x4xf32>
    %17 = vector.shape_cast %16 : vector<1x1x16x4xf32> to vector<16x4xf32>
    %c64 = arith.constant 64 : index
    %c0_21 = arith.constant 0 : index
    %18 = vector.load %arg7[%c64, %c0_21] : memref<256x4xf32, #tpu.memory_space<vmem>>, vector<16x4xf32>
    tpu.vector_store %arg7[%c64, %c0_21], %17 {strides = array<i32>} : memref<256x4xf32, #tpu.memory_space<vmem>>, vector<16x4xf32>,
    %c0_22 = arith.constant 0 : index
    %c5 = arith.constant 5 : index
    %c0_23 = arith.constant 0 : index
    %c0_24 = arith.constant 0 : index
    %19 = vector.load %arg1[%c0_22, %c5, %c0_23, %c0_24] : memref<1x18x18x4xf32, #tpu.memory_space<vmem>>, vector<1x1x16x4xf32>
    %20 = vector.shape_cast %19 : vector<1x1x16x4xf32> to vector<16x4xf32>
    %c80 = arith.constant 80 : index
    %c0_25 = arith.constant 0 : index
    %21 = vector.load %arg7[%c80, %c0_25] : memref<256x4xf32, #tpu.memory_space<vmem>>, vector<16x4xf32>
    tpu.vector_store %arg7[%c80, %c0_25], %20 {strides = array<i32>} : memref<256x4xf32, #tpu.memory_space<vmem>>, vector<16x4xf32>,
    %c0_26 = arith.constant 0 : index
    %c6 = arith.constant 6 : index
    %c0_27 = arith.constant 0 : index
    %c0_28 = arith.constant 0 : index
    %22 = vector.load %arg1[%c0_26, %c6, %c0_27, %c0_28] : memref<1x18x18x4xf32, #tpu.memory_space<vmem>>, vector<1x1x16x4xf32>
    %23 = vector.shape_cast %22 : vector<1x1x16x4xf32> to vector<16x4xf32>
    %c96 = arith.constant 96 : index
    %c0_29 = arith.constant 0 : index
    %24 = vector.load %arg7[%c96, %c0_29] : memref<256x4xf32, #tpu.memory_space<vmem>>, vector<16x4xf32>
    tpu.vector_store %arg7[%c96, %c0_29], %23 {strides = array<i32>} : memref<256x4xf32, #tpu.memory_space<vmem>>, vector<16x4xf32>,
    %c0_30 = arith.constant 0 : index
    %c7 = arith.constant 7 : index
    %c0_31 = arith.constant 0 : index
    %c0_32 = arith.constant 0 : index
    %25 = vector.load %arg1[%c0_30, %c7, %c0_31, %c0_32] : memref<1x18x18x4xf32, #tpu.memory_space<vmem>>, vector<1x1x16x4xf32>
    %26 = vector.shape_cast %25 : vector<1x1x16x4xf32> to vector<16x4xf32>
    %c112 = arith.constant 112 : index
    %c0_33 = arith.constant 0 : index
    %27 = vector.load %arg7[%c112, %c0_33] : memref<256x4xf32, #tpu.memory_space<vmem>>, vector<16x4xf32>
    tpu.vector_store %arg7[%c112, %c0_33], %26 {strides = array<i32>} : memref<256x4xf32, #tpu.memory_space<vmem>>, vector<16x4xf32>,
    %c0_34 = arith.constant 0 : index
    %c8 = arith.constant 8 : index
    %c0_35 = arith.constant 0 : index
    %c0_36 = arith.constant 0 : index
    %28 = vector.load %arg1[%c0_34, %c8, %c0_35, %c0_36] : memref<1x18x18x4xf32, #tpu.memory_space<vmem>>, vector<1x1x16x4xf32>
    %29 = vector.shape_cast %28 : vector<1x1x16x4xf32> to vector<16x4xf32>
    %c128 = arith.constant 128 : index
    %c0_37 = arith.constant 0 : index
    %30 = vector.load %arg7[%c128, %c0_37] : memref<256x4xf32, #tpu.memory_space<vmem>>, vector<16x4xf32>
    tpu.vector_store %arg7[%c128, %c0_37], %29 {strides = array<i32>} : memref<256x4xf32, #tpu.memory_space<vmem>>, vector<16x4xf32>,
    %c0_38 = arith.constant 0 : index
    %c9 = arith.constant 9 : index
    %c0_39 = arith.constant 0 : index
    %c0_40 = arith.constant 0 : index
    %31 = vector.load %arg1[%c0_38, %c9, %c0_39, %c0_40] : memref<1x18x18x4xf32, #tpu.memory_space<vmem>>, vector<1x1x16x4xf32>
    %32 = vector.shape_cast %31 : vector<1x1x16x4xf32> to vector<16x4xf32>
    %c144 = arith.constant 144 : index
    %c0_41 = arith.constant 0 : index
    %33 = vector.load %arg7[%c144, %c0_41] : memref<256x4xf32, #tpu.memory_space<vmem>>, vector<16x4xf32>
    tpu.vector_store %arg7[%c144, %c0_41], %32 {strides = array<i32>} : memref<256x4xf32, #tpu.memory_space<vmem>>, vector<16x4xf32>,
    %c0_42 = arith.constant 0 : index
    %c10 = arith.constant 10 : index
    %c0_43 = arith.constant 0 : index
    %c0_44 = arith.constant 0 : index
    %34 = vector.load %arg1[%c0_42, %c10, %c0_43, %c0_44] : memref<1x18x18x4xf32, #tpu.memory_space<vmem>>, vector<1x1x16x4xf32>
    %35 = vector.shape_cast %34 : vector<1x1x16x4xf32> to vector<16x4xf32>
    %c160 = arith.constant 160 : index
    %c0_45 = arith.constant 0 : index
    %36 = vector.load %arg7[%c160, %c0_45] : memref<256x4xf32, #tpu.memory_space<vmem>>, vector<16x4xf32>
    tpu.vector_store %arg7[%c160, %c0_45], %35 {strides = array<i32>} : memref<256x4xf32, #tpu.memory_space<vmem>>, vector<16x4xf32>,
    %c0_46 = arith.constant 0 : index
    %c11 = arith.constant 11 : index
    %c0_47 = arith.constant 0 : index
    %c0_48 = arith.constant 0 : index
    %37 = vector.load %arg1[%c0_46, %c11, %c0_47, %c0_48] : memref<1x18x18x4xf32, #tpu.memory_space<vmem>>, vector<1x1x16x4xf32>
    %38 = vector.shape_cast %37 : vector<1x1x16x4xf32> to vector<16x4xf32>
    %c176 = arith.constant 176 : index
    %c0_49 = arith.constant 0 : index
    %39 = vector.load %arg7[%c176, %c0_49] : memref<256x4xf32, #tpu.memory_space<vmem>>, vector<16x4xf32>
    tpu.vector_store %arg7[%c176, %c0_49], %38 {strides = array<i32>} : memref<256x4xf32, #tpu.memory_space<vmem>>, vector<16x4xf32>,
    %c0_50 = arith.constant 0 : index
    %c12 = arith.constant 12 : index
    %c0_51 = arith.constant 0 : index
    %c0_52 = arith.constant 0 : index
    %40 = vector.load %arg1[%c0_50, %c12, %c0_51, %c0_52] : memref<1x18x18x4xf32, #tpu.memory_space<vmem>>, vector<1x1x16x4xf32>
    %41 = vector.shape_cast %40 : vector<1x1x16x4xf32> to vector<16x4xf32>
    %c192 = arith.constant 192 : index
    %c0_53 = arith.constant 0 : index
    %42 = vector.load %arg7[%c192, %c0_53] : memref<256x4xf32, #tpu.memory_space<vmem>>, vector<16x4xf32>
    tpu.vector_store %arg7[%c192, %c0_53], %41 {strides = array<i32>} : memref<256x4xf32, #tpu.memory_space<vmem>>, vector<16x4xf32>,
    %c0_54 = arith.constant 0 : index
    %c13 = arith.constant 13 : index
    %c0_55 = arith.constant 0 : index
    %c0_56 = arith.constant 0 : index
    %43 = vector.load %arg1[%c0_54, %c13, %c0_55, %c0_56] : memref<1x18x18x4xf32, #tpu.memory_space<vmem>>, vector<1x1x16x4xf32>
    %44 = vector.shape_cast %43 : vector<1x1x16x4xf32> to vector<16x4xf32>
    %c208 = arith.constant 208 : index
    %c0_57 = arith.constant 0 : index
    %45 = vector.load %arg7[%c208, %c0_57] : memref<256x4xf32, #tpu.memory_space<vmem>>, vector<16x4xf32>
    tpu.vector_store %arg7[%c208, %c0_57], %44 {strides = array<i32>} : memref<256x4xf32, #tpu.memory_space<vmem>>, vector<16x4xf32>,
    %c0_58 = arith.constant 0 : index
    %c14 = arith.constant 14 : index
    %c0_59 = arith.constant 0 : index
    %c0_60 = arith.constant 0 : index
    %46 = vector.load %arg1[%c0_58, %c14, %c0_59, %c0_60] : memref<1x18x18x4xf32, #tpu.memory_space<vmem>>, vector<1x1x16x4xf32>
    %47 = vector.shape_cast %46 : vector<1x1x16x4xf32> to vector<16x4xf32>
    %c224 = arith.constant 224 : index
    %c0_61 = arith.constant 0 : index
    %48 = vector.load %arg7[%c224, %c0_61] : memref<256x4xf32, #tpu.memory_space<vmem>>, vector<16x4xf32>
    tpu.vector_store %arg7[%c224, %c0_61], %47 {strides = array<i32>} : memref<256x4xf32, #tpu.memory_space<vmem>>, vector<16x4xf32>,
    %c0_62 = arith.constant 0 : index
    %c15 = arith.constant 15 : index
    %c0_63 = arith.constant 0 : index
    %c0_64 = arith.constant 0 : index
    %49 = vector.load %arg1[%c0_62, %c15, %c0_63, %c0_64] : memref<1x18x18x4xf32, #tpu.memory_space<vmem>>, vector<1x1x16x4xf32>
    %50 = vector.shape_cast %49 : vector<1x1x16x4xf32> to vector<16x4xf32>
    %c240 = arith.constant 240 : index
    %c0_65 = arith.constant 0 : index
    %51 = vector.load %arg7[%c240, %c0_65] : memref<256x4xf32, #tpu.memory_space<vmem>>, vector<16x4xf32>
    tpu.vector_store %arg7[%c240, %c0_65], %50 {strides = array<i32>} : memref<256x4xf32, #tpu.memory_space<vmem>>, vector<16x4xf32>,
    %c0_66 = arith.constant 0 : index
    %c0_67 = arith.constant 0 : index
    %52 = vector.load %arg7[%c0_66, %c0_67] : memref<256x4xf32, #tpu.memory_space<vmem>>, vector<256x4xf32>
    %c0_68 = arith.constant 0 : index
    %c0_69 = arith.constant 0 : index
    %c0_70 = arith.constant 0 : index
    %53 = vector.load %arg2[%c0_68, %c0_69, %c0_70] : memref<9x4x32xf32, #tpu.memory_space<vmem>>, vector<1x4x32xf32>
    %54 = vector.shape_cast %53 : vector<1x4x32xf32> to vector<4x32xf32>
    %cst_71 = arith.constant dense<0.000000e+00> : vector<256x32xf32>
    %55 = tpu.matmul %52, %54, %cst_71 {dimension_numbers = #tpu.dot_dimension_numbers<[1], [0], [0], [1], [0, 0, 1, 1], [], []>} : vector<256x4xf32>, vector<4x32xf32>, vector<256x32xf32> -> vector<256x32xf32>
    %56 = arith.addf %3, %55 : vector<256x32xf32>
    %c0_72 = arith.constant 0 : index
    %c0_73 = arith.constant 0 : index
    %c1_74 = arith.constant 1 : index
    %c0_75 = arith.constant 0 : index
    %57 = vector.load %arg1[%c0_72, %c0_73, %c1_74, %c0_75] : memref<1x18x18x4xf32, #tpu.memory_space<vmem>>, vector<1x1x16x4xf32>
    %58 = vector.shape_cast %57 : vector<1x1x16x4xf32> to vector<16x4xf32>
    %c0_76 = arith.constant 0 : index
    %c0_77 = arith.constant 0 : index
    %59 = vector.load %arg7[%c0_76, %c0_77] : memref<256x4xf32, #tpu.memory_space<vmem>>, vector<16x4xf32>
    tpu.vector_store %arg7[%c0_76, %c0_77], %58 {strides = array<i32>} : memref<256x4xf32, #tpu.memory_space<vmem>>, vector<16x4xf32>,
    %c0_78 = arith.constant 0 : index
    %c1_79 = arith.constant 1 : index
    %c1_80 = arith.constant 1 : index
    %c0_81 = arith.constant 0 : index
    %60 = vector.load %arg1[%c0_78, %c1_79, %c1_80, %c0_81] : memref<1x18x18x4xf32, #tpu.memory_space<vmem>>, vector<1x1x16x4xf32>
    %61 = vector.shape_cast %60 : vector<1x1x16x4xf32> to vector<16x4xf32>
    %c16_82 = arith.constant 16 : index
    %c0_83 = arith.constant 0 : index
    %62 = vector.load %arg7[%c16_82, %c0_83] : memref<256x4xf32, #tpu.memory_space<vmem>>, vector<16x4xf32>
    tpu.vector_store %arg7[%c16_82, %c0_83], %61 {strides = array<i32>} : memref<256x4xf32, #tpu.memory_space<vmem>>, vector<16x4xf32>,
    %c0_84 = arith.constant 0 : index
    %c2_85 = arith.constant 2 : index
    %c1_86 = arith.constant 1 : index
    %c0_87 = arith.constant 0 : index
    %63 = vector.load %arg1[%c0_84, %c2_85, %c1_86, %c0_87] : memref<1x18x18x4xf32, #tpu.memory_space<vmem>>, vector<1x1x16x4xf32>
    %64 = vector.shape_cast %63 : vector<1x1x16x4xf32> to vector<16x4xf32>
    %c32_88 = arith.constant 32 : index
    %c0_89 = arith.constant 0 : index
    %65 = vector.load %arg7[%c32_88, %c0_89] : memref<256x4xf32, #tpu.memory_space<vmem>>, vector<16x4xf32>
    tpu.vector_store %arg7[%c32_88, %c0_89], %64 {strides = array<i32>} : memref<256x4xf32, #tpu.memory_space<vmem>>, vector<16x4xf32>,
    %c0_90 = arith.constant 0 : index
    %c3_91 = arith.constant 3 : index
    %c1_92 = arith.constant 1 : index
    %c0_93 = arith.constant 0 : index
    %66 = vector.load %arg1[%c0_90, %c3_91, %c1_92, %c0_93] : memref<1x18x18x4xf32, #tpu.memory_space<vmem>>, vector<1x1x16x4xf32>
    %67 = vector.shape_cast %66 : vector<1x1x16x4xf32> to vector<16x4xf32>
    %c48_94 = arith.constant 48 : index
    %c0_95 = arith.constant 0 : index
    %68 = vector.load %arg7[%c48_94, %c0_95] : memref<256x4xf32, #tpu.memory_space<vmem>>, vector<16x4xf32>
    tpu.vector_store %arg7[%c48_94, %c0_95], %67 {strides = array<i32>} : memref<256x4xf32, #tpu.memory_space<vmem>>, vector<16x4xf32>,
    %c0_96 = arith.constant 0 : index
    %c4_97 = arith.constant 4 : index
    %c1_98 = arith.constant 1 : index
    %c0_99 = arith.constant 0 : index
    %69 = vector.load %arg1[%c0_96, %c4_97, %c1_98, %c0_99] : memref<1x18x18x4xf32, #tpu.memory_space<vmem>>, vector<1x1x16x4xf32>
    %70 = vector.shape_cast %69 : vector<1x1x16x4xf32> to vector<16x4xf32>
    %c64_100 = arith.constant 64 : index
    %c0_101 = arith.constant 0 : index
    %71 = vector.load %arg7[%c64_100, %c0_101] : memref<256x4xf32, #tpu.memory_space<vmem>>, vector<16x4xf32>
    tpu.vector_store %arg7[%c64_100, %c0_101], %70 {strides = array<i32>} : memref<256x4xf32, #tpu.memory_space<vmem>>, vector<16x4xf32>,
    %c0_102 = arith.constant 0 : index
    %c5_103 = arith.constant 5 : index
    %c1_104 = arith.constant 1 : index
    %c0_105 = arith.constant 0 : index
    %72 = vector.load %arg1[%c0_102, %c5_103, %c1_104, %c0_105] : memref<1x18x18x4xf32, #tpu.memory_space<vmem>>, vector<1x1x16x4xf32>
    %73 = vector.shape_cast %72 : vector<1x1x16x4xf32> to vector<16x4xf32>
    %c80_106 = arith.constant 80 : index
    %c0_107 = arith.constant 0 : index
    %74 = vector.load %arg7[%c80_106, %c0_107] : memref<256x4xf32, #tpu.memory_space<vmem>>, vector<16x4xf32>
    tpu.vector_store %arg7[%c80_106, %c0_107], %73 {strides = array<i32>} : memref<256x4xf32, #tpu.memory_space<vmem>>, vector<16x4xf32>,
    %c0_108 = arith.constant 0 : index
    %c6_109 = arith.constant 6 : index
    %c1_110 = arith.constant 1 : index
    %c0_111 = arith.constant 0 : index
    %75 = vector.load %arg1[%c0_108, %c6_109, %c1_110, %c0_111] : memref<1x18x18x4xf32, #tpu.memory_space<vmem>>, vector<1x1x16x4xf32>
    %76 = vector.shape_cast %75 : vector<1x1x16x4xf32> to vector<16x4xf32>
    %c96_112 = arith.constant 96 : index
    %c0_113 = arith.constant 0 : index
    %77 = vector.load %arg7[%c96_112, %c0_113] : memref<256x4xf32, #tpu.memory_space<vmem>>, vector<16x4xf32>
    tpu.vector_store %arg7[%c96_112, %c0_113], %76 {strides = array<i32>} : memref<256x4xf32, #tpu.memory_space<vmem>>, vector<16x4xf32>,
    %c0_114 = arith.constant 0 : index
    %c7_115 = arith.constant 7 : index
    %c1_116 = arith.constant 1 : index
    %c0_117 = arith.constant 0 : index
    %78 = vector.load %arg1[%c0_114, %c7_115, %c1_116, %c0_117] : memref<1x18x18x4xf32, #tpu.memory_space<vmem>>, vector<1x1x16x4xf32>
    %79 = vector.shape_cast %78 : vector<1x1x16x4xf32> to vector<16x4xf32>
    %c112_118 = arith.constant 112 : index
    %c0_119 = arith.constant 0 : index
    %80 = vector.load %arg7[%c112_118, %c0_119] : memref<256x4xf32, #tpu.memory_space<vmem>>, vector<16x4xf32>
    tpu.vector_store %arg7[%c112_118, %c0_119], %79 {strides = array<i32>} : memref<256x4xf32, #tpu.memory_space<vmem>>, vector<16x4xf32>,
    %c0_120 = arith.constant 0 : index
    %c8_121 = arith.constant 8 : index
    %c1_122 = arith.constant 1 : index
    %c0_123 = arith.constant 0 : index
    %81 = vector.load %arg1[%c0_120, %c8_121, %c1_122, %c0_123] : memref<1x18x18x4xf32, #tpu.memory_space<vmem>>, vector<1x1x16x4xf32>
    %82 = vector.shape_cast %81 : vector<1x1x16x4xf32> to vector<16x4xf32>
    %c128_124 = arith.constant 128 : index
    %c0_125 = arith.constant 0 : index
    %83 = vector.load %arg7[%c128_124, %c0_125] : memref<256x4xf32, #tpu.memory_space<vmem>>, vector<16x4xf32>
    tpu.vector_store %arg7[%c128_124, %c0_125], %82 {strides = array<i32>} : memref<256x4xf32, #tpu.memory_space<vmem>>, vector<16x4xf32>,
    %c0_126 = arith.constant 0 : index
    %c9_127 = arith.constant 9 : index
    %c1_128 = arith.constant 1 : index
    %c0_129 = arith.constant 0 : index
    %84 = vector.load %arg1[%c0_126, %c9_127, %c1_128, %c0_129] : memref<1x18x18x4xf32, #tpu.memory_space<vmem>>, vector<1x1x16x4xf32>
    %85 = vector.shape_cast %84 : vector<1x1x16x4xf32> to vector<16x4xf32>
    %c144_130 = arith.constant 144 : index
    %c0_131 = arith.constant 0 : index
    %86 = vector.load %arg7[%c144_130, %c0_131] : memref<256x4xf32, #tpu.memory_space<vmem>>, vector<16x4xf32>
    tpu.vector_store %arg7[%c144_130, %c0_131], %85 {strides = array<i32>} : memref<256x4xf32, #tpu.memory_space<vmem>>, vector<16x4xf32>,
    %c0_132 = arith.constant 0 : index
    %c10_133 = arith.constant 10 : index
    %c1_134 = arith.constant 1 : index
    %c0_135 = arith.constant 0 : index
    %87 = vector.load %arg1[%c0_132, %c10_133, %c1_134, %c0_135] : memref<1x18x18x4xf32, #tpu.memory_space<vmem>>, vector<1x1x16x4xf32>
    %88 = vector.shape_cast %87 : vector<1x1x16x4xf32> to vector<16x4xf32>
    %c160_136 = arith.constant 160 : index
    %c0_137 = arith.constant 0 : index
    %89 = vector.load %arg7[%c160_136, %c0_137] : memref<256x4xf32, #tpu.memory_space<vmem>>, vector<16x4xf32>
    tpu.vector_store %arg7[%c160_136, %c0_137], %88 {strides = array<i32>} : memref<256x4xf32, #tpu.memory_space<vmem>>, vector<16x4xf32>,
    %c0_138 = arith.constant 0 : index
    %c11_139 = arith.constant 11 : index
    %c1_140 = arith.constant 1 : index
    %c0_141 = arith.constant 0 : index
    %90 = vector.load %arg1[%c0_138, %c11_139, %c1_140, %c0_141] : memref<1x18x18x4xf32, #tpu.memory_space<vmem>>, vector<1x1x16x4xf32>
    %91 = vector.shape_cast %90 : vector<1x1x16x4xf32> to vector<16x4xf32>
    %c176_142 = arith.constant 176 : index
    %c0_143 = arith.constant 0 : index
    %92 = vector.load %arg7[%c176_142, %c0_143] : memref<256x4xf32, #tpu.memory_space<vmem>>, vector<16x4xf32>
    tpu.vector_store %arg7[%c176_142, %c0_143], %91 {strides = array<i32>} : memref<256x4xf32, #tpu.memory_space<vmem>>, vector<16x4xf32>,
    %c0_144 = arith.constant 0 : index
    %c12_145 = arith.constant 12 : index
    %c1_146 = arith.constant 1 : index
    %c0_147 = arith.constant 0 : index
    %93 = vector.load %arg1[%c0_144, %c12_145, %c1_146, %c0_147] : memref<1x18x18x4xf32, #tpu.memory_space<vmem>>, vector<1x1x16x4xf32>
    %94 = vector.shape_cast %93 : vector<1x1x16x4xf32> to vector<16x4xf32>
    %c192_148 = arith.constant 192 : index
    %c0_149 = arith.constant 0 : index
    %95 = vector.load %arg7[%c192_148, %c0_149] : memref<256x4xf32, #tpu.memory_space<vmem>>, vector<16x4xf32>
    tpu.vector_store %arg7[%c192_148, %c0_149], %94 {strides = array<i32>} : memref<256x4xf32, #tpu.memory_space<vmem>>, vector<16x4xf32>,
    %c0_150 = arith.constant 0 : index
    %c13_151 = arith.constant 13 : index
    %c1_152 = arith.constant 1 : index
    %c0_153 = arith.constant 0 : index
    %96 = vector.load %arg1[%c0_150, %c13_151, %c1_152, %c0_153] : memref<1x18x18x4xf32, #tpu.memory_space<vmem>>, vector<1x1x16x4xf32>
    %97 = vector.shape_cast %96 : vector<1x1x16x4xf32> to vector<16x4xf32>
    %c208_154 = arith.constant 208 : index
    %c0_155 = arith.constant 0 : index
    %98 = vector.load %arg7[%c208_154, %c0_155] : memref<256x4xf32, #tpu.memory_space<vmem>>, vector<16x4xf32>
    tpu.vector_store %arg7[%c208_154, %c0_155], %97 {strides = array<i32>} : memref<256x4xf32, #tpu.memory_space<vmem>>, vector<16x4xf32>,
    %c0_156 = arith.constant 0 : index
    %c14_157 = arith.constant 14 : index
    %c1_158 = arith.constant 1 : index
    %c0_159 = arith.constant 0 : index
    %99 = vector.load %arg1[%c0_156, %c14_157, %c1_158, %c0_159] : memref<1x18x18x4xf32, #tpu.memory_space<vmem>>, vector<1x1x16x4xf32>
    %100 = vector.shape_cast %99 : vector<1x1x16x4xf32> to vector<16x4xf32>
    %c224_160 = arith.constant 224 : index
    %c0_161 = arith.constant 0 : index
    %101 = vector.load %arg7[%c224_160, %c0_161] : memref<256x4xf32, #tpu.memory_space<vmem>>, vector<16x4xf32>
    tpu.vector_store %arg7[%c224_160, %c0_161], %100 {strides = array<i32>} : memref<256x4xf32, #tpu.memory_space<vmem>>, vector<16x4xf32>,
    %c0_162 = arith.constant 0 : index
    %c15_163 = arith.constant 15 : index
    %c1_164 = arith.constant 1 : index
    %c0_165 = arith.constant 0 : index
    %102 = vector.load %arg1[%c0_162, %c15_163, %c1_164, %c0_165] : memref<1x18x18x4xf32, #tpu.memory_space<vmem>>, vector<1x1x16x4xf32>
    %103 = vector.shape_cast %102 : vector<1x1x16x4xf32> to vector<16x4xf32>
    %c240_166 = arith.constant 240 : index
    %c0_167 = arith.constant 0 : index
    %104 = vector.load %arg7[%c240_166, %c0_167] : memref<256x4xf32, #tpu.memory_space<vmem>>, vector<16x4xf32>
    tpu.vector_store %arg7[%c240_166, %c0_167], %103 {strides = array<i32>} : memref<256x4xf32, #tpu.memory_space<vmem>>, vector<16x4xf32>,
    %c0_168 = arith.constant 0 : index
    %c0_169 = arith.constant 0 : index
    %105 = vector.load %arg7[%c0_168, %c0_169] : memref<256x4xf32, #tpu.memory_space<vmem>>, vector<256x4xf32>
    %c1_170 = arith.constant 1 : index
    %c0_171 = arith.constant 0 : index
    %c0_172 = arith.constant 0 : index
    %106 = vector.load %arg2[%c1_170, %c0_171, %c0_172] : memref<9x4x32xf32, #tpu.memory_space<vmem>>, vector<1x4x32xf32>
    %107 = vector.shape_cast %106 : vector<1x4x32xf32> to vector<4x32xf32>
    %cst_173 = arith.constant dense<0.000000e+00> : vector<256x32xf32>
    %108 = tpu.matmul %105, %107, %cst_173 {dimension_numbers = #tpu.dot_dimension_numbers<[1], [0], [0], [1], [0, 0, 1, 1], [], []>} : vector<256x4xf32>, vector<4x32xf32>, vector<256x32xf32> -> vector<256x32xf32>
    %109 = arith.addf %56, %108 : vector<256x32xf32>
    %c0_174 = arith.constant 0 : index
    %c0_175 = arith.constant 0 : index
    %c2_176 = arith.constant 2 : index
    %c0_177 = arith.constant 0 : index
    %110 = vector.load %arg1[%c0_174, %c0_175, %c2_176, %c0_177] : memref<1x18x18x4xf32, #tpu.memory_space<vmem>>, vector<1x1x16x4xf32>
    %111 = vector.shape_cast %110 : vector<1x1x16x4xf32> to vector<16x4xf32>
    %c0_178 = arith.constant 0 : index
    %c0_179 = arith.constant 0 : index
    %112 = vector.load %arg7[%c0_178, %c0_179] : memref<256x4xf32, #tpu.memory_space<vmem>>, vector<16x4xf32>
    tpu.vector_store %arg7[%c0_178, %c0_179], %111 {strides = array<i32>} : memref<256x4xf32, #tpu.memory_space<vmem>>, vector<16x4xf32>,
    %c0_180 = arith.constant 0 : index
    %c1_181 = arith.constant 1 : index
    %c2_182 = arith.constant 2 : index
    %c0_183 = arith.constant 0 : index
    %113 = vector.load %arg1[%c0_180, %c1_181, %c2_182, %c0_183] : memref<1x18x18x4xf32, #tpu.memory_space<vmem>>, vector<1x1x16x4xf32>
    %114 = vector.shape_cast %113 : vector<1x1x16x4xf32> to vector<16x4xf32>
    %c16_184 = arith.constant 16 : index
    %c0_185 = arith.constant 0 : index
    %115 = vector.load %arg7[%c16_184, %c0_185] : memref<256x4xf32, #tpu.memory_space<vmem>>, vector<16x4xf32>
    tpu.vector_store %arg7[%c16_184, %c0_185], %114 {strides = array<i32>} : memref<256x4xf32, #tpu.memory_space<vmem>>, vector<16x4xf32>,
    %c0_186 = arith.constant 0 : index
    %c2_187 = arith.constant 2 : index
    %c2_188 = arith.constant 2 : index
    %c0_189 = arith.constant 0 : index
    %116 = vector.load %arg1[%c0_186, %c2_187, %c2_188, %c0_189] : memref<1x18x18x4xf32, #tpu.memory_space<vmem>>, vector<1x1x16x4xf32>
    %117 = vector.shape_cast %116 : vector<1x1x16x4xf32> to vector<16x4xf32>
    %c32_190 = arith.constant 32 : index
    %c0_191 = arith.constant 0 : index
    %118 = vector.load %arg7[%c32_190, %c0_191] : memref<256x4xf32, #tpu.memory_space<vmem>>, vector<16x4xf32>
    tpu.vector_store %arg7[%c32_190, %c0_191], %117 {strides = array<i32>} : memref<256x4xf32, #tpu.memory_space<vmem>>, vector<16x4xf32>,
    %c0_192 = arith.constant 0 : index
    %c3_193 = arith.constant 3 : index
    %c2_194 = arith.constant 2 : index
    %c0_195 = arith.constant 0 : index
    %119 = vector.load %arg1[%c0_192, %c3_193, %c2_194, %c0_195] : memref<1x18x18x4xf32, #tpu.memory_space<vmem>>, vector<1x1x16x4xf32>
    %120 = vector.shape_cast %119 : vector<1x1x16x4xf32> to vector<16x4xf32>
    %c48_196 = arith.constant 48 : index
    %c0_197 = arith.constant 0 : index
    %121 = vector.load %arg7[%c48_196, %c0_197] : memref<256x4xf32, #tpu.memory_space<vmem>>, vector<16x4xf32>
    tpu.vector_store %arg7[%c48_196, %c0_197], %120 {strides = array<i32>} : memref<256x4xf32, #tpu.memory_space<vmem>>, vector<16x4xf32>,
    %c0_198 = arith.constant 0 : index
    %c4_199 = arith.constant 4 : index
    %c2_200 = arith.constant 2 : index
    %c0_201 = arith.constant 0 : index
    %122 = vector.load %arg1[%c0_198, %c4_199, %c2_200, %c0_201] : memref<1x18x18x4xf32, #tpu.memory_space<vmem>>, vector<1x1x16x4xf32>
    %123 = vector.shape_cast %122 : vector<1x1x16x4xf32> to vector<16x4xf32>
    %c64_202 = arith.constant 64 : index
    %c0_203 = arith.constant 0 : index
    %124 = vector.load %arg7[%c64_202, %c0_203] : memref<256x4xf32, #tpu.memory_space<vmem>>, vector<16x4xf32>
    tpu.vector_store %arg7[%c64_202, %c0_203], %123 {strides = array<i32>} : memref<256x4xf32, #tpu.memory_space<vmem>>, vector<16x4xf32>,
    %c0_204 = arith.constant 0 : index
    %c5_205 = arith.constant 5 : index
    %c2_206 = arith.constant 2 : index
    %c0_207 = arith.constant 0 : index
    %125 = vector.load %arg1[%c0_204, %c5_205, %c2_206, %c0_207] : memref<1x18x18x4xf32, #tpu.memory_space<vmem>>, vector<1x1x16x4xf32>
    %126 = vector.shape_cast %125 : vector<1x1x16x4xf32> to vector<16x4xf32>
    %c80_208 = arith.constant 80 : index
    %c0_209 = arith.constant 0 : index
    %127 = vector.load %arg7[%c80_208, %c0_209] : memref<256x4xf32, #tpu.memory_space<vmem>>, vector<16x4xf32>
    tpu.vector_store %arg7[%c80_208, %c0_209], %126 {strides = array<i32>} : memref<256x4xf32, #tpu.memory_space<vmem>>, vector<16x4xf32>,
    %c0_210 = arith.constant 0 : index
    %c6_211 = arith.constant 6 : index
    %c2_212 = arith.constant 2 : index
    %c0_213 = arith.constant 0 : index
    %128 = vector.load %arg1[%c0_210, %c6_211, %c2_212, %c0_213] : memref<1x18x18x4xf32, #tpu.memory_space<vmem>>, vector<1x1x16x4xf32>
    %129 = vector.shape_cast %128 : vector<1x1x16x4xf32> to vector<16x4xf32>
    %c96_214 = arith.constant 96 : index
    %c0_215 = arith.constant 0 : index
    %130 = vector.load %arg7[%c96_214, %c0_215] : memref<256x4xf32, #tpu.memory_space<vmem>>, vector<16x4xf32>
    tpu.vector_store %arg7[%c96_214, %c0_215], %129 {strides = array<i32>} : memref<256x4xf32, #tpu.memory_space<vmem>>, vector<16x4xf32>,
    %c0_216 = arith.constant 0 : index
    %c7_217 = arith.constant 7 : index
    %c2_218 = arith.constant 2 : index
    %c0_219 = arith.constant 0 : index
    %131 = vector.load %arg1[%c0_216, %c7_217, %c2_218, %c0_219] : memref<1x18x18x4xf32, #tpu.memory_space<vmem>>, vector<1x1x16x4xf32>
    %132 = vector.shape_cast %131 : vector<1x1x16x4xf32> to vector<16x4xf32>
    %c112_220 = arith.constant 112 : index
    %c0_221 = arith.constant 0 : index
    %133 = vector.load %arg7[%c112_220, %c0_221] : memref<256x4xf32, #tpu.memory_space<vmem>>, vector<16x4xf32>
    tpu.vector_store %arg7[%c112_220, %c0_221], %132 {strides = array<i32>} : memref<256x4xf32, #tpu.memory_space<vmem>>, vector<16x4xf32>,
    %c0_222 = arith.constant 0 : index
    %c8_223 = arith.constant 8 : index
    %c2_224 = arith.constant 2 : index
    %c0_225 = arith.constant 0 : index
    %134 = vector.load %arg1[%c0_222, %c8_223, %c2_224, %c0_225] : memref<1x18x18x4xf32, #tpu.memory_space<vmem>>, vector<1x1x16x4xf32>
    %135 = vector.shape_cast %134 : vector<1x1x16x4xf32> to vector<16x4xf32>
    %c128_226 = arith.constant 128 : index
    %c0_227 = arith.constant 0 : index
    %136 = vector.load %arg7[%c128_226, %c0_227] : memref<256x4xf32, #tpu.memory_space<vmem>>, vector<16x4xf32>
    tpu.vector_store %arg7[%c128_226, %c0_227], %135 {strides = array<i32>} : memref<256x4xf32, #tpu.memory_space<vmem>>, vector<16x4xf32>,
    %c0_228 = arith.constant 0 : index
    %c9_229 = arith.constant 9 : index
    %c2_230 = arith.constant 2 : index
    %c0_231 = arith.constant 0 : index
    %137 = vector.load %arg1[%c0_228, %c9_229, %c2_230, %c0_231] : memref<1x18x18x4xf32, #tpu.memory_space<vmem>>, vector<1x1x16x4xf32>
    %138 = vector.shape_cast %137 : vector<1x1x16x4xf32> to vector<16x4xf32>
    %c144_232 = arith.constant 144 : index
    %c0_233 = arith.constant 0 : index
    %139 = vector.load %arg7[%c144_232, %c0_233] : memref<256x4xf32, #tpu.memory_space<vmem>>, vector<16x4xf32>
    tpu.vector_store %arg7[%c144_232, %c0_233], %138 {strides = array<i32>} : memref<256x4xf32, #tpu.memory_space<vmem>>, vector<16x4xf32>,
    %c0_234 = arith.constant 0 : index
    %c10_235 = arith.constant 10 : index
    %c2_236 = arith.constant 2 : index
    %c0_237 = arith.constant 0 : index
    %140 = vector.load %arg1[%c0_234, %c10_235, %c2_236, %c0_237] : memref<1x18x18x4xf32, #tpu.memory_space<vmem>>, vector<1x1x16x4xf32>
    %141 = vector.shape_cast %140 : vector<1x1x16x4xf32> to vector<16x4xf32>
    %c160_238 = arith.constant 160 : index
    %c0_239 = arith.constant 0 : index
    %142 = vector.load %arg7[%c160_238, %c0_239] : memref<256x4xf32, #tpu.memory_space<vmem>>, vector<16x4xf32>
    tpu.vector_store %arg7[%c160_238, %c0_239], %141 {strides = array<i32>} : memref<256x4xf32, #tpu.memory_space<vmem>>, vector<16x4xf32>,
    %c0_240 = arith.constant 0 : index
    %c11_241 = arith.constant 11 : index
    %c2_242 = arith.constant 2 : index
    %c0_243 = arith.constant 0 : index
    %143 = vector.load %arg1[%c0_240, %c11_241, %c2_242, %c0_243] : memref<1x18x18x4xf32, #tpu.memory_space<vmem>>, vector<1x1x16x4xf32>
    %144 = vector.shape_cast %143 : vector<1x1x16x4xf32> to vector<16x4xf32>
    %c176_244 = arith.constant 176 : index
    %c0_245 = arith.constant 0 : index
    %145 = vector.load %arg7[%c176_244, %c0_245] : memref<256x4xf32, #tpu.memory_space<vmem>>, vector<16x4xf32>
    tpu.vector_store %arg7[%c176_244, %c0_245], %144 {strides = array<i32>} : memref<256x4xf32, #tpu.memory_space<vmem>>, vector<16x4xf32>,
    %c0_246 = arith.constant 0 : index
    %c12_247 = arith.constant 12 : index
    %c2_248 = arith.constant 2 : index
    %c0_249 = arith.constant 0 : index
    %146 = vector.load %arg1[%c0_246, %c12_247, %c2_248, %c0_249] : memref<1x18x18x4xf32, #tpu.memory_space<vmem>>, vector<1x1x16x4xf32>
    %147 = vector.shape_cast %146 : vector<1x1x16x4xf32> to vector<16x4xf32>
    %c192_250 = arith.constant 192 : index
    %c0_251 = arith.constant 0 : index
    %148 = vector.load %arg7[%c192_250, %c0_251] : memref<256x4xf32, #tpu.memory_space<vmem>>, vector<16x4xf32>
    tpu.vector_store %arg7[%c192_250, %c0_251], %147 {strides = array<i32>} : memref<256x4xf32, #tpu.memory_space<vmem>>, vector<16x4xf32>,
    %c0_252 = arith.constant 0 : index
    %c13_253 = arith.constant 13 : index
    %c2_254 = arith.constant 2 : index
    %c0_255 = arith.constant 0 : index
    %149 = vector.load %arg1[%c0_252, %c13_253, %c2_254, %c0_255] : memref<1x18x18x4xf32, #tpu.memory_space<vmem>>, vector<1x1x16x4xf32>
    %150 = vector.shape_cast %149 : vector<1x1x16x4xf32> to vector<16x4xf32>
    %c208_256 = arith.constant 208 : index
    %c0_257 = arith.constant 0 : index
    %151 = vector.load %arg7[%c208_256, %c0_257] : memref<256x4xf32, #tpu.memory_space<vmem>>, vector<16x4xf32>
    tpu.vector_store %arg7[%c208_256, %c0_257], %150 {strides = array<i32>} : memref<256x4xf32, #tpu.memory_space<vmem>>, vector<16x4xf32>,
    %c0_258 = arith.constant 0 : index
    %c14_259 = arith.constant 14 : index
    %c2_260 = arith.constant 2 : index
    %c0_261 = arith.constant 0 : index
    %152 = vector.load %arg1[%c0_258, %c14_259, %c2_260, %c0_261] : memref<1x18x18x4xf32, #tpu.memory_space<vmem>>, vector<1x1x16x4xf32>
    %153 = vector.shape_cast %152 : vector<1x1x16x4xf32> to vector<16x4xf32>
    %c224_262 = arith.constant 224 : index
    %c0_263 = arith.constant 0 : index
    %154 = vector.load %arg7[%c224_262, %c0_263] : memref<256x4xf32, #tpu.memory_space<vmem>>, vector<16x4xf32>
    tpu.vector_store %arg7[%c224_262, %c0_263], %153 {strides = array<i32>} : memref<256x4xf32, #tpu.memory_space<vmem>>, vector<16x4xf32>,
    %c0_264 = arith.constant 0 : index
    %c15_265 = arith.constant 15 : index
    %c2_266 = arith.constant 2 : index
    %c0_267 = arith.constant 0 : index
    %155 = vector.load %arg1[%c0_264, %c15_265, %c2_266, %c0_267] : memref<1x18x18x4xf32, #tpu.memory_space<vmem>>, vector<1x1x16x4xf32>
    %156 = vector.shape_cast %155 : vector<1x1x16x4xf32> to vector<16x4xf32>
    %c240_268 = arith.constant 240 : index
    %c0_269 = arith.constant 0 : index
    %157 = vector.load %arg7[%c240_268, %c0_269] : memref<256x4xf32, #tpu.memory_space<vmem>>, vector<16x4xf32>
    tpu.vector_store %arg7[%c240_268, %c0_269], %156 {strides = array<i32>} : memref<256x4xf32, #tpu.memory_space<vmem>>, vector<16x4xf32>,
    %c0_270 = arith.constant 0 : index
    %c0_271 = arith.constant 0 : index
    %158 = vector.load %arg7[%c0_270, %c0_271] : memref<256x4xf32, #tpu.memory_space<vmem>>, vector<256x4xf32>
    %c2_272 = arith.constant 2 : index
    %c0_273 = arith.constant 0 : index
    %c0_274 = arith.constant 0 : index
    %159 = vector.load %arg2[%c2_272, %c0_273, %c0_274] : memref<9x4x32xf32, #tpu.memory_space<vmem>>, vector<1x4x32xf32>
    %160 = vector.shape_cast %159 : vector<1x4x32xf32> to vector<4x32xf32>
    %cst_275 = arith.constant dense<0.000000e+00> : vector<256x32xf32>
    %161 = tpu.matmul %158, %160, %cst_275 {dimension_numbers = #tpu.dot_dimension_numbers<[1], [0], [0], [1], [0, 0, 1, 1], [], []>} : vector<256x4xf32>, vector<4x32xf32>, vector<256x32xf32> -> vector<256x32xf32>
    %162 = arith.addf %109, %161 : vector<256x32xf32>
    %c0_276 = arith.constant 0 : index
    %c1_277 = arith.constant 1 : index
    %c0_278 = arith.constant 0 : index
    %c0_279 = arith.constant 0 : index
    %163 = vector.load %arg1[%c0_276, %c1_277, %c0_278, %c0_279] : memref<1x18x18x4xf32, #tpu.memory_space<vmem>>, vector<1x1x16x4xf32>
    %164 = vector.shape_cast %163 : vector<1x1x16x4xf32> to vector<16x4xf32>
    %c0_280 = arith.constant 0 : index
    %c0_281 = arith.constant 0 : index
    %165 = vector.load %arg7[%c0_280, %c0_281] : memref<256x4xf32, #tpu.memory_space<vmem>>, vector<16x4xf32>
    tpu.vector_store %arg7[%c0_280, %c0_281], %164 {strides = array<i32>} : memref<256x4xf32, #tpu.memory_space<vmem>>, vector<16x4xf32>,
    %c0_282 = arith.constant 0 : index
    %c2_283 = arith.constant 2 : index
    %c0_284 = arith.constant 0 : index
    %c0_285 = arith.constant 0 : index
    %166 = vector.load %arg1[%c0_282, %c2_283, %c0_284, %c0_285] : memref<1x18x18x4xf32, #tpu.memory_space<vmem>>, vector<1x1x16x4xf32>
    %167 = vector.shape_cast %166 : vector<1x1x16x4xf32> to vector<16x4xf32>
    %c16_286 = arith.constant 16 : index
    %c0_287 = arith.constant 0 : index
    %168 = vector.load %arg7[%c16_286, %c0_287] : memref<256x4xf32, #tpu.memory_space<vmem>>, vector<16x4xf32>
    tpu.vector_store %arg7[%c16_286, %c0_287], %167 {strides = array<i32>} : memref<256x4xf32, #tpu.memory_space<vmem>>, vector<16x4xf32>,
    %c0_288 = arith.constant 0 : index
    %c3_289 = arith.constant 3 : index
    %c0_290 = arith.constant 0 : index
    %c0_291 = arith.constant 0 : index
    %169 = vector.load %arg1[%c0_288, %c3_289, %c0_290, %c0_291] : memref<1x18x18x4xf32, #tpu.memory_space<vmem>>, vector<1x1x16x4xf32>
    %170 = vector.shape_cast %169 : vector<1x1x16x4xf32> to vector<16x4xf32>
    %c32_292 = arith.constant 32 : index
    %c0_293 = arith.constant 0 : index
    %171 = vector.load %arg7[%c32_292, %c0_293] : memref<256x4xf32, #tpu.memory_space<vmem>>, vector<16x4xf32>
    tpu.vector_store %arg7[%c32_292, %c0_293], %170 {strides = array<i32>} : memref<256x4xf32, #tpu.memory_space<vmem>>, vector<16x4xf32>,
    %c0_294 = arith.constant 0 : index
    %c4_295 = arith.constant 4 : index
    %c0_296 = arith.constant 0 : index
    %c0_297 = arith.constant 0 : index
    %172 = vector.load %arg1[%c0_294, %c4_295, %c0_296, %c0_297] : memref<1x18x18x4xf32, #tpu.memory_space<vmem>>, vector<1x1x16x4xf32>
    %173 = vector.shape_cast %172 : vector<1x1x16x4xf32> to vector<16x4xf32>
    %c48_298 = arith.constant 48 : index
    %c0_299 = arith.constant 0 : index
    %174 = vector.load %arg7[%c48_298, %c0_299] : memref<256x4xf32, #tpu.memory_space<vmem>>, vector<16x4xf32>
    tpu.vector_store %arg7[%c48_298, %c0_299], %173 {strides = array<i32>} : memref<256x4xf32, #tpu.memory_space<vmem>>, vector<16x4xf32>,
    %c0_300 = arith.constant 0 : index
    %c5_301 = arith.constant 5 : index
    %c0_302 = arith.constant 0 : index
    %c0_303 = arith.constant 0 : index
    %175 = vector.load %arg1[%c0_300, %c5_301, %c0_302, %c0_303] : memref<1x18x18x4xf32, #tpu.memory_space<vmem>>, vector<1x1x16x4xf32>
    %176 = vector.shape_cast %175 : vector<1x1x16x4xf32> to vector<16x4xf32>
    %c64_304 = arith.constant 64 : index
    %c0_305 = arith.constant 0 : index
    %177 = vector.load %arg7[%c64_304, %c0_305] : memref<256x4xf32, #tpu.memory_space<vmem>>, vector<16x4xf32>
    tpu.vector_store %arg7[%c64_304, %c0_305], %176 {strides = array<i32>} : memref<256x4xf32, #tpu.memory_space<vmem>>, vector<16x4xf32>,
    %c0_306 = arith.constant 0 : index
    %c6_307 = arith.constant 6 : index
    %c0_308 = arith.constant 0 : index
    %c0_309 = arith.constant 0 : index
    %178 = vector.load %arg1[%c0_306, %c6_307, %c0_308, %c0_309] : memref<1x18x18x4xf32, #tpu.memory_space<vmem>>, vector<1x1x16x4xf32>
    %179 = vector.shape_cast %178 : vector<1x1x16x4xf32> to vector<16x4xf32>
    %c80_310 = arith.constant 80 : index
    %c0_311 = arith.constant 0 : index
    %180 = vector.load %arg7[%c80_310, %c0_311] : memref<256x4xf32, #tpu.memory_space<vmem>>, vector<16x4xf32>
    tpu.vector_store %arg7[%c80_310, %c0_311], %179 {strides = array<i32>} : memref<256x4xf32, #tpu.memory_space<vmem>>, vector<16x4xf32>,
    %c0_312 = arith.constant 0 : index
    %c7_313 = arith.constant 7 : index
    %c0_314 = arith.constant 0 : index
    %c0_315 = arith.constant 0 : index
    %181 = vector.load %arg1[%c0_312, %c7_313, %c0_314, %c0_315] : memref<1x18x18x4xf32, #tpu.memory_space<vmem>>, vector<1x1x16x4xf32>
    %182 = vector.shape_cast %181 : vector<1x1x16x4xf32> to vector<16x4xf32>
    %c96_316 = arith.constant 96 : index
    %c0_317 = arith.constant 0 : index
    %183 = vector.load %arg7[%c96_316, %c0_317] : memref<256x4xf32, #tpu.memory_space<vmem>>, vector<16x4xf32>
    tpu.vector_store %arg7[%c96_316, %c0_317], %182 {strides = array<i32>} : memref<256x4xf32, #tpu.memory_space<vmem>>, vector<16x4xf32>,
    %c0_318 = arith.constant 0 : index
    %c8_319 = arith.constant 8 : index
    %c0_320 = arith.constant 0 : index
    %c0_321 = arith.constant 0 : index
    %184 = vector.load %arg1[%c0_318, %c8_319, %c0_320, %c0_321] : memref<1x18x18x4xf32, #tpu.memory_space<vmem>>, vector<1x1x16x4xf32>
    %185 = vector.shape_cast %184 : vector<1x1x16x4xf32> to vector<16x4xf32>
    %c112_322 = arith.constant 112 : index
    %c0_323 = arith.constant 0 : index
    %186 = vector.load %arg7[%c112_322, %c0_323] : memref<256x4xf32, #tpu.memory_space<vmem>>, vector<16x4xf32>
    tpu.vector_store %arg7[%c112_322, %c0_323], %185 {strides = array<i32>} : memref<256x4xf32, #tpu.memory_space<vmem>>, vector<16x4xf32>,
    %c0_324 = arith.constant 0 : index
    %c9_325 = arith.constant 9 : index
    %c0_326 = arith.constant 0 : index
    %c0_327 = arith.constant 0 : index
    %187 = vector.load %arg1[%c0_324, %c9_325, %c0_326, %c0_327] : memref<1x18x18x4xf32, #tpu.memory_space<vmem>>, vector<1x1x16x4xf32>
    %188 = vector.shape_cast %187 : vector<1x1x16x4xf32> to vector<16x4xf32>
    %c128_328 = arith.constant 128 : index
    %c0_329 = arith.constant 0 : index
    %189 = vector.load %arg7[%c128_328, %c0_329] : memref<256x4xf32, #tpu.memory_space<vmem>>, vector<16x4xf32>
    tpu.vector_store %arg7[%c128_328, %c0_329], %188 {strides = array<i32>} : memref<256x4xf32, #tpu.memory_space<vmem>>, vector<16x4xf32>,
    %c0_330 = arith.constant 0 : index
    %c10_331 = arith.constant 10 : index
    %c0_332 = arith.constant 0 : index
    %c0_333 = arith.constant 0 : index
    %190 = vector.load %arg1[%c0_330, %c10_331, %c0_332, %c0_333] : memref<1x18x18x4xf32, #tpu.memory_space<vmem>>, vector<1x1x16x4xf32>
    %191 = vector.shape_cast %190 : vector<1x1x16x4xf32> to vector<16x4xf32>
    %c144_334 = arith.constant 144 : index
    %c0_335 = arith.constant 0 : index
    %192 = vector.load %arg7[%c144_334, %c0_335] : memref<256x4xf32, #tpu.memory_space<vmem>>, vector<16x4xf32>
    tpu.vector_store %arg7[%c144_334, %c0_335], %191 {strides = array<i32>} : memref<256x4xf32, #tpu.memory_space<vmem>>, vector<16x4xf32>,
    %c0_336 = arith.constant 0 : index
    %c11_337 = arith.constant 11 : index
    %c0_338 = arith.constant 0 : index
    %c0_339 = arith.constant 0 : index
    %193 = vector.load %arg1[%c0_336, %c11_337, %c0_338, %c0_339] : memref<1x18x18x4xf32, #tpu.memory_space<vmem>>, vector<1x1x16x4xf32>
    %194 = vector.shape_cast %193 : vector<1x1x16x4xf32> to vector<16x4xf32>
    %c160_340 = arith.constant 160 : index
    %c0_341 = arith.constant 0 : index
    %195 = vector.load %arg7[%c160_340, %c0_341] : memref<256x4xf32, #tpu.memory_space<vmem>>, vector<16x4xf32>
    tpu.vector_store %arg7[%c160_340, %c0_341], %194 {strides = array<i32>} : memref<256x4xf32, #tpu.memory_space<vmem>>, vector<16x4xf32>,
    %c0_342 = arith.constant 0 : index
    %c12_343 = arith.constant 12 : index
    %c0_344 = arith.constant 0 : index
    %c0_345 = arith.constant 0 : index
    %196 = vector.load %arg1[%c0_342, %c12_343, %c0_344, %c0_345] : memref<1x18x18x4xf32, #tpu.memory_space<vmem>>, vector<1x1x16x4xf32>
    %197 = vector.shape_cast %196 : vector<1x1x16x4xf32> to vector<16x4xf32>
    %c176_346 = arith.constant 176 : index
    %c0_347 = arith.constant 0 : index
    %198 = vector.load %arg7[%c176_346, %c0_347] : memref<256x4xf32, #tpu.memory_space<vmem>>, vector<16x4xf32>
    tpu.vector_store %arg7[%c176_346, %c0_347], %197 {strides = array<i32>} : memref<256x4xf32, #tpu.memory_space<vmem>>, vector<16x4xf32>,
    %c0_348 = arith.constant 0 : index
    %c13_349 = arith.constant 13 : index
    %c0_350 = arith.constant 0 : index
    %c0_351 = arith.constant 0 : index
    %199 = vector.load %arg1[%c0_348, %c13_349, %c0_350, %c0_351] : memref<1x18x18x4xf32, #tpu.memory_space<vmem>>, vector<1x1x16x4xf32>
    %200 = vector.shape_cast %199 : vector<1x1x16x4xf32> to vector<16x4xf32>
    %c192_352 = arith.constant 192 : index
    %c0_353 = arith.constant 0 : index
    %201 = vector.load %arg7[%c192_352, %c0_353] : memref<256x4xf32, #tpu.memory_space<vmem>>, vector<16x4xf32>
    tpu.vector_store %arg7[%c192_352, %c0_353], %200 {strides = array<i32>} : memref<256x4xf32, #tpu.memory_space<vmem>>, vector<16x4xf32>,
    %c0_354 = arith.constant 0 : index
    %c14_355 = arith.constant 14 : index
    %c0_356 = arith.constant 0 : index
    %c0_357 = arith.constant 0 : index
    %202 = vector.load %arg1[%c0_354, %c14_355, %c0_356, %c0_357] : memref<1x18x18x4xf32, #tpu.memory_space<vmem>>, vector<1x1x16x4xf32>
    %203 = vector.shape_cast %202 : vector<1x1x16x4xf32> to vector<16x4xf32>
    %c208_358 = arith.constant 208 : index
    %c0_359 = arith.constant 0 : index
    %204 = vector.load %arg7[%c208_358, %c0_359] : memref<256x4xf32, #tpu.memory_space<vmem>>, vector<16x4xf32>
    tpu.vector_store %arg7[%c208_358, %c0_359], %203 {strides = array<i32>} : memref<256x4xf32, #tpu.memory_space<vmem>>, vector<16x4xf32>,
    %c0_360 = arith.constant 0 : index
    %c15_361 = arith.constant 15 : index
    %c0_362 = arith.constant 0 : index
    %c0_363 = arith.constant 0 : index
    %205 = vector.load %arg1[%c0_360, %c15_361, %c0_362, %c0_363] : memref<1x18x18x4xf32, #tpu.memory_space<vmem>>, vector<1x1x16x4xf32>
    %206 = vector.shape_cast %205 : vector<1x1x16x4xf32> to vector<16x4xf32>
    %c224_364 = arith.constant 224 : index
    %c0_365 = arith.constant 0 : index
    %207 = vector.load %arg7[%c224_364, %c0_365] : memref<256x4xf32, #tpu.memory_space<vmem>>, vector<16x4xf32>
    tpu.vector_store %arg7[%c224_364, %c0_365], %206 {strides = array<i32>} : memref<256x4xf32, #tpu.memory_space<vmem>>, vector<16x4xf32>,
    %c0_366 = arith.constant 0 : index
    %c16_367 = arith.constant 16 : index
    %c0_368 = arith.constant 0 : index
    %c0_369 = arith.constant 0 : index
    %208 = vector.load %arg1[%c0_366, %c16_367, %c0_368, %c0_369] : memref<1x18x18x4xf32, #tpu.memory_space<vmem>>, vector<1x1x16x4xf32>
    %209 = vector.shape_cast %208 : vector<1x1x16x4xf32> to vector<16x4xf32>
    %c240_370 = arith.constant 240 : index
    %c0_371 = arith.constant 0 : index
    %210 = vector.load %arg7[%c240_370, %c0_371] : memref<256x4xf32, #tpu.memory_space<vmem>>, vector<16x4xf32>
    tpu.vector_store %arg7[%c240_370, %c0_371], %209 {strides = array<i32>} : memref<256x4xf32, #tpu.memory_space<vmem>>, vector<16x4xf32>,
    %c0_372 = arith.constant 0 : index
    %c0_373 = arith.constant 0 : index
    %211 = vector.load %arg7[%c0_372, %c0_373] : memref<256x4xf32, #tpu.memory_space<vmem>>, vector<256x4xf32>
    %c3_374 = arith.constant 3 : index
    %c0_375 = arith.constant 0 : index
    %c0_376 = arith.constant 0 : index
    %212 = vector.load %arg2[%c3_374, %c0_375, %c0_376] : memref<9x4x32xf32, #tpu.memory_space<vmem>>, vector<1x4x32xf32>
    %213 = vector.shape_cast %212 : vector<1x4x32xf32> to vector<4x32xf32>
    %cst_377 = arith.constant dense<0.000000e+00> : vector<256x32xf32>
    %214 = tpu.matmul %211, %213, %cst_377 {dimension_numbers = #tpu.dot_dimension_numbers<[1], [0], [0], [1], [0, 0, 1, 1], [], []>} : vector<256x4xf32>, vector<4x32xf32>, vector<256x32xf32> -> vector<256x32xf32>
    %215 = arith.addf %162, %214 : vector<256x32xf32>
    %c0_378 = arith.constant 0 : index
    %c1_379 = arith.constant 1 : index
    %c1_380 = arith.constant 1 : index
    %c0_381 = arith.constant 0 : index
    %216 = vector.load %arg1[%c0_378, %c1_379, %c1_380, %c0_381] : memref<1x18x18x4xf32, #tpu.memory_space<vmem>>, vector<1x1x16x4xf32>
    %217 = vector.shape_cast %216 : vector<1x1x16x4xf32> to vector<16x4xf32>
    %c0_382 = arith.constant 0 : index
    %c0_383 = arith.constant 0 : index
    %218 = vector.load %arg7[%c0_382, %c0_383] : memref<256x4xf32, #tpu.memory_space<vmem>>, vector<16x4xf32>
    tpu.vector_store %arg7[%c0_382, %c0_383], %217 {strides = array<i32>} : memref<256x4xf32, #tpu.memory_space<vmem>>, vector<16x4xf32>,
    %c0_384 = arith.constant 0 : index
    %c2_385 = arith.constant 2 : index
    %c1_386 = arith.constant 1 : index
    %c0_387 = arith.constant 0 : index
    %219 = vector.load %arg1[%c0_384, %c2_385, %c1_386, %c0_387] : memref<1x18x18x4xf32, #tpu.memory_space<vmem>>, vector<1x1x16x4xf32>
    %220 = vector.shape_cast %219 : vector<1x1x16x4xf32> to vector<16x4xf32>
    %c16_388 = arith.constant 16 : index
    %c0_389 = arith.constant 0 : index
    %221 = vector.load %arg7[%c16_388, %c0_389] : memref<256x4xf32, #tpu.memory_space<vmem>>, vector<16x4xf32>
    tpu.vector_store %arg7[%c16_388, %c0_389], %220 {strides = array<i32>} : memref<256x4xf32, #tpu.memory_space<vmem>>, vector<16x4xf32>,
    %c0_390 = arith.constant 0 : index
    %c3_391 = arith.constant 3 : index
    %c1_392 = arith.constant 1 : index
    %c0_393 = arith.constant 0 : index
    %222 = vector.load %arg1[%c0_390, %c3_391, %c1_392, %c0_393] : memref<1x18x18x4xf32, #tpu.memory_space<vmem>>, vector<1x1x16x4xf32>
    %223 = vector.shape_cast %222 : vector<1x1x16x4xf32> to vector<16x4xf32>
    %c32_394 = arith.constant 32 : index
    %c0_395 = arith.constant 0 : index
    %224 = vector.load %arg7[%c32_394, %c0_395] : memref<256x4xf32, #tpu.memory_space<vmem>>, vector<16x4xf32>
    tpu.vector_store %arg7[%c32_394, %c0_395], %223 {strides = array<i32>} : memref<256x4xf32, #tpu.memory_space<vmem>>, vector<16x4xf32>,
    %c0_396 = arith.constant 0 : index
    %c4_397 = arith.constant 4 : index
    %c1_398 = arith.constant 1 : index
    %c0_399 = arith.constant 0 : index
    %225 = vector.load %arg1[%c0_396, %c4_397, %c1_398, %c0_399] : memref<1x18x18x4xf32, #tpu.memory_space<vmem>>, vector<1x1x16x4xf32>
    %226 = vector.shape_cast %225 : vector<1x1x16x4xf32> to vector<16x4xf32>
    %c48_400 = arith.constant 48 : index
    %c0_401 = arith.constant 0 : index
    %227 = vector.load %arg7[%c48_400, %c0_401] : memref<256x4xf32, #tpu.memory_space<vmem>>, vector<16x4xf32>
    tpu.vector_store %arg7[%c48_400, %c0_401], %226 {strides = array<i32>} : memref<256x4xf32, #tpu.memory_space<vmem>>, vector<16x4xf32>,
    %c0_402 = arith.constant 0 : index
    %c5_403 = arith.constant 5 : index
    %c1_404 = arith.constant 1 : index
    %c0_405 = arith.constant 0 : index
    %228 = vector.load %arg1[%c0_402, %c5_403, %c1_404, %c0_405] : memref<1x18x18x4xf32, #tpu.memory_space<vmem>>, vector<1x1x16x4xf32>
    %229 = vector.shape_cast %228 : vector<1x1x16x4xf32> to vector<16x4xf32>
    %c64_406 = arith.constant 64 : index
    %c0_407 = arith.constant 0 : index
    %230 = vector.load %arg7[%c64_406, %c0_407] : memref<256x4xf32, #tpu.memory_space<vmem>>, vector<16x4xf32>
    tpu.vector_store %arg7[%c64_406, %c0_407], %229 {strides = array<i32>} : memref<256x4xf32, #tpu.memory_space<vmem>>, vector<16x4xf32>,
    %c0_408 = arith.constant 0 : index
    %c6_409 = arith.constant 6 : index
    %c1_410 = arith.constant 1 : index
    %c0_411 = arith.constant 0 : index
    %231 = vector.load %arg1[%c0_408, %c6_409, %c1_410, %c0_411] : memref<1x18x18x4xf32, #tpu.memory_space<vmem>>, vector<1x1x16x4xf32>
    %232 = vector.shape_cast %231 : vector<1x1x16x4xf32> to vector<16x4xf32>
    %c80_412 = arith.constant 80 : index
    %c0_413 = arith.constant 0 : index
    %233 = vector.load %arg7[%c80_412, %c0_413] : memref<256x4xf32, #tpu.memory_space<vmem>>, vector<16x4xf32>
    tpu.vector_store %arg7[%c80_412, %c0_413], %232 {strides = array<i32>} : memref<256x4xf32, #tpu.memory_space<vmem>>, vector<16x4xf32>,
    %c0_414 = arith.constant 0 : index
    %c7_415 = arith.constant 7 : index
    %c1_416 = arith.constant 1 : index
    %c0_417 = arith.constant 0 : index
    %234 = vector.load %arg1[%c0_414, %c7_415, %c1_416, %c0_417] : memref<1x18x18x4xf32, #tpu.memory_space<vmem>>, vector<1x1x16x4xf32>
    %235 = vector.shape_cast %234 : vector<1x1x16x4xf32> to vector<16x4xf32>
    %c96_418 = arith.constant 96 : index
    %c0_419 = arith.constant 0 : index
    %236 = vector.load %arg7[%c96_418, %c0_419] : memref<256x4xf32, #tpu.memory_space<vmem>>, vector<16x4xf32>
    tpu.vector_store %arg7[%c96_418, %c0_419], %235 {strides = array<i32>} : memref<256x4xf32, #tpu.memory_space<vmem>>, vector<16x4xf32>,
    %c0_420 = arith.constant 0 : index
    %c8_421 = arith.constant 8 : index
    %c1_422 = arith.constant 1 : index
    %c0_423 = arith.constant 0 : index
    %237 = vector.load %arg1[%c0_420, %c8_421, %c1_422, %c0_423] : memref<1x18x18x4xf32, #tpu.memory_space<vmem>>, vector<1x1x16x4xf32>
    %238 = vector.shape_cast %237 : vector<1x1x16x4xf32> to vector<16x4xf32>
    %c112_424 = arith.constant 112 : index
    %c0_425 = arith.constant 0 : index
    %239 = vector.load %arg7[%c112_424, %c0_425] : memref<256x4xf32, #tpu.memory_space<vmem>>, vector<16x4xf32>
    tpu.vector_store %arg7[%c112_424, %c0_425], %238 {strides = array<i32>} : memref<256x4xf32, #tpu.memory_space<vmem>>, vector<16x4xf32>,
    %c0_426 = arith.constant 0 : index
    %c9_427 = arith.constant 9 : index
    %c1_428 = arith.constant 1 : index
    %c0_429 = arith.constant 0 : index
    %240 = vector.load %arg1[%c0_426, %c9_427, %c1_428, %c0_429] : memref<1x18x18x4xf32, #tpu.memory_space<vmem>>, vector<1x1x16x4xf32>
    %241 = vector.shape_cast %240 : vector<1x1x16x4xf32> to vector<16x4xf32>
    %c128_430 = arith.constant 128 : index
    %c0_431 = arith.constant 0 : index
    %242 = vector.load %arg7[%c128_430, %c0_431] : memref<256x4xf32, #tpu.memory_space<vmem>>, vector<16x4xf32>
    tpu.vector_store %arg7[%c128_430, %c0_431], %241 {strides = array<i32>} : memref<256x4xf32, #tpu.memory_space<vmem>>, vector<16x4xf32>,
    %c0_432 = arith.constant 0 : index
    %c10_433 = arith.constant 10 : index
    %c1_434 = arith.constant 1 : index
    %c0_435 = arith.constant 0 : index
    %243 = vector.load %arg1[%c0_432, %c10_433, %c1_434, %c0_435] : memref<1x18x18x4xf32, #tpu.memory_space<vmem>>, vector<1x1x16x4xf32>
    %244 = vector.shape_cast %243 : vector<1x1x16x4xf32> to vector<16x4xf32>
    %c144_436 = arith.constant 144 : index
    %c0_437 = arith.constant 0 : index
    %245 = vector.load %arg7[%c144_436, %c0_437] : memref<256x4xf32, #tpu.memory_space<vmem>>, vector<16x4xf32>
    tpu.vector_store %arg7[%c144_436, %c0_437], %244 {strides = array<i32>} : memref<256x4xf32, #tpu.memory_space<vmem>>, vector<16x4xf32>,
    %c0_438 = arith.constant 0 : index
    %c11_439 = arith.constant 11 : index
    %c1_440 = arith.constant 1 : index
    %c0_441 = arith.constant 0 : index
    %246 = vector.load %arg1[%c0_438, %c11_439, %c1_440, %c0_441] : memref<1x18x18x4xf32, #tpu.memory_space<vmem>>, vector<1x1x16x4xf32>
    %247 = vector.shape_cast %246 : vector<1x1x16x4xf32> to vector<16x4xf32>
    %c160_442 = arith.constant 160 : index
    %c0_443 = arith.constant 0 : index
    %248 = vector.load %arg7[%c160_442, %c0_443] : memref<256x4xf32, #tpu.memory_space<vmem>>, vector<16x4xf32>
    tpu.vector_store %arg7[%c160_442, %c0_443], %247 {strides = array<i32>} : memref<256x4xf32, #tpu.memory_space<vmem>>, vector<16x4xf32>,
    %c0_444 = arith.constant 0 : index
    %c12_445 = arith.constant 12 : index
    %c1_446 = arith.constant 1 : index
    %c0_447 = arith.constant 0 : index
    %249 = vector.load %arg1[%c0_444, %c12_445, %c1_446, %c0_447] : memref<1x18x18x4xf32, #tpu.memory_space<vmem>>, vector<1x1x16x4xf32>
    %250 = vector.shape_cast %249 : vector<1x1x16x4xf32> to vector<16x4xf32>
    %c176_448 = arith.constant 176 : index
    %c0_449 = arith.constant 0 : index
    %251 = vector.load %arg7[%c176_448, %c0_449] : memref<256x4xf32, #tpu.memory_space<vmem>>, vector<16x4xf32>
    tpu.vector_store %arg7[%c176_448, %c0_449], %250 {strides = array<i32>} : memref<256x4xf32, #tpu.memory_space<vmem>>, vector<16x4xf32>,
    %c0_450 = arith.constant 0 : index
    %c13_451 = arith.constant 13 : index
    %c1_452 = arith.constant 1 : index
    %c0_453 = arith.constant 0 : index
    %252 = vector.load %arg1[%c0_450, %c13_451, %c1_452, %c0_453] : memref<1x18x18x4xf32, #tpu.memory_space<vmem>>, vector<1x1x16x4xf32>
    %253 = vector.shape_cast %252 : vector<1x1x16x4xf32> to vector<16x4xf32>
    %c192_454 = arith.constant 192 : index
    %c0_455 = arith.constant 0 : index
    %254 = vector.load %arg7[%c192_454, %c0_455] : memref<256x4xf32, #tpu.memory_space<vmem>>, vector<16x4xf32>
    tpu.vector_store %arg7[%c192_454, %c0_455], %253 {strides = array<i32>} : memref<256x4xf32, #tpu.memory_space<vmem>>, vector<16x4xf32>,
    %c0_456 = arith.constant 0 : index
    %c14_457 = arith.constant 14 : index
    %c1_458 = arith.constant 1 : index
    %c0_459 = arith.constant 0 : index
    %255 = vector.load %arg1[%c0_456, %c14_457, %c1_458, %c0_459] : memref<1x18x18x4xf32, #tpu.memory_space<vmem>>, vector<1x1x16x4xf32>
    %256 = vector.shape_cast %255 : vector<1x1x16x4xf32> to vector<16x4xf32>
    %c208_460 = arith.constant 208 : index
    %c0_461 = arith.constant 0 : index
    %257 = vector.load %arg7[%c208_460, %c0_461] : memref<256x4xf32, #tpu.memory_space<vmem>>, vector<16x4xf32>
    tpu.vector_store %arg7[%c208_460, %c0_461], %256 {strides = array<i32>} : memref<256x4xf32, #tpu.memory_space<vmem>>, vector<16x4xf32>,
    %c0_462 = arith.constant 0 : index
    %c15_463 = arith.constant 15 : index
    %c1_464 = arith.constant 1 : index
    %c0_465 = arith.constant 0 : index
    %258 = vector.load %arg1[%c0_462, %c15_463, %c1_464, %c0_465] : memref<1x18x18x4xf32, #tpu.memory_space<vmem>>, vector<1x1x16x4xf32>
    %259 = vector.shape_cast %258 : vector<1x1x16x4xf32> to vector<16x4xf32>
    %c224_466 = arith.constant 224 : index
    %c0_467 = arith.constant 0 : index
    %260 = vector.load %arg7[%c224_466, %c0_467] : memref<256x4xf32, #tpu.memory_space<vmem>>, vector<16x4xf32>
    tpu.vector_store %arg7[%c224_466, %c0_467], %259 {strides = array<i32>} : memref<256x4xf32, #tpu.memory_space<vmem>>, vector<16x4xf32>,
    %c0_468 = arith.constant 0 : index
    %c16_469 = arith.constant 16 : index
    %c1_470 = arith.constant 1 : index
    %c0_471 = arith.constant 0 : index
    %261 = vector.load %arg1[%c0_468, %c16_469, %c1_470, %c0_471] : memref<1x18x18x4xf32, #tpu.memory_space<vmem>>, vector<1x1x16x4xf32>
    %262 = vector.shape_cast %261 : vector<1x1x16x4xf32> to vector<16x4xf32>
    %c240_472 = arith.constant 240 : index
    %c0_473 = arith.constant 0 : index
    %263 = vector.load %arg7[%c240_472, %c0_473] : memref<256x4xf32, #tpu.memory_space<vmem>>, vector<16x4xf32>
    tpu.vector_store %arg7[%c240_472, %c0_473], %262 {strides = array<i32>} : memref<256x4xf32, #tpu.memory_space<vmem>>, vector<16x4xf32>,
    %c0_474 = arith.constant 0 : index
    %c0_475 = arith.constant 0 : index
    %264 = vector.load %arg7[%c0_474, %c0_475] : memref<256x4xf32, #tpu.memory_space<vmem>>, vector<256x4xf32>
    %c4_476 = arith.constant 4 : index
    %c0_477 = arith.constant 0 : index
    %c0_478 = arith.constant 0 : index
    %265 = vector.load %arg2[%c4_476, %c0_477, %c0_478] : memref<9x4x32xf32, #tpu.memory_space<vmem>>, vector<1x4x32xf32>
    %266 = vector.shape_cast %265 : vector<1x4x32xf32> to vector<4x32xf32>
    %cst_479 = arith.constant dense<0.000000e+00> : vector<256x32xf32>
    %267 = tpu.matmul %264, %266, %cst_479 {dimension_numbers = #tpu.dot_dimension_numbers<[1], [0], [0], [1], [0, 0, 1, 1], [], []>} : vector<256x4xf32>, vector<4x32xf32>, vector<256x32xf32> -> vector<256x32xf32>
    %268 = arith.addf %215, %267 : vector<256x32xf32>
    %c0_480 = arith.constant 0 : index
    %c1_481 = arith.constant 1 : index
    %c2_482 = arith.constant 2 : index
    %c0_483 = arith.constant 0 : index
    %269 = vector.load %arg1[%c0_480, %c1_481, %c2_482, %c0_483] : memref<1x18x18x4xf32, #tpu.memory_space<vmem>>, vector<1x1x16x4xf32>
    %270 = vector.shape_cast %269 : vector<1x1x16x4xf32> to vector<16x4xf32>
    %c0_484 = arith.constant 0 : index
    %c0_485 = arith.constant 0 : index
    %271 = vector.load %arg7[%c0_484, %c0_485] : memref<256x4xf32, #tpu.memory_space<vmem>>, vector<16x4xf32>
    tpu.vector_store %arg7[%c0_484, %c0_485], %270 {strides = array<i32>} : memref<256x4xf32, #tpu.memory_space<vmem>>, vector<16x4xf32>,
    %c0_486 = arith.constant 0 : index
    %c2_487 = arith.constant 2 : index
    %c2_488 = arith.constant 2 : index
    %c0_489 = arith.constant 0 : index
    %272 = vector.load %arg1[%c0_486, %c2_487, %c2_488, %c0_489] : memref<1x18x18x4xf32, #tpu.memory_space<vmem>>, vector<1x1x16x4xf32>
    %273 = vector.shape_cast %272 : vector<1x1x16x4xf32> to vector<16x4xf32>
    %c16_490 = arith.constant 16 : index
    %c0_491 = arith.constant 0 : index
    %274 = vector.load %arg7[%c16_490, %c0_491] : memref<256x4xf32, #tpu.memory_space<vmem>>, vector<16x4xf32>
    tpu.vector_store %arg7[%c16_490, %c0_491], %273 {strides = array<i32>} : memref<256x4xf32, #tpu.memory_space<vmem>>, vector<16x4xf32>,
    %c0_492 = arith.constant 0 : index
    %c3_493 = arith.constant 3 : index
    %c2_494 = arith.constant 2 : index
    %c0_495 = arith.constant 0 : index
    %275 = vector.load %arg1[%c0_492, %c3_493, %c2_494, %c0_495] : memref<1x18x18x4xf32, #tpu.memory_space<vmem>>, vector<1x1x16x4xf32>
    %276 = vector.shape_cast %275 : vector<1x1x16x4xf32> to vector<16x4xf32>
    %c32_496 = arith.constant 32 : index
    %c0_497 = arith.constant 0 : index
    %277 = vector.load %arg7[%c32_496, %c0_497] : memref<256x4xf32, #tpu.memory_space<vmem>>, vector<16x4xf32>
    tpu.vector_store %arg7[%c32_496, %c0_497], %276 {strides = array<i32>} : memref<256x4xf32, #tpu.memory_space<vmem>>, vector<16x4xf32>,
    %c0_498 = arith.constant 0 : index
    %c4_499 = arith.constant 4 : index
    %c2_500 = arith.constant 2 : index
    %c0_501 = arith.constant 0 : index
    %278 = vector.load %arg1[%c0_498, %c4_499, %c2_500, %c0_501] : memref<1x18x18x4xf32, #tpu.memory_space<vmem>>, vector<1x1x16x4xf32>
    %279 = vector.shape_cast %278 : vector<1x1x16x4xf32> to vector<16x4xf32>
    %c48_502 = arith.constant 48 : index
    %c0_503 = arith.constant 0 : index
    %280 = vector.load %arg7[%c48_502, %c0_503] : memref<256x4xf32, #tpu.memory_space<vmem>>, vector<16x4xf32>
    tpu.vector_store %arg7[%c48_502, %c0_503], %279 {strides = array<i32>} : memref<256x4xf32, #tpu.memory_space<vmem>>, vector<16x4xf32>,
    %c0_504 = arith.constant 0 : index
    %c5_505 = arith.constant 5 : index
    %c2_506 = arith.constant 2 : index
    %c0_507 = arith.constant 0 : index
    %281 = vector.load %arg1[%c0_504, %c5_505, %c2_506, %c0_507] : memref<1x18x18x4xf32, #tpu.memory_space<vmem>>, vector<1x1x16x4xf32>
    %282 = vector.shape_cast %281 : vector<1x1x16x4xf32> to vector<16x4xf32>
    %c64_508 = arith.constant 64 : index
    %c0_509 = arith.constant 0 : index
    %283 = vector.load %arg7[%c64_508, %c0_509] : memref<256x4xf32, #tpu.memory_space<vmem>>, vector<16x4xf32>
    tpu.vector_store %arg7[%c64_508, %c0_509], %282 {strides = array<i32>} : memref<256x4xf32, #tpu.memory_space<vmem>>, vector<16x4xf32>,
    %c0_510 = arith.constant 0 : index
    %c6_511 = arith.constant 6 : index
    %c2_512 = arith.constant 2 : index
    %c0_513 = arith.constant 0 : index
    %284 = vector.load %arg1[%c0_510, %c6_511, %c2_512, %c0_513] : memref<1x18x18x4xf32, #tpu.memory_space<vmem>>, vector<1x1x16x4xf32>
    %285 = vector.shape_cast %284 : vector<1x1x16x4xf32> to vector<16x4xf32>
    %c80_514 = arith.constant 80 : index
    %c0_515 = arith.constant 0 : index
    %286 = vector.load %arg7[%c80_514, %c0_515] : memref<256x4xf32, #tpu.memory_space<vmem>>, vector<16x4xf32>
    tpu.vector_store %arg7[%c80_514, %c0_515], %285 {strides = array<i32>} : memref<256x4xf32, #tpu.memory_space<vmem>>, vector<16x4xf32>,
    %c0_516 = arith.constant 0 : index
    %c7_517 = arith.constant 7 : index
    %c2_518 = arith.constant 2 : index
    %c0_519 = arith.constant 0 : index
    %287 = vector.load %arg1[%c0_516, %c7_517, %c2_518, %c0_519] : memref<1x18x18x4xf32, #tpu.memory_space<vmem>>, vector<1x1x16x4xf32>
    %288 = vector.shape_cast %287 : vector<1x1x16x4xf32> to vector<16x4xf32>
    %c96_520 = arith.constant 96 : index
    %c0_521 = arith.constant 0 : index
    %289 = vector.load %arg7[%c96_520, %c0_521] : memref<256x4xf32, #tpu.memory_space<vmem>>, vector<16x4xf32>
    tpu.vector_store %arg7[%c96_520, %c0_521], %288 {strides = array<i32>} : memref<256x4xf32, #tpu.memory_space<vmem>>, vector<16x4xf32>,
    %c0_522 = arith.constant 0 : index
    %c8_523 = arith.constant 8 : index
    %c2_524 = arith.constant 2 : index
    %c0_525 = arith.constant 0 : index
    %290 = vector.load %arg1[%c0_522, %c8_523, %c2_524, %c0_525] : memref<1x18x18x4xf32, #tpu.memory_space<vmem>>, vector<1x1x16x4xf32>
    %291 = vector.shape_cast %290 : vector<1x1x16x4xf32> to vector<16x4xf32>
    %c112_526 = arith.constant 112 : index
    %c0_527 = arith.constant 0 : index
    %292 = vector.load %arg7[%c112_526, %c0_527] : memref<256x4xf32, #tpu.memory_space<vmem>>, vector<16x4xf32>
    tpu.vector_store %arg7[%c112_526, %c0_527], %291 {strides = array<i32>} : memref<256x4xf32, #tpu.memory_space<vmem>>, vector<16x4xf32>,
    %c0_528 = arith.constant 0 : index
    %c9_529 = arith.constant 9 : index
    %c2_530 = arith.constant 2 : index
    %c0_531 = arith.constant 0 : index
    %293 = vector.load %arg1[%c0_528, %c9_529, %c2_530, %c0_531] : memref<1x18x18x4xf32, #tpu.memory_space<vmem>>, vector<1x1x16x4xf32>
    %294 = vector.shape_cast %293 : vector<1x1x16x4xf32> to vector<16x4xf32>
    %c128_532 = arith.constant 128 : index
    %c0_533 = arith.constant 0 : index
    %295 = vector.load %arg7[%c128_532, %c0_533] : memref<256x4xf32, #tpu.memory_space<vmem>>, vector<16x4xf32>
    tpu.vector_store %arg7[%c128_532, %c0_533], %294 {strides = array<i32>} : memref<256x4xf32, #tpu.memory_space<vmem>>, vector<16x4xf32>,
    %c0_534 = arith.constant 0 : index
    %c10_535 = arith.constant 10 : index
    %c2_536 = arith.constant 2 : index
    %c0_537 = arith.constant 0 : index
    %296 = vector.load %arg1[%c0_534, %c10_535, %c2_536, %c0_537] : memref<1x18x18x4xf32, #tpu.memory_space<vmem>>, vector<1x1x16x4xf32>
    %297 = vector.shape_cast %296 : vector<1x1x16x4xf32> to vector<16x4xf32>
    %c144_538 = arith.constant 144 : index
    %c0_539 = arith.constant 0 : index
    %298 = vector.load %arg7[%c144_538, %c0_539] : memref<256x4xf32, #tpu.memory_space<vmem>>, vector<16x4xf32>
    tpu.vector_store %arg7[%c144_538, %c0_539], %297 {strides = array<i32>} : memref<256x4xf32, #tpu.memory_space<vmem>>, vector<16x4xf32>,
    %c0_540 = arith.constant 0 : index
    %c11_541 = arith.constant 11 : index
    %c2_542 = arith.constant 2 : index
    %c0_543 = arith.constant 0 : index
    %299 = vector.load %arg1[%c0_540, %c11_541, %c2_542, %c0_543] : memref<1x18x18x4xf32, #tpu.memory_space<vmem>>, vector<1x1x16x4xf32>
    %300 = vector.shape_cast %299 : vector<1x1x16x4xf32> to vector<16x4xf32>
    %c160_544 = arith.constant 160 : index
    %c0_545 = arith.constant 0 : index
    %301 = vector.load %arg7[%c160_544, %c0_545] : memref<256x4xf32, #tpu.memory_space<vmem>>, vector<16x4xf32>
    tpu.vector_store %arg7[%c160_544, %c0_545], %300 {strides = array<i32>} : memref<256x4xf32, #tpu.memory_space<vmem>>, vector<16x4xf32>,
    %c0_546 = arith.constant 0 : index
    %c12_547 = arith.constant 12 : index
    %c2_548 = arith.constant 2 : index
    %c0_549 = arith.constant 0 : index
    %302 = vector.load %arg1[%c0_546, %c12_547, %c2_548, %c0_549] : memref<1x18x18x4xf32, #tpu.memory_space<vmem>>, vector<1x1x16x4xf32>
    %303 = vector.shape_cast %302 : vector<1x1x16x4xf32> to vector<16x4xf32>
    %c176_550 = arith.constant 176 : index
    %c0_551 = arith.constant 0 : index
    %304 = vector.load %arg7[%c176_550, %c0_551] : memref<256x4xf32, #tpu.memory_space<vmem>>, vector<16x4xf32>
    tpu.vector_store %arg7[%c176_550, %c0_551], %303 {strides = array<i32>} : memref<256x4xf32, #tpu.memory_space<vmem>>, vector<16x4xf32>,
    %c0_552 = arith.constant 0 : index
    %c13_553 = arith.constant 13 : index
    %c2_554 = arith.constant 2 : index
    %c0_555 = arith.constant 0 : index
    %305 = vector.load %arg1[%c0_552, %c13_553, %c2_554, %c0_555] : memref<1x18x18x4xf32, #tpu.memory_space<vmem>>, vector<1x1x16x4xf32>
    %306 = vector.shape_cast %305 : vector<1x1x16x4xf32> to vector<16x4xf32>
    %c192_556 = arith.constant 192 : index
    %c0_557 = arith.constant 0 : index
    %307 = vector.load %arg7[%c192_556, %c0_557] : memref<256x4xf32, #tpu.memory_space<vmem>>, vector<16x4xf32>
    tpu.vector_store %arg7[%c192_556, %c0_557], %306 {strides = array<i32>} : memref<256x4xf32, #tpu.memory_space<vmem>>, vector<16x4xf32>,
    %c0_558 = arith.constant 0 : index
    %c14_559 = arith.constant 14 : index
    %c2_560 = arith.constant 2 : index
    %c0_561 = arith.constant 0 : index
    %308 = vector.load %arg1[%c0_558, %c14_559, %c2_560, %c0_561] : memref<1x18x18x4xf32, #tpu.memory_space<vmem>>, vector<1x1x16x4xf32>
    %309 = vector.shape_cast %308 : vector<1x1x16x4xf32> to vector<16x4xf32>
    %c208_562 = arith.constant 208 : index
    %c0_563 = arith.constant 0 : index
    %310 = vector.load %arg7[%c208_562, %c0_563] : memref<256x4xf32, #tpu.memory_space<vmem>>, vector<16x4xf32>
    tpu.vector_store %arg7[%c208_562, %c0_563], %309 {strides = array<i32>} : memref<256x4xf32, #tpu.memory_space<vmem>>, vector<16x4xf32>,
    %c0_564 = arith.constant 0 : index
    %c15_565 = arith.constant 15 : index
    %c2_566 = arith.constant 2 : index
    %c0_567 = arith.constant 0 : index
    %311 = vector.load %arg1[%c0_564, %c15_565, %c2_566, %c0_567] : memref<1x18x18x4xf32, #tpu.memory_space<vmem>>, vector<1x1x16x4xf32>
    %312 = vector.shape_cast %311 : vector<1x1x16x4xf32> to vector<16x4xf32>
    %c224_568 = arith.constant 224 : index
    %c0_569 = arith.constant 0 : index
    %313 = vector.load %arg7[%c224_568, %c0_569] : memref<256x4xf32, #tpu.memory_space<vmem>>, vector<16x4xf32>
    tpu.vector_store %arg7[%c224_568, %c0_569], %312 {strides = array<i32>} : memref<256x4xf32, #tpu.memory_space<vmem>>, vector<16x4xf32>,
    %c0_570 = arith.constant 0 : index
    %c16_571 = arith.constant 16 : index
    %c2_572 = arith.constant 2 : index
    %c0_573 = arith.constant 0 : index
    %314 = vector.load %arg1[%c0_570, %c16_571, %c2_572, %c0_573] : memref<1x18x18x4xf32, #tpu.memory_space<vmem>>, vector<1x1x16x4xf32>
    %315 = vector.shape_cast %314 : vector<1x1x16x4xf32> to vector<16x4xf32>
    %c240_574 = arith.constant 240 : index
    %c0_575 = arith.constant 0 : index
    %316 = vector.load %arg7[%c240_574, %c0_575] : memref<256x4xf32, #tpu.memory_space<vmem>>, vector<16x4xf32>
    tpu.vector_store %arg7[%c240_574, %c0_575], %315 {strides = array<i32>} : memref<256x4xf32, #tpu.memory_space<vmem>>, vector<16x4xf32>,
    %c0_576 = arith.constant 0 : index
    %c0_577 = arith.constant 0 : index
    %317 = vector.load %arg7[%c0_576, %c0_577] : memref<256x4xf32, #tpu.memory_space<vmem>>, vector<256x4xf32>
    %c5_578 = arith.constant 5 : index
    %c0_579 = arith.constant 0 : index
    %c0_580 = arith.constant 0 : index
    %318 = vector.load %arg2[%c5_578, %c0_579, %c0_580] : memref<9x4x32xf32, #tpu.memory_space<vmem>>, vector<1x4x32xf32>
    %319 = vector.shape_cast %318 : vector<1x4x32xf32> to vector<4x32xf32>
    %cst_581 = arith.constant dense<0.000000e+00> : vector<256x32xf32>
    %320 = tpu.matmul %317, %319, %cst_581 {dimension_numbers = #tpu.dot_dimension_numbers<[1], [0], [0], [1], [0, 0, 1, 1], [], []>} : vector<256x4xf32>, vector<4x32xf32>, vector<256x32xf32> -> vector<256x32xf32>
    %321 = arith.addf %268, %320 : vector<256x32xf32>
    %c0_582 = arith.constant 0 : index
    %c2_583 = arith.constant 2 : index
    %c0_584 = arith.constant 0 : index
    %c0_585 = arith.constant 0 : index
    %322 = vector.load %arg1[%c0_582, %c2_583, %c0_584, %c0_585] : memref<1x18x18x4xf32, #tpu.memory_space<vmem>>, vector<1x1x16x4xf32>
    %323 = vector.shape_cast %322 : vector<1x1x16x4xf32> to vector<16x4xf32>
    %c0_586 = arith.constant 0 : index
    %c0_587 = arith.constant 0 : index
    %324 = vector.load %arg7[%c0_586, %c0_587] : memref<256x4xf32, #tpu.memory_space<vmem>>, vector<16x4xf32>
    tpu.vector_store %arg7[%c0_586, %c0_587], %323 {strides = array<i32>} : memref<256x4xf32, #tpu.memory_space<vmem>>, vector<16x4xf32>,
    %c0_588 = arith.constant 0 : index
    %c3_589 = arith.constant 3 : index
    %c0_590 = arith.constant 0 : index
    %c0_591 = arith.constant 0 : index
    %325 = vector.load %arg1[%c0_588, %c3_589, %c0_590, %c0_591] : memref<1x18x18x4xf32, #tpu.memory_space<vmem>>, vector<1x1x16x4xf32>
    %326 = vector.shape_cast %325 : vector<1x1x16x4xf32> to vector<16x4xf32>
    %c16_592 = arith.constant 16 : index
    %c0_593 = arith.constant 0 : index
    %327 = vector.load %arg7[%c16_592, %c0_593] : memref<256x4xf32, #tpu.memory_space<vmem>>, vector<16x4xf32>
    tpu.vector_store %arg7[%c16_592, %c0_593], %326 {strides = array<i32>} : memref<256x4xf32, #tpu.memory_space<vmem>>, vector<16x4xf32>,
    %c0_594 = arith.constant 0 : index
    %c4_595 = arith.constant 4 : index
    %c0_596 = arith.constant 0 : index
    %c0_597 = arith.constant 0 : index
    %328 = vector.load %arg1[%c0_594, %c4_595, %c0_596, %c0_597] : memref<1x18x18x4xf32, #tpu.memory_space<vmem>>, vector<1x1x16x4xf32>
    %329 = vector.shape_cast %328 : vector<1x1x16x4xf32> to vector<16x4xf32>
    %c32_598 = arith.constant 32 : index
    %c0_599 = arith.constant 0 : index
    %330 = vector.load %arg7[%c32_598, %c0_599] : memref<256x4xf32, #tpu.memory_space<vmem>>, vector<16x4xf32>
    tpu.vector_store %arg7[%c32_598, %c0_599], %329 {strides = array<i32>} : memref<256x4xf32, #tpu.memory_space<vmem>>, vector<16x4xf32>,
    %c0_600 = arith.constant 0 : index
    %c5_601 = arith.constant 5 : index
    %c0_602 = arith.constant 0 : index
    %c0_603 = arith.constant 0 : index
    %331 = vector.load %arg1[%c0_600, %c5_601, %c0_602, %c0_603] : memref<1x18x18x4xf32, #tpu.memory_space<vmem>>, vector<1x1x16x4xf32>
    %332 = vector.shape_cast %331 : vector<1x1x16x4xf32> to vector<16x4xf32>
    %c48_604 = arith.constant 48 : index
    %c0_605 = arith.constant 0 : index
    %333 = vector.load %arg7[%c48_604, %c0_605] : memref<256x4xf32, #tpu.memory_space<vmem>>, vector<16x4xf32>
    tpu.vector_store %arg7[%c48_604, %c0_605], %332 {strides = array<i32>} : memref<256x4xf32, #tpu.memory_space<vmem>>, vector<16x4xf32>,
    %c0_606 = arith.constant 0 : index
    %c6_607 = arith.constant 6 : index
    %c0_608 = arith.constant 0 : index
    %c0_609 = arith.constant 0 : index
    %334 = vector.load %arg1[%c0_606, %c6_607, %c0_608, %c0_609] : memref<1x18x18x4xf32, #tpu.memory_space<vmem>>, vector<1x1x16x4xf32>
    %335 = vector.shape_cast %334 : vector<1x1x16x4xf32> to vector<16x4xf32>
    %c64_610 = arith.constant 64 : index
    %c0_611 = arith.constant 0 : index
    %336 = vector.load %arg7[%c64_610, %c0_611] : memref<256x4xf32, #tpu.memory_space<vmem>>, vector<16x4xf32>
    tpu.vector_store %arg7[%c64_610, %c0_611], %335 {strides = array<i32>} : memref<256x4xf32, #tpu.memory_space<vmem>>, vector<16x4xf32>,
    %c0_612 = arith.constant 0 : index
    %c7_613 = arith.constant 7 : index
    %c0_614 = arith.constant 0 : index
    %c0_615 = arith.constant 0 : index
    %337 = vector.load %arg1[%c0_612, %c7_613, %c0_614, %c0_615] : memref<1x18x18x4xf32, #tpu.memory_space<vmem>>, vector<1x1x16x4xf32>
    %338 = vector.shape_cast %337 : vector<1x1x16x4xf32> to vector<16x4xf32>
    %c80_616 = arith.constant 80 : index
    %c0_617 = arith.constant 0 : index
    %339 = vector.load %arg7[%c80_616, %c0_617] : memref<256x4xf32, #tpu.memory_space<vmem>>, vector<16x4xf32>
    tpu.vector_store %arg7[%c80_616, %c0_617], %338 {strides = array<i32>} : memref<256x4xf32, #tpu.memory_space<vmem>>, vector<16x4xf32>,
    %c0_618 = arith.constant 0 : index
    %c8_619 = arith.constant 8 : index
    %c0_620 = arith.constant 0 : index
    %c0_621 = arith.constant 0 : index
    %340 = vector.load %arg1[%c0_618, %c8_619, %c0_620, %c0_621] : memref<1x18x18x4xf32, #tpu.memory_space<vmem>>, vector<1x1x16x4xf32>
    %341 = vector.shape_cast %340 : vector<1x1x16x4xf32> to vector<16x4xf32>
    %c96_622 = arith.constant 96 : index
    %c0_623 = arith.constant 0 : index
    %342 = vector.load %arg7[%c96_622, %c0_623] : memref<256x4xf32, #tpu.memory_space<vmem>>, vector<16x4xf32>
    tpu.vector_store %arg7[%c96_622, %c0_623], %341 {strides = array<i32>} : memref<256x4xf32, #tpu.memory_space<vmem>>, vector<16x4xf32>,
    %c0_624 = arith.constant 0 : index
    %c9_625 = arith.constant 9 : index
    %c0_626 = arith.constant 0 : index
    %c0_627 = arith.constant 0 : index
    %343 = vector.load %arg1[%c0_624, %c9_625, %c0_626, %c0_627] : memref<1x18x18x4xf32, #tpu.memory_space<vmem>>, vector<1x1x16x4xf32>
    %344 = vector.shape_cast %343 : vector<1x1x16x4xf32> to vector<16x4xf32>
    %c112_628 = arith.constant 112 : index
    %c0_629 = arith.constant 0 : index
    %345 = vector.load %arg7[%c112_628, %c0_629] : memref<256x4xf32, #tpu.memory_space<vmem>>, vector<16x4xf32>
    tpu.vector_store %arg7[%c112_628, %c0_629], %344 {strides = array<i32>} : memref<256x4xf32, #tpu.memory_space<vmem>>, vector<16x4xf32>,
    %c0_630 = arith.constant 0 : index
    %c10_631 = arith.constant 10 : index
    %c0_632 = arith.constant 0 : index
    %c0_633 = arith.constant 0 : index
    %346 = vector.load %arg1[%c0_630, %c10_631, %c0_632, %c0_633] : memref<1x18x18x4xf32, #tpu.memory_space<vmem>>, vector<1x1x16x4xf32>
    %347 = vector.shape_cast %346 : vector<1x1x16x4xf32> to vector<16x4xf32>
    %c128_634 = arith.constant 128 : index
    %c0_635 = arith.constant 0 : index
    %348 = vector.load %arg7[%c128_634, %c0_635] : memref<256x4xf32, #tpu.memory_space<vmem>>, vector<16x4xf32>
    tpu.vector_store %arg7[%c128_634, %c0_635], %347 {strides = array<i32>} : memref<256x4xf32, #tpu.memory_space<vmem>>, vector<16x4xf32>,
    %c0_636 = arith.constant 0 : index
    %c11_637 = arith.constant 11 : index
    %c0_638 = arith.constant 0 : index
    %c0_639 = arith.constant 0 : index
    %349 = vector.load %arg1[%c0_636, %c11_637, %c0_638, %c0_639] : memref<1x18x18x4xf32, #tpu.memory_space<vmem>>, vector<1x1x16x4xf32>
    %350 = vector.shape_cast %349 : vector<1x1x16x4xf32> to vector<16x4xf32>
    %c144_640 = arith.constant 144 : index
    %c0_641 = arith.constant 0 : index
    %351 = vector.load %arg7[%c144_640, %c0_641] : memref<256x4xf32, #tpu.memory_space<vmem>>, vector<16x4xf32>
    tpu.vector_store %arg7[%c144_640, %c0_641], %350 {strides = array<i32>} : memref<256x4xf32, #tpu.memory_space<vmem>>, vector<16x4xf32>,
    %c0_642 = arith.constant 0 : index
    %c12_643 = arith.constant 12 : index
    %c0_644 = arith.constant 0 : index
    %c0_645 = arith.constant 0 : index
    %352 = vector.load %arg1[%c0_642, %c12_643, %c0_644, %c0_645] : memref<1x18x18x4xf32, #tpu.memory_space<vmem>>, vector<1x1x16x4xf32>
    %353 = vector.shape_cast %352 : vector<1x1x16x4xf32> to vector<16x4xf32>
    %c160_646 = arith.constant 160 : index
    %c0_647 = arith.constant 0 : index
    %354 = vector.load %arg7[%c160_646, %c0_647] : memref<256x4xf32, #tpu.memory_space<vmem>>, vector<16x4xf32>
    tpu.vector_store %arg7[%c160_646, %c0_647], %353 {strides = array<i32>} : memref<256x4xf32, #tpu.memory_space<vmem>>, vector<16x4xf32>,
    %c0_648 = arith.constant 0 : index
    %c13_649 = arith.constant 13 : index
    %c0_650 = arith.constant 0 : index
    %c0_651 = arith.constant 0 : index
    %355 = vector.load %arg1[%c0_648, %c13_649, %c0_650, %c0_651] : memref<1x18x18x4xf32, #tpu.memory_space<vmem>>, vector<1x1x16x4xf32>
    %356 = vector.shape_cast %355 : vector<1x1x16x4xf32> to vector<16x4xf32>
    %c176_652 = arith.constant 176 : index
    %c0_653 = arith.constant 0 : index
    %357 = vector.load %arg7[%c176_652, %c0_653] : memref<256x4xf32, #tpu.memory_space<vmem>>, vector<16x4xf32>
    tpu.vector_store %arg7[%c176_652, %c0_653], %356 {strides = array<i32>} : memref<256x4xf32, #tpu.memory_space<vmem>>, vector<16x4xf32>,
    %c0_654 = arith.constant 0 : index
    %c14_655 = arith.constant 14 : index
    %c0_656 = arith.constant 0 : index
    %c0_657 = arith.constant 0 : index
    %358 = vector.load %arg1[%c0_654, %c14_655, %c0_656, %c0_657] : memref<1x18x18x4xf32, #tpu.memory_space<vmem>>, vector<1x1x16x4xf32>
    %359 = vector.shape_cast %358 : vector<1x1x16x4xf32> to vector<16x4xf32>
    %c192_658 = arith.constant 192 : index
    %c0_659 = arith.constant 0 : index
    %360 = vector.load %arg7[%c192_658, %c0_659] : memref<256x4xf32, #tpu.memory_space<vmem>>, vector<16x4xf32>
    tpu.vector_store %arg7[%c192_658, %c0_659], %359 {strides = array<i32>} : memref<256x4xf32, #tpu.memory_space<vmem>>, vector<16x4xf32>,
    %c0_660 = arith.constant 0 : index
    %c15_661 = arith.constant 15 : index
    %c0_662 = arith.constant 0 : index
    %c0_663 = arith.constant 0 : index
    %361 = vector.load %arg1[%c0_660, %c15_661, %c0_662, %c0_663] : memref<1x18x18x4xf32, #tpu.memory_space<vmem>>, vector<1x1x16x4xf32>
    %362 = vector.shape_cast %361 : vector<1x1x16x4xf32> to vector<16x4xf32>
    %c208_664 = arith.constant 208 : index
    %c0_665 = arith.constant 0 : index
    %363 = vector.load %arg7[%c208_664, %c0_665] : memref<256x4xf32, #tpu.memory_space<vmem>>, vector<16x4xf32>
    tpu.vector_store %arg7[%c208_664, %c0_665], %362 {strides = array<i32>} : memref<256x4xf32, #tpu.memory_space<vmem>>, vector<16x4xf32>,
    %c0_666 = arith.constant 0 : index
    %c16_667 = arith.constant 16 : index
    %c0_668 = arith.constant 0 : index
    %c0_669 = arith.constant 0 : index
    %364 = vector.load %arg1[%c0_666, %c16_667, %c0_668, %c0_669] : memref<1x18x18x4xf32, #tpu.memory_space<vmem>>, vector<1x1x16x4xf32>
    %365 = vector.shape_cast %364 : vector<1x1x16x4xf32> to vector<16x4xf32>
    %c224_670 = arith.constant 224 : index
    %c0_671 = arith.constant 0 : index
    %366 = vector.load %arg7[%c224_670, %c0_671] : memref<256x4xf32, #tpu.memory_space<vmem>>, vector<16x4xf32>
    tpu.vector_store %arg7[%c224_670, %c0_671], %365 {strides = array<i32>} : memref<256x4xf32, #tpu.memory_space<vmem>>, vector<16x4xf32>,
    %c0_672 = arith.constant 0 : index
    %c17 = arith.constant 17 : index
    %c0_673 = arith.constant 0 : index
    %c0_674 = arith.constant 0 : index
    %367 = vector.load %arg1[%c0_672, %c17, %c0_673, %c0_674] : memref<1x18x18x4xf32, #tpu.memory_space<vmem>>, vector<1x1x16x4xf32>
    %368 = vector.shape_cast %367 : vector<1x1x16x4xf32> to vector<16x4xf32>
    %c240_675 = arith.constant 240 : index
    %c0_676 = arith.constant 0 : index
    %369 = vector.load %arg7[%c240_675, %c0_676] : memref<256x4xf32, #tpu.memory_space<vmem>>, vector<16x4xf32>
    tpu.vector_store %arg7[%c240_675, %c0_676], %368 {strides = array<i32>} : memref<256x4xf32, #tpu.memory_space<vmem>>, vector<16x4xf32>,
    %c0_677 = arith.constant 0 : index
    %c0_678 = arith.constant 0 : index
    %370 = vector.load %arg7[%c0_677, %c0_678] : memref<256x4xf32, #tpu.memory_space<vmem>>, vector<256x4xf32>
    %c6_679 = arith.constant 6 : index
    %c0_680 = arith.constant 0 : index
    %c0_681 = arith.constant 0 : index
    %371 = vector.load %arg2[%c6_679, %c0_680, %c0_681] : memref<9x4x32xf32, #tpu.memory_space<vmem>>, vector<1x4x32xf32>
    %372 = vector.shape_cast %371 : vector<1x4x32xf32> to vector<4x32xf32>
    %cst_682 = arith.constant dense<0.000000e+00> : vector<256x32xf32>
    %373 = tpu.matmul %370, %372, %cst_682 {dimension_numbers = #tpu.dot_dimension_numbers<[1], [0], [0], [1], [0, 0, 1, 1], [], []>} : vector<256x4xf32>, vector<4x32xf32>, vector<256x32xf32> -> vector<256x32xf32>
    %374 = arith.addf %321, %373 : vector<256x32xf32>
    %c0_683 = arith.constant 0 : index
    %c2_684 = arith.constant 2 : index
    %c1_685 = arith.constant 1 : index
    %c0_686 = arith.constant 0 : index
    %375 = vector.load %arg1[%c0_683, %c2_684, %c1_685, %c0_686] : memref<1x18x18x4xf32, #tpu.memory_space<vmem>>, vector<1x1x16x4xf32>
    %376 = vector.shape_cast %375 : vector<1x1x16x4xf32> to vector<16x4xf32>
    %c0_687 = arith.constant 0 : index
    %c0_688 = arith.constant 0 : index
    %377 = vector.load %arg7[%c0_687, %c0_688] : memref<256x4xf32, #tpu.memory_space<vmem>>, vector<16x4xf32>
    tpu.vector_store %arg7[%c0_687, %c0_688], %376 {strides = array<i32>} : memref<256x4xf32, #tpu.memory_space<vmem>>, vector<16x4xf32>,
    %c0_689 = arith.constant 0 : index
    %c3_690 = arith.constant 3 : index
    %c1_691 = arith.constant 1 : index
    %c0_692 = arith.constant 0 : index
    %378 = vector.load %arg1[%c0_689, %c3_690, %c1_691, %c0_692] : memref<1x18x18x4xf32, #tpu.memory_space<vmem>>, vector<1x1x16x4xf32>
    %379 = vector.shape_cast %378 : vector<1x1x16x4xf32> to vector<16x4xf32>
    %c16_693 = arith.constant 16 : index
    %c0_694 = arith.constant 0 : index
    %380 = vector.load %arg7[%c16_693, %c0_694] : memref<256x4xf32, #tpu.memory_space<vmem>>, vector<16x4xf32>
    tpu.vector_store %arg7[%c16_693, %c0_694], %379 {strides = array<i32>} : memref<256x4xf32, #tpu.memory_space<vmem>>, vector<16x4xf32>,
    %c0_695 = arith.constant 0 : index
    %c4_696 = arith.constant 4 : index
    %c1_697 = arith.constant 1 : index
    %c0_698 = arith.constant 0 : index
    %381 = vector.load %arg1[%c0_695, %c4_696, %c1_697, %c0_698] : memref<1x18x18x4xf32, #tpu.memory_space<vmem>>, vector<1x1x16x4xf32>
    %382 = vector.shape_cast %381 : vector<1x1x16x4xf32> to vector<16x4xf32>
    %c32_699 = arith.constant 32 : index
    %c0_700 = arith.constant 0 : index
    %383 = vector.load %arg7[%c32_699, %c0_700] : memref<256x4xf32, #tpu.memory_space<vmem>>, vector<16x4xf32>
    tpu.vector_store %arg7[%c32_699, %c0_700], %382 {strides = array<i32>} : memref<256x4xf32, #tpu.memory_space<vmem>>, vector<16x4xf32>,
    %c0_701 = arith.constant 0 : index
    %c5_702 = arith.constant 5 : index
    %c1_703 = arith.constant 1 : index
    %c0_704 = arith.constant 0 : index
    %384 = vector.load %arg1[%c0_701, %c5_702, %c1_703, %c0_704] : memref<1x18x18x4xf32, #tpu.memory_space<vmem>>, vector<1x1x16x4xf32>
    %385 = vector.shape_cast %384 : vector<1x1x16x4xf32> to vector<16x4xf32>
    %c48_705 = arith.constant 48 : index
    %c0_706 = arith.constant 0 : index
    %386 = vector.load %arg7[%c48_705, %c0_706] : memref<256x4xf32, #tpu.memory_space<vmem>>, vector<16x4xf32>
    tpu.vector_store %arg7[%c48_705, %c0_706], %385 {strides = array<i32>} : memref<256x4xf32, #tpu.memory_space<vmem>>, vector<16x4xf32>,
    %c0_707 = arith.constant 0 : index
    %c6_708 = arith.constant 6 : index
    %c1_709 = arith.constant 1 : index
    %c0_710 = arith.constant 0 : index
    %387 = vector.load %arg1[%c0_707, %c6_708, %c1_709, %c0_710] : memref<1x18x18x4xf32, #tpu.memory_space<vmem>>, vector<1x1x16x4xf32>
    %388 = vector.shape_cast %387 : vector<1x1x16x4xf32> to vector<16x4xf32>
    %c64_711 = arith.constant 64 : index
    %c0_712 = arith.constant 0 : index
    %389 = vector.load %arg7[%c64_711, %c0_712] : memref<256x4xf32, #tpu.memory_space<vmem>>, vector<16x4xf32>
    tpu.vector_store %arg7[%c64_711, %c0_712], %388 {strides = array<i32>} : memref<256x4xf32, #tpu.memory_space<vmem>>, vector<16x4xf32>,
    %c0_713 = arith.constant 0 : index
    %c7_714 = arith.constant 7 : index
    %c1_715 = arith.constant 1 : index
    %c0_716 = arith.constant 0 : index
    %390 = vector.load %arg1[%c0_713, %c7_714, %c1_715, %c0_716] : memref<1x18x18x4xf32, #tpu.memory_space<vmem>>, vector<1x1x16x4xf32>
    %391 = vector.shape_cast %390 : vector<1x1x16x4xf32> to vector<16x4xf32>
    %c80_717 = arith.constant 80 : index
    %c0_718 = arith.constant 0 : index
    %392 = vector.load %arg7[%c80_717, %c0_718] : memref<256x4xf32, #tpu.memory_space<vmem>>, vector<16x4xf32>
    tpu.vector_store %arg7[%c80_717, %c0_718], %391 {strides = array<i32>} : memref<256x4xf32, #tpu.memory_space<vmem>>, vector<16x4xf32>,
    %c0_719 = arith.constant 0 : index
    %c8_720 = arith.constant 8 : index
    %c1_721 = arith.constant 1 : index
    %c0_722 = arith.constant 0 : index
    %393 = vector.load %arg1[%c0_719, %c8_720, %c1_721, %c0_722] : memref<1x18x18x4xf32, #tpu.memory_space<vmem>>, vector<1x1x16x4xf32>
    %394 = vector.shape_cast %393 : vector<1x1x16x4xf32> to vector<16x4xf32>
    %c96_723 = arith.constant 96 : index
    %c0_724 = arith.constant 0 : index
    %395 = vector.load %arg7[%c96_723, %c0_724] : memref<256x4xf32, #tpu.memory_space<vmem>>, vector<16x4xf32>
    tpu.vector_store %arg7[%c96_723, %c0_724], %394 {strides = array<i32>} : memref<256x4xf32, #tpu.memory_space<vmem>>, vector<16x4xf32>,
    %c0_725 = arith.constant 0 : index
    %c9_726 = arith.constant 9 : index
    %c1_727 = arith.constant 1 : index
    %c0_728 = arith.constant 0 : index
    %396 = vector.load %arg1[%c0_725, %c9_726, %c1_727, %c0_728] : memref<1x18x18x4xf32, #tpu.memory_space<vmem>>, vector<1x1x16x4xf32>
    %397 = vector.shape_cast %396 : vector<1x1x16x4xf32> to vector<16x4xf32>
    %c112_729 = arith.constant 112 : index
    %c0_730 = arith.constant 0 : index
    %398 = vector.load %arg7[%c112_729, %c0_730] : memref<256x4xf32, #tpu.memory_space<vmem>>, vector<16x4xf32>
    tpu.vector_store %arg7[%c112_729, %c0_730], %397 {strides = array<i32>} : memref<256x4xf32, #tpu.memory_space<vmem>>, vector<16x4xf32>,
    %c0_731 = arith.constant 0 : index
    %c10_732 = arith.constant 10 : index
    %c1_733 = arith.constant 1 : index
    %c0_734 = arith.constant 0 : index
    %399 = vector.load %arg1[%c0_731, %c10_732, %c1_733, %c0_734] : memref<1x18x18x4xf32, #tpu.memory_space<vmem>>, vector<1x1x16x4xf32>
    %400 = vector.shape_cast %399 : vector<1x1x16x4xf32> to vector<16x4xf32>
    %c128_735 = arith.constant 128 : index
    %c0_736 = arith.constant 0 : index
    %401 = vector.load %arg7[%c128_735, %c0_736] : memref<256x4xf32, #tpu.memory_space<vmem>>, vector<16x4xf32>
    tpu.vector_store %arg7[%c128_735, %c0_736], %400 {strides = array<i32>} : memref<256x4xf32, #tpu.memory_space<vmem>>, vector<16x4xf32>,
    %c0_737 = arith.constant 0 : index
    %c11_738 = arith.constant 11 : index
    %c1_739 = arith.constant 1 : index
    %c0_740 = arith.constant 0 : index
    %402 = vector.load %arg1[%c0_737, %c11_738, %c1_739, %c0_740] : memref<1x18x18x4xf32, #tpu.memory_space<vmem>>, vector<1x1x16x4xf32>
    %403 = vector.shape_cast %402 : vector<1x1x16x4xf32> to vector<16x4xf32>
    %c144_741 = arith.constant 144 : index
    %c0_742 = arith.constant 0 : index
    %404 = vector.load %arg7[%c144_741, %c0_742] : memref<256x4xf32, #tpu.memory_space<vmem>>, vector<16x4xf32>
    tpu.vector_store %arg7[%c144_741, %c0_742], %403 {strides = array<i32>} : memref<256x4xf32, #tpu.memory_space<vmem>>, vector<16x4xf32>,
    %c0_743 = arith.constant 0 : index
    %c12_744 = arith.constant 12 : index
    %c1_745 = arith.constant 1 : index
    %c0_746 = arith.constant 0 : index
    %405 = vector.load %arg1[%c0_743, %c12_744, %c1_745, %c0_746] : memref<1x18x18x4xf32, #tpu.memory_space<vmem>>, vector<1x1x16x4xf32>
    %406 = vector.shape_cast %405 : vector<1x1x16x4xf32> to vector<16x4xf32>
    %c160_747 = arith.constant 160 : index
    %c0_748 = arith.constant 0 : index
    %407 = vector.load %arg7[%c160_747, %c0_748] : memref<256x4xf32, #tpu.memory_space<vmem>>, vector<16x4xf32>
    tpu.vector_store %arg7[%c160_747, %c0_748], %406 {strides = array<i32>} : memref<256x4xf32, #tpu.memory_space<vmem>>, vector<16x4xf32>,
    %c0_749 = arith.constant 0 : index
    %c13_750 = arith.constant 13 : index
    %c1_751 = arith.constant 1 : index
    %c0_752 = arith.constant 0 : index
    %408 = vector.load %arg1[%c0_749, %c13_750, %c1_751, %c0_752] : memref<1x18x18x4xf32, #tpu.memory_space<vmem>>, vector<1x1x16x4xf32>
    %409 = vector.shape_cast %408 : vector<1x1x16x4xf32> to vector<16x4xf32>
    %c176_753 = arith.constant 176 : index
    %c0_754 = arith.constant 0 : index
    %410 = vector.load %arg7[%c176_753, %c0_754] : memref<256x4xf32, #tpu.memory_space<vmem>>, vector<16x4xf32>
    tpu.vector_store %arg7[%c176_753, %c0_754], %409 {strides = array<i32>} : memref<256x4xf32, #tpu.memory_space<vmem>>, vector<16x4xf32>,
    %c0_755 = arith.constant 0 : index
    %c14_756 = arith.constant 14 : index
    %c1_757 = arith.constant 1 : index
    %c0_758 = arith.constant 0 : index
    %411 = vector.load %arg1[%c0_755, %c14_756, %c1_757, %c0_758] : memref<1x18x18x4xf32, #tpu.memory_space<vmem>>, vector<1x1x16x4xf32>
    %412 = vector.shape_cast %411 : vector<1x1x16x4xf32> to vector<16x4xf32>
    %c192_759 = arith.constant 192 : index
    %c0_760 = arith.constant 0 : index
    %413 = vector.load %arg7[%c192_759, %c0_760] : memref<256x4xf32, #tpu.memory_space<vmem>>, vector<16x4xf32>
    tpu.vector_store %arg7[%c192_759, %c0_760], %412 {strides = array<i32>} : memref<256x4xf32, #tpu.memory_space<vmem>>, vector<16x4xf32>,
    %c0_761 = arith.constant 0 : index
    %c15_762 = arith.constant 15 : index
    %c1_763 = arith.constant 1 : index
    %c0_764 = arith.constant 0 : index
    %414 = vector.load %arg1[%c0_761, %c15_762, %c1_763, %c0_764] : memref<1x18x18x4xf32, #tpu.memory_space<vmem>>, vector<1x1x16x4xf32>
    %415 = vector.shape_cast %414 : vector<1x1x16x4xf32> to vector<16x4xf32>
    %c208_765 = arith.constant 208 : index
    %c0_766 = arith.constant 0 : index
    %416 = vector.load %arg7[%c208_765, %c0_766] : memref<256x4xf32, #tpu.memory_space<vmem>>, vector<16x4xf32>
    tpu.vector_store %arg7[%c208_765, %c0_766], %415 {strides = array<i32>} : memref<256x4xf32, #tpu.memory_space<vmem>>, vector<16x4xf32>,
    %c0_767 = arith.constant 0 : index
    %c16_768 = arith.constant 16 : index
    %c1_769 = arith.constant 1 : index
    %c0_770 = arith.constant 0 : index
    %417 = vector.load %arg1[%c0_767, %c16_768, %c1_769, %c0_770] : memref<1x18x18x4xf32, #tpu.memory_space<vmem>>, vector<1x1x16x4xf32>
    %418 = vector.shape_cast %417 : vector<1x1x16x4xf32> to vector<16x4xf32>
    %c224_771 = arith.constant 224 : index
    %c0_772 = arith.constant 0 : index
    %419 = vector.load %arg7[%c224_771, %c0_772] : memref<256x4xf32, #tpu.memory_space<vmem>>, vector<16x4xf32>
    tpu.vector_store %arg7[%c224_771, %c0_772], %418 {strides = array<i32>} : memref<256x4xf32, #tpu.memory_space<vmem>>, vector<16x4xf32>,
    %c0_773 = arith.constant 0 : index
    %c17_774 = arith.constant 17 : index
    %c1_775 = arith.constant 1 : index
    %c0_776 = arith.constant 0 : index
    %420 = vector.load %arg1[%c0_773, %c17_774, %c1_775, %c0_776] : memref<1x18x18x4xf32, #tpu.memory_space<vmem>>, vector<1x1x16x4xf32>
    %421 = vector.shape_cast %420 : vector<1x1x16x4xf32> to vector<16x4xf32>
    %c240_777 = arith.constant 240 : index
    %c0_778 = arith.constant 0 : index
    %422 = vector.load %arg7[%c240_777, %c0_778] : memref<256x4xf32, #tpu.memory_space<vmem>>, vector<16x4xf32>
    tpu.vector_store %arg7[%c240_777, %c0_778], %421 {strides = array<i32>} : memref<256x4xf32, #tpu.memory_space<vmem>>, vector<16x4xf32>,
    %c0_779 = arith.constant 0 : index
    %c0_780 = arith.constant 0 : index
    %423 = vector.load %arg7[%c0_779, %c0_780] : memref<256x4xf32, #tpu.memory_space<vmem>>, vector<256x4xf32>
    %c7_781 = arith.constant 7 : index
    %c0_782 = arith.constant 0 : index
    %c0_783 = arith.constant 0 : index
    %424 = vector.load %arg2[%c7_781, %c0_782, %c0_783] : memref<9x4x32xf32, #tpu.memory_space<vmem>>, vector<1x4x32xf32>
    %425 = vector.shape_cast %424 : vector<1x4x32xf32> to vector<4x32xf32>
    %cst_784 = arith.constant dense<0.000000e+00> : vector<256x32xf32>
    %426 = tpu.matmul %423, %425, %cst_784 {dimension_numbers = #tpu.dot_dimension_numbers<[1], [0], [0], [1], [0, 0, 1, 1], [], []>} : vector<256x4xf32>, vector<4x32xf32>, vector<256x32xf32> -> vector<256x32xf32>
    %427 = arith.addf %374, %426 : vector<256x32xf32>
    %c0_785 = arith.constant 0 : index
    %c2_786 = arith.constant 2 : index
    %c2_787 = arith.constant 2 : index
    %c0_788 = arith.constant 0 : index
    %428 = vector.load %arg1[%c0_785, %c2_786, %c2_787, %c0_788] : memref<1x18x18x4xf32, #tpu.memory_space<vmem>>, vector<1x1x16x4xf32>
    %429 = vector.shape_cast %428 : vector<1x1x16x4xf32> to vector<16x4xf32>
    %c0_789 = arith.constant 0 : index
    %c0_790 = arith.constant 0 : index
    %430 = vector.load %arg7[%c0_789, %c0_790] : memref<256x4xf32, #tpu.memory_space<vmem>>, vector<16x4xf32>
    tpu.vector_store %arg7[%c0_789, %c0_790], %429 {strides = array<i32>} : memref<256x4xf32, #tpu.memory_space<vmem>>, vector<16x4xf32>,
    %c0_791 = arith.constant 0 : index
    %c3_792 = arith.constant 3 : index
    %c2_793 = arith.constant 2 : index
    %c0_794 = arith.constant 0 : index
    %431 = vector.load %arg1[%c0_791, %c3_792, %c2_793, %c0_794] : memref<1x18x18x4xf32, #tpu.memory_space<vmem>>, vector<1x1x16x4xf32>
    %432 = vector.shape_cast %431 : vector<1x1x16x4xf32> to vector<16x4xf32>
    %c16_795 = arith.constant 16 : index
    %c0_796 = arith.constant 0 : index
    %433 = vector.load %arg7[%c16_795, %c0_796] : memref<256x4xf32, #tpu.memory_space<vmem>>, vector<16x4xf32>
    tpu.vector_store %arg7[%c16_795, %c0_796], %432 {strides = array<i32>} : memref<256x4xf32, #tpu.memory_space<vmem>>, vector<16x4xf32>,
    %c0_797 = arith.constant 0 : index
    %c4_798 = arith.constant 4 : index
    %c2_799 = arith.constant 2 : index
    %c0_800 = arith.constant 0 : index
    %434 = vector.load %arg1[%c0_797, %c4_798, %c2_799, %c0_800] : memref<1x18x18x4xf32, #tpu.memory_space<vmem>>, vector<1x1x16x4xf32>
    %435 = vector.shape_cast %434 : vector<1x1x16x4xf32> to vector<16x4xf32>
    %c32_801 = arith.constant 32 : index
    %c0_802 = arith.constant 0 : index
    %436 = vector.load %arg7[%c32_801, %c0_802] : memref<256x4xf32, #tpu.memory_space<vmem>>, vector<16x4xf32>
    tpu.vector_store %arg7[%c32_801, %c0_802], %435 {strides = array<i32>} : memref<256x4xf32, #tpu.memory_space<vmem>>, vector<16x4xf32>,
    %c0_803 = arith.constant 0 : index
    %c5_804 = arith.constant 5 : index
    %c2_805 = arith.constant 2 : index
    %c0_806 = arith.constant 0 : index
    %437 = vector.load %arg1[%c0_803, %c5_804, %c2_805, %c0_806] : memref<1x18x18x4xf32, #tpu.memory_space<vmem>>, vector<1x1x16x4xf32>
    %438 = vector.shape_cast %437 : vector<1x1x16x4xf32> to vector<16x4xf32>
    %c48_807 = arith.constant 48 : index
    %c0_808 = arith.constant 0 : index
    %439 = vector.load %arg7[%c48_807, %c0_808] : memref<256x4xf32, #tpu.memory_space<vmem>>, vector<16x4xf32>
    tpu.vector_store %arg7[%c48_807, %c0_808], %438 {strides = array<i32>} : memref<256x4xf32, #tpu.memory_space<vmem>>, vector<16x4xf32>,
    %c0_809 = arith.constant 0 : index
    %c6_810 = arith.constant 6 : index
    %c2_811 = arith.constant 2 : index
    %c0_812 = arith.constant 0 : index
    %440 = vector.load %arg1[%c0_809, %c6_810, %c2_811, %c0_812] : memref<1x18x18x4xf32, #tpu.memory_space<vmem>>, vector<1x1x16x4xf32>
    %441 = vector.shape_cast %440 : vector<1x1x16x4xf32> to vector<16x4xf32>
    %c64_813 = arith.constant 64 : index
    %c0_814 = arith.constant 0 : index
    %442 = vector.load %arg7[%c64_813, %c0_814] : memref<256x4xf32, #tpu.memory_space<vmem>>, vector<16x4xf32>
    tpu.vector_store %arg7[%c64_813, %c0_814], %441 {strides = array<i32>} : memref<256x4xf32, #tpu.memory_space<vmem>>, vector<16x4xf32>,
    %c0_815 = arith.constant 0 : index
    %c7_816 = arith.constant 7 : index
    %c2_817 = arith.constant 2 : index
    %c0_818 = arith.constant 0 : index
    %443 = vector.load %arg1[%c0_815, %c7_816, %c2_817, %c0_818] : memref<1x18x18x4xf32, #tpu.memory_space<vmem>>, vector<1x1x16x4xf32>
    %444 = vector.shape_cast %443 : vector<1x1x16x4xf32> to vector<16x4xf32>
    %c80_819 = arith.constant 80 : index
    %c0_820 = arith.constant 0 : index
    %445 = vector.load %arg7[%c80_819, %c0_820] : memref<256x4xf32, #tpu.memory_space<vmem>>, vector<16x4xf32>
    tpu.vector_store %arg7[%c80_819, %c0_820], %444 {strides = array<i32>} : memref<256x4xf32, #tpu.memory_space<vmem>>, vector<16x4xf32>,
    %c0_821 = arith.constant 0 : index
    %c8_822 = arith.constant 8 : index
    %c2_823 = arith.constant 2 : index
    %c0_824 = arith.constant 0 : index
    %446 = vector.load %arg1[%c0_821, %c8_822, %c2_823, %c0_824] : memref<1x18x18x4xf32, #tpu.memory_space<vmem>>, vector<1x1x16x4xf32>
    %447 = vector.shape_cast %446 : vector<1x1x16x4xf32> to vector<16x4xf32>
    %c96_825 = arith.constant 96 : index
    %c0_826 = arith.constant 0 : index
    %448 = vector.load %arg7[%c96_825, %c0_826] : memref<256x4xf32, #tpu.memory_space<vmem>>, vector<16x4xf32>
    tpu.vector_store %arg7[%c96_825, %c0_826], %447 {strides = array<i32>} : memref<256x4xf32, #tpu.memory_space<vmem>>, vector<16x4xf32>,
    %c0_827 = arith.constant 0 : index
    %c9_828 = arith.constant 9 : index
    %c2_829 = arith.constant 2 : index
    %c0_830 = arith.constant 0 : index
    %449 = vector.load %arg1[%c0_827, %c9_828, %c2_829, %c0_830] : memref<1x18x18x4xf32, #tpu.memory_space<vmem>>, vector<1x1x16x4xf32>
    %450 = vector.shape_cast %449 : vector<1x1x16x4xf32> to vector<16x4xf32>
    %c112_831 = arith.constant 112 : index
    %c0_832 = arith.constant 0 : index
    %451 = vector.load %arg7[%c112_831, %c0_832] : memref<256x4xf32, #tpu.memory_space<vmem>>, vector<16x4xf32>
    tpu.vector_store %arg7[%c112_831, %c0_832], %450 {strides = array<i32>} : memref<256x4xf32, #tpu.memory_space<vmem>>, vector<16x4xf32>,
    %c0_833 = arith.constant 0 : index
    %c10_834 = arith.constant 10 : index
    %c2_835 = arith.constant 2 : index
    %c0_836 = arith.constant 0 : index
    %452 = vector.load %arg1[%c0_833, %c10_834, %c2_835, %c0_836] : memref<1x18x18x4xf32, #tpu.memory_space<vmem>>, vector<1x1x16x4xf32>
    %453 = vector.shape_cast %452 : vector<1x1x16x4xf32> to vector<16x4xf32>
    %c128_837 = arith.constant 128 : index
    %c0_838 = arith.constant 0 : index
    %454 = vector.load %arg7[%c128_837, %c0_838] : memref<256x4xf32, #tpu.memory_space<vmem>>, vector<16x4xf32>
    tpu.vector_store %arg7[%c128_837, %c0_838], %453 {strides = array<i32>} : memref<256x4xf32, #tpu.memory_space<vmem>>, vector<16x4xf32>,
    %c0_839 = arith.constant 0 : index
    %c11_840 = arith.constant 11 : index
    %c2_841 = arith.constant 2 : index
    %c0_842 = arith.constant 0 : index
    %455 = vector.load %arg1[%c0_839, %c11_840, %c2_841, %c0_842] : memref<1x18x18x4xf32, #tpu.memory_space<vmem>>, vector<1x1x16x4xf32>
    %456 = vector.shape_cast %455 : vector<1x1x16x4xf32> to vector<16x4xf32>
    %c144_843 = arith.constant 144 : index
    %c0_844 = arith.constant 0 : index
    %457 = vector.load %arg7[%c144_843, %c0_844] : memref<256x4xf32, #tpu.memory_space<vmem>>, vector<16x4xf32>
    tpu.vector_store %arg7[%c144_843, %c0_844], %456 {strides = array<i32>} : memref<256x4xf32, #tpu.memory_space<vmem>>, vector<16x4xf32>,
    %c0_845 = arith.constant 0 : index
    %c12_846 = arith.constant 12 : index
    %c2_847 = arith.constant 2 : index
    %c0_848 = arith.constant 0 : index
    %458 = vector.load %arg1[%c0_845, %c12_846, %c2_847, %c0_848] : memref<1x18x18x4xf32, #tpu.memory_space<vmem>>, vector<1x1x16x4xf32>
    %459 = vector.shape_cast %458 : vector<1x1x16x4xf32> to vector<16x4xf32>
    %c160_849 = arith.constant 160 : index
    %c0_850 = arith.constant 0 : index
    %460 = vector.load %arg7[%c160_849, %c0_850] : memref<256x4xf32, #tpu.memory_space<vmem>>, vector<16x4xf32>
    tpu.vector_store %arg7[%c160_849, %c0_850], %459 {strides = array<i32>} : memref<256x4xf32, #tpu.memory_space<vmem>>, vector<16x4xf32>,
    %c0_851 = arith.constant 0 : index
    %c13_852 = arith.constant 13 : index
    %c2_853 = arith.constant 2 : index
    %c0_854 = arith.constant 0 : index
    %461 = vector.load %arg1[%c0_851, %c13_852, %c2_853, %c0_854] : memref<1x18x18x4xf32, #tpu.memory_space<vmem>>, vector<1x1x16x4xf32>
    %462 = vector.shape_cast %461 : vector<1x1x16x4xf32> to vector<16x4xf32>
    %c176_855 = arith.constant 176 : index
    %c0_856 = arith.constant 0 : index
    %463 = vector.load %arg7[%c176_855, %c0_856] : memref<256x4xf32, #tpu.memory_space<vmem>>, vector<16x4xf32>
    tpu.vector_store %arg7[%c176_855, %c0_856], %462 {strides = array<i32>} : memref<256x4xf32, #tpu.memory_space<vmem>>, vector<16x4xf32>,
    %c0_857 = arith.constant 0 : index
    %c14_858 = arith.constant 14 : index
    %c2_859 = arith.constant 2 : index
    %c0_860 = arith.constant 0 : index
    %464 = vector.load %arg1[%c0_857, %c14_858, %c2_859, %c0_860] : memref<1x18x18x4xf32, #tpu.memory_space<vmem>>, vector<1x1x16x4xf32>
    %465 = vector.shape_cast %464 : vector<1x1x16x4xf32> to vector<16x4xf32>
    %c192_861 = arith.constant 192 : index
    %c0_862 = arith.constant 0 : index
    %466 = vector.load %arg7[%c192_861, %c0_862] : memref<256x4xf32, #tpu.memory_space<vmem>>, vector<16x4xf32>
    tpu.vector_store %arg7[%c192_861, %c0_862], %465 {strides = array<i32>} : memref<256x4xf32, #tpu.memory_space<vmem>>, vector<16x4xf32>,
    %c0_863 = arith.constant 0 : index
    %c15_864 = arith.constant 15 : index
    %c2_865 = arith.constant 2 : index
    %c0_866 = arith.constant 0 : index
    %467 = vector.load %arg1[%c0_863, %c15_864, %c2_865, %c0_866] : memref<1x18x18x4xf32, #tpu.memory_space<vmem>>, vector<1x1x16x4xf32>
    %468 = vector.shape_cast %467 : vector<1x1x16x4xf32> to vector<16x4xf32>
    %c208_867 = arith.constant 208 : index
    %c0_868 = arith.constant 0 : index
    %469 = vector.load %arg7[%c208_867, %c0_868] : memref<256x4xf32, #tpu.memory_space<vmem>>, vector<16x4xf32>
    tpu.vector_store %arg7[%c208_867, %c0_868], %468 {strides = array<i32>} : memref<256x4xf32, #tpu.memory_space<vmem>>, vector<16x4xf32>,
    %c0_869 = arith.constant 0 : index
    %c16_870 = arith.constant 16 : index
    %c2_871 = arith.constant 2 : index
    %c0_872 = arith.constant 0 : index
    %470 = vector.load %arg1[%c0_869, %c16_870, %c2_871, %c0_872] : memref<1x18x18x4xf32, #tpu.memory_space<vmem>>, vector<1x1x16x4xf32>
    %471 = vector.shape_cast %470 : vector<1x1x16x4xf32> to vector<16x4xf32>
    %c224_873 = arith.constant 224 : index
    %c0_874 = arith.constant 0 : index
    %472 = vector.load %arg7[%c224_873, %c0_874] : memref<256x4xf32, #tpu.memory_space<vmem>>, vector<16x4xf32>
    tpu.vector_store %arg7[%c224_873, %c0_874], %471 {strides = array<i32>} : memref<256x4xf32, #tpu.memory_space<vmem>>, vector<16x4xf32>,
    %c0_875 = arith.constant 0 : index
    %c17_876 = arith.constant 17 : index
    %c2_877 = arith.constant 2 : index
    %c0_878 = arith.constant 0 : index
    %473 = vector.load %arg1[%c0_875, %c17_876, %c2_877, %c0_878] : memref<1x18x18x4xf32, #tpu.memory_space<vmem>>, vector<1x1x16x4xf32>
    %474 = vector.shape_cast %473 : vector<1x1x16x4xf32> to vector<16x4xf32>
    %c240_879 = arith.constant 240 : index
    %c0_880 = arith.constant 0 : index
    %475 = vector.load %arg7[%c240_879, %c0_880] : memref<256x4xf32, #tpu.memory_space<vmem>>, vector<16x4xf32>
    tpu.vector_store %arg7[%c240_879, %c0_880], %474 {strides = array<i32>} : memref<256x4xf32, #tpu.memory_space<vmem>>, vector<16x4xf32>,
    %c0_881 = arith.constant 0 : index
    %c0_882 = arith.constant 0 : index
    %476 = vector.load %arg7[%c0_881, %c0_882] : memref<256x4xf32, #tpu.memory_space<vmem>>, vector<256x4xf32>
    %c8_883 = arith.constant 8 : index
    %c0_884 = arith.constant 0 : index
    %c0_885 = arith.constant 0 : index
    %477 = vector.load %arg2[%c8_883, %c0_884, %c0_885] : memref<9x4x32xf32, #tpu.memory_space<vmem>>, vector<1x4x32xf32>
    %478 = vector.shape_cast %477 : vector<1x4x32xf32> to vector<4x32xf32>
    %cst_886 = arith.constant dense<0.000000e+00> : vector<256x32xf32>
    %479 = tpu.matmul %476, %478, %cst_886 {dimension_numbers = #tpu.dot_dimension_numbers<[1], [0], [0], [1], [0, 0, 1, 1], [], []>} : vector<256x4xf32>, vector<4x32xf32>, vector<256x32xf32> -> vector<256x32xf32>
    %480 = arith.addf %427, %479 : vector<256x32xf32>
    %c0_887 = arith.constant 0 : index
    %c0_888 = arith.constant 0 : index
    %481 = vector.load %arg3[%c0_887, %c0_888] : memref<1x32xf32, #tpu.memory_space<vmem>>, vector<1x32xf32>
    %482 = vector.broadcast %481 : vector<1x32xf32> to vector<256x32xf32>
    %483 = arith.addf %480, %482 : vector<256x32xf32>
    %c256_i32 = arith.constant 256 : i32
    %484 = arith.muli %arg0, %c256_i32 : i32
    %485 = tpu.assume_multiple %484, 8 : i32
    %486 = arith.index_cast %485 : i32 to index
    %c0_889 = arith.constant 0 : index
    %487 = vector.load %arg6[%486, %c0_889] : memref<512x32xf32, #tpu.memory_space<vmem>>, vector<256x32xf32>
    tpu.vector_store %arg6[%486, %c0_889], %483 {strides = array<i32>} : memref<512x32xf32, #tpu.memory_space<vmem>>, vector<256x32xf32>,
    %c0_890 = arith.constant 0 : index
    %c0_891 = arith.constant 0 : index
    %488 = vector.load %arg8[%c0_890, %c0_891] : memref<1x32xf32, #tpu.memory_space<vmem>>, vector<1x32xf32>
    %cst_892 = arith.constant dense<0.000000e+00> : vector<32xf32>
    %489 = vector.multi_reduction <add>, %483, %cst_892 [0] : vector<256x32xf32> to vector<32xf32>
    %490 = vector.shape_cast %489 : vector<32xf32> to vector<1x32xf32>
    %491 = arith.addf %488, %490 : vector<1x32xf32>
    %c0_893 = arith.constant 0 : index
    %c0_894 = arith.constant 0 : index
    %492 = vector.load %arg8[%c0_893, %c0_894] : memref<1x32xf32, #tpu.memory_space<vmem>>, vector<1x32xf32>
    tpu.vector_store %arg8[%c0_893, %c0_894], %491 {strides = array<i32>} : memref<1x32xf32, #tpu.memory_space<vmem>>, vector<1x32xf32>,
    %c0_895 = arith.constant 0 : index
    %c0_896 = arith.constant 0 : index
    %493 = vector.load %arg9[%c0_895, %c0_896] : memref<1x32xf32, #tpu.memory_space<vmem>>, vector<1x32xf32>
    %494 = arith.mulf %483, %483 : vector<256x32xf32>
    %cst_897 = arith.constant dense<0.000000e+00> : vector<32xf32>
    %495 = vector.multi_reduction <add>, %494, %cst_897 [0] : vector<256x32xf32> to vector<32xf32>
    %496 = vector.shape_cast %495 : vector<32xf32> to vector<1x32xf32>
    %497 = arith.addf %493, %496 : vector<1x32xf32>
    %c0_898 = arith.constant 0 : index
    %c0_899 = arith.constant 0 : index
    %498 = vector.load %arg9[%c0_898, %c0_899] : memref<1x32xf32, #tpu.memory_space<vmem>>, vector<1x32xf32>
    tpu.vector_store %arg9[%c0_898, %c0_899], %497 {strides = array<i32>} : memref<1x32xf32, #tpu.memory_space<vmem>>, vector<1x32xf32>,
    %c1_i32 = arith.constant 1 : i32
    %499 = arith.cmpi eq, %arg0, %c1_i32 : i32
    %500 = arith.extui %499 : i1 to i32
    %c0_i32_900 = arith.constant 0 : i32
    %501 = arith.cmpi ne, %500, %c0_i32_900 : i32
    scf.if %501 {
      %c0_901 = arith.constant 0 : index
      %c0_902 = arith.constant 0 : index
      %502 = vector.load %arg8[%c0_901, %c0_902] : memref<1x32xf32, #tpu.memory_space<vmem>>, vector<1x32xf32>
      %cst_903 = arith.constant 0.001953125 : f32
      %503 = vector.broadcast %cst_903 : f32 to vector<1x32xf32>
      %504 = arith.mulf %502, %503 : vector<1x32xf32>
      %c0_904 = arith.constant 0 : index
      %c0_905 = arith.constant 0 : index
      %505 = vector.load %arg9[%c0_904, %c0_905] : memref<1x32xf32, #tpu.memory_space<vmem>>, vector<1x32xf32>
      %cst_906 = arith.constant 0.001953125 : f32
      %506 = vector.broadcast %cst_906 : f32 to vector<1x32xf32>
      %507 = arith.mulf %505, %506 : vector<1x32xf32>
      %508 = arith.mulf %504, %504 : vector<1x32xf32>
      %509 = arith.subf %507, %508 : vector<1x32xf32>
      %cst_907 = arith.constant 0.000000e+00 : f32
      %510 = vector.broadcast %cst_907 : f32 to vector<1x32xf32>
      %511 = arith.maximumf %509, %510 : vector<1x32xf32>
      %c0_908 = arith.constant 0 : index
      %c0_909 = arith.constant 0 : index
      %512 = vector.load %arg4[%c0_908, %c0_909] : memref<1x32xf32, #tpu.memory_space<vmem>>, vector<1x32xf32>
      %cst_910 = arith.constant 9.99999974E-6 : f32
      %513 = vector.broadcast %cst_910 : f32 to vector<1x32xf32>
      %514 = arith.addf %511, %513 : vector<1x32xf32>
      %515 = math.rsqrt %514 : vector<1x32xf32>
      %516 = arith.mulf %512, %515 : vector<1x32xf32>
      %c0_911 = arith.constant 0 : index
      %c0_912 = arith.constant 0 : index
      %517 = vector.load %arg5[%c0_911, %c0_912] : memref<1x32xf32, #tpu.memory_space<vmem>>, vector<1x32xf32>
      %518 = arith.mulf %504, %516 : vector<1x32xf32>
      %519 = arith.subf %517, %518 : vector<1x32xf32>
      %c0_913 = arith.constant 0 : index
      %c0_914 = arith.constant 0 : index
      %520 = vector.load %arg6[%c0_913, %c0_914] : memref<512x32xf32, #tpu.memory_space<vmem>>, vector<256x32xf32>
      %521 = vector.broadcast %516 : vector<1x32xf32> to vector<256x32xf32>
      %522 = arith.mulf %520, %521 : vector<256x32xf32>
      %523 = vector.broadcast %519 : vector<1x32xf32> to vector<256x32xf32>
      %524 = arith.addf %522, %523 : vector<256x32xf32>
      %cst_915 = arith.constant 0.000000e+00 : f32
      %525 = vector.broadcast %cst_915 : f32 to vector<256x32xf32>
      %526 = arith.maximumf %524, %525 : vector<256x32xf32>
      %c0_916 = arith.constant 0 : index
      %c0_917 = arith.constant 0 : index
      %527 = vector.load %arg6[%c0_916, %c0_917] : memref<512x32xf32, #tpu.memory_space<vmem>>, vector<256x32xf32>
      tpu.vector_store %arg6[%c0_916, %c0_917], %526 {strides = array<i32>} : memref<512x32xf32, #tpu.memory_space<vmem>>, vector<256x32xf32>,
      %c256 = arith.constant 256 : index
      %c0_918 = arith.constant 0 : index
      %528 = vector.load %arg6[%c256, %c0_918] : memref<512x32xf32, #tpu.memory_space<vmem>>, vector<256x32xf32>
      %529 = vector.broadcast %516 : vector<1x32xf32> to vector<256x32xf32>
      %530 = arith.mulf %528, %529 : vector<256x32xf32>
      %531 = vector.broadcast %519 : vector<1x32xf32> to vector<256x32xf32>
      %532 = arith.addf %530, %531 : vector<256x32xf32>
      %cst_919 = arith.constant 0.000000e+00 : f32
      %533 = vector.broadcast %cst_919 : f32 to vector<256x32xf32>
      %534 = arith.maximumf %532, %533 : vector<256x32xf32>
      %c256_920 = arith.constant 256 : index
      %c0_921 = arith.constant 0 : index
      %535 = vector.load %arg6[%c256_920, %c0_921] : memref<512x32xf32, #tpu.memory_space<vmem>>, vector<256x32xf32>
      tpu.vector_store %arg6[%c256_920, %c0_921], %534 {strides = array<i32>} : memref<512x32xf32, #tpu.memory_space<vmem>>, vector<256x32xf32>,
    } else {
    }
    return
  }
  func.func @transform_0(%arg0: i32) -> (i32, i32, i32, i32) {
    %c0_i32 = arith.constant 0 : i32
    %c0_i32_0 = arith.constant 0 : i32
    %c0_i32_1 = arith.constant 0 : i32
    %c0_i32_2 = arith.constant 0 : i32
    return %arg0, %c0_i32, %c0_i32_0, %c0_i32_1 : i32, i32, i32, i32
  }
  func.func @transform_1(%arg0: i32) -> (i32, i32, i32) {
    %c0_i32 = arith.constant 0 : i32
    %c0_i32_0 = arith.constant 0 : i32
    %c0_i32_1 = arith.constant 0 : i32
    %c0_i32_2 = arith.constant 0 : i32
    return %c0_i32, %c0_i32_0, %c0_i32_1 : i32, i32, i32
  }
  func.func @transform_2(%arg0: i32) -> (i32, i32) {
    %c0_i32 = arith.constant 0 : i32
    %c0_i32_0 = arith.constant 0 : i32
    %c0_i32_1 = arith.constant 0 : i32
    return %c0_i32, %c0_i32_0 : i32, i32
  }
  func.func @transform_3(%arg0: i32) -> (i32, i32) {
    %c0_i32 = arith.constant 0 : i32
    %c0_i32_0 = arith.constant 0 : i32
    %c0_i32_1 = arith.constant 0 : i32
    return %c0_i32, %c0_i32_0 : i32, i32
  }
  func.func @transform_4(%arg0: i32) -> (i32, i32) {
    %c0_i32 = arith.constant 0 : i32
    %c0_i32_0 = arith.constant 0 : i32
    %c0_i32_1 = arith.constant 0 : i32
    return %c0_i32, %c0_i32_0 : i32, i32
  }
  func.func @transform_5(%arg0: i32) -> (i32, i32) {
    %c0_i32 = arith.constant 0 : i32
    %c0_i32_0 = arith.constant 0 : i32
    %c0_i32_1 = arith.constant 0 : i32
    return %c0_i32, %c0_i32_0 : i32, i32
  }
}

</mosaic_0001>

<llo_original>
// kernel: basic_conv_forward.1
$region0: #{basic_conv_forward.1}
  #allocation0 [shape = 'u32[]', space=smem, size = 0x4, offset = 0x4, fixed_abs, tag = 'smem constant byte address 0x4 - core index']
  #allocation1 [shape = 'u32[72,128]{1,0:T(1,128)}', space=vmem, size = 0x9000, scoped, tag = 'internal scratch']
  #allocation2 [shape = 'f32[256,4]{1,0:T(8,128)}', space=vmem, size = 0x20000, scoped, tag = 'scratch operand']
  #allocation3 [shape = 'f32[1,32]{1,0:T(1,128)}', space=vmem, size = 0x200, scoped, tag = 'scratch operand']
  #allocation4 [shape = 'f32[1,32]{1,0:T(1,128)}', space=vmem, size = 0x200, scoped, tag = 'scratch operand']
  %s0 = inlined_call_operand.vmem [shape: f32[2,18,18,4], index: 0, kind: input, shape index: {}]
  %s1 = inlined_call_operand.vmem [shape: f32[9,4,32], index: 1, kind: input, shape index: {}]
  %s2 = inlined_call_operand.vmem [shape: f32[1,32], index: 2, kind: input, shape index: {}]
  %s3 = inlined_call_operand.vmem [shape: f32[1,32], index: 3, kind: input, shape index: {}]
  %s4 = inlined_call_operand.vmem [shape: f32[1,32], index: 4, kind: input, shape index: {}]
  %s5 = inlined_call_operand.hbm [shape: f32[512,32], index: 5, kind: output, shape index: {}]
  %s6 = sld [smem:[#allocation0]]
  $region61: #{basic_conv_forward.1} parent=0
    _
  %s8 = ssub.s32 1, %s6
  %s9 = scalar_select 0, %s8, %s6
  $region1: #{basic_conv_forward.1} parent=0
    #allocation5 [shape = 'u8[262144]{0}', space=vmem, size = 0x40000, scoped, tag = 'output window, operand 0, single buffered']
    #allocation6 [shape = 's32[2]{0}', space=sflag, size = 0x8, scoped, tag = 'scoped memory for basic_conv_forward.1']
    %10 = vsyncpa [#allocation6], 0
    loop: start=0, step=1, limit=4
    $region2: #{basic_conv_forward.1} parent=1 // loop_pre_header
      _
    $region3: #{basic_conv_forward.1} parent=1 // loop_header
      %s12 = sphi 0, %s16
      %p13 = scmp.ge.s32.totalorder %s12, 4
      %s22 = sphi 0, %s24
      %s25 = sphi 0, %s22
      %s26 = sphi 0, %s25
      %s42 = sphi 0, %s26
      %s46 = sphi 0, %s46
      %s48 = sphi 0, %s46
      %s49 = sphi 0, %s48
      %s63 = sphi 0, %s49
      %s67 = sphi 0, %s67
      %s69 = sphi 0, %s67
      %s70 = sphi 0, %s69
      %s84 = sphi 0, %s70
      %s88 = sphi 0, %s88
      %s90 = sphi 0, %s88
      %s91 = sphi 0, %s90
      %s105 = sphi 0, %s91
      %s109 = sphi 0, %s109
      %s111 = sphi 0, %s109
      %s112 = sphi 0, %s111
      %s126 = sphi 0, %s112
      %s130 = sphi 0, %s130
      %s132 = sphi 0, %s130
      %s133 = sphi 0, %s132
      %s147 = sphi 0, %s133
    $region4: #{basic_conv_forward.1} parent=1 // loop_header_branch
      %15 = sbr.rel (%p13) target = $region8
    $region5: #{basic_conv_forward.1} parent=1 // loop_body
      %s17 = ssub.s32 %s12, 1
      %s18 = ssub.s32 %s12, 2
      %s19 = sadd.s32 %s12, 1
      %s20 = ssub.s32 %s12, %s19
      %p21 = scmp.eq.s32.totalorder %s20, 0
      %s23 = sadd.s32 %s22, 1
      %s24 = scalar_select %p21, %s22, %s23
      %p27 = pneg %p21
      %p28 = scmp.eq.s32.totalorder %s12, 1
      %p29 = por %p27, %p28
      %p30 = scmp.ne.s32.totalorder %s22, %s25
      %p31 = scmp.eq.s32.totalorder %s12, 0
      %p32 = por %p30, %p31
      %p33 = scmp.ne.s32.totalorder %s22, %s25
      %p34 = scmp.eq.s32.totalorder %s17, 1
      %p35 = por %p33, %p34
      %p36 = scmp.ne.s32.totalorder %s25, %s26
      %p37 = scmp.eq.s32.totalorder %s17, 0
      %p38 = por %p36, %p37
      %p39 = scmp.ne.s32.totalorder %s25, %s26
      %p40 = scmp.eq.s32.totalorder %s18, 1
      %p41 = por %p39, %p40
      %p43 = scmp.ne.s32.totalorder %s26, %s42
      %p44 = scmp.eq.s32.totalorder %s18, 0
      %p45 = por %p43, %p44
      %s47 = sadd.s32 %s46, 1
      %p50 = scmp.eq.s32.totalorder %s12, 1
      %p51 = scmp.ne.s32.totalorder %s46, %s48
      %p52 = scmp.eq.s32.totalorder %s12, 0
      %p53 = por %p51, %p52
      %p54 = scmp.ne.s32.totalorder %s46, %s48
      %p55 = scmp.eq.s32.totalorder %s17, 1
      %p56 = por %p54, %p55
      %p57 = scmp.ne.s32.totalorder %s48, %s49
      %p58 = scmp.eq.s32.totalorder %s17, 0
      %p59 = por %p57, %p58
      %p60 = scmp.ne.s32.totalorder %s48, %s49
      %p61 = scmp.eq.s32.totalorder %s18, 1
      %p62 = por %p60, %p61
      %p64 = scmp.ne.s32.totalorder %s49, %s63
      %p65 = scmp.eq.s32.totalorder %s18, 0
      %p66 = por %p64, %p65
      %s68 = sadd.s32 %s67, 1
      %p71 = scmp.eq.s32.totalorder %s12, 1
      %p72 = scmp.ne.s32.totalorder %s67, %s69
      %p73 = scmp.eq.s32.totalorder %s12, 0
      %p74 = por %p72, %p73
      %p75 = scmp.ne.s32.totalorder %s67, %s69
      %p76 = scmp.eq.s32.totalorder %s17, 1
      %p77 = por %p75, %p76
      %p78 = scmp.ne.s32.totalorder %s69, %s70
      %p79 = scmp.eq.s32.totalorder %s17, 0
      %p80 = por %p78, %p79
      %p81 = scmp.ne.s32.totalorder %s69, %s70
      %p82 = scmp.eq.s32.totalorder %s18, 1
      %p83 = por %p81, %p82
      %p85 = scmp.ne.s32.totalorder %s70, %s84
      %p86 = scmp.eq.s32.totalorder %s18, 0
      %p87 = por %p85, %p86
      %s89 = sadd.s32 %s88, 1
      %p92 = scmp.eq.s32.totalorder %s12, 1
      %p93 = scmp.ne.s32.totalorder %s88, %s90
      %p94 = scmp.eq.s32.totalorder %s12, 0
      %p95 = por %p93, %p94
      %p96 = scmp.ne.s32.totalorder %s88, %s90
      %p97 = scmp.eq.s32.totalorder %s17, 1
      %p98 = por %p96, %p97
      %p99 = scmp.ne.s32.totalorder %s90, %s91
      %p100 = scmp.eq.s32.totalorder %s17, 0
      %p101 = por %p99, %p100
      %p102 = scmp.ne.s32.totalorder %s90, %s91
      %p103 = scmp.eq.s32.totalorder %s18, 1
      %p104 = por %p102, %p103
      %p106 = scmp.ne.s32.totalorder %s91, %s105
      %p107 = scmp.eq.s32.totalorder %s18, 0
      %p108 = por %p106, %p107
      %s110 = sadd.s32 %s109, 1
      %p113 = scmp.eq.s32.totalorder %s12, 1
      %p114 = scmp.ne.s32.totalorder %s109, %s111
      %p115 = scmp.eq.s32.totalorder %s12, 0
      %p116 = por %p114, %p115
      %p117 = scmp.ne.s32.totalorder %s109, %s111
      %p118 = scmp.eq.s32.totalorder %s17, 1
      %p119 = por %p117, %p118
      %p120 = scmp.ne.s32.totalorder %s111, %s112
      %p121 = scmp.eq.s32.totalorder %s17, 0
      %p122 = por %p120, %p121
      %p123 = scmp.ne.s32.totalorder %s111, %s112
      %p124 = scmp.eq.s32.totalorder %s18, 1
      %p125 = por %p123, %p124
      %p127 = scmp.ne.s32.totalorder %s112, %s126
      %p128 = scmp.eq.s32.totalorder %s18, 0
      %p129 = por %p127, %p128
      %s131 = sadd.s32 %s130, 1
      %p134 = scmp.eq.s32.totalorder %s12, 1
      %p135 = scmp.ne.s32.totalorder %s130, %s132
      %p136 = scmp.eq.s32.totalorder %s12, 0
      %p137 = por %p135, %p136
      %p138 = scmp.ne.s32.totalorder %s130, %s132
      %p139 = scmp.eq.s32.totalorder %s17, 1
      %p140 = por %p138, %p139
      %p141 = scmp.ne.s32.totalorder %s132, %s133
      %p142 = scmp.eq.s32.totalorder %s17, 0
      %p143 = por %p141, %p142
      %p144 = scmp.ne.s32.totalorder %s132, %s133
      %p145 = scmp.eq.s32.totalorder %s18, 1
      %p146 = por %p144, %p145
      %p148 = scmp.ne.s32.totalorder %s133, %s147
      %p149 = scmp.eq.s32.totalorder %s18, 0
      %p150 = por %p148, %p149
      %p151 = scmp.le.s32.totalorder 1, %s12
      %p152 = scmp.lt.s32.totalorder %s12, 3
      %p153 = pnand %p151, %p152
      %p154 = pneg %p153
      // Predicated region
      $region9: #{basic_conv_forward.1} parent=5 // pred_check
        _
      $region10: #{basic_conv_forward.1} parent=5 // pred_check_branch
        %156 = sbr.rel (%p153) target = $region12
      $region11: #{basic_conv_forward.1} parent=5 // pred_region
        %s157 = ssub.s32 %s12, 1
        // Predicated region
        $region13: #{basic_conv_forward.1} parent=11 // pred_check
          %p158 = pneg %p59
        $region14: #{basic_conv_forward.1} parent=11 // pred_check_branch
          %160 = sbr.rel (%p158) target = $region16
        $region15: #{basic_conv_forward.1} parent=11 // pred_region
          _
        $region16: #{basic_conv_forward.1} parent=11 // pred_fallthru
          _
        // Predicated region
        $region17: #{basic_conv_forward.1} parent=11 // pred_check
          %p161 = pneg %p80
        $region18: #{basic_conv_forward.1} parent=11 // pred_check_branch
          %163 = sbr.rel (%p161) target = $region20
        $region19: #{basic_conv_forward.1} parent=11 // pred_region
          _
        $region20: #{basic_conv_forward.1} parent=11 // pred_fallthru
          _
        // Predicated region
        $region21: #{basic_conv_forward.1} parent=11 // pred_check
          %p164 = pneg %p101
        $region22: #{basic_conv_forward.1} parent=11 // pred_check_branch
          %166 = sbr.rel (%p164) target = $region24
        $region23: #{basic_conv_forward.1} parent=11 // pred_region
          _
        $region24: #{basic_conv_forward.1} parent=11 // pred_fallthru
          _
        // Predicated region
        $region25: #{basic_conv_forward.1} parent=11 // pred_check
          %p167 = pneg %p122
        $region26: #{basic_conv_forward.1} parent=11 // pred_check_branch
          %169 = sbr.rel (%p167) target = $region28
        $region27: #{basic_conv_forward.1} parent=11 // pred_region
          _
        $region28: #{basic_conv_forward.1} parent=11 // pred_fallthru
          _
      $region12: #{basic_conv_forward.1} parent=5 // pred_fallthru
        _
      %p170 = scmp.lt.s32.totalorder %s12, 2
      // Predicated region
      $region29: #{basic_conv_forward.1} parent=5 // pred_check
        %p171 = pneg %p170
      $region30: #{basic_conv_forward.1} parent=5 // pred_check_branch
        %173 = sbr.rel (%p171) target = $region32
      $region31: #{basic_conv_forward.1} parent=5 // pred_region
        // Predicated region
        $region33: #{basic_conv_forward.1} parent=31 // pred_check
          %p174 = pneg %p32
        $region34: #{basic_conv_forward.1} parent=31 // pred_check_branch
          %176 = sbr.rel (%p174) target = $region36
        $region35: #{basic_conv_forward.1} parent=31 // pred_region
          %p177 = scmp.lt.s32.totalorder %s12, 1
          %s178 = scalar_select %p177, %s12, 1
          %s179 = smul.addr %s178, 54
          %s180 = smul.addr %s179, 8
          %s181 = scalar_lea.vmem %s0, %s180
        $region36: #{basic_conv_forward.1} parent=31 // pred_fallthru
          _
      $region32: #{basic_conv_forward.1} parent=5 // pred_fallthru
        _
      %p182 = scmp.le.s32.totalorder 1, %s12
      %p183 = scmp.lt.s32.totalorder %s12, 3
      %p184 = pnand %p182, %p183
      %p185 = pneg %p184
      // Predicated region
      $region37: #{basic_conv_forward.1} parent=5 // pred_check
        _
      $region38: #{basic_conv_forward.1} parent=5 // pred_check_branch
        %187 = sbr.rel (%p184) target = $region40
      $region39: #{basic_conv_forward.1} parent=5 // pred_region
        %s188 = ssub.s32 %s12, 1
        %p189 = scmp.lt.s32.totalorder %s17, 1
        %s190 = scalar_select %p189, %s17, 1
        %s191 = smul.addr %s190, 54
        %s192 = smul.addr %s191, 8
        %s193 = scalar_lea.vmem %s0, %s192
        %p194 = pneg %p38
        %p195 = pneg %p35
        %p196 = pneg %p59
        %p197 = pneg %p56
        %p198 = pneg %p80
        %p199 = pneg %p77
        %p200 = pneg %p101
        %p201 = pneg %p98
        %p202 = pneg %p122
        %p203 = pneg %p119
        %p204 = pneg %p143
        %p205 = pneg %p140
        %p206 = scmp.lt.s32.totalorder %s17, 1
        %s207 = scalar_select %p206, %s17, 1
        %s208 = smul.addr %s207, 54
        %s209 = smul.addr %s208, 8
        %s210 = scalar_lea.vmem %s0, %s209
        %p211 = scmp.eq.s32.totalorder %s17, 0
        // Predicated region
        $region41: #{basic_conv_forward.1} parent=39 // pred_check
          %p212 = pneg %p211
        $region42: #{basic_conv_forward.1} parent=39 // pred_check_branch
          %214 = sbr.rel (%p212) target = $region44
        $region43: #{basic_conv_forward.1} parent=39 // pred_region
          %vm215 = vcmask 253952
          %216 = vst.msk [vmem:[#allocation3] sm:$0x1] %vm215, 0.0
          %217 = vst.msk [vmem:[#allocation4] sm:$0x1] %vm215, 0.0
        $region44: #{basic_conv_forward.1} parent=39 // pred_fallthru
          _
        %v218 = vld [vmem:[%s210] sm:$0xff]
        %v219 = vld [vmem:[%s210 + $0x8] sm:$0xff]
        %vm220 = vcmask 31744
        %221 = vst.msk [vmem:[#allocation2] sm:$0xff] %vm220, %v218
        %222 = vst.msk [vmem:[#allocation2 + $0x8] sm:$0xff] %vm220, %v219
        %s223 = scalar_lea.vmem %s210, 24
        %v224 = vld [vmem:[%s223] sm:$0xff]
        %v225 = vld [vmem:[%s223 + $0x8] sm:$0xff]
        %226 = vst.msk [vmem:[#allocation2 + $0x10] sm:$0xff] %vm220, %v224
        %227 = vst.msk [vmem:[#allocation2 + $0x18] sm:$0xff] %vm220, %v225
        %s228 = scalar_lea.vmem %s210, 48
        %v229 = vld [vmem:[%s228] sm:$0xff]
        %v230 = vld [vmem:[%s228 + $0x8] sm:$0xff]
        %231 = vst.msk [vmem:[#allocation2 + $0x20] sm:$0xff] %vm220, %v229
        %232 = vst.msk [vmem:[#allocation2 + $0x28] sm:$0xff] %vm220, %v230
        %s233 = scalar_lea.vmem %s210, 72
        %v234 = vld [vmem:[%s233] sm:$0xff]
        %v235 = vld [vmem:[%s233 + $0x8] sm:$0xff]
        %236 = vst.msk [vmem:[#allocation2 + $0x30] sm:$0xff] %vm220, %v234
        %237 = vst.msk [vmem:[#allocation2 + $0x38] sm:$0xff] %vm220, %v235
        %s238 = scalar_lea.vmem %s210, 96
        %v239 = vld [vmem:[%s238] sm:$0xff]
        %v240 = vld [vmem:[%s238 + $0x8] sm:$0xff]
        %241 = vst.msk [vmem:[#allocation2 + $0x40] sm:$0xff] %vm220, %v239
        %242 = vst.msk [vmem:[#allocation2 + $0x48] sm:$0xff] %vm220, %v240
        %s243 = scalar_lea.vmem %s210, 120
        %v244 = vld [vmem:[%s243] sm:$0xff]
        %v245 = vld [vmem:[%s243 + $0x8] sm:$0xff]
        %246 = vst.msk [vmem:[#allocation2 + $0x50] sm:$0xff] %vm220, %v244
        %247 = vst.msk [vmem:[#allocation2 + $0x58] sm:$0xff] %vm220, %v245
        %s248 = scalar_lea.vmem %s210, 144
        %v249 = vld [vmem:[%s248] sm:$0xff]
        %v250 = vld [vmem:[%s248 + $0x8] sm:$0xff]
        %251 = vst.msk [vmem:[#allocation2 + $0x60] sm:$0xff] %vm220, %v249
        %252 = vst.msk [vmem:[#allocation2 + $0x68] sm:$0xff] %vm220, %v250
        %s253 = scalar_lea.vmem %s210, 168
        %v254 = vld [vmem:[%s253] sm:$0xff]
        %v255 = vld [vmem:[%s253 + $0x8] sm:$0xff]
        %256 = vst.msk [vmem:[#allocation2 + $0x70] sm:$0xff] %vm220, %v254
        %257 = vst.msk [vmem:[#allocation2 + $0x78] sm:$0xff] %vm220, %v255
        %s258 = scalar_lea.vmem %s210, 192
        %v259 = vld [vmem:[%s258] sm:$0xff]
        %v260 = vld [vmem:[%s258 + $0x8] sm:$0xff]
        %261 = vst.msk [vmem:[#allocation2 + $0x80] sm:$0xff] %vm220, %v259
        %262 = vst.msk [vmem:[#allocation2 + $0x88] sm:$0xff] %vm220, %v260
        %s263 = scalar_lea.vmem %s210, 216
        %v264 = vld [vmem:[%s263] sm:$0xff]
        %v265 = vld [vmem:[%s263 + $0x8] sm:$0xff]
        %266 = vst.msk [vmem:[#allocation2 + $0x90] sm:$0xff] %vm220, %v264
        %267 = vst.msk [vmem:[#allocation2 + $0x98] sm:$0xff] %vm220, %v265
        %s268 = scalar_lea.vmem %s210, 240
        %v269 = vld [vmem:[%s268] sm:$0xff]
        %v270 = vld [vmem:[%s268 + $0x8] sm:$0xff]
        %271 = vst.msk [vmem:[#allocation2 + $0xa0] sm:$0xff] %vm220, %v269
        %272 = vst.msk [vmem:[#allocation2 + $0xa8] sm:$0xff] %vm220, %v270
        %s273 = scalar_lea.vmem %s210, 264
        %v274 = vld [vmem:[%s273] sm:$0xff]
        %v275 = vld [vmem:[%s273 + $0x8] sm:$0xff]
        %276 = vst.msk [vmem:[#allocation2 + $0xb0] sm:$0xff] %vm220, %v274
        %277 = vst.msk [vmem:[#allocation2 + $0xb8] sm:$0xff] %vm220, %v275
        %s278 = scalar_lea.vmem %s210, 288
        %v279 = vld [vmem:[%s278] sm:$0xff]
        %v280 = vld [vmem:[%s278 + $0x8] sm:$0xff]
        %281 = vst.msk [vmem:[#allocation2 + $0xc0] sm:$0xff] %vm220, %v279
        %282 = vst.msk [vmem:[#allocation2 + $0xc8] sm:$0xff] %vm220, %v280
        %s283 = scalar_lea.vmem %s210, 312
        %v284 = vld [vmem:[%s283] sm:$0xff]
        %v285 = vld [vmem:[%s283 + $0x8] sm:$0xff]
        %286 = vst.msk [vmem:[#allocation2 + $0xd0] sm:$0xff] %vm220, %v284
        %287 = vst.msk [vmem:[#allocation2 + $0xd8] sm:$0xff] %vm220, %v285
        %s288 = scalar_lea.vmem %s210, 336
        %v289 = vld [vmem:[%s288] sm:$0xff]
        %v290 = vld [vmem:[%s288 + $0x8] sm:$0xff]
        %291 = vst.msk [vmem:[#allocation2 + $0xe0] sm:$0xff] %vm220, %v289
        %292 = vst.msk [vmem:[#allocation2 + $0xe8] sm:$0xff] %vm220, %v290
        %s293 = scalar_lea.vmem %s210, 360
        %v294 = vld [vmem:[%s293] sm:$0xff]
        %v295 = vld [vmem:[%s293 + $0x8] sm:$0xff]
        %296 = vst.msk [vmem:[#allocation2 + $0xf0] sm:$0xff] %vm220, %v294
        %297 = vst.msk [vmem:[#allocation2 + $0xf8] sm:$0xff] %vm220, %v295
        %v298 = vld [vmem:[#allocation2] sm:$0xff]
        %v299 = vld [vmem:[#allocation2 + $0x8] sm:$0xff]
        %v300 = vld [vmem:[#allocation2 + $0x10] sm:$0xff]
        %v301 = vld [vmem:[#allocation2 + $0x18] sm:$0xff]
        %v302 = vld [vmem:[#allocation2 + $0x20] sm:$0xff]
        %v303 = vld [vmem:[#allocation2 + $0x28] sm:$0xff]
        %v304 = vld [vmem:[#allocation2 + $0x30] sm:$0xff]
        %v305 = vld [vmem:[#allocation2 + $0x38] sm:$0xff]
        %v306 = vld [vmem:[#allocation2 + $0x40] sm:$0xff]
        %v307 = vld [vmem:[#allocation2 + $0x48] sm:$0xff]
        %v308 = vld [vmem:[#allocation2 + $0x50] sm:$0xff]
        %v309 = vld [vmem:[#allocation2 + $0x58] sm:$0xff]
        %v310 = vld [vmem:[#allocation2 + $0x60] sm:$0xff]
        %v311 = vld [vmem:[#allocation2 + $0x68] sm:$0xff]
        %v312 = vld [vmem:[#allocation2 + $0x70] sm:$0xff]
        %v313 = vld [vmem:[#allocation2 + $0x78] sm:$0xff]
        %v314 = vld [vmem:[#allocation2 + $0x80] sm:$0xff]
        %v315 = vld [vmem:[#allocation2 + $0x88] sm:$0xff]
        %v316 = vld [vmem:[#allocation2 + $0x90] sm:$0xff]
        %v317 = vld [vmem:[#allocation2 + $0x98] sm:$0xff]
        %v318 = vld [vmem:[#allocation2 + $0xa0] sm:$0xff]
        %v319 = vld [vmem:[#allocation2 + $0xa8] sm:$0xff]
        %v320 = vld [vmem:[#allocation2 + $0xb0] sm:$0xff]
        %v321 = vld [vmem:[#allocation2 + $0xb8] sm:$0xff]
        %v322 = vld [vmem:[#allocation2 + $0xc0] sm:$0xff]
        %v323 = vld [vmem:[#allocation2 + $0xc8] sm:$0xff]
        %v324 = vld [vmem:[#allocation2 + $0xd0] sm:$0xff]
        %v325 = vld [vmem:[#allocation2 + $0xd8] sm:$0xff]
        %v326 = vld [vmem:[#allocation2 + $0xe0] sm:$0xff]
        %v327 = vld [vmem:[#allocation2 + $0xe8] sm:$0xff]
        %v328 = vld [vmem:[#allocation2 + $0xf0] sm:$0xff]
        %v329 = vld [vmem:[#allocation2 + $0xf8] sm:$0xff]
        %v330 = vld [vmem:[%s1] sm:$0xf]
        %v331 = vld [vmem:[%s210 + $0x1] sm:$0xff]
        %v332 = vld [vmem:[%s210 + $0x9] sm:$0xff]
        %333 = vst.msk [vmem:[#allocation2] sm:$0xff] %vm220, %v331
        %334 = vst.msk [vmem:[#allocation2 + $0x8] sm:$0xff] %vm220, %v332
        %v335 = vld [vmem:[%s223 + $0x1] sm:$0xff]
        %v336 = vld [vmem:[%s223 + $0x9] sm:$0xff]
        %337 = vst.msk [vmem:[#allocation2 + $0x10] sm:$0xff] %vm220, %v335
        %338 = vst.msk [vmem:[#allocation2 + $0x18] sm:$0xff] %vm220, %v336
        %v339 = vld [vmem:[%s228 + $0x1] sm:$0xff]
        %v340 = vld [vmem:[%s228 + $0x9] sm:$0xff]
        %341 = vst.msk [vmem:[#allocation2 + $0x20] sm:$0xff] %vm220, %v339
        %342 = vst.msk [vmem:[#allocation2 + $0x28] sm:$0xff] %vm220, %v340
        %v343 = vld [vmem:[%s233 + $0x1] sm:$0xff]
        %v344 = vld [vmem:[%s233 + $0x9] sm:$0xff]
        %345 = vst.msk [vmem:[#allocation2 + $0x30] sm:$0xff] %vm220, %v343
        %346 = vst.msk [vmem:[#allocation2 + $0x38] sm:$0xff] %vm220, %v344
        %v347 = vld [vmem:[%s238 + $0x1] sm:$0xff]
        %v348 = vld [vmem:[%s238 + $0x9] sm:$0xff]
        %349 = vst.msk [vmem:[#allocation2 + $0x40] sm:$0xff] %vm220, %v347
        %350 = vst.msk [vmem:[#allocation2 + $0x48] sm:$0xff] %vm220, %v348
        %v351 = vld [vmem:[%s243 + $0x1] sm:$0xff]
        %v352 = vld [vmem:[%s243 + $0x9] sm:$0xff]
        %353 = vst.msk [vmem:[#allocation2 + $0x50] sm:$0xff] %vm220, %v351
        %354 = vst.msk [vmem:[#allocation2 + $0x58] sm:$0xff] %vm220, %v352
        %v355 = vld [vmem:[%s248 + $0x1] sm:$0xff]
        %v356 = vld [vmem:[%s248 + $0x9] sm:$0xff]
        %357 = vst.msk [vmem:[#allocation2 + $0x60] sm:$0xff] %vm220, %v355
        %358 = vst.msk [vmem:[#allocation2 + $0x68] sm:$0xff] %vm220, %v356
        %v359 = vld [vmem:[%s253 + $0x1] sm:$0xff]
        %v360 = vld [vmem:[%s253 + $0x9] sm:$0xff]
        %361 = vst.msk [vmem:[#allocation2 + $0x70] sm:$0xff] %vm220, %v359
        %362 = vst.msk [vmem:[#allocation2 + $0x78] sm:$0xff] %vm220, %v360
        %v363 = vld [vmem:[%s258 + $0x1] sm:$0xff]
        %v364 = vld [vmem:[%s258 + $0x9] sm:$0xff]
        %365 = vst.msk [vmem:[#allocation2 + $0x80] sm:$0xff] %vm220, %v363
        %366 = vst.msk [vmem:[#allocation2 + $0x88] sm:$0xff] %vm220, %v364
        %v367 = vld [vmem:[%s263 + $0x1] sm:$0xff]
        %v368 = vld [vmem:[%s263 + $0x9] sm:$0xff]
        %369 = vst.msk [vmem:[#allocation2 + $0x90] sm:$0xff] %vm220, %v367
        %370 = vst.msk [vmem:[#allocation2 + $0x98] sm:$0xff] %vm220, %v368
        %v371 = vld [vmem:[%s268 + $0x1] sm:$0xff]
        %v372 = vld [vmem:[%s268 + $0x9] sm:$0xff]
        %373 = vst.msk [vmem:[#allocation2 + $0xa0] sm:$0xff] %vm220, %v371
        %374 = vst.msk [vmem:[#allocation2 + $0xa8] sm:$0xff] %vm220, %v372
        %v375 = vld [vmem:[%s273 + $0x1] sm:$0xff]
        %v376 = vld [vmem:[%s273 + $0x9] sm:$0xff]
        %377 = vst.msk [vmem:[#allocation2 + $0xb0] sm:$0xff] %vm220, %v375
        %378 = vst.msk [vmem:[#allocation2 + $0xb8] sm:$0xff] %vm220, %v376
        %v379 = vld [vmem:[%s278 + $0x1] sm:$0xff]
        %v380 = vld [vmem:[%s278 + $0x9] sm:$0xff]
        %381 = vst.msk [vmem:[#allocation2 + $0xc0] sm:$0xff] %vm220, %v379
        %382 = vst.msk [vmem:[#allocation2 + $0xc8] sm:$0xff] %vm220, %v380
        %v383 = vld [vmem:[%s283 + $0x1] sm:$0xff]
        %v384 = vld [vmem:[%s283 + $0x9] sm:$0xff]
        %385 = vst.msk [vmem:[#allocation2 + $0xd0] sm:$0xff] %vm220, %v383
        %386 = vst.msk [vmem:[#allocation2 + $0xd8] sm:$0xff] %vm220, %v384
        %v387 = vld [vmem:[%s288 + $0x1] sm:$0xff]
        %v388 = vld [vmem:[%s288 + $0x9] sm:$0xff]
        %389 = vst.msk [vmem:[#allocation2 + $0xe0] sm:$0xff] %vm220, %v387
        %390 = vst.msk [vmem:[#allocation2 + $0xe8] sm:$0xff] %vm220, %v388
        %v391 = vld [vmem:[%s293 + $0x1] sm:$0xff]
        %v392 = vld [vmem:[%s293 + $0x9] sm:$0xff]
        %393 = vst.msk [vmem:[#allocation2 + $0xf0] sm:$0xff] %vm220, %v391
        %394 = vst.msk [vmem:[#allocation2 + $0xf8] sm:$0xff] %vm220, %v392
        %v395 = vld [vmem:[#allocation2] sm:$0xff]
        %v396 = vld [vmem:[#allocation2 + $0x8] sm:$0xff]
        %v397 = vld [vmem:[#allocation2 + $0x10] sm:$0xff]
        %v398 = vld [vmem:[#allocation2 + $0x18] sm:$0xff]
        %v399 = vld [vmem:[#allocation2 + $0x20] sm:$0xff]
        %v400 = vld [vmem:[#allocation2 + $0x28] sm:$0xff]
        %v401 = vld [vmem:[#allocation2 + $0x30] sm:$0xff]
        %v402 = vld [vmem:[#allocation2 + $0x38] sm:$0xff]
        %v403 = vld [vmem:[#allocation2 + $0x40] sm:$0xff]
        %v404 = vld [vmem:[#allocation2 + $0x48] sm:$0xff]
        %v405 = vld [vmem:[#allocation2 + $0x50] sm:$0xff]
        %v406 = vld [vmem:[#allocation2 + $0x58] sm:$0xff]
        %v407 = vld [vmem:[#allocation2 + $0x60] sm:$0xff]
        %v408 = vld [vmem:[#allocation2 + $0x68] sm:$0xff]
        %v409 = vld [vmem:[#allocation2 + $0x70] sm:$0xff]
        %v410 = vld [vmem:[#allocation2 + $0x78] sm:$0xff]
        %v411 = vld [vmem:[#allocation2 + $0x80] sm:$0xff]
        %v412 = vld [vmem:[#allocation2 + $0x88] sm:$0xff]
        %v413 = vld [vmem:[#allocation2 + $0x90] sm:$0xff]
        %v414 = vld [vmem:[#allocation2 + $0x98] sm:$0xff]
        %v415 = vld [vmem:[#allocation2 + $0xa0] sm:$0xff]
        %v416 = vld [vmem:[#allocation2 + $0xa8] sm:$0xff]
        %v417 = vld [vmem:[#allocation2 + $0xb0] sm:$0xff]
        %v418 = vld [vmem:[#allocation2 + $0xb8] sm:$0xff]
        %v419 = vld [vmem:[#allocation2 + $0xc0] sm:$0xff]
        %v420 = vld [vmem:[#allocation2 + $0xc8] sm:$0xff]
        %v421 = vld [vmem:[#allocation2 + $0xd0] sm:$0xff]
        %v422 = vld [vmem:[#allocation2 + $0xd8] sm:$0xff]
        %v423 = vld [vmem:[#allocation2 + $0xe0] sm:$0xff]
        %v424 = vld [vmem:[#allocation2 + $0xe8] sm:$0xff]
        %v425 = vld [vmem:[#allocation2 + $0xf0] sm:$0xff]
        %v426 = vld [vmem:[#allocation2 + $0xf8] sm:$0xff]
        %s427 = scalar_lea.vmem %s1, 4
        %v428 = vld [vmem:[%s427] sm:$0xf]
        %v430 = vsel %vm220, %v395, 0
        %v433 = vsel %vm220, %v396, 0
        %v436 = vsel %vm220, %v397, 0
        %v439 = vsel %vm220, %v398, 0
        %v442 = vsel %vm220, %v399, 0
        %v445 = vsel %vm220, %v400, 0
        %v448 = vsel %vm220, %v401, 0
        %v451 = vsel %vm220, %v402, 0
        %v454 = vsel %vm220, %v403, 0
        %v457 = vsel %vm220, %v404, 0
        %v460 = vsel %vm220, %v405, 0
        %v463 = vsel %vm220, %v406, 0
        %v466 = vsel %vm220, %v407, 0
        %v469 = vsel %vm220, %v408, 0
        %v472 = vsel %vm220, %v409, 0
        %v475 = vsel %vm220, %v410, 0
        %v478 = vsel %vm220, %v411, 0
        %v481 = vsel %vm220, %v412, 0
        %v484 = vsel %vm220, %v413, 0
        %v487 = vsel %vm220, %v414, 0
        %v490 = vsel %vm220, %v415, 0
        %v493 = vsel %vm220, %v416, 0
        %v496 = vsel %vm220, %v417, 0
        %v499 = vsel %vm220, %v418, 0
        %v502 = vsel %vm220, %v419, 0
        %v505 = vsel %vm220, %v420, 0
        %v508 = vsel %vm220, %v421, 0
        %v511 = vsel %vm220, %v422, 0
        %v514 = vsel %vm220, %v423, 0
        %v517 = vsel %vm220, %v424, 0
        %v520 = vsel %vm220, %v425, 0
        %v523 = vsel %vm220, %v426, 0
        %vm525 = vcmask 1043456
        %v527 = vsel %vm525, %v428, 0
        %529 = vmatpush.msra.mxu0 0.0
        %530 = vmatpush.msra.mxu0 0.0
        %531 = vmatpush.msra.mxu0 0.0
        %532 = vmatpush.msra.mxu0 0.0
        %533 = vmatpush.msra.mxu0 0.0
        %534 = vmatpush.msra.mxu0 0.0
        %535 = vmatpush.msra.mxu0 0.0
        %536 = vmatpush.msra.mxu0 0.0
        %537 = vmatpush.msra.mxu0 0.0
        %538 = vmatpush.msra.mxu0 0.0
        %539 = vmatpush.msra.mxu0 0.0
        %540 = vmatpush.msra.mxu0 0.0
        %541 = vmatpush.msra.mxu0 0.0
        %542 = vmatpush.msra.mxu0 0.0
        %543 = vmatpush.msra.mxu0 0.0
        %544 = vmatpush.msra.mxu0 %v527
        %545 = vmatmul.f32.gmra.mxu0 %v430
        %v546 = vpop.f32.mrf.mxu0
        %v547 = vadd.f32 0.0, %v546
        %548 = vmatmul.f32.gmra.mxu0 %v433
        %v549 = vpop.f32.mrf.mxu0
        %v550 = vadd.f32 0.0, %v549
        %551 = vmatmul.f32.gmra.mxu0 %v436
        %v552 = vpop.f32.mrf.mxu0
        %v553 = vadd.f32 0.0, %v552
        %554 = vmatmul.f32.gmra.mxu0 %v439
        %v555 = vpop.f32.mrf.mxu0
        %v556 = vadd.f32 0.0, %v555
        %557 = vmatmul.f32.gmra.mxu0 %v442
        %v558 = vpop.f32.mrf.mxu0
        %v559 = vadd.f32 0.0, %v558
        %560 = vmatmul.f32.gmra.mxu0 %v445
        %v561 = vpop.f32.mrf.mxu0
        %v562 = vadd.f32 0.0, %v561
        %563 = vmatmul.f32.gmra.mxu0 %v448
        %v564 = vpop.f32.mrf.mxu0
        %v565 = vadd.f32 0.0, %v564
        %566 = vmatmul.f32.gmra.mxu0 %v451
        %v567 = vpop.f32.mrf.mxu0
        %v568 = vadd.f32 0.0, %v567
        %569 = vmatmul.f32.gmra.mxu0 %v454
        %v570 = vpop.f32.mrf.mxu0
        %v571 = vadd.f32 0.0, %v570
        %572 = vmatmul.f32.gmra.mxu0 %v457
        %v573 = vpop.f32.mrf.mxu0
        %v574 = vadd.f32 0.0, %v573
        %575 = vmatmul.f32.gmra.mxu0 %v460
        %v576 = vpop.f32.mrf.mxu0
        %v577 = vadd.f32 0.0, %v576
        %578 = vmatmul.f32.gmra.mxu0 %v463
        %v579 = vpop.f32.mrf.mxu0
        %v580 = vadd.f32 0.0, %v579
        %581 = vmatmul.f32.gmra.mxu0 %v466
        %v582 = vpop.f32.mrf.mxu0
        %v583 = vadd.f32 0.0, %v582
        %584 = vmatmul.f32.gmra.mxu0 %v469
        %v585 = vpop.f32.mrf.mxu0
        %v586 = vadd.f32 0.0, %v585
        %587 = vmatmul.f32.gmra.mxu0 %v472
        %v588 = vpop.f32.mrf.mxu0
        %v589 = vadd.f32 0.0, %v588
        %590 = vmatmul.f32.gmra.mxu0 %v475
        %v591 = vpop.f32.mrf.mxu0
        %v592 = vadd.f32 0.0, %v591
        %593 = vmatmul.f32.gmra.mxu0 %v478
        %v594 = vpop.f32.mrf.mxu0
        %v595 = vadd.f32 0.0, %v594
        %596 = vmatmul.f32.gmra.mxu0 %v481
        %v597 = vpop.f32.mrf.mxu0
        %v598 = vadd.f32 0.0, %v597
        %599 = vmatmul.f32.gmra.mxu0 %v484
        %v600 = vpop.f32.mrf.mxu0
        %v601 = vadd.f32 0.0, %v600
        %602 = vmatmul.f32.gmra.mxu0 %v487
        %v603 = vpop.f32.mrf.mxu0
        %v604 = vadd.f32 0.0, %v603
        %605 = vmatmul.f32.gmra.mxu0 %v490
        %v606 = vpop.f32.mrf.mxu0
        %v607 = vadd.f32 0.0, %v606
        %608 = vmatmul.f32.gmra.mxu0 %v493
        %v609 = vpop.f32.mrf.mxu0
        %v610 = vadd.f32 0.0, %v609
        %611 = vmatmul.f32.gmra.mxu0 %v496
        %v612 = vpop.f32.mrf.mxu0
        %v613 = vadd.f32 0.0, %v612
        %614 = vmatmul.f32.gmra.mxu0 %v499
        %v615 = vpop.f32.mrf.mxu0
        %v616 = vadd.f32 0.0, %v615
        %617 = vmatmul.f32.gmra.mxu0 %v502
        %v618 = vpop.f32.mrf.mxu0
        %v619 = vadd.f32 0.0, %v618
        %620 = vmatmul.f32.gmra.mxu0 %v505
        %v621 = vpop.f32.mrf.mxu0
        %v622 = vadd.f32 0.0, %v621
        %623 = vmatmul.f32.gmra.mxu0 %v508
        %v624 = vpop.f32.mrf.mxu0
        %v625 = vadd.f32 0.0, %v624
        %626 = vmatmul.f32.gmra.mxu0 %v511
        %v627 = vpop.f32.mrf.mxu0
        %v628 = vadd.f32 0.0, %v627
        %629 = vmatmul.f32.gmra.mxu0 %v514
        %v630 = vpop.f32.mrf.mxu0
        %v631 = vadd.f32 0.0, %v630
        %632 = vmatmul.f32.gmra.mxu0 %v517
        %v633 = vpop.f32.mrf.mxu0
        %v634 = vadd.f32 0.0, %v633
        %635 = vmatmul.f32.gmra.mxu0 %v520
        %v636 = vpop.f32.mrf.mxu0
        %v637 = vadd.f32 0.0, %v636
        %638 = vmatmul.f32.gmra.mxu0 %v523
        %v639 = vpop.f32.mrf.mxu0
        %v640 = vadd.f32 0.0, %v639
        %641 = vdwg.mxu0
        %v643 = vsel %vm220, %v298, 0
        %v646 = vsel %vm220, %v299, 0
        %v649 = vsel %vm220, %v300, 0
        %v652 = vsel %vm220, %v301, 0
        %v655 = vsel %vm220, %v302, 0
        %v658 = vsel %vm220, %v303, 0
        %v661 = vsel %vm220, %v304, 0
        %v664 = vsel %vm220, %v305, 0
        %v667 = vsel %vm220, %v306, 0
        %v670 = vsel %vm220, %v307, 0
        %v673 = vsel %vm220, %v308, 0
        %v676 = vsel %vm220, %v309, 0
        %v679 = vsel %vm220, %v310, 0
        %v682 = vsel %vm220, %v311, 0
        %v685 = vsel %vm220, %v312, 0
        %v688 = vsel %vm220, %v313, 0
        %v691 = vsel %vm220, %v314, 0
        %v694 = vsel %vm220, %v315, 0
        %v697 = vsel %vm220, %v316, 0
        %v700 = vsel %vm220, %v317, 0
        %v703 = vsel %vm220, %v318, 0
        %v706 = vsel %vm220, %v319, 0
        %v709 = vsel %vm220, %v320, 0
        %v712 = vsel %vm220, %v321, 0
        %v715 = vsel %vm220, %v322, 0
        %v718 = vsel %vm220, %v323, 0
        %v721 = vsel %vm220, %v324, 0
        %v724 = vsel %vm220, %v325, 0
        %v727 = vsel %vm220, %v326, 0
        %v730 = vsel %vm220, %v327, 0
        %v733 = vsel %vm220, %v328, 0
        %v736 = vsel %vm220, %v329, 0
        %v739 = vsel %vm525, %v330, 0
        %741 = vmatpush.msra.mxu0 0.0
        %742 = vmatpush.msra.mxu0 0.0
        %743 = vmatpush.msra.mxu0 0.0
        %744 = vmatpush.msra.mxu0 0.0
        %745 = vmatpush.msra.mxu0 0.0
        %746 = vmatpush.msra.mxu0 0.0
        %747 = vmatpush.msra.mxu0 0.0
        %748 = vmatpush.msra.mxu0 0.0
        %749 = vmatpush.msra.mxu0 0.0
        %750 = vmatpush.msra.mxu0 0.0
        %751 = vmatpush.msra.mxu0 0.0
        %752 = vmatpush.msra.mxu0 0.0
        %753 = vmatpush.msra.mxu0 0.0
        %754 = vmatpush.msra.mxu0 0.0
        %755 = vmatpush.msra.mxu0 0.0
        %756 = vmatpush.msra.mxu0 %v739
        %757 = vmatmul.f32.gmra.mxu0 %v643
        %v758 = vpop.f32.mrf.mxu0
        %v759 = vadd.f32 %v547, %v758
        %760 = vmatmul.f32.gmra.mxu0 %v646
        %v761 = vpop.f32.mrf.mxu0
        %v762 = vadd.f32 %v550, %v761
        %763 = vmatmul.f32.gmra.mxu0 %v649
        %v764 = vpop.f32.mrf.mxu0
        %v765 = vadd.f32 %v553, %v764
        %766 = vmatmul.f32.gmra.mxu0 %v652
        %v767 = vpop.f32.mrf.mxu0
        %v768 = vadd.f32 %v556, %v767
        %769 = vmatmul.f32.gmra.mxu0 %v655
        %v770 = vpop.f32.mrf.mxu0
        %v771 = vadd.f32 %v559, %v770
        %772 = vmatmul.f32.gmra.mxu0 %v658
        %v773 = vpop.f32.mrf.mxu0
        %v774 = vadd.f32 %v562, %v773
        %775 = vmatmul.f32.gmra.mxu0 %v661
        %v776 = vpop.f32.mrf.mxu0
        %v777 = vadd.f32 %v565, %v776
        %778 = vmatmul.f32.gmra.mxu0 %v664
        %v779 = vpop.f32.mrf.mxu0
        %v780 = vadd.f32 %v568, %v779
        %781 = vmatmul.f32.gmra.mxu0 %v667
        %v782 = vpop.f32.mrf.mxu0
        %v783 = vadd.f32 %v571, %v782
        %784 = vmatmul.f32.gmra.mxu0 %v670
        %v785 = vpop.f32.mrf.mxu0
        %v786 = vadd.f32 %v574, %v785
        %787 = vmatmul.f32.gmra.mxu0 %v673
        %v788 = vpop.f32.mrf.mxu0
        %v789 = vadd.f32 %v577, %v788
        %790 = vmatmul.f32.gmra.mxu0 %v676
        %v791 = vpop.f32.mrf.mxu0
        %v792 = vadd.f32 %v580, %v791
        %793 = vmatmul.f32.gmra.mxu0 %v679
        %v794 = vpop.f32.mrf.mxu0
        %v795 = vadd.f32 %v583, %v794
        %796 = vmatmul.f32.gmra.mxu0 %v682
        %v797 = vpop.f32.mrf.mxu0
        %v798 = vadd.f32 %v586, %v797
        %799 = vmatmul.f32.gmra.mxu0 %v685
        %v800 = vpop.f32.mrf.mxu0
        %v801 = vadd.f32 %v589, %v800
        %802 = vmatmul.f32.gmra.mxu0 %v688
        %v803 = vpop.f32.mrf.mxu0
        %v804 = vadd.f32 %v592, %v803
        %805 = vmatmul.f32.gmra.mxu0 %v691
        %v806 = vpop.f32.mrf.mxu0
        %v807 = vadd.f32 %v595, %v806
        %808 = vmatmul.f32.gmra.mxu0 %v694
        %v809 = vpop.f32.mrf.mxu0
        %v810 = vadd.f32 %v598, %v809
        %811 = vmatmul.f32.gmra.mxu0 %v697
        %v812 = vpop.f32.mrf.mxu0
        %v813 = vadd.f32 %v601, %v812
        %814 = vmatmul.f32.gmra.mxu0 %v700
        %v815 = vpop.f32.mrf.mxu0
        %v816 = vadd.f32 %v604, %v815
        %817 = vmatmul.f32.gmra.mxu0 %v703
        %v818 = vpop.f32.mrf.mxu0
        %v819 = vadd.f32 %v607, %v818
        %820 = vmatmul.f32.gmra.mxu0 %v706
        %v821 = vpop.f32.mrf.mxu0
        %v822 = vadd.f32 %v610, %v821
        %823 = vmatmul.f32.gmra.mxu0 %v709
        %v824 = vpop.f32.mrf.mxu0
        %v825 = vadd.f32 %v613, %v824
        %826 = vmatmul.f32.gmra.mxu0 %v712
        %v827 = vpop.f32.mrf.mxu0
        %v828 = vadd.f32 %v616, %v827
        %829 = vmatmul.f32.gmra.mxu0 %v715
        %v830 = vpop.f32.mrf.mxu0
        %v831 = vadd.f32 %v619, %v830
        %832 = vmatmul.f32.gmra.mxu0 %v718
        %v833 = vpop.f32.mrf.mxu0
        %v834 = vadd.f32 %v622, %v833
        %835 = vmatmul.f32.gmra.mxu0 %v721
        %v836 = vpop.f32.mrf.mxu0
        %v837 = vadd.f32 %v625, %v836
        %838 = vmatmul.f32.gmra.mxu0 %v724
        %v839 = vpop.f32.mrf.mxu0
        %v840 = vadd.f32 %v628, %v839
        %841 = vmatmul.f32.gmra.mxu0 %v727
        %v842 = vpop.f32.mrf.mxu0
        %v843 = vadd.f32 %v631, %v842
        %844 = vmatmul.f32.gmra.mxu0 %v730
        %v845 = vpop.f32.mrf.mxu0
        %v846 = vadd.f32 %v634, %v845
        %847 = vmatmul.f32.gmra.mxu0 %v733
        %v848 = vpop.f32.mrf.mxu0
        %v849 = vadd.f32 %v637, %v848
        %850 = vmatmul.f32.gmra.mxu0 %v736
        %v851 = vpop.f32.mrf.mxu0
        %v852 = vadd.f32 %v640, %v851
        %853 = vdwg.mxu0
        %v854 = vld [vmem:[%s210 + $0x2] sm:$0xff]
        %v855 = vld [vmem:[%s210 + $0xa] sm:$0xff]
        %856 = vst.msk [vmem:[#allocation2] sm:$0xff] %vm220, %v854
        %857 = vst.msk [vmem:[#allocation2 + $0x8] sm:$0xff] %vm220, %v855
        %v858 = vld [vmem:[%s223 + $0x2] sm:$0xff]
        %v859 = vld [vmem:[%s223 + $0xa] sm:$0xff]
        %860 = vst.msk [vmem:[#allocation2 + $0x10] sm:$0xff] %vm220, %v858
        %861 = vst.msk [vmem:[#allocation2 + $0x18] sm:$0xff] %vm220, %v859
        %v862 = vld [vmem:[%s228 + $0x2] sm:$0xff]
        %v863 = vld [vmem:[%s228 + $0xa] sm:$0xff]
        %864 = vst.msk [vmem:[#allocation2 + $0x20] sm:$0xff] %vm220, %v862
        %865 = vst.msk [vmem:[#allocation2 + $0x28] sm:$0xff] %vm220, %v863
        %v866 = vld [vmem:[%s233 + $0x2] sm:$0xff]
        %v867 = vld [vmem:[%s233 + $0xa] sm:$0xff]
        %868 = vst.msk [vmem:[#allocation2 + $0x30] sm:$0xff] %vm220, %v866
        %869 = vst.msk [vmem:[#allocation2 + $0x38] sm:$0xff] %vm220, %v867
        %v870 = vld [vmem:[%s238 + $0x2] sm:$0xff]
        %v871 = vld [vmem:[%s238 + $0xa] sm:$0xff]
        %872 = vst.msk [vmem:[#allocation2 + $0x40] sm:$0xff] %vm220, %v870
        %873 = vst.msk [vmem:[#allocation2 + $0x48] sm:$0xff] %vm220, %v871
        %v874 = vld [vmem:[%s243 + $0x2] sm:$0xff]
        %v875 = vld [vmem:[%s243 + $0xa] sm:$0xff]
        %876 = vst.msk [vmem:[#allocation2 + $0x50] sm:$0xff] %vm220, %v874
        %877 = vst.msk [vmem:[#allocation2 + $0x58] sm:$0xff] %vm220, %v875
        %v878 = vld [vmem:[%s248 + $0x2] sm:$0xff]
        %v879 = vld [vmem:[%s248 + $0xa] sm:$0xff]
        %880 = vst.msk [vmem:[#allocation2 + $0x60] sm:$0xff] %vm220, %v878
        %881 = vst.msk [vmem:[#allocation2 + $0x68] sm:$0xff] %vm220, %v879
        %v882 = vld [vmem:[%s253 + $0x2] sm:$0xff]
        %v883 = vld [vmem:[%s253 + $0xa] sm:$0xff]
        %884 = vst.msk [vmem:[#allocation2 + $0x70] sm:$0xff] %vm220, %v882
        %885 = vst.msk [vmem:[#allocation2 + $0x78] sm:$0xff] %vm220, %v883
        %v886 = vld [vmem:[%s258 + $0x2] sm:$0xff]
        %v887 = vld [vmem:[%s258 + $0xa] sm:$0xff]
        %888 = vst.msk [vmem:[#allocation2 + $0x80] sm:$0xff] %vm220, %v886
        %889 = vst.msk [vmem:[#allocation2 + $0x88] sm:$0xff] %vm220, %v887
        %v890 = vld [vmem:[%s263 + $0x2] sm:$0xff]
        %v891 = vld [vmem:[%s263 + $0xa] sm:$0xff]
        %892 = vst.msk [vmem:[#allocation2 + $0x90] sm:$0xff] %vm220, %v890
        %893 = vst.msk [vmem:[#allocation2 + $0x98] sm:$0xff] %vm220, %v891
        %v894 = vld [vmem:[%s268 + $0x2] sm:$0xff]
        %v895 = vld [vmem:[%s268 + $0xa] sm:$0xff]
        %896 = vst.msk [vmem:[#allocation2 + $0xa0] sm:$0xff] %vm220, %v894
        %897 = vst.msk [vmem:[#allocation2 + $0xa8] sm:$0xff] %vm220, %v895
        %v898 = vld [vmem:[%s273 + $0x2] sm:$0xff]
        %v899 = vld [vmem:[%s273 + $0xa] sm:$0xff]
        %900 = vst.msk [vmem:[#allocation2 + $0xb0] sm:$0xff] %vm220, %v898
        %901 = vst.msk [vmem:[#allocation2 + $0xb8] sm:$0xff] %vm220, %v899
        %v902 = vld [vmem:[%s278 + $0x2] sm:$0xff]
        %v903 = vld [vmem:[%s278 + $0xa] sm:$0xff]
        %904 = vst.msk [vmem:[#allocation2 + $0xc0] sm:$0xff] %vm220, %v902
        %905 = vst.msk [vmem:[#allocation2 + $0xc8] sm:$0xff] %vm220, %v903
        %v906 = vld [vmem:[%s283 + $0x2] sm:$0xff]
        %v907 = vld [vmem:[%s283 + $0xa] sm:$0xff]
        %908 = vst.msk [vmem:[#allocation2 + $0xd0] sm:$0xff] %vm220, %v906
        %909 = vst.msk [vmem:[#allocation2 + $0xd8] sm:$0xff] %vm220, %v907
        %v910 = vld [vmem:[%s288 + $0x2] sm:$0xff]
        %v911 = vld [vmem:[%s288 + $0xa] sm:$0xff]
        %912 = vst.msk [vmem:[#allocation2 + $0xe0] sm:$0xff] %vm220, %v910
        %913 = vst.msk [vmem:[#allocation2 + $0xe8] sm:$0xff] %vm220, %v911
        %v914 = vld [vmem:[%s293 + $0x2] sm:$0xff]
        %v915 = vld [vmem:[%s293 + $0xa] sm:$0xff]
        %916 = vst.msk [vmem:[#allocation2 + $0xf0] sm:$0xff] %vm220, %v914
        %917 = vst.msk [vmem:[#allocation2 + $0xf8] sm:$0xff] %vm220, %v915
        %v918 = vld [vmem:[#allocation2] sm:$0xff]
        %v919 = vld [vmem:[#allocation2 + $0x8] sm:$0xff]
        %v920 = vld [vmem:[#allocation2 + $0x10] sm:$0xff]
        %v921 = vld [vmem:[#allocation2 + $0x18] sm:$0xff]
        %v922 = vld [vmem:[#allocation2 + $0x20] sm:$0xff]
        %v923 = vld [vmem:[#allocation2 + $0x28] sm:$0xff]
        %v924 = vld [vmem:[#allocation2 + $0x30] sm:$0xff]
        %v925 = vld [vmem:[#allocation2 + $0x38] sm:$0xff]
        %v926 = vld [vmem:[#allocation2 + $0x40] sm:$0xff]
        %v927 = vld [vmem:[#allocation2 + $0x48] sm:$0xff]
        %v928 = vld [vmem:[#allocation2 + $0x50] sm:$0xff]
        %v929 = vld [vmem:[#allocation2 + $0x58] sm:$0xff]
        %v930 = vld [vmem:[#allocation2 + $0x60] sm:$0xff]
        %v931 = vld [vmem:[#allocation2 + $0x68] sm:$0xff]
        %v932 = vld [vmem:[#allocation2 + $0x70] sm:$0xff]
        %v933 = vld [vmem:[#allocation2 + $0x78] sm:$0xff]
        %v934 = vld [vmem:[#allocation2 + $0x80] sm:$0xff]
        %v935 = vld [vmem:[#allocation2 + $0x88] sm:$0xff]
        %v936 = vld [vmem:[#allocation2 + $0x90] sm:$0xff]
        %v937 = vld [vmem:[#allocation2 + $0x98] sm:$0xff]
        %v938 = vld [vmem:[#allocation2 + $0xa0] sm:$0xff]
        %v939 = vld [vmem:[#allocation2 + $0xa8] sm:$0xff]
        %v940 = vld [vmem:[#allocation2 + $0xb0] sm:$0xff]
        %v941 = vld [vmem:[#allocation2 + $0xb8] sm:$0xff]
        %v942 = vld [vmem:[#allocation2 + $0xc0] sm:$0xff]
        %v943 = vld [vmem:[#allocation2 + $0xc8] sm:$0xff]
        %v944 = vld [vmem:[#allocation2 + $0xd0] sm:$0xff]
        %v945 = vld [vmem:[#allocation2 + $0xd8] sm:$0xff]
        %v946 = vld [vmem:[#allocation2 + $0xe0] sm:$0xff]
        %v947 = vld [vmem:[#allocation2 + $0xe8] sm:$0xff]
        %v948 = vld [vmem:[#allocation2 + $0xf0] sm:$0xff]
        %v949 = vld [vmem:[#allocation2 + $0xf8] sm:$0xff]
        %s950 = scalar_lea.vmem %s1, 8
        %v951 = vld [vmem:[%s950] sm:$0xf]
        %v953 = vsel %vm220, %v918, 0
        %v956 = vsel %vm220, %v919, 0
        %v959 = vsel %vm220, %v920, 0
        %v962 = vsel %vm220, %v921, 0
        %v965 = vsel %vm220, %v922, 0
        %v968 = vsel %vm220, %v923, 0
        %v971 = vsel %vm220, %v924, 0
        %v974 = vsel %vm220, %v925, 0
        %v977 = vsel %vm220, %v926, 0
        %v980 = vsel %vm220, %v927, 0
        %v983 = vsel %vm220, %v928, 0
        %v986 = vsel %vm220, %v929, 0
        %v989 = vsel %vm220, %v930, 0
        %v992 = vsel %vm220, %v931, 0
        %v995 = vsel %vm220, %v932, 0
        %v998 = vsel %vm220, %v933, 0
        %v1001 = vsel %vm220, %v934, 0
        %v1004 = vsel %vm220, %v935, 0
        %v1007 = vsel %vm220, %v936, 0
        %v1010 = vsel %vm220, %v937, 0
        %v1013 = vsel %vm220, %v938, 0
        %v1016 = vsel %vm220, %v939, 0
        %v1019 = vsel %vm220, %v940, 0
        %v1022 = vsel %vm220, %v941, 0
        %v1025 = vsel %vm220, %v942, 0
        %v1028 = vsel %vm220, %v943, 0
        %v1031 = vsel %vm220, %v944, 0
        %v1034 = vsel %vm220, %v945, 0
        %v1037 = vsel %vm220, %v946, 0
        %v1040 = vsel %vm220, %v947, 0
        %v1043 = vsel %vm220, %v948, 0
        %v1046 = vsel %vm220, %v949, 0
        %v1049 = vsel %vm525, %v951, 0
        %1051 = vmatpush.msra.mxu0 0.0
        %1052 = vmatpush.msra.mxu0 0.0
        %1053 = vmatpush.msra.mxu0 0.0
        %1054 = vmatpush.msra.mxu0 0.0
        %1055 = vmatpush.msra.mxu0 0.0
        %1056 = vmatpush.msra.mxu0 0.0
        %1057 = vmatpush.msra.mxu0 0.0
        %1058 = vmatpush.msra.mxu0 0.0
        %1059 = vmatpush.msra.mxu0 0.0
        %1060 = vmatpush.msra.mxu0 0.0
        %1061 = vmatpush.msra.mxu0 0.0
        %1062 = vmatpush.msra.mxu0 0.0
        %1063 = vmatpush.msra.mxu0 0.0
        %1064 = vmatpush.msra.mxu0 0.0
        %1065 = vmatpush.msra.mxu0 0.0
        %1066 = vmatpush.msra.mxu0 %v1049
        %1067 = vmatmul.f32.gmra.mxu0 %v953
        %v1068 = vpop.f32.mrf.mxu0
        %v1069 = vadd.f32 0.0, %v1068
        %1070 = vmatmul.f32.gmra.mxu0 %v956
        %v1071 = vpop.f32.mrf.mxu0
        %v1072 = vadd.f32 0.0, %v1071
        %1073 = vmatmul.f32.gmra.mxu0 %v959
        %v1074 = vpop.f32.mrf.mxu0
        %v1075 = vadd.f32 0.0, %v1074
        %1076 = vmatmul.f32.gmra.mxu0 %v962
        %v1077 = vpop.f32.mrf.mxu0
        %v1078 = vadd.f32 0.0, %v1077
        %1079 = vmatmul.f32.gmra.mxu0 %v965
        %v1080 = vpop.f32.mrf.mxu0
        %v1081 = vadd.f32 0.0, %v1080
        %1082 = vmatmul.f32.gmra.mxu0 %v968
        %v1083 = vpop.f32.mrf.mxu0
        %v1084 = vadd.f32 0.0, %v1083
        %1085 = vmatmul.f32.gmra.mxu0 %v971
        %v1086 = vpop.f32.mrf.mxu0
        %v1087 = vadd.f32 0.0, %v1086
        %1088 = vmatmul.f32.gmra.mxu0 %v974
        %v1089 = vpop.f32.mrf.mxu0
        %v1090 = vadd.f32 0.0, %v1089
        %1091 = vmatmul.f32.gmra.mxu0 %v977
        %v1092 = vpop.f32.mrf.mxu0
        %v1093 = vadd.f32 0.0, %v1092
        %1094 = vmatmul.f32.gmra.mxu0 %v980
        %v1095 = vpop.f32.mrf.mxu0
        %v1096 = vadd.f32 0.0, %v1095
        %1097 = vmatmul.f32.gmra.mxu0 %v983
        %v1098 = vpop.f32.mrf.mxu0
        %v1099 = vadd.f32 0.0, %v1098
        %1100 = vmatmul.f32.gmra.mxu0 %v986
        %v1101 = vpop.f32.mrf.mxu0
        %v1102 = vadd.f32 0.0, %v1101
        %1103 = vmatmul.f32.gmra.mxu0 %v989
        %v1104 = vpop.f32.mrf.mxu0
        %v1105 = vadd.f32 0.0, %v1104
        %1106 = vmatmul.f32.gmra.mxu0 %v992
        %v1107 = vpop.f32.mrf.mxu0
        %v1108 = vadd.f32 0.0, %v1107
        %1109 = vmatmul.f32.gmra.mxu0 %v995
        %v1110 = vpop.f32.mrf.mxu0
        %v1111 = vadd.f32 0.0, %v1110
        %1112 = vmatmul.f32.gmra.mxu0 %v998
        %v1113 = vpop.f32.mrf.mxu0
        %v1114 = vadd.f32 0.0, %v1113
        %1115 = vmatmul.f32.gmra.mxu0 %v1001
        %v1116 = vpop.f32.mrf.mxu0
        %v1117 = vadd.f32 0.0, %v1116
        %1118 = vmatmul.f32.gmra.mxu0 %v1004
        %v1119 = vpop.f32.mrf.mxu0
        %v1120 = vadd.f32 0.0, %v1119
        %1121 = vmatmul.f32.gmra.mxu0 %v1007
        %v1122 = vpop.f32.mrf.mxu0
        %v1123 = vadd.f32 0.0, %v1122
        %1124 = vmatmul.f32.gmra.mxu0 %v1010
        %v1125 = vpop.f32.mrf.mxu0
        %v1126 = vadd.f32 0.0, %v1125
        %1127 = vmatmul.f32.gmra.mxu0 %v1013
        %v1128 = vpop.f32.mrf.mxu0
        %v1129 = vadd.f32 0.0, %v1128
        %1130 = vmatmul.f32.gmra.mxu0 %v1016
        %v1131 = vpop.f32.mrf.mxu0
        %v1132 = vadd.f32 0.0, %v1131
        %1133 = vmatmul.f32.gmra.mxu0 %v1019
        %v1134 = vpop.f32.mrf.mxu0
        %v1135 = vadd.f32 0.0, %v1134
        %1136 = vmatmul.f32.gmra.mxu0 %v1022
        %v1137 = vpop.f32.mrf.mxu0
        %v1138 = vadd.f32 0.0, %v1137
        %1139 = vmatmul.f32.gmra.mxu0 %v1025
        %v1140 = vpop.f32.mrf.mxu0
        %v1141 = vadd.f32 0.0, %v1140
        %1142 = vmatmul.f32.gmra.mxu0 %v1028
        %v1143 = vpop.f32.mrf.mxu0
        %v1144 = vadd.f32 0.0, %v1143
        %1145 = vmatmul.f32.gmra.mxu0 %v1031
        %v1146 = vpop.f32.mrf.mxu0
        %v1147 = vadd.f32 0.0, %v1146
        %1148 = vmatmul.f32.gmra.mxu0 %v1034
        %v1149 = vpop.f32.mrf.mxu0
        %v1150 = vadd.f32 0.0, %v1149
        %1151 = vmatmul.f32.gmra.mxu0 %v1037
        %v1152 = vpop.f32.mrf.mxu0
        %v1153 = vadd.f32 0.0, %v1152
        %1154 = vmatmul.f32.gmra.mxu0 %v1040
        %v1155 = vpop.f32.mrf.mxu0
        %v1156 = vadd.f32 0.0, %v1155
        %1157 = vmatmul.f32.gmra.mxu0 %v1043
        %v1158 = vpop.f32.mrf.mxu0
        %v1159 = vadd.f32 0.0, %v1158
        %1160 = vmatmul.f32.gmra.mxu0 %v1046
        %v1161 = vpop.f32.mrf.mxu0
        %v1162 = vadd.f32 0.0, %v1161
        %1163 = vdwg.mxu0
        %v1164 = vadd.f32 %v759, %v1069
        %v1165 = vadd.f32 %v762, %v1072
        %v1166 = vadd.f32 %v765, %v1075
        %v1167 = vadd.f32 %v768, %v1078
        %v1168 = vadd.f32 %v771, %v1081
        %v1169 = vadd.f32 %v774, %v1084
        %v1170 = vadd.f32 %v777, %v1087
        %v1171 = vadd.f32 %v780, %v1090
        %v1172 = vadd.f32 %v783, %v1093
        %v1173 = vadd.f32 %v786, %v1096
        %v1174 = vadd.f32 %v789, %v1099
        %v1175 = vadd.f32 %v792, %v1102
        %v1176 = vadd.f32 %v795, %v1105
        %v1177 = vadd.f32 %v798, %v1108
        %v1178 = vadd.f32 %v801, %v1111
        %v1179 = vadd.f32 %v804, %v1114
        %v1180 = vadd.f32 %v807, %v1117
        %v1181 = vadd.f32 %v810, %v1120
        %v1182 = vadd.f32 %v813, %v1123
        %v1183 = vadd.f32 %v816, %v1126
        %v1184 = vadd.f32 %v819, %v1129
        %v1185 = vadd.f32 %v822, %v1132
        %v1186 = vadd.f32 %v825, %v1135
        %v1187 = vadd.f32 %v828, %v1138
        %v1188 = vadd.f32 %v831, %v1141
        %v1189 = vadd.f32 %v834, %v1144
        %v1190 = vadd.f32 %v837, %v1147
        %v1191 = vadd.f32 %v840, %v1150
        %v1192 = vadd.f32 %v843, %v1153
        %v1193 = vadd.f32 %v846, %v1156
        %v1194 = vadd.f32 %v849, %v1159
        %v1195 = vadd.f32 %v852, %v1162
        %v1196 = vld [vmem:[%s223] sm:$0xff]
        %v1197 = vld [vmem:[%s223 + $0x8] sm:$0xff]
        %1198 = vst.msk [vmem:[#allocation2] sm:$0xff] %vm220, %v1196
        %1199 = vst.msk [vmem:[#allocation2 + $0x8] sm:$0xff] %vm220, %v1197
        %v1200 = vld [vmem:[%s228] sm:$0xff]
        %v1201 = vld [vmem:[%s228 + $0x8] sm:$0xff]
        %1202 = vst.msk [vmem:[#allocation2 + $0x10] sm:$0xff] %vm220, %v1200
        %1203 = vst.msk [vmem:[#allocation2 + $0x18] sm:$0xff] %vm220, %v1201
        %v1204 = vld [vmem:[%s233] sm:$0xff]
        %v1205 = vld [vmem:[%s233 + $0x8] sm:$0xff]
        %1206 = vst.msk [vmem:[#allocation2 + $0x20] sm:$0xff] %vm220, %v1204
        %1207 = vst.msk [vmem:[#allocation2 + $0x28] sm:$0xff] %vm220, %v1205
        %v1208 = vld [vmem:[%s238] sm:$0xff]
        %v1209 = vld [vmem:[%s238 + $0x8] sm:$0xff]
        %1210 = vst.msk [vmem:[#allocation2 + $0x30] sm:$0xff] %vm220, %v1208
        %1211 = vst.msk [vmem:[#allocation2 + $0x38] sm:$0xff] %vm220, %v1209
        %v1212 = vld [vmem:[%s243] sm:$0xff]
        %v1213 = vld [vmem:[%s243 + $0x8] sm:$0xff]
        %1214 = vst.msk [vmem:[#allocation2 + $0x40] sm:$0xff] %vm220, %v1212
        %1215 = vst.msk [vmem:[#allocation2 + $0x48] sm:$0xff] %vm220, %v1213
        %v1216 = vld [vmem:[%s248] sm:$0xff]
        %v1217 = vld [vmem:[%s248 + $0x8] sm:$0xff]
        %1218 = vst.msk [vmem:[#allocation2 + $0x50] sm:$0xff] %vm220, %v1216
        %1219 = vst.msk [vmem:[#allocation2 + $0x58] sm:$0xff] %vm220, %v1217
        %v1220 = vld [vmem:[%s253] sm:$0xff]
        %v1221 = vld [vmem:[%s253 + $0x8] sm:$0xff]
        %1222 = vst.msk [vmem:[#allocation2 + $0x60] sm:$0xff] %vm220, %v1220
        %1223 = vst.msk [vmem:[#allocation2 + $0x68] sm:$0xff] %vm220, %v1221
        %v1224 = vld [vmem:[%s258] sm:$0xff]
        %v1225 = vld [vmem:[%s258 + $0x8] sm:$0xff]
        %1226 = vst.msk [vmem:[#allocation2 + $0x70] sm:$0xff] %vm220, %v1224
        %1227 = vst.msk [vmem:[#allocation2 + $0x78] sm:$0xff] %vm220, %v1225
        %v1228 = vld [vmem:[%s263] sm:$0xff]
        %v1229 = vld [vmem:[%s263 + $0x8] sm:$0xff]
        %1230 = vst.msk [vmem:[#allocation2 + $0x80] sm:$0xff] %vm220, %v1228
        %1231 = vst.msk [vmem:[#allocation2 + $0x88] sm:$0xff] %vm220, %v1229
        %v1232 = vld [vmem:[%s268] sm:$0xff]
        %v1233 = vld [vmem:[%s268 + $0x8] sm:$0xff]
        %1234 = vst.msk [vmem:[#allocation2 + $0x90] sm:$0xff] %vm220, %v1232
        %1235 = vst.msk [vmem:[#allocation2 + $0x98] sm:$0xff] %vm220, %v1233
        %v1236 = vld [vmem:[%s273] sm:$0xff]
        %v1237 = vld [vmem:[%s273 + $0x8] sm:$0xff]
        %1238 = vst.msk [vmem:[#allocation2 + $0xa0] sm:$0xff] %vm220, %v1236
        %1239 = vst.msk [vmem:[#allocation2 + $0xa8] sm:$0xff] %vm220, %v1237
        %v1240 = vld [vmem:[%s278] sm:$0xff]
        %v1241 = vld [vmem:[%s278 + $0x8] sm:$0xff]
        %1242 = vst.msk [vmem:[#allocation2 + $0xb0] sm:$0xff] %vm220, %v1240
        %1243 = vst.msk [vmem:[#allocation2 + $0xb8] sm:$0xff] %vm220, %v1241
        %v1244 = vld [vmem:[%s283] sm:$0xff]
        %v1245 = vld [vmem:[%s283 + $0x8] sm:$0xff]
        %1246 = vst.msk [vmem:[#allocation2 + $0xc0] sm:$0xff] %vm220, %v1244
        %1247 = vst.msk [vmem:[#allocation2 + $0xc8] sm:$0xff] %vm220, %v1245
        %v1248 = vld [vmem:[%s288] sm:$0xff]
        %v1249 = vld [vmem:[%s288 + $0x8] sm:$0xff]
        %1250 = vst.msk [vmem:[#allocation2 + $0xd0] sm:$0xff] %vm220, %v1248
        %1251 = vst.msk [vmem:[#allocation2 + $0xd8] sm:$0xff] %vm220, %v1249
        %v1252 = vld [vmem:[%s293] sm:$0xff]
        %v1253 = vld [vmem:[%s293 + $0x8] sm:$0xff]
        %1254 = vst.msk [vmem:[#allocation2 + $0xe0] sm:$0xff] %vm220, %v1252
        %1255 = vst.msk [vmem:[#allocation2 + $0xe8] sm:$0xff] %vm220, %v1253
        %s1256 = scalar_lea.vmem %s210, 384
        %v1257 = vld [vmem:[%s1256] sm:$0xff]
        %v1258 = vld [vmem:[%s1256 + $0x8] sm:$0xff]
        %1259 = vst.msk [vmem:[#allocation2 + $0xf0] sm:$0xff] %vm220, %v1257
        %1260 = vst.msk [vmem:[#allocation2 + $0xf8] sm:$0xff] %vm220, %v1258
        %v1261 = vld [vmem:[#allocation2] sm:$0xff]
        %v1262 = vld [vmem:[#allocation2 + $0x8] sm:$0xff]
        %v1263 = vld [vmem:[#allocation2 + $0x10] sm:$0xff]
        %v1264 = vld [vmem:[#allocation2 + $0x18] sm:$0xff]
        %v1265 = vld [vmem:[#allocation2 + $0x20] sm:$0xff]
        %v1266 = vld [vmem:[#allocation2 + $0x28] sm:$0xff]
        %v1267 = vld [vmem:[#allocation2 + $0x30] sm:$0xff]
        %v1268 = vld [vmem:[#allocation2 + $0x38] sm:$0xff]
        %v1269 = vld [vmem:[#allocation2 + $0x40] sm:$0xff]
        %v1270 = vld [vmem:[#allocation2 + $0x48] sm:$0xff]
        %v1271 = vld [vmem:[#allocation2 + $0x50] sm:$0xff]
        %v1272 = vld [vmem:[#allocation2 + $0x58] sm:$0xff]
        %v1273 = vld [vmem:[#allocation2 + $0x60] sm:$0xff]
        %v1274 = vld [vmem:[#allocation2 + $0x68] sm:$0xff]
        %v1275 = vld [vmem:[#allocation2 + $0x70] sm:$0xff]
        %v1276 = vld [vmem:[#allocation2 + $0x78] sm:$0xff]
        %v1277 = vld [vmem:[#allocation2 + $0x80] sm:$0xff]
        %v1278 = vld [vmem:[#allocation2 + $0x88] sm:$0xff]
        %v1279 = vld [vmem:[#allocation2 + $0x90] sm:$0xff]
        %v1280 = vld [vmem:[#allocation2 + $0x98] sm:$0xff]
        %v1281 = vld [vmem:[#allocation2 + $0xa0] sm:$0xff]
        %v1282 = vld [vmem:[#allocation2 + $0xa8] sm:$0xff]
        %v1283 = vld [vmem:[#allocation2 + $0xb0] sm:$0xff]
        %v1284 = vld [vmem:[#allocation2 + $0xb8] sm:$0xff]
        %v1285 = vld [vmem:[#allocation2 + $0xc0] sm:$0xff]
        %v1286 = vld [vmem:[#allocation2 + $0xc8] sm:$0xff]
        %v1287 = vld [vmem:[#allocation2 + $0xd0] sm:$0xff]
        %v1288 = vld [vmem:[#allocation2 + $0xd8] sm:$0xff]
        %v1289 = vld [vmem:[#allocation2 + $0xe0] sm:$0xff]
        %v1290 = vld [vmem:[#allocation2 + $0xe8] sm:$0xff]
        %v1291 = vld [vmem:[#allocation2 + $0xf0] sm:$0xff]
        %v1292 = vld [vmem:[#allocation2 + $0xf8] sm:$0xff]
        %s1293 = scalar_lea.vmem %s1, 12
        %v1294 = vld [vmem:[%s1293] sm:$0xf]
        %v1296 = vsel %vm220, %v1261, 0
        %v1299 = vsel %vm220, %v1262, 0
        %v1302 = vsel %vm220, %v1263, 0
        %v1305 = vsel %vm220, %v1264, 0
        %v1308 = vsel %vm220, %v1265, 0
        %v1311 = vsel %vm220, %v1266, 0
        %v1314 = vsel %vm220, %v1267, 0
        %v1317 = vsel %vm220, %v1268, 0
        %v1320 = vsel %vm220, %v1269, 0
        %v1323 = vsel %vm220, %v1270, 0
        %v1326 = vsel %vm220, %v1271, 0
        %v1329 = vsel %vm220, %v1272, 0
        %v1332 = vsel %vm220, %v1273, 0
        %v1335 = vsel %vm220, %v1274, 0
        %v1338 = vsel %vm220, %v1275, 0
        %v1341 = vsel %vm220, %v1276, 0
        %v1344 = vsel %vm220, %v1277, 0
        %v1347 = vsel %vm220, %v1278, 0
        %v1350 = vsel %vm220, %v1279, 0
        %v1353 = vsel %vm220, %v1280, 0
        %v1356 = vsel %vm220, %v1281, 0
        %v1359 = vsel %vm220, %v1282, 0
        %v1362 = vsel %vm220, %v1283, 0
        %v1365 = vsel %vm220, %v1284, 0
        %v1368 = vsel %vm220, %v1285, 0
        %v1371 = vsel %vm220, %v1286, 0
        %v1374 = vsel %vm220, %v1287, 0
        %v1377 = vsel %vm220, %v1288, 0
        %v1380 = vsel %vm220, %v1289, 0
        %v1383 = vsel %vm220, %v1290, 0
        %v1386 = vsel %vm220, %v1291, 0
        %v1389 = vsel %vm220, %v1292, 0
        %v1392 = vsel %vm525, %v1294, 0
        %1394 = vmatpush.msra.mxu0 0.0
        %1395 = vmatpush.msra.mxu0 0.0
        %1396 = vmatpush.msra.mxu0 0.0
        %1397 = vmatpush.msra.mxu0 0.0
        %1398 = vmatpush.msra.mxu0 0.0
        %1399 = vmatpush.msra.mxu0 0.0
        %1400 = vmatpush.msra.mxu0 0.0
        %1401 = vmatpush.msra.mxu0 0.0
        %1402 = vmatpush.msra.mxu0 0.0
        %1403 = vmatpush.msra.mxu0 0.0
        %1404 = vmatpush.msra.mxu0 0.0
        %1405 = vmatpush.msra.mxu0 0.0
        %1406 = vmatpush.msra.mxu0 0.0
        %1407 = vmatpush.msra.mxu0 0.0
        %1408 = vmatpush.msra.mxu0 0.0
        %1409 = vmatpush.msra.mxu0 %v1392
        %1410 = vmatmul.f32.gmra.mxu0 %v1296
        %v1411 = vpop.f32.mrf.mxu0
        %v1412 = vadd.f32 0.0, %v1411
        %1413 = vmatmul.f32.gmra.mxu0 %v1299
        %v1414 = vpop.f32.mrf.mxu0
        %v1415 = vadd.f32 0.0, %v1414
        %1416 = vmatmul.f32.gmra.mxu0 %v1302
        %v1417 = vpop.f32.mrf.mxu0
        %v1418 = vadd.f32 0.0, %v1417
        %1419 = vmatmul.f32.gmra.mxu0 %v1305
        %v1420 = vpop.f32.mrf.mxu0
        %v1421 = vadd.f32 0.0, %v1420
        %1422 = vmatmul.f32.gmra.mxu0 %v1308
        %v1423 = vpop.f32.mrf.mxu0
        %v1424 = vadd.f32 0.0, %v1423
        %1425 = vmatmul.f32.gmra.mxu0 %v1311
        %v1426 = vpop.f32.mrf.mxu0
        %v1427 = vadd.f32 0.0, %v1426
        %1428 = vmatmul.f32.gmra.mxu0 %v1314
        %v1429 = vpop.f32.mrf.mxu0
        %v1430 = vadd.f32 0.0, %v1429
        %1431 = vmatmul.f32.gmra.mxu0 %v1317
        %v1432 = vpop.f32.mrf.mxu0
        %v1433 = vadd.f32 0.0, %v1432
        %1434 = vmatmul.f32.gmra.mxu0 %v1320
        %v1435 = vpop.f32.mrf.mxu0
        %v1436 = vadd.f32 0.0, %v1435
        %1437 = vmatmul.f32.gmra.mxu0 %v1323
        %v1438 = vpop.f32.mrf.mxu0
        %v1439 = vadd.f32 0.0, %v1438
        %1440 = vmatmul.f32.gmra.mxu0 %v1326
        %v1441 = vpop.f32.mrf.mxu0
        %v1442 = vadd.f32 0.0, %v1441
        %1443 = vmatmul.f32.gmra.mxu0 %v1329
        %v1444 = vpop.f32.mrf.mxu0
        %v1445 = vadd.f32 0.0, %v1444
        %1446 = vmatmul.f32.gmra.mxu0 %v1332
        %v1447 = vpop.f32.mrf.mxu0
        %v1448 = vadd.f32 0.0, %v1447
        %1449 = vmatmul.f32.gmra.mxu0 %v1335
        %v1450 = vpop.f32.mrf.mxu0
        %v1451 = vadd.f32 0.0, %v1450
        %1452 = vmatmul.f32.gmra.mxu0 %v1338
        %v1453 = vpop.f32.mrf.mxu0
        %v1454 = vadd.f32 0.0, %v1453
        %1455 = vmatmul.f32.gmra.mxu0 %v1341
        %v1456 = vpop.f32.mrf.mxu0
        %v1457 = vadd.f32 0.0, %v1456
        %1458 = vmatmul.f32.gmra.mxu0 %v1344
        %v1459 = vpop.f32.mrf.mxu0
        %v1460 = vadd.f32 0.0, %v1459
        %1461 = vmatmul.f32.gmra.mxu0 %v1347
        %v1462 = vpop.f32.mrf.mxu0
        %v1463 = vadd.f32 0.0, %v1462
        %1464 = vmatmul.f32.gmra.mxu0 %v1350
        %v1465 = vpop.f32.mrf.mxu0
        %v1466 = vadd.f32 0.0, %v1465
        %1467 = vmatmul.f32.gmra.mxu0 %v1353
        %v1468 = vpop.f32.mrf.mxu0
        %v1469 = vadd.f32 0.0, %v1468
        %1470 = vmatmul.f32.gmra.mxu0 %v1356
        %v1471 = vpop.f32.mrf.mxu0
        %v1472 = vadd.f32 0.0, %v1471
        %1473 = vmatmul.f32.gmra.mxu0 %v1359
        %v1474 = vpop.f32.mrf.mxu0
        %v1475 = vadd.f32 0.0, %v1474
        %1476 = vmatmul.f32.gmra.mxu0 %v1362
        %v1477 = vpop.f32.mrf.mxu0
        %v1478 = vadd.f32 0.0, %v1477
        %1479 = vmatmul.f32.gmra.mxu0 %v1365
        %v1480 = vpop.f32.mrf.mxu0
        %v1481 = vadd.f32 0.0, %v1480
        %1482 = vmatmul.f32.gmra.mxu0 %v1368
        %v1483 = vpop.f32.mrf.mxu0
        %v1484 = vadd.f32 0.0, %v1483
        %1485 = vmatmul.f32.gmra.mxu0 %v1371
        %v1486 = vpop.f32.mrf.mxu0
        %v1487 = vadd.f32 0.0, %v1486
        %1488 = vmatmul.f32.gmra.mxu0 %v1374
        %v1489 = vpop.f32.mrf.mxu0
        %v1490 = vadd.f32 0.0, %v1489
        %1491 = vmatmul.f32.gmra.mxu0 %v1377
        %v1492 = vpop.f32.mrf.mxu0
        %v1493 = vadd.f32 0.0, %v1492
        %1494 = vmatmul.f32.gmra.mxu0 %v1380
        %v1495 = vpop.f32.mrf.mxu0
        %v1496 = vadd.f32 0.0, %v1495
        %1497 = vmatmul.f32.gmra.mxu0 %v1383
        %v1498 = vpop.f32.mrf.mxu0
        %v1499 = vadd.f32 0.0, %v1498
        %1500 = vmatmul.f32.gmra.mxu0 %v1386
        %v1501 = vpop.f32.mrf.mxu0
        %v1502 = vadd.f32 0.0, %v1501
        %1503 = vmatmul.f32.gmra.mxu0 %v1389
        %v1504 = vpop.f32.mrf.mxu0
        %v1505 = vadd.f32 0.0, %v1504
        %1506 = vdwg.mxu0
        %v1507 = vadd.f32 %v1164, %v1412
        %v1508 = vadd.f32 %v1165, %v1415
        %v1509 = vadd.f32 %v1166, %v1418
        %v1510 = vadd.f32 %v1167, %v1421
        %v1511 = vadd.f32 %v1168, %v1424
        %v1512 = vadd.f32 %v1169, %v1427
        %v1513 = vadd.f32 %v1170, %v1430
        %v1514 = vadd.f32 %v1171, %v1433
        %v1515 = vadd.f32 %v1172, %v1436
        %v1516 = vadd.f32 %v1173, %v1439
        %v1517 = vadd.f32 %v1174, %v1442
        %v1518 = vadd.f32 %v1175, %v1445
        %v1519 = vadd.f32 %v1176, %v1448
        %v1520 = vadd.f32 %v1177, %v1451
        %v1521 = vadd.f32 %v1178, %v1454
        %v1522 = vadd.f32 %v1179, %v1457
        %v1523 = vadd.f32 %v1180, %v1460
        %v1524 = vadd.f32 %v1181, %v1463
        %v1525 = vadd.f32 %v1182, %v1466
        %v1526 = vadd.f32 %v1183, %v1469
        %v1527 = vadd.f32 %v1184, %v1472
        %v1528 = vadd.f32 %v1185, %v1475
        %v1529 = vadd.f32 %v1186, %v1478
        %v1530 = vadd.f32 %v1187, %v1481
        %v1531 = vadd.f32 %v1188, %v1484
        %v1532 = vadd.f32 %v1189, %v1487
        %v1533 = vadd.f32 %v1190, %v1490
        %v1534 = vadd.f32 %v1191, %v1493
        %v1535 = vadd.f32 %v1192, %v1496
        %v1536 = vadd.f32 %v1193, %v1499
        %v1537 = vadd.f32 %v1194, %v1502
        %v1538 = vadd.f32 %v1195, %v1505
        %v1539 = vld [vmem:[%s223 + $0x1] sm:$0xff]
        %v1540 = vld [vmem:[%s223 + $0x9] sm:$0xff]
        %1541 = vst.msk [vmem:[#allocation2] sm:$0xff] %vm220, %v1539
        %1542 = vst.msk [vmem:[#allocation2 + $0x8] sm:$0xff] %vm220, %v1540
        %v1543 = vld [vmem:[%s228 + $0x1] sm:$0xff]
        %v1544 = vld [vmem:[%s228 + $0x9] sm:$0xff]
        %1545 = vst.msk [vmem:[#allocation2 + $0x10] sm:$0xff] %vm220, %v1543
        %1546 = vst.msk [vmem:[#allocation2 + $0x18] sm:$0xff] %vm220, %v1544
        %v1547 = vld [vmem:[%s233 + $0x1] sm:$0xff]
        %v1548 = vld [vmem:[%s233 + $0x9] sm:$0xff]
        %1549 = vst.msk [vmem:[#allocation2 + $0x20] sm:$0xff] %vm220, %v1547
        %1550 = vst.msk [vmem:[#allocation2 + $0x28] sm:$0xff] %vm220, %v1548
        %v1551 = vld [vmem:[%s238 + $0x1] sm:$0xff]
        %v1552 = vld [vmem:[%s238 + $0x9] sm:$0xff]
        %1553 = vst.msk [vmem:[#allocation2 + $0x30] sm:$0xff] %vm220, %v1551
        %1554 = vst.msk [vmem:[#allocation2 + $0x38] sm:$0xff] %vm220, %v1552
        %v1555 = vld [vmem:[%s243 + $0x1] sm:$0xff]
        %v1556 = vld [vmem:[%s243 + $0x9] sm:$0xff]
        %1557 = vst.msk [vmem:[#allocation2 + $0x40] sm:$0xff] %vm220, %v1555
        %1558 = vst.msk [vmem:[#allocation2 + $0x48] sm:$0xff] %vm220, %v1556
        %v1559 = vld [vmem:[%s248 + $0x1] sm:$0xff]
        %v1560 = vld [vmem:[%s248 + $0x9] sm:$0xff]
        %1561 = vst.msk [vmem:[#allocation2 + $0x50] sm:$0xff] %vm220, %v1559
        %1562 = vst.msk [vmem:[#allocation2 + $0x58] sm:$0xff] %vm220, %v1560
        %v1563 = vld [vmem:[%s253 + $0x1] sm:$0xff]
        %v1564 = vld [vmem:[%s253 + $0x9] sm:$0xff]
        %1565 = vst.msk [vmem:[#allocation2 + $0x60] sm:$0xff] %vm220, %v1563
        %1566 = vst.msk [vmem:[#allocation2 + $0x68] sm:$0xff] %vm220, %v1564
        %v1567 = vld [vmem:[%s258 + $0x1] sm:$0xff]
        %v1568 = vld [vmem:[%s258 + $0x9] sm:$0xff]
        %1569 = vst.msk [vmem:[#allocation2 + $0x70] sm:$0xff] %vm220, %v1567
        %1570 = vst.msk [vmem:[#allocation2 + $0x78] sm:$0xff] %vm220, %v1568
        %v1571 = vld [vmem:[%s263 + $0x1] sm:$0xff]
        %v1572 = vld [vmem:[%s263 + $0x9] sm:$0xff]
        %1573 = vst.msk [vmem:[#allocation2 + $0x80] sm:$0xff] %vm220, %v1571
        %1574 = vst.msk [vmem:[#allocation2 + $0x88] sm:$0xff] %vm220, %v1572
        %v1575 = vld [vmem:[%s268 + $0x1] sm:$0xff]
        %v1576 = vld [vmem:[%s268 + $0x9] sm:$0xff]
        %1577 = vst.msk [vmem:[#allocation2 + $0x90] sm:$0xff] %vm220, %v1575
        %1578 = vst.msk [vmem:[#allocation2 + $0x98] sm:$0xff] %vm220, %v1576
        %v1579 = vld [vmem:[%s273 + $0x1] sm:$0xff]
        %v1580 = vld [vmem:[%s273 + $0x9] sm:$0xff]
        %1581 = vst.msk [vmem:[#allocation2 + $0xa0] sm:$0xff] %vm220, %v1579
        %1582 = vst.msk [vmem:[#allocation2 + $0xa8] sm:$0xff] %vm220, %v1580
        %v1583 = vld [vmem:[%s278 + $0x1] sm:$0xff]
        %v1584 = vld [vmem:[%s278 + $0x9] sm:$0xff]
        %1585 = vst.msk [vmem:[#allocation2 + $0xb0] sm:$0xff] %vm220, %v1583
        %1586 = vst.msk [vmem:[#allocation2 + $0xb8] sm:$0xff] %vm220, %v1584
        %v1587 = vld [vmem:[%s283 + $0x1] sm:$0xff]
        %v1588 = vld [vmem:[%s283 + $0x9] sm:$0xff]
        %1589 = vst.msk [vmem:[#allocation2 + $0xc0] sm:$0xff] %vm220, %v1587
        %1590 = vst.msk [vmem:[#allocation2 + $0xc8] sm:$0xff] %vm220, %v1588
        %v1591 = vld [vmem:[%s288 + $0x1] sm:$0xff]
        %v1592 = vld [vmem:[%s288 + $0x9] sm:$0xff]
        %1593 = vst.msk [vmem:[#allocation2 + $0xd0] sm:$0xff] %vm220, %v1591
        %1594 = vst.msk [vmem:[#allocation2 + $0xd8] sm:$0xff] %vm220, %v1592
        %v1595 = vld [vmem:[%s293 + $0x1] sm:$0xff]
        %v1596 = vld [vmem:[%s293 + $0x9] sm:$0xff]
        %1597 = vst.msk [vmem:[#allocation2 + $0xe0] sm:$0xff] %vm220, %v1595
        %1598 = vst.msk [vmem:[#allocation2 + $0xe8] sm:$0xff] %vm220, %v1596
        %v1599 = vld [vmem:[%s1256 + $0x1] sm:$0xff]
        %v1600 = vld [vmem:[%s1256 + $0x9] sm:$0xff]
        %1601 = vst.msk [vmem:[#allocation2 + $0xf0] sm:$0xff] %vm220, %v1599
        %1602 = vst.msk [vmem:[#allocation2 + $0xf8] sm:$0xff] %vm220, %v1600
        %v1603 = vld [vmem:[#allocation2] sm:$0xff]
        %v1604 = vld [vmem:[#allocation2 + $0x8] sm:$0xff]
        %v1605 = vld [vmem:[#allocation2 + $0x10] sm:$0xff]
        %v1606 = vld [vmem:[#allocation2 + $0x18] sm:$0xff]
        %v1607 = vld [vmem:[#allocation2 + $0x20] sm:$0xff]
        %v1608 = vld [vmem:[#allocation2 + $0x28] sm:$0xff]
        %v1609 = vld [vmem:[#allocation2 + $0x30] sm:$0xff]
        %v1610 = vld [vmem:[#allocation2 + $0x38] sm:$0xff]
        %v1611 = vld [vmem:[#allocation2 + $0x40] sm:$0xff]
        %v1612 = vld [vmem:[#allocation2 + $0x48] sm:$0xff]
        %v1613 = vld [vmem:[#allocation2 + $0x50] sm:$0xff]
        %v1614 = vld [vmem:[#allocation2 + $0x58] sm:$0xff]
        %v1615 = vld [vmem:[#allocation2 + $0x60] sm:$0xff]
        %v1616 = vld [vmem:[#allocation2 + $0x68] sm:$0xff]
        %v1617 = vld [vmem:[#allocation2 + $0x70] sm:$0xff]
        %v1618 = vld [vmem:[#allocation2 + $0x78] sm:$0xff]
        %v1619 = vld [vmem:[#allocation2 + $0x80] sm:$0xff]
        %v1620 = vld [vmem:[#allocation2 + $0x88] sm:$0xff]
        %v1621 = vld [vmem:[#allocation2 + $0x90] sm:$0xff]
        %v1622 = vld [vmem:[#allocation2 + $0x98] sm:$0xff]
        %v1623 = vld [vmem:[#allocation2 + $0xa0] sm:$0xff]
        %v1624 = vld [vmem:[#allocation2 + $0xa8] sm:$0xff]
        %v1625 = vld [vmem:[#allocation2 + $0xb0] sm:$0xff]
        %v1626 = vld [vmem:[#allocation2 + $0xb8] sm:$0xff]
        %v1627 = vld [vmem:[#allocation2 + $0xc0] sm:$0xff]
        %v1628 = vld [vmem:[#allocation2 + $0xc8] sm:$0xff]
        %v1629 = vld [vmem:[#allocation2 + $0xd0] sm:$0xff]
        %v1630 = vld [vmem:[#allocation2 + $0xd8] sm:$0xff]
        %v1631 = vld [vmem:[#allocation2 + $0xe0] sm:$0xff]
        %v1632 = vld [vmem:[#allocation2 + $0xe8] sm:$0xff]
        %v1633 = vld [vmem:[#allocation2 + $0xf0] sm:$0xff]
        %v1634 = vld [vmem:[#allocation2 + $0xf8] sm:$0xff]
        %s1635 = scalar_lea.vmem %s1, 16
        %v1636 = vld [vmem:[%s1635] sm:$0xf]
        %v1638 = vsel %vm220, %v1603, 0
        %v1641 = vsel %vm220, %v1604, 0
        %v1644 = vsel %vm220, %v1605, 0
        %v1647 = vsel %vm220, %v1606, 0
        %v1650 = vsel %vm220, %v1607, 0
        %v1653 = vsel %vm220, %v1608, 0
        %v1656 = vsel %vm220, %v1609, 0
        %v1659 = vsel %vm220, %v1610, 0
        %v1662 = vsel %vm220, %v1611, 0
        %v1665 = vsel %vm220, %v1612, 0
        %v1668 = vsel %vm220, %v1613, 0
        %v1671 = vsel %vm220, %v1614, 0
        %v1674 = vsel %vm220, %v1615, 0
        %v1677 = vsel %vm220, %v1616, 0
        %v1680 = vsel %vm220, %v1617, 0
        %v1683 = vsel %vm220, %v1618, 0
        %v1686 = vsel %vm220, %v1619, 0
        %v1689 = vsel %vm220, %v1620, 0
        %v1692 = vsel %vm220, %v1621, 0
        %v1695 = vsel %vm220, %v1622, 0
        %v1698 = vsel %vm220, %v1623, 0
        %v1701 = vsel %vm220, %v1624, 0
        %v1704 = vsel %vm220, %v1625, 0
        %v1707 = vsel %vm220, %v1626, 0
        %v1710 = vsel %vm220, %v1627, 0
        %v1713 = vsel %vm220, %v1628, 0
        %v1716 = vsel %vm220, %v1629, 0
        %v1719 = vsel %vm220, %v1630, 0
        %v1722 = vsel %vm220, %v1631, 0
        %v1725 = vsel %vm220, %v1632, 0
        %v1728 = vsel %vm220, %v1633, 0
        %v1731 = vsel %vm220, %v1634, 0
        %v1734 = vsel %vm525, %v1636, 0
        %1736 = vmatpush.msra.mxu0 0.0
        %1737 = vmatpush.msra.mxu0 0.0
        %1738 = vmatpush.msra.mxu0 0.0
        %1739 = vmatpush.msra.mxu0 0.0
        %1740 = vmatpush.msra.mxu0 0.0
        %1741 = vmatpush.msra.mxu0 0.0
        %1742 = vmatpush.msra.mxu0 0.0
        %1743 = vmatpush.msra.mxu0 0.0
        %1744 = vmatpush.msra.mxu0 0.0
        %1745 = vmatpush.msra.mxu0 0.0
        %1746 = vmatpush.msra.mxu0 0.0
        %1747 = vmatpush.msra.mxu0 0.0
        %1748 = vmatpush.msra.mxu0 0.0
        %1749 = vmatpush.msra.mxu0 0.0
        %1750 = vmatpush.msra.mxu0 0.0
        %1751 = vmatpush.msra.mxu0 %v1734
        %1752 = vmatmul.f32.gmra.mxu0 %v1638
        %v1753 = vpop.f32.mrf.mxu0
        %v1754 = vadd.f32 0.0, %v1753
        %1755 = vmatmul.f32.gmra.mxu0 %v1641
        %v1756 = vpop.f32.mrf.mxu0
        %v1757 = vadd.f32 0.0, %v1756
        %1758 = vmatmul.f32.gmra.mxu0 %v1644
        %v1759 = vpop.f32.mrf.mxu0
        %v1760 = vadd.f32 0.0, %v1759
        %1761 = vmatmul.f32.gmra.mxu0 %v1647
        %v1762 = vpop.f32.mrf.mxu0
        %v1763 = vadd.f32 0.0, %v1762
        %1764 = vmatmul.f32.gmra.mxu0 %v1650
        %v1765 = vpop.f32.mrf.mxu0
        %v1766 = vadd.f32 0.0, %v1765
        %1767 = vmatmul.f32.gmra.mxu0 %v1653
        %v1768 = vpop.f32.mrf.mxu0
        %v1769 = vadd.f32 0.0, %v1768
        %1770 = vmatmul.f32.gmra.mxu0 %v1656
        %v1771 = vpop.f32.mrf.mxu0
        %v1772 = vadd.f32 0.0, %v1771
        %1773 = vmatmul.f32.gmra.mxu0 %v1659
        %v1774 = vpop.f32.mrf.mxu0
        %v1775 = vadd.f32 0.0, %v1774
        %1776 = vmatmul.f32.gmra.mxu0 %v1662
        %v1777 = vpop.f32.mrf.mxu0
        %v1778 = vadd.f32 0.0, %v1777
        %1779 = vmatmul.f32.gmra.mxu0 %v1665
        %v1780 = vpop.f32.mrf.mxu0
        %v1781 = vadd.f32 0.0, %v1780
        %1782 = vmatmul.f32.gmra.mxu0 %v1668
        %v1783 = vpop.f32.mrf.mxu0
        %v1784 = vadd.f32 0.0, %v1783
        %1785 = vmatmul.f32.gmra.mxu0 %v1671
        %v1786 = vpop.f32.mrf.mxu0
        %v1787 = vadd.f32 0.0, %v1786
        %1788 = vmatmul.f32.gmra.mxu0 %v1674
        %v1789 = vpop.f32.mrf.mxu0
        %v1790 = vadd.f32 0.0, %v1789
        %1791 = vmatmul.f32.gmra.mxu0 %v1677
        %v1792 = vpop.f32.mrf.mxu0
        %v1793 = vadd.f32 0.0, %v1792
        %1794 = vmatmul.f32.gmra.mxu0 %v1680
        %v1795 = vpop.f32.mrf.mxu0
        %v1796 = vadd.f32 0.0, %v1795
        %1797 = vmatmul.f32.gmra.mxu0 %v1683
        %v1798 = vpop.f32.mrf.mxu0
        %v1799 = vadd.f32 0.0, %v1798
        %1800 = vmatmul.f32.gmra.mxu0 %v1686
        %v1801 = vpop.f32.mrf.mxu0
        %v1802 = vadd.f32 0.0, %v1801
        %1803 = vmatmul.f32.gmra.mxu0 %v1689
        %v1804 = vpop.f32.mrf.mxu0
        %v1805 = vadd.f32 0.0, %v1804
        %1806 = vmatmul.f32.gmra.mxu0 %v1692
        %v1807 = vpop.f32.mrf.mxu0
        %v1808 = vadd.f32 0.0, %v1807
        %1809 = vmatmul.f32.gmra.mxu0 %v1695
        %v1810 = vpop.f32.mrf.mxu0
        %v1811 = vadd.f32 0.0, %v1810
        %1812 = vmatmul.f32.gmra.mxu0 %v1698
        %v1813 = vpop.f32.mrf.mxu0
        %v1814 = vadd.f32 0.0, %v1813
        %1815 = vmatmul.f32.gmra.mxu0 %v1701
        %v1816 = vpop.f32.mrf.mxu0
        %v1817 = vadd.f32 0.0, %v1816
        %1818 = vmatmul.f32.gmra.mxu0 %v1704
        %v1819 = vpop.f32.mrf.mxu0
        %v1820 = vadd.f32 0.0, %v1819
        %1821 = vmatmul.f32.gmra.mxu0 %v1707
        %v1822 = vpop.f32.mrf.mxu0
        %v1823 = vadd.f32 0.0, %v1822
        %1824 = vmatmul.f32.gmra.mxu0 %v1710
        %v1825 = vpop.f32.mrf.mxu0
        %v1826 = vadd.f32 0.0, %v1825
        %1827 = vmatmul.f32.gmra.mxu0 %v1713
        %v1828 = vpop.f32.mrf.mxu0
        %v1829 = vadd.f32 0.0, %v1828
        %1830 = vmatmul.f32.gmra.mxu0 %v1716
        %v1831 = vpop.f32.mrf.mxu0
        %v1832 = vadd.f32 0.0, %v1831
        %1833 = vmatmul.f32.gmra.mxu0 %v1719
        %v1834 = vpop.f32.mrf.mxu0
        %v1835 = vadd.f32 0.0, %v1834
        %1836 = vmatmul.f32.gmra.mxu0 %v1722
        %v1837 = vpop.f32.mrf.mxu0
        %v1838 = vadd.f32 0.0, %v1837
        %1839 = vmatmul.f32.gmra.mxu0 %v1725
        %v1840 = vpop.f32.mrf.mxu0
        %v1841 = vadd.f32 0.0, %v1840
        %1842 = vmatmul.f32.gmra.mxu0 %v1728
        %v1843 = vpop.f32.mrf.mxu0
        %v1844 = vadd.f32 0.0, %v1843
        %1845 = vmatmul.f32.gmra.mxu0 %v1731
        %v1846 = vpop.f32.mrf.mxu0
        %v1847 = vadd.f32 0.0, %v1846
        %1848 = vdwg.mxu0
        %v1849 = vadd.f32 %v1507, %v1754
        %v1850 = vadd.f32 %v1508, %v1757
        %v1851 = vadd.f32 %v1509, %v1760
        %v1852 = vadd.f32 %v1510, %v1763
        %v1853 = vadd.f32 %v1511, %v1766
        %v1854 = vadd.f32 %v1512, %v1769
        %v1855 = vadd.f32 %v1513, %v1772
        %v1856 = vadd.f32 %v1514, %v1775
        %v1857 = vadd.f32 %v1515, %v1778
        %v1858 = vadd.f32 %v1516, %v1781
        %v1859 = vadd.f32 %v1517, %v1784
        %v1860 = vadd.f32 %v1518, %v1787
        %v1861 = vadd.f32 %v1519, %v1790
        %v1862 = vadd.f32 %v1520, %v1793
        %v1863 = vadd.f32 %v1521, %v1796
        %v1864 = vadd.f32 %v1522, %v1799
        %v1865 = vadd.f32 %v1523, %v1802
        %v1866 = vadd.f32 %v1524, %v1805
        %v1867 = vadd.f32 %v1525, %v1808
        %v1868 = vadd.f32 %v1526, %v1811
        %v1869 = vadd.f32 %v1527, %v1814
        %v1870 = vadd.f32 %v1528, %v1817
        %v1871 = vadd.f32 %v1529, %v1820
        %v1872 = vadd.f32 %v1530, %v1823
        %v1873 = vadd.f32 %v1531, %v1826
        %v1874 = vadd.f32 %v1532, %v1829
        %v1875 = vadd.f32 %v1533, %v1832
        %v1876 = vadd.f32 %v1534, %v1835
        %v1877 = vadd.f32 %v1535, %v1838
        %v1878 = vadd.f32 %v1536, %v1841
        %v1879 = vadd.f32 %v1537, %v1844
        %v1880 = vadd.f32 %v1538, %v1847
        %v1881 = vld [vmem:[%s223 + $0x2] sm:$0xff]
        %v1882 = vld [vmem:[%s223 + $0xa] sm:$0xff]
        %1883 = vst.msk [vmem:[#allocation2] sm:$0xff] %vm220, %v1881
        %1884 = vst.msk [vmem:[#allocation2 + $0x8] sm:$0xff] %vm220, %v1882
        %v1885 = vld [vmem:[%s228 + $0x2] sm:$0xff]
        %v1886 = vld [vmem:[%s228 + $0xa] sm:$0xff]
        %1887 = vst.msk [vmem:[#allocation2 + $0x10] sm:$0xff] %vm220, %v1885
        %1888 = vst.msk [vmem:[#allocation2 + $0x18] sm:$0xff] %vm220, %v1886
        %v1889 = vld [vmem:[%s233 + $0x2] sm:$0xff]
        %v1890 = vld [vmem:[%s233 + $0xa] sm:$0xff]
        %1891 = vst.msk [vmem:[#allocation2 + $0x20] sm:$0xff] %vm220, %v1889
        %1892 = vst.msk [vmem:[#allocation2 + $0x28] sm:$0xff] %vm220, %v1890
        %v1893 = vld [vmem:[%s238 + $0x2] sm:$0xff]
        %v1894 = vld [vmem:[%s238 + $0xa] sm:$0xff]
        %1895 = vst.msk [vmem:[#allocation2 + $0x30] sm:$0xff] %vm220, %v1893
        %1896 = vst.msk [vmem:[#allocation2 + $0x38] sm:$0xff] %vm220, %v1894
        %v1897 = vld [vmem:[%s243 + $0x2] sm:$0xff]
        %v1898 = vld [vmem:[%s243 + $0xa] sm:$0xff]
        %1899 = vst.msk [vmem:[#allocation2 + $0x40] sm:$0xff] %vm220, %v1897
        %1900 = vst.msk [vmem:[#allocation2 + $0x48] sm:$0xff] %vm220, %v1898
        %v1901 = vld [vmem:[%s248 + $0x2] sm:$0xff]
        %v1902 = vld [vmem:[%s248 + $0xa] sm:$0xff]
        %1903 = vst.msk [vmem:[#allocation2 + $0x50] sm:$0xff] %vm220, %v1901
        %1904 = vst.msk [vmem:[#allocation2 + $0x58] sm:$0xff] %vm220, %v1902
        %v1905 = vld [vmem:[%s253 + $0x2] sm:$0xff]
        %v1906 = vld [vmem:[%s253 + $0xa] sm:$0xff]
        %1907 = vst.msk [vmem:[#allocation2 + $0x60] sm:$0xff] %vm220, %v1905
        %1908 = vst.msk [vmem:[#allocation2 + $0x68] sm:$0xff] %vm220, %v1906
        %v1909 = vld [vmem:[%s258 + $0x2] sm:$0xff]
        %v1910 = vld [vmem:[%s258 + $0xa] sm:$0xff]
        %1911 = vst.msk [vmem:[#allocation2 + $0x70] sm:$0xff] %vm220, %v1909
        %1912 = vst.msk [vmem:[#allocation2 + $0x78] sm:$0xff] %vm220, %v1910
        %v1913 = vld [vmem:[%s263 + $0x2] sm:$0xff]
        %v1914 = vld [vmem:[%s263 + $0xa] sm:$0xff]
        %1915 = vst.msk [vmem:[#allocation2 + $0x80] sm:$0xff] %vm220, %v1913
        %1916 = vst.msk [vmem:[#allocation2 + $0x88] sm:$0xff] %vm220, %v1914
        %v1917 = vld [vmem:[%s268 + $0x2] sm:$0xff]
        %v1918 = vld [vmem:[%s268 + $0xa] sm:$0xff]
        %1919 = vst.msk [vmem:[#allocation2 + $0x90] sm:$0xff] %vm220, %v1917
        %1920 = vst.msk [vmem:[#allocation2 + $0x98] sm:$0xff] %vm220, %v1918
        %v1921 = vld [vmem:[%s273 + $0x2] sm:$0xff]
        %v1922 = vld [vmem:[%s273 + $0xa] sm:$0xff]
        %1923 = vst.msk [vmem:[#allocation2 + $0xa0] sm:$0xff] %vm220, %v1921
        %1924 = vst.msk [vmem:[#allocation2 + $0xa8] sm:$0xff] %vm220, %v1922
        %v1925 = vld [vmem:[%s278 + $0x2] sm:$0xff]
        %v1926 = vld [vmem:[%s278 + $0xa] sm:$0xff]
        %1927 = vst.msk [vmem:[#allocation2 + $0xb0] sm:$0xff] %vm220, %v1925
        %1928 = vst.msk [vmem:[#allocation2 + $0xb8] sm:$0xff] %vm220, %v1926
        %v1929 = vld [vmem:[%s283 + $0x2] sm:$0xff]
        %v1930 = vld [vmem:[%s283 + $0xa] sm:$0xff]
        %1931 = vst.msk [vmem:[#allocation2 + $0xc0] sm:$0xff] %vm220, %v1929
        %1932 = vst.msk [vmem:[#allocation2 + $0xc8] sm:$0xff] %vm220, %v1930
        %v1933 = vld [vmem:[%s288 + $0x2] sm:$0xff]
        %v1934 = vld [vmem:[%s288 + $0xa] sm:$0xff]
        %1935 = vst.msk [vmem:[#allocation2 + $0xd0] sm:$0xff] %vm220, %v1933
        %1936 = vst.msk [vmem:[#allocation2 + $0xd8] sm:$0xff] %vm220, %v1934
        %v1937 = vld [vmem:[%s293 + $0x2] sm:$0xff]
        %v1938 = vld [vmem:[%s293 + $0xa] sm:$0xff]
        %1939 = vst.msk [vmem:[#allocation2 + $0xe0] sm:$0xff] %vm220, %v1937
        %1940 = vst.msk [vmem:[#allocation2 + $0xe8] sm:$0xff] %vm220, %v1938
        %v1941 = vld [vmem:[%s1256 + $0x2] sm:$0xff]
        %v1942 = vld [vmem:[%s1256 + $0xa] sm:$0xff]
        %1943 = vst.msk [vmem:[#allocation2 + $0xf0] sm:$0xff] %vm220, %v1941
        %1944 = vst.msk [vmem:[#allocation2 + $0xf8] sm:$0xff] %vm220, %v1942
        %v1945 = vld [vmem:[#allocation2] sm:$0xff]
        %v1946 = vld [vmem:[#allocation2 + $0x8] sm:$0xff]
        %v1947 = vld [vmem:[#allocation2 + $0x10] sm:$0xff]
        %v1948 = vld [vmem:[#allocation2 + $0x18] sm:$0xff]
        %v1949 = vld [vmem:[#allocation2 + $0x20] sm:$0xff]
        %v1950 = vld [vmem:[#allocation2 + $0x28] sm:$0xff]
        %v1951 = vld [vmem:[#allocation2 + $0x30] sm:$0xff]
        %v1952 = vld [vmem:[#allocation2 + $0x38] sm:$0xff]
        %v1953 = vld [vmem:[#allocation2 + $0x40] sm:$0xff]
        %v1954 = vld [vmem:[#allocation2 + $0x48] sm:$0xff]
        %v1955 = vld [vmem:[#allocation2 + $0x50] sm:$0xff]
        %v1956 = vld [vmem:[#allocation2 + $0x58] sm:$0xff]
        %v1957 = vld [vmem:[#allocation2 + $0x60] sm:$0xff]
        %v1958 = vld [vmem:[#allocation2 + $0x68] sm:$0xff]
        %v1959 = vld [vmem:[#allocation2 + $0x70] sm:$0xff]
        %v1960 = vld [vmem:[#allocation2 + $0x78] sm:$0xff]
        %v1961 = vld [vmem:[#allocation2 + $0x80] sm:$0xff]
        %v1962 = vld [vmem:[#allocation2 + $0x88] sm:$0xff]
        %v1963 = vld [vmem:[#allocation2 + $0x90] sm:$0xff]
        %v1964 = vld [vmem:[#allocation2 + $0x98] sm:$0xff]
        %v1965 = vld [vmem:[#allocation2 + $0xa0] sm:$0xff]
        %v1966 = vld [vmem:[#allocation2 + $0xa8] sm:$0xff]
        %v1967 = vld [vmem:[#allocation2 + $0xb0] sm:$0xff]
        %v1968 = vld [vmem:[#allocation2 + $0xb8] sm:$0xff]
        %v1969 = vld [vmem:[#allocation2 + $0xc0] sm:$0xff]
        %v1970 = vld [vmem:[#allocation2 + $0xc8] sm:$0xff]
        %v1971 = vld [vmem:[#allocation2 + $0xd0] sm:$0xff]
        %v1972 = vld [vmem:[#allocation2 + $0xd8] sm:$0xff]
        %v1973 = vld [vmem:[#allocation2 + $0xe0] sm:$0xff]
        %v1974 = vld [vmem:[#allocation2 + $0xe8] sm:$0xff]
        %v1975 = vld [vmem:[#allocation2 + $0xf0] sm:$0xff]
        %v1976 = vld [vmem:[#allocation2 + $0xf8] sm:$0xff]
        %s1977 = scalar_lea.vmem %s1, 20
        %v1978 = vld [vmem:[%s1977] sm:$0xf]
        %v1980 = vsel %vm220, %v1945, 0
        %v1983 = vsel %vm220, %v1946, 0
        %v1986 = vsel %vm220, %v1947, 0
        %v1989 = vsel %vm220, %v1948, 0
        %v1992 = vsel %vm220, %v1949, 0
        %v1995 = vsel %vm220, %v1950, 0
        %v1998 = vsel %vm220, %v1951, 0
        %v2001 = vsel %vm220, %v1952, 0
        %v2004 = vsel %vm220, %v1953, 0
        %v2007 = vsel %vm220, %v1954, 0
        %v2010 = vsel %vm220, %v1955, 0
        %v2013 = vsel %vm220, %v1956, 0
        %v2016 = vsel %vm220, %v1957, 0
        %v2019 = vsel %vm220, %v1958, 0
        %v2022 = vsel %vm220, %v1959, 0
        %v2025 = vsel %vm220, %v1960, 0
        %v2028 = vsel %vm220, %v1961, 0
        %v2031 = vsel %vm220, %v1962, 0
        %v2034 = vsel %vm220, %v1963, 0
        %v2037 = vsel %vm220, %v1964, 0
        %v2040 = vsel %vm220, %v1965, 0
        %v2043 = vsel %vm220, %v1966, 0
        %v2046 = vsel %vm220, %v1967, 0
        %v2049 = vsel %vm220, %v1968, 0
        %v2052 = vsel %vm220, %v1969, 0
        %v2055 = vsel %vm220, %v1970, 0
        %v2058 = vsel %vm220, %v1971, 0
        %v2061 = vsel %vm220, %v1972, 0
        %v2064 = vsel %vm220, %v1973, 0
        %v2067 = vsel %vm220, %v1974, 0
        %v2070 = vsel %vm220, %v1975, 0
        %v2073 = vsel %vm220, %v1976, 0
        %v2076 = vsel %vm525, %v1978, 0
        %2078 = vmatpush.msra.mxu0 0.0
        %2079 = vmatpush.msra.mxu0 0.0
        %2080 = vmatpush.msra.mxu0 0.0
        %2081 = vmatpush.msra.mxu0 0.0
        %2082 = vmatpush.msra.mxu0 0.0
        %2083 = vmatpush.msra.mxu0 0.0
        %2084 = vmatpush.msra.mxu0 0.0
        %2085 = vmatpush.msra.mxu0 0.0
        %2086 = vmatpush.msra.mxu0 0.0
        %2087 = vmatpush.msra.mxu0 0.0
        %2088 = vmatpush.msra.mxu0 0.0
        %2089 = vmatpush.msra.mxu0 0.0
        %2090 = vmatpush.msra.mxu0 0.0
        %2091 = vmatpush.msra.mxu0 0.0
        %2092 = vmatpush.msra.mxu0 0.0
        %2093 = vmatpush.msra.mxu0 %v2076
        %2094 = vmatmul.f32.gmra.mxu0 %v1980
        %v2095 = vpop.f32.mrf.mxu0
        %v2096 = vadd.f32 0.0, %v2095
        %2097 = vmatmul.f32.gmra.mxu0 %v1983
        %v2098 = vpop.f32.mrf.mxu0
        %v2099 = vadd.f32 0.0, %v2098
        %2100 = vmatmul.f32.gmra.mxu0 %v1986
        %v2101 = vpop.f32.mrf.mxu0
        %v2102 = vadd.f32 0.0, %v2101
        %2103 = vmatmul.f32.gmra.mxu0 %v1989
        %v2104 = vpop.f32.mrf.mxu0
        %v2105 = vadd.f32 0.0, %v2104
        %2106 = vmatmul.f32.gmra.mxu0 %v1992
        %v2107 = vpop.f32.mrf.mxu0
        %v2108 = vadd.f32 0.0, %v2107
        %2109 = vmatmul.f32.gmra.mxu0 %v1995
        %v2110 = vpop.f32.mrf.mxu0
        %v2111 = vadd.f32 0.0, %v2110
        %2112 = vmatmul.f32.gmra.mxu0 %v1998
        %v2113 = vpop.f32.mrf.mxu0
        %v2114 = vadd.f32 0.0, %v2113
        %2115 = vmatmul.f32.gmra.mxu0 %v2001
        %v2116 = vpop.f32.mrf.mxu0
        %v2117 = vadd.f32 0.0, %v2116
        %2118 = vmatmul.f32.gmra.mxu0 %v2004
        %v2119 = vpop.f32.mrf.mxu0
        %v2120 = vadd.f32 0.0, %v2119
        %2121 = vmatmul.f32.gmra.mxu0 %v2007
        %v2122 = vpop.f32.mrf.mxu0
        %v2123 = vadd.f32 0.0, %v2122
        %2124 = vmatmul.f32.gmra.mxu0 %v2010
        %v2125 = vpop.f32.mrf.mxu0
        %v2126 = vadd.f32 0.0, %v2125
        %2127 = vmatmul.f32.gmra.mxu0 %v2013
        %v2128 = vpop.f32.mrf.mxu0
        %v2129 = vadd.f32 0.0, %v2128
        %2130 = vmatmul.f32.gmra.mxu0 %v2016
        %v2131 = vpop.f32.mrf.mxu0
        %v2132 = vadd.f32 0.0, %v2131
        %2133 = vmatmul.f32.gmra.mxu0 %v2019
        %v2134 = vpop.f32.mrf.mxu0
        %v2135 = vadd.f32 0.0, %v2134
        %2136 = vmatmul.f32.gmra.mxu0 %v2022
        %v2137 = vpop.f32.mrf.mxu0
        %v2138 = vadd.f32 0.0, %v2137
        %2139 = vmatmul.f32.gmra.mxu0 %v2025
        %v2140 = vpop.f32.mrf.mxu0
        %v2141 = vadd.f32 0.0, %v2140
        %2142 = vmatmul.f32.gmra.mxu0 %v2028
        %v2143 = vpop.f32.mrf.mxu0
        %v2144 = vadd.f32 0.0, %v2143
        %2145 = vmatmul.f32.gmra.mxu0 %v2031
        %v2146 = vpop.f32.mrf.mxu0
        %v2147 = vadd.f32 0.0, %v2146
        %2148 = vmatmul.f32.gmra.mxu0 %v2034
        %v2149 = vpop.f32.mrf.mxu0
        %v2150 = vadd.f32 0.0, %v2149
        %2151 = vmatmul.f32.gmra.mxu0 %v2037
        %v2152 = vpop.f32.mrf.mxu0
        %v2153 = vadd.f32 0.0, %v2152
        %2154 = vmatmul.f32.gmra.mxu0 %v2040
        %v2155 = vpop.f32.mrf.mxu0
        %v2156 = vadd.f32 0.0, %v2155
        %2157 = vmatmul.f32.gmra.mxu0 %v2043
        %v2158 = vpop.f32.mrf.mxu0
        %v2159 = vadd.f32 0.0, %v2158
        %2160 = vmatmul.f32.gmra.mxu0 %v2046
        %v2161 = vpop.f32.mrf.mxu0
        %v2162 = vadd.f32 0.0, %v2161
        %2163 = vmatmul.f32.gmra.mxu0 %v2049
        %v2164 = vpop.f32.mrf.mxu0
        %v2165 = vadd.f32 0.0, %v2164
        %2166 = vmatmul.f32.gmra.mxu0 %v2052
        %v2167 = vpop.f32.mrf.mxu0
        %v2168 = vadd.f32 0.0, %v2167
        %2169 = vmatmul.f32.gmra.mxu0 %v2055
        %v2170 = vpop.f32.mrf.mxu0
        %v2171 = vadd.f32 0.0, %v2170
        %2172 = vmatmul.f32.gmra.mxu0 %v2058
        %v2173 = vpop.f32.mrf.mxu0
        %v2174 = vadd.f32 0.0, %v2173
        %2175 = vmatmul.f32.gmra.mxu0 %v2061
        %v2176 = vpop.f32.mrf.mxu0
        %v2177 = vadd.f32 0.0, %v2176
        %2178 = vmatmul.f32.gmra.mxu0 %v2064
        %v2179 = vpop.f32.mrf.mxu0
        %v2180 = vadd.f32 0.0, %v2179
        %2181 = vmatmul.f32.gmra.mxu0 %v2067
        %v2182 = vpop.f32.mrf.mxu0
        %v2183 = vadd.f32 0.0, %v2182
        %2184 = vmatmul.f32.gmra.mxu0 %v2070
        %v2185 = vpop.f32.mrf.mxu0
        %v2186 = vadd.f32 0.0, %v2185
        %2187 = vmatmul.f32.gmra.mxu0 %v2073
        %v2188 = vpop.f32.mrf.mxu0
        %v2189 = vadd.f32 0.0, %v2188
        %2190 = vdwg.mxu0
        %v2191 = vadd.f32 %v1849, %v2096
        %v2192 = vadd.f32 %v1850, %v2099
        %v2193 = vadd.f32 %v1851, %v2102
        %v2194 = vadd.f32 %v1852, %v2105
        %v2195 = vadd.f32 %v1853, %v2108
        %v2196 = vadd.f32 %v1854, %v2111
        %v2197 = vadd.f32 %v1855, %v2114
        %v2198 = vadd.f32 %v1856, %v2117
        %v2199 = vadd.f32 %v1857, %v2120
        %v2200 = vadd.f32 %v1858, %v2123
        %v2201 = vadd.f32 %v1859, %v2126
        %v2202 = vadd.f32 %v1860, %v2129
        %v2203 = vadd.f32 %v1861, %v2132
        %v2204 = vadd.f32 %v1862, %v2135
        %v2205 = vadd.f32 %v1863, %v2138
        %v2206 = vadd.f32 %v1864, %v2141
        %v2207 = vadd.f32 %v1865, %v2144
        %v2208 = vadd.f32 %v1866, %v2147
        %v2209 = vadd.f32 %v1867, %v2150
        %v2210 = vadd.f32 %v1868, %v2153
        %v2211 = vadd.f32 %v1869, %v2156
        %v2212 = vadd.f32 %v1870, %v2159
        %v2213 = vadd.f32 %v1871, %v2162
        %v2214 = vadd.f32 %v1872, %v2165
        %v2215 = vadd.f32 %v1873, %v2168
        %v2216 = vadd.f32 %v1874, %v2171
        %v2217 = vadd.f32 %v1875, %v2174
        %v2218 = vadd.f32 %v1876, %v2177
        %v2219 = vadd.f32 %v1877, %v2180
        %v2220 = vadd.f32 %v1878, %v2183
        %v2221 = vadd.f32 %v1879, %v2186
        %v2222 = vadd.f32 %v1880, %v2189
        %v2223 = vld [vmem:[%s228] sm:$0xff]
        %v2224 = vld [vmem:[%s228 + $0x8] sm:$0xff]
        %2225 = vst.msk [vmem:[#allocation2] sm:$0xff] %vm220, %v2223
        %2226 = vst.msk [vmem:[#allocation2 + $0x8] sm:$0xff] %vm220, %v2224
        %v2227 = vld [vmem:[%s233] sm:$0xff]
        %v2228 = vld [vmem:[%s233 + $0x8] sm:$0xff]
        %2229 = vst.msk [vmem:[#allocation2 + $0x10] sm:$0xff] %vm220, %v2227
        %2230 = vst.msk [vmem:[#allocation2 + $0x18] sm:$0xff] %vm220, %v2228
        %v2231 = vld [vmem:[%s238] sm:$0xff]
        %v2232 = vld [vmem:[%s238 + $0x8] sm:$0xff]
        %2233 = vst.msk [vmem:[#allocation2 + $0x20] sm:$0xff] %vm220, %v2231
        %2234 = vst.msk [vmem:[#allocation2 + $0x28] sm:$0xff] %vm220, %v2232
        %v2235 = vld [vmem:[%s243] sm:$0xff]
        %v2236 = vld [vmem:[%s243 + $0x8] sm:$0xff]
        %2237 = vst.msk [vmem:[#allocation2 + $0x30] sm:$0xff] %vm220, %v2235
        %2238 = vst.msk [vmem:[#allocation2 + $0x38] sm:$0xff] %vm220, %v2236
        %v2239 = vld [vmem:[%s248] sm:$0xff]
        %v2240 = vld [vmem:[%s248 + $0x8] sm:$0xff]
        %2241 = vst.msk [vmem:[#allocation2 + $0x40] sm:$0xff] %vm220, %v2239
        %2242 = vst.msk [vmem:[#allocation2 + $0x48] sm:$0xff] %vm220, %v2240
        %v2243 = vld [vmem:[%s253] sm:$0xff]
        %v2244 = vld [vmem:[%s253 + $0x8] sm:$0xff]
        %2245 = vst.msk [vmem:[#allocation2 + $0x50] sm:$0xff] %vm220, %v2243
        %2246 = vst.msk [vmem:[#allocation2 + $0x58] sm:$0xff] %vm220, %v2244
        %v2247 = vld [vmem:[%s258] sm:$0xff]
        %v2248 = vld [vmem:[%s258 + $0x8] sm:$0xff]
        %2249 = vst.msk [vmem:[#allocation2 + $0x60] sm:$0xff] %vm220, %v2247
        %2250 = vst.msk [vmem:[#allocation2 + $0x68] sm:$0xff] %vm220, %v2248
        %v2251 = vld [vmem:[%s263] sm:$0xff]
        %v2252 = vld [vmem:[%s263 + $0x8] sm:$0xff]
        %2253 = vst.msk [vmem:[#allocation2 + $0x70] sm:$0xff] %vm220, %v2251
        %2254 = vst.msk [vmem:[#allocation2 + $0x78] sm:$0xff] %vm220, %v2252
        %v2255 = vld [vmem:[%s268] sm:$0xff]
        %v2256 = vld [vmem:[%s268 + $0x8] sm:$0xff]
        %2257 = vst.msk [vmem:[#allocation2 + $0x80] sm:$0xff] %vm220, %v2255
        %2258 = vst.msk [vmem:[#allocation2 + $0x88] sm:$0xff] %vm220, %v2256
        %v2259 = vld [vmem:[%s273] sm:$0xff]
        %v2260 = vld [vmem:[%s273 + $0x8] sm:$0xff]
        %2261 = vst.msk [vmem:[#allocation2 + $0x90] sm:$0xff] %vm220, %v2259
        %2262 = vst.msk [vmem:[#allocation2 + $0x98] sm:$0xff] %vm220, %v2260
        %v2263 = vld [vmem:[%s278] sm:$0xff]
        %v2264 = vld [vmem:[%s278 + $0x8] sm:$0xff]
        %2265 = vst.msk [vmem:[#allocation2 + $0xa0] sm:$0xff] %vm220, %v2263
        %2266 = vst.msk [vmem:[#allocation2 + $0xa8] sm:$0xff] %vm220, %v2264
        %v2267 = vld [vmem:[%s283] sm:$0xff]
        %v2268 = vld [vmem:[%s283 + $0x8] sm:$0xff]
        %2269 = vst.msk [vmem:[#allocation2 + $0xb0] sm:$0xff] %vm220, %v2267
        %2270 = vst.msk [vmem:[#allocation2 + $0xb8] sm:$0xff] %vm220, %v2268
        %v2271 = vld [vmem:[%s288] sm:$0xff]
        %v2272 = vld [vmem:[%s288 + $0x8] sm:$0xff]
        %2273 = vst.msk [vmem:[#allocation2 + $0xc0] sm:$0xff] %vm220, %v2271
        %2274 = vst.msk [vmem:[#allocation2 + $0xc8] sm:$0xff] %vm220, %v2272
        %v2275 = vld [vmem:[%s293] sm:$0xff]
        %v2276 = vld [vmem:[%s293 + $0x8] sm:$0xff]
        %2277 = vst.msk [vmem:[#allocation2 + $0xd0] sm:$0xff] %vm220, %v2275
        %2278 = vst.msk [vmem:[#allocation2 + $0xd8] sm:$0xff] %vm220, %v2276
        %v2279 = vld [vmem:[%s1256] sm:$0xff]
        %v2280 = vld [vmem:[%s1256 + $0x8] sm:$0xff]
        %2281 = vst.msk [vmem:[#allocation2 + $0xe0] sm:$0xff] %vm220, %v2279
        %2282 = vst.msk [vmem:[#allocation2 + $0xe8] sm:$0xff] %vm220, %v2280
        %s2283 = scalar_lea.vmem %s210, 408
        %v2284 = vld [vmem:[%s2283] sm:$0xff]
        %v2285 = vld [vmem:[%s2283 + $0x8] sm:$0xff]
        %2286 = vst.msk [vmem:[#allocation2 + $0xf0] sm:$0xff] %vm220, %v2284
        %2287 = vst.msk [vmem:[#allocation2 + $0xf8] sm:$0xff] %vm220, %v2285
        %v2288 = vld [vmem:[#allocation2] sm:$0xff]
        %v2289 = vld [vmem:[#allocation2 + $0x8] sm:$0xff]
        %v2290 = vld [vmem:[#allocation2 + $0x10] sm:$0xff]
        %v2291 = vld [vmem:[#allocation2 + $0x18] sm:$0xff]
        %v2292 = vld [vmem:[#allocation2 + $0x20] sm:$0xff]
        %v2293 = vld [vmem:[#allocation2 + $0x28] sm:$0xff]
        %v2294 = vld [vmem:[#allocation2 + $0x30] sm:$0xff]
        %v2295 = vld [vmem:[#allocation2 + $0x38] sm:$0xff]
        %v2296 = vld [vmem:[#allocation2 + $0x40] sm:$0xff]
        %v2297 = vld [vmem:[#allocation2 + $0x48] sm:$0xff]
        %v2298 = vld [vmem:[#allocation2 + $0x50] sm:$0xff]
        %v2299 = vld [vmem:[#allocation2 + $0x58] sm:$0xff]
        %v2300 = vld [vmem:[#allocation2 + $0x60] sm:$0xff]
        %v2301 = vld [vmem:[#allocation2 + $0x68] sm:$0xff]
        %v2302 = vld [vmem:[#allocation2 + $0x70] sm:$0xff]
        %v2303 = vld [vmem:[#allocation2 + $0x78] sm:$0xff]
        %v2304 = vld [vmem:[#allocation2 + $0x80] sm:$0xff]
        %v2305 = vld [vmem:[#allocation2 + $0x88] sm:$0xff]
        %v2306 = vld [vmem:[#allocation2 + $0x90] sm:$0xff]
        %v2307 = vld [vmem:[#allocation2 + $0x98] sm:$0xff]
        %v2308 = vld [vmem:[#allocation2 + $0xa0] sm:$0xff]
        %v2309 = vld [vmem:[#allocation2 + $0xa8] sm:$0xff]
        %v2310 = vld [vmem:[#allocation2 + $0xb0] sm:$0xff]
        %v2311 = vld [vmem:[#allocation2 + $0xb8] sm:$0xff]
        %v2312 = vld [vmem:[#allocation2 + $0xc0] sm:$0xff]
        %v2313 = vld [vmem:[#allocation2 + $0xc8] sm:$0xff]
        %v2314 = vld [vmem:[#allocation2 + $0xd0] sm:$0xff]
        %v2315 = vld [vmem:[#allocation2 + $0xd8] sm:$0xff]
        %v2316 = vld [vmem:[#allocation2 + $0xe0] sm:$0xff]
        %v2317 = vld [vmem:[#allocation2 + $0xe8] sm:$0xff]
        %v2318 = vld [vmem:[#allocation2 + $0xf0] sm:$0xff]
        %v2319 = vld [vmem:[#allocation2 + $0xf8] sm:$0xff]
        %s2320 = scalar_lea.vmem %s1, 24
        %v2321 = vld [vmem:[%s2320] sm:$0xf]
        %v2323 = vsel %vm220, %v2288, 0
        %v2326 = vsel %vm220, %v2289, 0
        %v2329 = vsel %vm220, %v2290, 0
        %v2332 = vsel %vm220, %v2291, 0
        %v2335 = vsel %vm220, %v2292, 0
        %v2338 = vsel %vm220, %v2293, 0
        %v2341 = vsel %vm220, %v2294, 0
        %v2344 = vsel %vm220, %v2295, 0
        %v2347 = vsel %vm220, %v2296, 0
        %v2350 = vsel %vm220, %v2297, 0
        %v2353 = vsel %vm220, %v2298, 0
        %v2356 = vsel %vm220, %v2299, 0
        %v2359 = vsel %vm220, %v2300, 0
        %v2362 = vsel %vm220, %v2301, 0
        %v2365 = vsel %vm220, %v2302, 0
        %v2368 = vsel %vm220, %v2303, 0
        %v2371 = vsel %vm220, %v2304, 0
        %v2374 = vsel %vm220, %v2305, 0
        %v2377 = vsel %vm220, %v2306, 0
        %v2380 = vsel %vm220, %v2307, 0
        %v2383 = vsel %vm220, %v2308, 0
        %v2386 = vsel %vm220, %v2309, 0
        %v2389 = vsel %vm220, %v2310, 0
        %v2392 = vsel %vm220, %v2311, 0
        %v2395 = vsel %vm220, %v2312, 0
        %v2398 = vsel %vm220, %v2313, 0
        %v2401 = vsel %vm220, %v2314, 0
        %v2404 = vsel %vm220, %v2315, 0
        %v2407 = vsel %vm220, %v2316, 0
        %v2410 = vsel %vm220, %v2317, 0
        %v2413 = vsel %vm220, %v2318, 0
        %v2416 = vsel %vm220, %v2319, 0
        %v2419 = vsel %vm525, %v2321, 0
        %2421 = vmatpush.msra.mxu0 0.0
        %2422 = vmatpush.msra.mxu0 0.0
        %2423 = vmatpush.msra.mxu0 0.0
        %2424 = vmatpush.msra.mxu0 0.0
        %2425 = vmatpush.msra.mxu0 0.0
        %2426 = vmatpush.msra.mxu0 0.0
        %2427 = vmatpush.msra.mxu0 0.0
        %2428 = vmatpush.msra.mxu0 0.0
        %2429 = vmatpush.msra.mxu0 0.0
        %2430 = vmatpush.msra.mxu0 0.0
        %2431 = vmatpush.msra.mxu0 0.0
        %2432 = vmatpush.msra.mxu0 0.0
        %2433 = vmatpush.msra.mxu0 0.0
        %2434 = vmatpush.msra.mxu0 0.0
        %2435 = vmatpush.msra.mxu0 0.0
        %2436 = vmatpush.msra.mxu0 %v2419
        %2437 = vmatmul.f32.gmra.mxu0 %v2323
        %v2438 = vpop.f32.mrf.mxu0
        %v2439 = vadd.f32 0.0, %v2438
        %2440 = vmatmul.f32.gmra.mxu0 %v2326
        %v2441 = vpop.f32.mrf.mxu0
        %v2442 = vadd.f32 0.0, %v2441
        %2443 = vmatmul.f32.gmra.mxu0 %v2329
        %v2444 = vpop.f32.mrf.mxu0
        %v2445 = vadd.f32 0.0, %v2444
        %2446 = vmatmul.f32.gmra.mxu0 %v2332
        %v2447 = vpop.f32.mrf.mxu0
        %v2448 = vadd.f32 0.0, %v2447
        %2449 = vmatmul.f32.gmra.mxu0 %v2335
        %v2450 = vpop.f32.mrf.mxu0
        %v2451 = vadd.f32 0.0, %v2450
        %2452 = vmatmul.f32.gmra.mxu0 %v2338
        %v2453 = vpop.f32.mrf.mxu0
        %v2454 = vadd.f32 0.0, %v2453
        %2455 = vmatmul.f32.gmra.mxu0 %v2341
        %v2456 = vpop.f32.mrf.mxu0
        %v2457 = vadd.f32 0.0, %v2456
        %2458 = vmatmul.f32.gmra.mxu0 %v2344
        %v2459 = vpop.f32.mrf.mxu0
        %v2460 = vadd.f32 0.0, %v2459
        %2461 = vmatmul.f32.gmra.mxu0 %v2347
        %v2462 = vpop.f32.mrf.mxu0
        %v2463 = vadd.f32 0.0, %v2462
        %2464 = vmatmul.f32.gmra.mxu0 %v2350
        %v2465 = vpop.f32.mrf.mxu0
        %v2466 = vadd.f32 0.0, %v2465
        %2467 = vmatmul.f32.gmra.mxu0 %v2353
        %v2468 = vpop.f32.mrf.mxu0
        %v2469 = vadd.f32 0.0, %v2468
        %2470 = vmatmul.f32.gmra.mxu0 %v2356
        %v2471 = vpop.f32.mrf.mxu0
        %v2472 = vadd.f32 0.0, %v2471
        %2473 = vmatmul.f32.gmra.mxu0 %v2359
        %v2474 = vpop.f32.mrf.mxu0
        %v2475 = vadd.f32 0.0, %v2474
        %2476 = vmatmul.f32.gmra.mxu0 %v2362
        %v2477 = vpop.f32.mrf.mxu0
        %v2478 = vadd.f32 0.0, %v2477
        %2479 = vmatmul.f32.gmra.mxu0 %v2365
        %v2480 = vpop.f32.mrf.mxu0
        %v2481 = vadd.f32 0.0, %v2480
        %2482 = vmatmul.f32.gmra.mxu0 %v2368
        %v2483 = vpop.f32.mrf.mxu0
        %v2484 = vadd.f32 0.0, %v2483
        %2485 = vmatmul.f32.gmra.mxu0 %v2371
        %v2486 = vpop.f32.mrf.mxu0
        %v2487 = vadd.f32 0.0, %v2486
        %2488 = vmatmul.f32.gmra.mxu0 %v2374
        %v2489 = vpop.f32.mrf.mxu0
        %v2490 = vadd.f32 0.0, %v2489
        %2491 = vmatmul.f32.gmra.mxu0 %v2377
        %v2492 = vpop.f32.mrf.mxu0
        %v2493 = vadd.f32 0.0, %v2492
        %2494 = vmatmul.f32.gmra.mxu0 %v2380
        %v2495 = vpop.f32.mrf.mxu0
        %v2496 = vadd.f32 0.0, %v2495
        %2497 = vmatmul.f32.gmra.mxu0 %v2383
        %v2498 = vpop.f32.mrf.mxu0
        %v2499 = vadd.f32 0.0, %v2498
        %2500 = vmatmul.f32.gmra.mxu0 %v2386
        %v2501 = vpop.f32.mrf.mxu0
        %v2502 = vadd.f32 0.0, %v2501
        %2503 = vmatmul.f32.gmra.mxu0 %v2389
        %v2504 = vpop.f32.mrf.mxu0
        %v2505 = vadd.f32 0.0, %v2504
        %2506 = vmatmul.f32.gmra.mxu0 %v2392
        %v2507 = vpop.f32.mrf.mxu0
        %v2508 = vadd.f32 0.0, %v2507
        %2509 = vmatmul.f32.gmra.mxu0 %v2395
        %v2510 = vpop.f32.mrf.mxu0
        %v2511 = vadd.f32 0.0, %v2510
        %2512 = vmatmul.f32.gmra.mxu0 %v2398
        %v2513 = vpop.f32.mrf.mxu0
        %v2514 = vadd.f32 0.0, %v2513
        %2515 = vmatmul.f32.gmra.mxu0 %v2401
        %v2516 = vpop.f32.mrf.mxu0
        %v2517 = vadd.f32 0.0, %v2516
        %2518 = vmatmul.f32.gmra.mxu0 %v2404
        %v2519 = vpop.f32.mrf.mxu0
        %v2520 = vadd.f32 0.0, %v2519
        %2521 = vmatmul.f32.gmra.mxu0 %v2407
        %v2522 = vpop.f32.mrf.mxu0
        %v2523 = vadd.f32 0.0, %v2522
        %2524 = vmatmul.f32.gmra.mxu0 %v2410
        %v2525 = vpop.f32.mrf.mxu0
        %v2526 = vadd.f32 0.0, %v2525
        %2527 = vmatmul.f32.gmra.mxu0 %v2413
        %v2528 = vpop.f32.mrf.mxu0
        %v2529 = vadd.f32 0.0, %v2528
        %2530 = vmatmul.f32.gmra.mxu0 %v2416
        %v2531 = vpop.f32.mrf.mxu0
        %v2532 = vadd.f32 0.0, %v2531
        %2533 = vdwg.mxu0
        %v2534 = vadd.f32 %v2191, %v2439
        %v2535 = vadd.f32 %v2192, %v2442
        %v2536 = vadd.f32 %v2193, %v2445
        %v2537 = vadd.f32 %v2194, %v2448
        %v2538 = vadd.f32 %v2195, %v2451
        %v2539 = vadd.f32 %v2196, %v2454
        %v2540 = vadd.f32 %v2197, %v2457
        %v2541 = vadd.f32 %v2198, %v2460
        %v2542 = vadd.f32 %v2199, %v2463
        %v2543 = vadd.f32 %v2200, %v2466
        %v2544 = vadd.f32 %v2201, %v2469
        %v2545 = vadd.f32 %v2202, %v2472
        %v2546 = vadd.f32 %v2203, %v2475
        %v2547 = vadd.f32 %v2204, %v2478
        %v2548 = vadd.f32 %v2205, %v2481
        %v2549 = vadd.f32 %v2206, %v2484
        %v2550 = vadd.f32 %v2207, %v2487
        %v2551 = vadd.f32 %v2208, %v2490
        %v2552 = vadd.f32 %v2209, %v2493
        %v2553 = vadd.f32 %v2210, %v2496
        %v2554 = vadd.f32 %v2211, %v2499
        %v2555 = vadd.f32 %v2212, %v2502
        %v2556 = vadd.f32 %v2213, %v2505
        %v2557 = vadd.f32 %v2214, %v2508
        %v2558 = vadd.f32 %v2215, %v2511
        %v2559 = vadd.f32 %v2216, %v2514
        %v2560 = vadd.f32 %v2217, %v2517
        %v2561 = vadd.f32 %v2218, %v2520
        %v2562 = vadd.f32 %v2219, %v2523
        %v2563 = vadd.f32 %v2220, %v2526
        %v2564 = vadd.f32 %v2221, %v2529
        %v2565 = vadd.f32 %v2222, %v2532
        %v2566 = vld [vmem:[%s228 + $0x1] sm:$0xff]
        %v2567 = vld [vmem:[%s228 + $0x9] sm:$0xff]
        %2568 = vst.msk [vmem:[#allocation2] sm:$0xff] %vm220, %v2566
        %2569 = vst.msk [vmem:[#allocation2 + $0x8] sm:$0xff] %vm220, %v2567
        %v2570 = vld [vmem:[%s233 + $0x1] sm:$0xff]
        %v2571 = vld [vmem:[%s233 + $0x9] sm:$0xff]
        %2572 = vst.msk [vmem:[#allocation2 + $0x10] sm:$0xff] %vm220, %v2570
        %2573 = vst.msk [vmem:[#allocation2 + $0x18] sm:$0xff] %vm220, %v2571
        %v2574 = vld [vmem:[%s238 + $0x1] sm:$0xff]
        %v2575 = vld [vmem:[%s238 + $0x9] sm:$0xff]
        %2576 = vst.msk [vmem:[#allocation2 + $0x20] sm:$0xff] %vm220, %v2574
        %2577 = vst.msk [vmem:[#allocation2 + $0x28] sm:$0xff] %vm220, %v2575
        %v2578 = vld [vmem:[%s243 + $0x1] sm:$0xff]
        %v2579 = vld [vmem:[%s243 + $0x9] sm:$0xff]
        %2580 = vst.msk [vmem:[#allocation2 + $0x30] sm:$0xff] %vm220, %v2578
        %2581 = vst.msk [vmem:[#allocation2 + $0x38] sm:$0xff] %vm220, %v2579
        %v2582 = vld [vmem:[%s248 + $0x1] sm:$0xff]
        %v2583 = vld [vmem:[%s248 + $0x9] sm:$0xff]
        %2584 = vst.msk [vmem:[#allocation2 + $0x40] sm:$0xff] %vm220, %v2582
        %2585 = vst.msk [vmem:[#allocation2 + $0x48] sm:$0xff] %vm220, %v2583
        %v2586 = vld [vmem:[%s253 + $0x1] sm:$0xff]
        %v2587 = vld [vmem:[%s253 + $0x9] sm:$0xff]
        %2588 = vst.msk [vmem:[#allocation2 + $0x50] sm:$0xff] %vm220, %v2586
        %2589 = vst.msk [vmem:[#allocation2 + $0x58] sm:$0xff] %vm220, %v2587
        %v2590 = vld [vmem:[%s258 + $0x1] sm:$0xff]
        %v2591 = vld [vmem:[%s258 + $0x9] sm:$0xff]
        %2592 = vst.msk [vmem:[#allocation2 + $0x60] sm:$0xff] %vm220, %v2590
        %2593 = vst.msk [vmem:[#allocation2 + $0x68] sm:$0xff] %vm220, %v2591
        %v2594 = vld [vmem:[%s263 + $0x1] sm:$0xff]
        %v2595 = vld [vmem:[%s263 + $0x9] sm:$0xff]
        %2596 = vst.msk [vmem:[#allocation2 + $0x70] sm:$0xff] %vm220, %v2594
        %2597 = vst.msk [vmem:[#allocation2 + $0x78] sm:$0xff] %vm220, %v2595
        %v2598 = vld [vmem:[%s268 + $0x1] sm:$0xff]
        %v2599 = vld [vmem:[%s268 + $0x9] sm:$0xff]
        %2600 = vst.msk [vmem:[#allocation2 + $0x80] sm:$0xff] %vm220, %v2598
        %2601 = vst.msk [vmem:[#allocation2 + $0x88] sm:$0xff] %vm220, %v2599
        %v2602 = vld [vmem:[%s273 + $0x1] sm:$0xff]
        %v2603 = vld [vmem:[%s273 + $0x9] sm:$0xff]
        %2604 = vst.msk [vmem:[#allocation2 + $0x90] sm:$0xff] %vm220, %v2602
        %2605 = vst.msk [vmem:[#allocation2 + $0x98] sm:$0xff] %vm220, %v2603
        %v2606 = vld [vmem:[%s278 + $0x1] sm:$0xff]
        %v2607 = vld [vmem:[%s278 + $0x9] sm:$0xff]
        %2608 = vst.msk [vmem:[#allocation2 + $0xa0] sm:$0xff] %vm220, %v2606
        %2609 = vst.msk [vmem:[#allocation2 + $0xa8] sm:$0xff] %vm220, %v2607
        %v2610 = vld [vmem:[%s283 + $0x1] sm:$0xff]
        %v2611 = vld [vmem:[%s283 + $0x9] sm:$0xff]
        %2612 = vst.msk [vmem:[#allocation2 + $0xb0] sm:$0xff] %vm220, %v2610
        %2613 = vst.msk [vmem:[#allocation2 + $0xb8] sm:$0xff] %vm220, %v2611
        %v2614 = vld [vmem:[%s288 + $0x1] sm:$0xff]
        %v2615 = vld [vmem:[%s288 + $0x9] sm:$0xff]
        %2616 = vst.msk [vmem:[#allocation2 + $0xc0] sm:$0xff] %vm220, %v2614
        %2617 = vst.msk [vmem:[#allocation2 + $0xc8] sm:$0xff] %vm220, %v2615
        %v2618 = vld [vmem:[%s293 + $0x1] sm:$0xff]
        %v2619 = vld [vmem:[%s293 + $0x9] sm:$0xff]
        %2620 = vst.msk [vmem:[#allocation2 + $0xd0] sm:$0xff] %vm220, %v2618
        %2621 = vst.msk [vmem:[#allocation2 + $0xd8] sm:$0xff] %vm220, %v2619
        %v2622 = vld [vmem:[%s1256 + $0x1] sm:$0xff]
        %v2623 = vld [vmem:[%s1256 + $0x9] sm:$0xff]
        %2624 = vst.msk [vmem:[#allocation2 + $0xe0] sm:$0xff] %vm220, %v2622
        %2625 = vst.msk [vmem:[#allocation2 + $0xe8] sm:$0xff] %vm220, %v2623
        %v2626 = vld [vmem:[%s2283 + $0x1] sm:$0xff]
        %v2627 = vld [vmem:[%s2283 + $0x9] sm:$0xff]
        %2628 = vst.msk [vmem:[#allocation2 + $0xf0] sm:$0xff] %vm220, %v2626
        %2629 = vst.msk [vmem:[#allocation2 + $0xf8] sm:$0xff] %vm220, %v2627
        %v2630 = vld [vmem:[#allocation2] sm:$0xff]
        %v2631 = vld [vmem:[#allocation2 + $0x8] sm:$0xff]
        %v2632 = vld [vmem:[#allocation2 + $0x10] sm:$0xff]
        %v2633 = vld [vmem:[#allocation2 + $0x18] sm:$0xff]
        %v2634 = vld [vmem:[#allocation2 + $0x20] sm:$0xff]
        %v2635 = vld [vmem:[#allocation2 + $0x28] sm:$0xff]
        %v2636 = vld [vmem:[#allocation2 + $0x30] sm:$0xff]
        %v2637 = vld [vmem:[#allocation2 + $0x38] sm:$0xff]
        %v2638 = vld [vmem:[#allocation2 + $0x40] sm:$0xff]
        %v2639 = vld [vmem:[#allocation2 + $0x48] sm:$0xff]
        %v2640 = vld [vmem:[#allocation2 + $0x50] sm:$0xff]
        %v2641 = vld [vmem:[#allocation2 + $0x58] sm:$0xff]
        %v2642 = vld [vmem:[#allocation2 + $0x60] sm:$0xff]
        %v2643 = vld [vmem:[#allocation2 + $0x68] sm:$0xff]
        %v2644 = vld [vmem:[#allocation2 + $0x70] sm:$0xff]
        %v2645 = vld [vmem:[#allocation2 + $0x78] sm:$0xff]
        %v2646 = vld [vmem:[#allocation2 + $0x80] sm:$0xff]
        %v2647 = vld [vmem:[#allocation2 + $0x88] sm:$0xff]
        %v2648 = vld [vmem:[#allocation2 + $0x90] sm:$0xff]
        %v2649 = vld [vmem:[#allocation2 + $0x98] sm:$0xff]
        %v2650 = vld [vmem:[#allocation2 + $0xa0] sm:$0xff]
        %v2651 = vld [vmem:[#allocation2 + $0xa8] sm:$0xff]
        %v2652 = vld [vmem:[#allocation2 + $0xb0] sm:$0xff]
        %v2653 = vld [vmem:[#allocation2 + $0xb8] sm:$0xff]
        %v2654 = vld [vmem:[#allocation2 + $0xc0] sm:$0xff]
        %v2655 = vld [vmem:[#allocation2 + $0xc8] sm:$0xff]
        %v2656 = vld [vmem:[#allocation2 + $0xd0] sm:$0xff]
        %v2657 = vld [vmem:[#allocation2 + $0xd8] sm:$0xff]
        %v2658 = vld [vmem:[#allocation2 + $0xe0] sm:$0xff]
        %v2659 = vld [vmem:[#allocation2 + $0xe8] sm:$0xff]
        %v2660 = vld [vmem:[#allocation2 + $0xf0] sm:$0xff]
        %v2661 = vld [vmem:[#allocation2 + $0xf8] sm:$0xff]
        %s2662 = scalar_lea.vmem %s1, 28
        %v2663 = vld [vmem:[%s2662] sm:$0xf]
        %v2665 = vsel %vm220, %v2630, 0
        %v2668 = vsel %vm220, %v2631, 0
        %v2671 = vsel %vm220, %v2632, 0
        %v2674 = vsel %vm220, %v2633, 0
        %v2677 = vsel %vm220, %v2634, 0
        %v2680 = vsel %vm220, %v2635, 0
        %v2683 = vsel %vm220, %v2636, 0
        %v2686 = vsel %vm220, %v2637, 0
        %v2689 = vsel %vm220, %v2638, 0
        %v2692 = vsel %vm220, %v2639, 0
        %v2695 = vsel %vm220, %v2640, 0
        %v2698 = vsel %vm220, %v2641, 0
        %v2701 = vsel %vm220, %v2642, 0
        %v2704 = vsel %vm220, %v2643, 0
        %v2707 = vsel %vm220, %v2644, 0
        %v2710 = vsel %vm220, %v2645, 0
        %v2713 = vsel %vm220, %v2646, 0
        %v2716 = vsel %vm220, %v2647, 0
        %v2719 = vsel %vm220, %v2648, 0
        %v2722 = vsel %vm220, %v2649, 0
        %v2725 = vsel %vm220, %v2650, 0
        %v2728 = vsel %vm220, %v2651, 0
        %v2731 = vsel %vm220, %v2652, 0
        %v2734 = vsel %vm220, %v2653, 0
        %v2737 = vsel %vm220, %v2654, 0
        %v2740 = vsel %vm220, %v2655, 0
        %v2743 = vsel %vm220, %v2656, 0
        %v2746 = vsel %vm220, %v2657, 0
        %v2749 = vsel %vm220, %v2658, 0
        %v2752 = vsel %vm220, %v2659, 0
        %v2755 = vsel %vm220, %v2660, 0
        %v2758 = vsel %vm220, %v2661, 0
        %v2761 = vsel %vm525, %v2663, 0
        %2763 = vmatpush.msra.mxu0 0.0
        %2764 = vmatpush.msra.mxu0 0.0
        %2765 = vmatpush.msra.mxu0 0.0
        %2766 = vmatpush.msra.mxu0 0.0
        %2767 = vmatpush.msra.mxu0 0.0
        %2768 = vmatpush.msra.mxu0 0.0
        %2769 = vmatpush.msra.mxu0 0.0
        %2770 = vmatpush.msra.mxu0 0.0
        %2771 = vmatpush.msra.mxu0 0.0
        %2772 = vmatpush.msra.mxu0 0.0
        %2773 = vmatpush.msra.mxu0 0.0
        %2774 = vmatpush.msra.mxu0 0.0
        %2775 = vmatpush.msra.mxu0 0.0
        %2776 = vmatpush.msra.mxu0 0.0
        %2777 = vmatpush.msra.mxu0 0.0
        %2778 = vmatpush.msra.mxu0 %v2761
        %2779 = vmatmul.f32.gmra.mxu0 %v2665
        %v2780 = vpop.f32.mrf.mxu0
        %v2781 = vadd.f32 0.0, %v2780
        %2782 = vmatmul.f32.gmra.mxu0 %v2668
        %v2783 = vpop.f32.mrf.mxu0
        %v2784 = vadd.f32 0.0, %v2783
        %2785 = vmatmul.f32.gmra.mxu0 %v2671
        %v2786 = vpop.f32.mrf.mxu0
        %v2787 = vadd.f32 0.0, %v2786
        %2788 = vmatmul.f32.gmra.mxu0 %v2674
        %v2789 = vpop.f32.mrf.mxu0
        %v2790 = vadd.f32 0.0, %v2789
        %2791 = vmatmul.f32.gmra.mxu0 %v2677
        %v2792 = vpop.f32.mrf.mxu0
        %v2793 = vadd.f32 0.0, %v2792
        %2794 = vmatmul.f32.gmra.mxu0 %v2680
        %v2795 = vpop.f32.mrf.mxu0
        %v2796 = vadd.f32 0.0, %v2795
        %2797 = vmatmul.f32.gmra.mxu0 %v2683
        %v2798 = vpop.f32.mrf.mxu0
        %v2799 = vadd.f32 0.0, %v2798
        %2800 = vmatmul.f32.gmra.mxu0 %v2686
        %v2801 = vpop.f32.mrf.mxu0
        %v2802 = vadd.f32 0.0, %v2801
        %2803 = vmatmul.f32.gmra.mxu0 %v2689
        %v2804 = vpop.f32.mrf.mxu0
        %v2805 = vadd.f32 0.0, %v2804
        %2806 = vmatmul.f32.gmra.mxu0 %v2692
        %v2807 = vpop.f32.mrf.mxu0
        %v2808 = vadd.f32 0.0, %v2807
        %2809 = vmatmul.f32.gmra.mxu0 %v2695
        %v2810 = vpop.f32.mrf.mxu0
        %v2811 = vadd.f32 0.0, %v2810
        %2812 = vmatmul.f32.gmra.mxu0 %v2698
        %v2813 = vpop.f32.mrf.mxu0
        %v2814 = vadd.f32 0.0, %v2813
        %2815 = vmatmul.f32.gmra.mxu0 %v2701
        %v2816 = vpop.f32.mrf.mxu0
        %v2817 = vadd.f32 0.0, %v2816
        %2818 = vmatmul.f32.gmra.mxu0 %v2704
        %v2819 = vpop.f32.mrf.mxu0
        %v2820 = vadd.f32 0.0, %v2819
        %2821 = vmatmul.f32.gmra.mxu0 %v2707
        %v2822 = vpop.f32.mrf.mxu0
        %v2823 = vadd.f32 0.0, %v2822
        %2824 = vmatmul.f32.gmra.mxu0 %v2710
        %v2825 = vpop.f32.mrf.mxu0
        %v2826 = vadd.f32 0.0, %v2825
        %2827 = vmatmul.f32.gmra.mxu0 %v2713
        %v2828 = vpop.f32.mrf.mxu0
        %v2829 = vadd.f32 0.0, %v2828
        %2830 = vmatmul.f32.gmra.mxu0 %v2716
        %v2831 = vpop.f32.mrf.mxu0
        %v2832 = vadd.f32 0.0, %v2831
        %2833 = vmatmul.f32.gmra.mxu0 %v2719
        %v2834 = vpop.f32.mrf.mxu0
        %v2835 = vadd.f32 0.0, %v2834
        %2836 = vmatmul.f32.gmra.mxu0 %v2722
        %v2837 = vpop.f32.mrf.mxu0
        %v2838 = vadd.f32 0.0, %v2837
        %2839 = vmatmul.f32.gmra.mxu0 %v2725
        %v2840 = vpop.f32.mrf.mxu0
        %v2841 = vadd.f32 0.0, %v2840
        %2842 = vmatmul.f32.gmra.mxu0 %v2728
        %v2843 = vpop.f32.mrf.mxu0
        %v2844 = vadd.f32 0.0, %v2843
        %2845 = vmatmul.f32.gmra.mxu0 %v2731
        %v2846 = vpop.f32.mrf.mxu0
        %v2847 = vadd.f32 0.0, %v2846
        %2848 = vmatmul.f32.gmra.mxu0 %v2734
        %v2849 = vpop.f32.mrf.mxu0
        %v2850 = vadd.f32 0.0, %v2849
        %2851 = vmatmul.f32.gmra.mxu0 %v2737
        %v2852 = vpop.f32.mrf.mxu0
        %v2853 = vadd.f32 0.0, %v2852
        %2854 = vmatmul.f32.gmra.mxu0 %v2740
        %v2855 = vpop.f32.mrf.mxu0
        %v2856 = vadd.f32 0.0, %v2855
        %2857 = vmatmul.f32.gmra.mxu0 %v2743
        %v2858 = vpop.f32.mrf.mxu0
        %v2859 = vadd.f32 0.0, %v2858
        %2860 = vmatmul.f32.gmra.mxu0 %v2746
        %v2861 = vpop.f32.mrf.mxu0
        %v2862 = vadd.f32 0.0, %v2861
        %2863 = vmatmul.f32.gmra.mxu0 %v2749
        %v2864 = vpop.f32.mrf.mxu0
        %v2865 = vadd.f32 0.0, %v2864
        %2866 = vmatmul.f32.gmra.mxu0 %v2752
        %v2867 = vpop.f32.mrf.mxu0
        %v2868 = vadd.f32 0.0, %v2867
        %2869 = vmatmul.f32.gmra.mxu0 %v2755
        %v2870 = vpop.f32.mrf.mxu0
        %v2871 = vadd.f32 0.0, %v2870
        %2872 = vmatmul.f32.gmra.mxu0 %v2758
        %v2873 = vpop.f32.mrf.mxu0
        %v2874 = vadd.f32 0.0, %v2873
        %2875 = vdwg.mxu0
        %v2876 = vadd.f32 %v2534, %v2781
        %v2877 = vadd.f32 %v2535, %v2784
        %v2878 = vadd.f32 %v2536, %v2787
        %v2879 = vadd.f32 %v2537, %v2790
        %v2880 = vadd.f32 %v2538, %v2793
        %v2881 = vadd.f32 %v2539, %v2796
        %v2882 = vadd.f32 %v2540, %v2799
        %v2883 = vadd.f32 %v2541, %v2802
        %v2884 = vadd.f32 %v2542, %v2805
        %v2885 = vadd.f32 %v2543, %v2808
        %v2886 = vadd.f32 %v2544, %v2811
        %v2887 = vadd.f32 %v2545, %v2814
        %v2888 = vadd.f32 %v2546, %v2817
        %v2889 = vadd.f32 %v2547, %v2820
        %v2890 = vadd.f32 %v2548, %v2823
        %v2891 = vadd.f32 %v2549, %v2826
        %v2892 = vadd.f32 %v2550, %v2829
        %v2893 = vadd.f32 %v2551, %v2832
        %v2894 = vadd.f32 %v2552, %v2835
        %v2895 = vadd.f32 %v2553, %v2838
        %v2896 = vadd.f32 %v2554, %v2841
        %v2897 = vadd.f32 %v2555, %v2844
        %v2898 = vadd.f32 %v2556, %v2847
        %v2899 = vadd.f32 %v2557, %v2850
        %v2900 = vadd.f32 %v2558, %v2853
        %v2901 = vadd.f32 %v2559, %v2856
        %v2902 = vadd.f32 %v2560, %v2859
        %v2903 = vadd.f32 %v2561, %v2862
        %v2904 = vadd.f32 %v2562, %v2865
        %v2905 = vadd.f32 %v2563, %v2868
        %v2906 = vadd.f32 %v2564, %v2871
        %v2907 = vadd.f32 %v2565, %v2874
        %v2908 = vld [vmem:[%s228 + $0x2] sm:$0xff]
        %v2909 = vld [vmem:[%s228 + $0xa] sm:$0xff]
        %2910 = vst.msk [vmem:[#allocation2] sm:$0xff] %vm220, %v2908
        %2911 = vst.msk [vmem:[#allocation2 + $0x8] sm:$0xff] %vm220, %v2909
        %v2912 = vld [vmem:[%s233 + $0x2] sm:$0xff]
        %v2913 = vld [vmem:[%s233 + $0xa] sm:$0xff]
        %2914 = vst.msk [vmem:[#allocation2 + $0x10] sm:$0xff] %vm220, %v2912
        %2915 = vst.msk [vmem:[#allocation2 + $0x18] sm:$0xff] %vm220, %v2913
        %v2916 = vld [vmem:[%s238 + $0x2] sm:$0xff]
        %v2917 = vld [vmem:[%s238 + $0xa] sm:$0xff]
        %2918 = vst.msk [vmem:[#allocation2 + $0x20] sm:$0xff] %vm220, %v2916
        %2919 = vst.msk [vmem:[#allocation2 + $0x28] sm:$0xff] %vm220, %v2917
        %v2920 = vld [vmem:[%s243 + $0x2] sm:$0xff]
        %v2921 = vld [vmem:[%s243 + $0xa] sm:$0xff]
        %2922 = vst.msk [vmem:[#allocation2 + $0x30] sm:$0xff] %vm220, %v2920
        %2923 = vst.msk [vmem:[#allocation2 + $0x38] sm:$0xff] %vm220, %v2921
        %v2924 = vld [vmem:[%s248 + $0x2] sm:$0xff]
        %v2925 = vld [vmem:[%s248 + $0xa] sm:$0xff]
        %2926 = vst.msk [vmem:[#allocation2 + $0x40] sm:$0xff] %vm220, %v2924
        %2927 = vst.msk [vmem:[#allocation2 + $0x48] sm:$0xff] %vm220, %v2925
        %v2928 = vld [vmem:[%s253 + $0x2] sm:$0xff]
        %v2929 = vld [vmem:[%s253 + $0xa] sm:$0xff]
        %2930 = vst.msk [vmem:[#allocation2 + $0x50] sm:$0xff] %vm220, %v2928
        %2931 = vst.msk [vmem:[#allocation2 + $0x58] sm:$0xff] %vm220, %v2929
        %v2932 = vld [vmem:[%s258 + $0x2] sm:$0xff]
        %v2933 = vld [vmem:[%s258 + $0xa] sm:$0xff]
        %2934 = vst.msk [vmem:[#allocation2 + $0x60] sm:$0xff] %vm220, %v2932
        %2935 = vst.msk [vmem:[#allocation2 + $0x68] sm:$0xff] %vm220, %v2933
        %v2936 = vld [vmem:[%s263 + $0x2] sm:$0xff]
        %v2937 = vld [vmem:[%s263 + $0xa] sm:$0xff]
        %2938 = vst.msk [vmem:[#allocation2 + $0x70] sm:$0xff] %vm220, %v2936
        %2939 = vst.msk [vmem:[#allocation2 + $0x78] sm:$0xff] %vm220, %v2937
        %v2940 = vld [vmem:[%s268 + $0x2] sm:$0xff]
        %v2941 = vld [vmem:[%s268 + $0xa] sm:$0xff]
        %2942 = vst.msk [vmem:[#allocation2 + $0x80] sm:$0xff] %vm220, %v2940
        %2943 = vst.msk [vmem:[#allocation2 + $0x88] sm:$0xff] %vm220, %v2941
        %v2944 = vld [vmem:[%s273 + $0x2] sm:$0xff]
        %v2945 = vld [vmem:[%s273 + $0xa] sm:$0xff]
        %2946 = vst.msk [vmem:[#allocation2 + $0x90] sm:$0xff] %vm220, %v2944
        %2947 = vst.msk [vmem:[#allocation2 + $0x98] sm:$0xff] %vm220, %v2945
        %v2948 = vld [vmem:[%s278 + $0x2] sm:$0xff]
        %v2949 = vld [vmem:[%s278 + $0xa] sm:$0xff]
        %2950 = vst.msk [vmem:[#allocation2 + $0xa0] sm:$0xff] %vm220, %v2948
        %2951 = vst.msk [vmem:[#allocation2 + $0xa8] sm:$0xff] %vm220, %v2949
        %v2952 = vld [vmem:[%s283 + $0x2] sm:$0xff]
        %v2953 = vld [vmem:[%s283 + $0xa] sm:$0xff]
        %2954 = vst.msk [vmem:[#allocation2 + $0xb0] sm:$0xff] %vm220, %v2952
        %2955 = vst.msk [vmem:[#allocation2 + $0xb8] sm:$0xff] %vm220, %v2953
        %v2956 = vld [vmem:[%s288 + $0x2] sm:$0xff]
        %v2957 = vld [vmem:[%s288 + $0xa] sm:$0xff]
        %2958 = vst.msk [vmem:[#allocation2 + $0xc0] sm:$0xff] %vm220, %v2956
        %2959 = vst.msk [vmem:[#allocation2 + $0xc8] sm:$0xff] %vm220, %v2957
        %v2960 = vld [vmem:[%s293 + $0x2] sm:$0xff]
        %v2961 = vld [vmem:[%s293 + $0xa] sm:$0xff]
        %2962 = vst.msk [vmem:[#allocation2 + $0xd0] sm:$0xff] %vm220, %v2960
        %2963 = vst.msk [vmem:[#allocation2 + $0xd8] sm:$0xff] %vm220, %v2961
        %v2964 = vld [vmem:[%s1256 + $0x2] sm:$0xff]
        %v2965 = vld [vmem:[%s1256 + $0xa] sm:$0xff]
        %2966 = vst.msk [vmem:[#allocation2 + $0xe0] sm:$0xff] %vm220, %v2964
        %2967 = vst.msk [vmem:[#allocation2 + $0xe8] sm:$0xff] %vm220, %v2965
        %v2968 = vld [vmem:[%s2283 + $0x2] sm:$0xff]
        %v2969 = vld [vmem:[%s2283 + $0xa] sm:$0xff]
        %2970 = vst.msk [vmem:[#allocation2 + $0xf0] sm:$0xff] %vm220, %v2968
        %2971 = vst.msk [vmem:[#allocation2 + $0xf8] sm:$0xff] %vm220, %v2969
        %v2972 = vld [vmem:[#allocation2] sm:$0xff]
        %v2973 = vld [vmem:[#allocation2 + $0x8] sm:$0xff]
        %v2974 = vld [vmem:[#allocation2 + $0x10] sm:$0xff]
        %v2975 = vld [vmem:[#allocation2 + $0x18] sm:$0xff]
        %v2976 = vld [vmem:[#allocation2 + $0x20] sm:$0xff]
        %v2977 = vld [vmem:[#allocation2 + $0x28] sm:$0xff]
        %v2978 = vld [vmem:[#allocation2 + $0x30] sm:$0xff]
        %v2979 = vld [vmem:[#allocation2 + $0x38] sm:$0xff]
        %v2980 = vld [vmem:[#allocation2 + $0x40] sm:$0xff]
        %v2981 = vld [vmem:[#allocation2 + $0x48] sm:$0xff]
        %v2982 = vld [vmem:[#allocation2 + $0x50] sm:$0xff]
        %v2983 = vld [vmem:[#allocation2 + $0x58] sm:$0xff]
        %v2984 = vld [vmem:[#allocation2 + $0x60] sm:$0xff]
        %v2985 = vld [vmem:[#allocation2 + $0x68] sm:$0xff]
        %v2986 = vld [vmem:[#allocation2 + $0x70] sm:$0xff]
        %v2987 = vld [vmem:[#allocation2 + $0x78] sm:$0xff]
        %v2988 = vld [vmem:[#allocation2 + $0x80] sm:$0xff]
        %v2989 = vld [vmem:[#allocation2 + $0x88] sm:$0xff]
        %v2990 = vld [vmem:[#allocation2 + $0x90] sm:$0xff]
        %v2991 = vld [vmem:[#allocation2 + $0x98] sm:$0xff]
        %v2992 = vld [vmem:[#allocation2 + $0xa0] sm:$0xff]
        %v2993 = vld [vmem:[#allocation2 + $0xa8] sm:$0xff]
        %v2994 = vld [vmem:[#allocation2 + $0xb0] sm:$0xff]
        %v2995 = vld [vmem:[#allocation2 + $0xb8] sm:$0xff]
        %v2996 = vld [vmem:[#allocation2 + $0xc0] sm:$0xff]
        %v2997 = vld [vmem:[#allocation2 + $0xc8] sm:$0xff]
        %v2998 = vld [vmem:[#allocation2 + $0xd0] sm:$0xff]
        %v2999 = vld [vmem:[#allocation2 + $0xd8] sm:$0xff]
        %v3000 = vld [vmem:[#allocation2 + $0xe0] sm:$0xff]
        %v3001 = vld [vmem:[#allocation2 + $0xe8] sm:$0xff]
        %v3002 = vld [vmem:[#allocation2 + $0xf0] sm:$0xff]
        %v3003 = vld [vmem:[#allocation2 + $0xf8] sm:$0xff]
        %s3004 = scalar_lea.vmem %s1, 32
        %v3005 = vld [vmem:[%s3004] sm:$0xf]
        %v3007 = vsel %vm220, %v2972, 0
        %v3010 = vsel %vm220, %v2973, 0
        %v3013 = vsel %vm220, %v2974, 0
        %v3016 = vsel %vm220, %v2975, 0
        %v3019 = vsel %vm220, %v2976, 0
        %v3022 = vsel %vm220, %v2977, 0
        %v3025 = vsel %vm220, %v2978, 0
        %v3028 = vsel %vm220, %v2979, 0
        %v3031 = vsel %vm220, %v2980, 0
        %v3034 = vsel %vm220, %v2981, 0
        %v3037 = vsel %vm220, %v2982, 0
        %v3040 = vsel %vm220, %v2983, 0
        %v3043 = vsel %vm220, %v2984, 0
        %v3046 = vsel %vm220, %v2985, 0
        %v3049 = vsel %vm220, %v2986, 0
        %v3052 = vsel %vm220, %v2987, 0
        %v3055 = vsel %vm220, %v2988, 0
        %v3058 = vsel %vm220, %v2989, 0
        %v3061 = vsel %vm220, %v2990, 0
        %v3064 = vsel %vm220, %v2991, 0
        %v3067 = vsel %vm220, %v2992, 0
        %v3070 = vsel %vm220, %v2993, 0
        %v3073 = vsel %vm220, %v2994, 0
        %v3076 = vsel %vm220, %v2995, 0
        %v3079 = vsel %vm220, %v2996, 0
        %v3082 = vsel %vm220, %v2997, 0
        %v3085 = vsel %vm220, %v2998, 0
        %v3088 = vsel %vm220, %v2999, 0
        %v3091 = vsel %vm220, %v3000, 0
        %v3094 = vsel %vm220, %v3001, 0
        %v3097 = vsel %vm220, %v3002, 0
        %v3100 = vsel %vm220, %v3003, 0
        %v3103 = vsel %vm525, %v3005, 0
        %3105 = vmatpush.msra.mxu0 0.0
        %3106 = vmatpush.msra.mxu0 0.0
        %3107 = vmatpush.msra.mxu0 0.0
        %3108 = vmatpush.msra.mxu0 0.0
        %3109 = vmatpush.msra.mxu0 0.0
        %3110 = vmatpush.msra.mxu0 0.0
        %3111 = vmatpush.msra.mxu0 0.0
        %3112 = vmatpush.msra.mxu0 0.0
        %3113 = vmatpush.msra.mxu0 0.0
        %3114 = vmatpush.msra.mxu0 0.0
        %3115 = vmatpush.msra.mxu0 0.0
        %3116 = vmatpush.msra.mxu0 0.0
        %3117 = vmatpush.msra.mxu0 0.0
        %3118 = vmatpush.msra.mxu0 0.0
        %3119 = vmatpush.msra.mxu0 0.0
        %3120 = vmatpush.msra.mxu0 %v3103
        %3121 = vmatmul.f32.gmra.mxu0 %v3007
        %v3122 = vpop.f32.mrf.mxu0
        %v3123 = vadd.f32 0.0, %v3122
        %3124 = vmatmul.f32.gmra.mxu0 %v3010
        %v3125 = vpop.f32.mrf.mxu0
        %v3126 = vadd.f32 0.0, %v3125
        %3127 = vmatmul.f32.gmra.mxu0 %v3013
        %v3128 = vpop.f32.mrf.mxu0
        %v3129 = vadd.f32 0.0, %v3128
        %3130 = vmatmul.f32.gmra.mxu0 %v3016
        %v3131 = vpop.f32.mrf.mxu0
        %v3132 = vadd.f32 0.0, %v3131
        %3133 = vmatmul.f32.gmra.mxu0 %v3019
        %v3134 = vpop.f32.mrf.mxu0
        %v3135 = vadd.f32 0.0, %v3134
        %3136 = vmatmul.f32.gmra.mxu0 %v3022
        %v3137 = vpop.f32.mrf.mxu0
        %v3138 = vadd.f32 0.0, %v3137
        %3139 = vmatmul.f32.gmra.mxu0 %v3025
        %v3140 = vpop.f32.mrf.mxu0
        %v3141 = vadd.f32 0.0, %v3140
        %3142 = vmatmul.f32.gmra.mxu0 %v3028
        %v3143 = vpop.f32.mrf.mxu0
        %v3144 = vadd.f32 0.0, %v3143
        %3145 = vmatmul.f32.gmra.mxu0 %v3031
        %v3146 = vpop.f32.mrf.mxu0
        %v3147 = vadd.f32 0.0, %v3146
        %3148 = vmatmul.f32.gmra.mxu0 %v3034
        %v3149 = vpop.f32.mrf.mxu0
        %v3150 = vadd.f32 0.0, %v3149
        %3151 = vmatmul.f32.gmra.mxu0 %v3037
        %v3152 = vpop.f32.mrf.mxu0
        %v3153 = vadd.f32 0.0, %v3152
        %3154 = vmatmul.f32.gmra.mxu0 %v3040
        %v3155 = vpop.f32.mrf.mxu0
        %v3156 = vadd.f32 0.0, %v3155
        %3157 = vmatmul.f32.gmra.mxu0 %v3043
        %v3158 = vpop.f32.mrf.mxu0
        %v3159 = vadd.f32 0.0, %v3158
        %3160 = vmatmul.f32.gmra.mxu0 %v3046
        %v3161 = vpop.f32.mrf.mxu0
        %v3162 = vadd.f32 0.0, %v3161
        %3163 = vmatmul.f32.gmra.mxu0 %v3049
        %v3164 = vpop.f32.mrf.mxu0
        %v3165 = vadd.f32 0.0, %v3164
        %3166 = vmatmul.f32.gmra.mxu0 %v3052
        %v3167 = vpop.f32.mrf.mxu0
        %v3168 = vadd.f32 0.0, %v3167
        %3169 = vmatmul.f32.gmra.mxu0 %v3055
        %v3170 = vpop.f32.mrf.mxu0
        %v3171 = vadd.f32 0.0, %v3170
        %3172 = vmatmul.f32.gmra.mxu0 %v3058
        %v3173 = vpop.f32.mrf.mxu0
        %v3174 = vadd.f32 0.0, %v3173
        %3175 = vmatmul.f32.gmra.mxu0 %v3061
        %v3176 = vpop.f32.mrf.mxu0
        %v3177 = vadd.f32 0.0, %v3176
        %3178 = vmatmul.f32.gmra.mxu0 %v3064
        %v3179 = vpop.f32.mrf.mxu0
        %v3180 = vadd.f32 0.0, %v3179
        %3181 = vmatmul.f32.gmra.mxu0 %v3067
        %v3182 = vpop.f32.mrf.mxu0
        %v3183 = vadd.f32 0.0, %v3182
        %3184 = vmatmul.f32.gmra.mxu0 %v3070
        %v3185 = vpop.f32.mrf.mxu0
        %v3186 = vadd.f32 0.0, %v3185
        %3187 = vmatmul.f32.gmra.mxu0 %v3073
        %v3188 = vpop.f32.mrf.mxu0
        %v3189 = vadd.f32 0.0, %v3188
        %3190 = vmatmul.f32.gmra.mxu0 %v3076
        %v3191 = vpop.f32.mrf.mxu0
        %v3192 = vadd.f32 0.0, %v3191
        %3193 = vmatmul.f32.gmra.mxu0 %v3079
        %v3194 = vpop.f32.mrf.mxu0
        %v3195 = vadd.f32 0.0, %v3194
        %3196 = vmatmul.f32.gmra.mxu0 %v3082
        %v3197 = vpop.f32.mrf.mxu0
        %v3198 = vadd.f32 0.0, %v3197
        %3199 = vmatmul.f32.gmra.mxu0 %v3085
        %v3200 = vpop.f32.mrf.mxu0
        %v3201 = vadd.f32 0.0, %v3200
        %3202 = vmatmul.f32.gmra.mxu0 %v3088
        %v3203 = vpop.f32.mrf.mxu0
        %v3204 = vadd.f32 0.0, %v3203
        %3205 = vmatmul.f32.gmra.mxu0 %v3091
        %v3206 = vpop.f32.mrf.mxu0
        %v3207 = vadd.f32 0.0, %v3206
        %3208 = vmatmul.f32.gmra.mxu0 %v3094
        %v3209 = vpop.f32.mrf.mxu0
        %v3210 = vadd.f32 0.0, %v3209
        %3211 = vmatmul.f32.gmra.mxu0 %v3097
        %v3212 = vpop.f32.mrf.mxu0
        %v3213 = vadd.f32 0.0, %v3212
        %3214 = vmatmul.f32.gmra.mxu0 %v3100
        %v3215 = vpop.f32.mrf.mxu0
        %v3216 = vadd.f32 0.0, %v3215
        %3217 = vdwg.mxu0
        %v3218 = vadd.f32 %v2876, %v3123
        %v3219 = vadd.f32 %v2877, %v3126
        %v3220 = vadd.f32 %v2878, %v3129
        %v3221 = vadd.f32 %v2879, %v3132
        %v3222 = vadd.f32 %v2880, %v3135
        %v3223 = vadd.f32 %v2881, %v3138
        %v3224 = vadd.f32 %v2882, %v3141
        %v3225 = vadd.f32 %v2883, %v3144
        %v3226 = vadd.f32 %v2884, %v3147
        %v3227 = vadd.f32 %v2885, %v3150
        %v3228 = vadd.f32 %v2886, %v3153
        %v3229 = vadd.f32 %v2887, %v3156
        %v3230 = vadd.f32 %v2888, %v3159
        %v3231 = vadd.f32 %v2889, %v3162
        %v3232 = vadd.f32 %v2890, %v3165
        %v3233 = vadd.f32 %v2891, %v3168
        %v3234 = vadd.f32 %v2892, %v3171
        %v3235 = vadd.f32 %v2893, %v3174
        %v3236 = vadd.f32 %v2894, %v3177
        %v3237 = vadd.f32 %v2895, %v3180
        %v3238 = vadd.f32 %v2896, %v3183
        %v3239 = vadd.f32 %v2897, %v3186
        %v3240 = vadd.f32 %v2898, %v3189
        %v3241 = vadd.f32 %v2899, %v3192
        %v3242 = vadd.f32 %v2900, %v3195
        %v3243 = vadd.f32 %v2901, %v3198
        %v3244 = vadd.f32 %v2902, %v3201
        %v3245 = vadd.f32 %v2903, %v3204
        %v3246 = vadd.f32 %v2904, %v3207
        %v3247 = vadd.f32 %v2905, %v3210
        %v3248 = vadd.f32 %v2906, %v3213
        %v3249 = vadd.f32 %v2907, %v3216
        %v3250 = vld [vmem:[%s2] sm:$0x1]
        %v3252 = vperm.slane %v3250, 0
        %v3254 = vadd.f32 %v3218, %v3252
        %v3255 = vadd.f32 %v3219, %v3252
        %v3256 = vadd.f32 %v3220, %v3252
        %v3257 = vadd.f32 %v3221, %v3252
        %v3258 = vadd.f32 %v3222, %v3252
        %v3259 = vadd.f32 %v3223, %v3252
        %v3260 = vadd.f32 %v3224, %v3252
        %v3261 = vadd.f32 %v3225, %v3252
        %v3262 = vadd.f32 %v3226, %v3252
        %v3263 = vadd.f32 %v3227, %v3252
        %v3264 = vadd.f32 %v3228, %v3252
        %v3265 = vadd.f32 %v3229, %v3252
        %v3266 = vadd.f32 %v3230, %v3252
        %v3267 = vadd.f32 %v3231, %v3252
        %v3268 = vadd.f32 %v3232, %v3252
        %v3269 = vadd.f32 %v3233, %v3252
        %v3270 = vadd.f32 %v3234, %v3252
        %v3271 = vadd.f32 %v3235, %v3252
        %v3272 = vadd.f32 %v3236, %v3252
        %v3273 = vadd.f32 %v3237, %v3252
        %v3274 = vadd.f32 %v3238, %v3252
        %v3275 = vadd.f32 %v3239, %v3252
        %v3276 = vadd.f32 %v3240, %v3252
        %v3277 = vadd.f32 %v3241, %v3252
        %v3278 = vadd.f32 %v3242, %v3252
        %v3279 = vadd.f32 %v3243, %v3252
        %v3280 = vadd.f32 %v3244, %v3252
        %v3281 = vadd.f32 %v3245, %v3252
        %v3282 = vadd.f32 %v3246, %v3252
        %v3283 = vadd.f32 %v3247, %v3252
        %v3284 = vadd.f32 %v3248, %v3252
        %v3285 = vadd.f32 %v3249, %v3252
        %s3286 = smul.u32 %s17, 256
        %s3287 = scalar_lea.vmem [#allocation5], %s3286
        %vm3288 = vcmask 261120
        %3289 = vst.msk [vmem:[%s3287] sm:$0xff] %vm3288, %v3254
        %3290 = vst.msk [vmem:[%s3287 + $0x8] sm:$0xff] %vm3288, %v3255
        %3291 = vst.msk [vmem:[%s3287 + $0x10] sm:$0xff] %vm3288, %v3256
        %3292 = vst.msk [vmem:[%s3287 + $0x18] sm:$0xff] %vm3288, %v3257
        %3293 = vst.msk [vmem:[%s3287 + $0x20] sm:$0xff] %vm3288, %v3258
        %3294 = vst.msk [vmem:[%s3287 + $0x28] sm:$0xff] %vm3288, %v3259
        %3295 = vst.msk [vmem:[%s3287 + $0x30] sm:$0xff] %vm3288, %v3260
        %3296 = vst.msk [vmem:[%s3287 + $0x38] sm:$0xff] %vm3288, %v3261
        %3297 = vst.msk [vmem:[%s3287 + $0x40] sm:$0xff] %vm3288, %v3262
        %3298 = vst.msk [vmem:[%s3287 + $0x48] sm:$0xff] %vm3288, %v3263
        %3299 = vst.msk [vmem:[%s3287 + $0x50] sm:$0xff] %vm3288, %v3264
        %3300 = vst.msk [vmem:[%s3287 + $0x58] sm:$0xff] %vm3288, %v3265
        %3301 = vst.msk [vmem:[%s3287 + $0x60] sm:$0xff] %vm3288, %v3266
        %3302 = vst.msk [vmem:[%s3287 + $0x68] sm:$0xff] %vm3288, %v3267
        %3303 = vst.msk [vmem:[%s3287 + $0x70] sm:$0xff] %vm3288, %v3268
        %3304 = vst.msk [vmem:[%s3287 + $0x78] sm:$0xff] %vm3288, %v3269
        %3305 = vst.msk [vmem:[%s3287 + $0x80] sm:$0xff] %vm3288, %v3270
        %3306 = vst.msk [vmem:[%s3287 + $0x88] sm:$0xff] %vm3288, %v3271
        %3307 = vst.msk [vmem:[%s3287 + $0x90] sm:$0xff] %vm3288, %v3272
        %3308 = vst.msk [vmem:[%s3287 + $0x98] sm:$0xff] %vm3288, %v3273
        %3309 = vst.msk [vmem:[%s3287 + $0xa0] sm:$0xff] %vm3288, %v3274
        %3310 = vst.msk [vmem:[%s3287 + $0xa8] sm:$0xff] %vm3288, %v3275
        %3311 = vst.msk [vmem:[%s3287 + $0xb0] sm:$0xff] %vm3288, %v3276
        %3312 = vst.msk [vmem:[%s3287 + $0xb8] sm:$0xff] %vm3288, %v3277
        %3313 = vst.msk [vmem:[%s3287 + $0xc0] sm:$0xff] %vm3288, %v3278
        %3314 = vst.msk [vmem:[%s3287 + $0xc8] sm:$0xff] %vm3288, %v3279
        %3315 = vst.msk [vmem:[%s3287 + $0xd0] sm:$0xff] %vm3288, %v3280
        %3316 = vst.msk [vmem:[%s3287 + $0xd8] sm:$0xff] %vm3288, %v3281
        %3317 = vst.msk [vmem:[%s3287 + $0xe0] sm:$0xff] %vm3288, %v3282
        %3318 = vst.msk [vmem:[%s3287 + $0xe8] sm:$0xff] %vm3288, %v3283
        %3319 = vst.msk [vmem:[%s3287 + $0xf0] sm:$0xff] %vm3288, %v3284
        %3320 = vst.msk [vmem:[%s3287 + $0xf8] sm:$0xff] %vm3288, %v3285
        %v3321 = vld [vmem:[#allocation3] sm:$0x1]
        %v3322 = vsel %vm3288, %v3254, 0.0
        %v3323 = vsel %vm3288, %v3255, 0.0
        %v3324 = vadd.f32 %v3322, %v3323
        %v3325 = vsel %vm3288, %v3256, 0.0
        %v3326 = vadd.f32 %v3324, %v3325
        %v3327 = vsel %vm3288, %v3257, 0.0
        %v3328 = vadd.f32 %v3326, %v3327
        %v3329 = vsel %vm3288, %v3258, 0.0
        %v3330 = vadd.f32 %v3328, %v3329
        %v3331 = vsel %vm3288, %v3259, 0.0
        %v3332 = vadd.f32 %v3330, %v3331
        %v3333 = vsel %vm3288, %v3260, 0.0
        %v3334 = vadd.f32 %v3332, %v3333
        %v3335 = vsel %vm3288, %v3261, 0.0
        %v3336 = vadd.f32 %v3334, %v3335
        %v3337 = vsel %vm3288, %v3262, 0.0
        %v3338 = vadd.f32 %v3336, %v3337
        %v3339 = vsel %vm3288, %v3263, 0.0
        %v3340 = vadd.f32 %v3338, %v3339
        %v3341 = vsel %vm3288, %v3264, 0.0
        %v3342 = vadd.f32 %v3340, %v3341
        %v3343 = vsel %vm3288, %v3265, 0.0
        %v3344 = vadd.f32 %v3342, %v3343
        %v3345 = vsel %vm3288, %v3266, 0.0
        %v3346 = vadd.f32 %v3344, %v3345
        %v3347 = vsel %vm3288, %v3267, 0.0
        %v3348 = vadd.f32 %v3346, %v3347
        %v3349 = vsel %vm3288, %v3268, 0.0
        %v3350 = vadd.f32 %v3348, %v3349
        %v3351 = vsel %vm3288, %v3269, 0.0
        %v3352 = vadd.f32 %v3350, %v3351
        %v3353 = vsel %vm3288, %v3270, 0.0
        %v3354 = vadd.f32 %v3352, %v3353
        %v3355 = vsel %vm3288, %v3271, 0.0
        %v3356 = vadd.f32 %v3354, %v3355
        %v3357 = vsel %vm3288, %v3272, 0.0
        %v3358 = vadd.f32 %v3356, %v3357
        %v3359 = vsel %vm3288, %v3273, 0.0
        %v3360 = vadd.f32 %v3358, %v3359
        %v3361 = vsel %vm3288, %v3274, 0.0
        %v3362 = vadd.f32 %v3360, %v3361
        %v3363 = vsel %vm3288, %v3275, 0.0
        %v3364 = vadd.f32 %v3362, %v3363
        %v3365 = vsel %vm3288, %v3276, 0.0
        %v3366 = vadd.f32 %v3364, %v3365
        %v3367 = vsel %vm3288, %v3277, 0.0
        %v3368 = vadd.f32 %v3366, %v3367
        %v3369 = vsel %vm3288, %v3278, 0.0
        %v3370 = vadd.f32 %v3368, %v3369
        %v3371 = vsel %vm3288, %v3279, 0.0
        %v3372 = vadd.f32 %v3370, %v3371
        %v3373 = vsel %vm3288, %v3280, 0.0
        %v3374 = vadd.f32 %v3372, %v3373
        %v3375 = vsel %vm3288, %v3281, 0.0
        %v3376 = vadd.f32 %v3374, %v3375
        %v3377 = vsel %vm3288, %v3282, 0.0
        %v3378 = vadd.f32 %v3376, %v3377
        %v3379 = vsel %vm3288, %v3283, 0.0
        %v3380 = vadd.f32 %v3378, %v3379
        %v3381 = vsel %vm3288, %v3284, 0.0
        %v3382 = vadd.f32 %v3380, %v3381
        %v3383 = vsel %vm3288, %v3285, 0.0
        %v3384 = vadd.f32 %v3382, %v3383
        %v3385 = vrot.slane %v3384, 4
        %v3386 = vadd.f32 %v3384, %v3385
        %v3387 = vrot.slane %v3386, 2
        %v3388 = vadd.f32 %v3386, %v3387
        %v3389 = vrot.slane %v3388, 1
        %v3390 = vadd.f32 %v3388, %v3389
        %v3391 = vadd.f32 %v3321, %v3390
        %vm3392 = vcmask 253952
        %3393 = vst.msk [vmem:[#allocation3] sm:$0x1] %vm3392, %v3391
        %v3394 = vld [vmem:[#allocation4] sm:$0x1]
        %v3395 = vmul.f32 %v3254, %v3254
        %v3396 = vmul.f32 %v3255, %v3255
        %v3397 = vmul.f32 %v3256, %v3256
        %v3398 = vmul.f32 %v3257, %v3257
        %v3399 = vmul.f32 %v3258, %v3258
        %v3400 = vmul.f32 %v3259, %v3259
        %v3401 = vmul.f32 %v3260, %v3260
        %v3402 = vmul.f32 %v3261, %v3261
        %v3403 = vmul.f32 %v3262, %v3262
        %v3404 = vmul.f32 %v3263, %v3263
        %v3405 = vmul.f32 %v3264, %v3264
        %v3406 = vmul.f32 %v3265, %v3265
        %v3407 = vmul.f32 %v3266, %v3266
        %v3408 = vmul.f32 %v3267, %v3267
        %v3409 = vmul.f32 %v3268, %v3268
        %v3410 = vmul.f32 %v3269, %v3269
        %v3411 = vmul.f32 %v3270, %v3270
        %v3412 = vmul.f32 %v3271, %v3271
        %v3413 = vmul.f32 %v3272, %v3272
        %v3414 = vmul.f32 %v3273, %v3273
        %v3415 = vmul.f32 %v3274, %v3274
        %v3416 = vmul.f32 %v3275, %v3275
        %v3417 = vmul.f32 %v3276, %v3276
        %v3418 = vmul.f32 %v3277, %v3277
        %v3419 = vmul.f32 %v3278, %v3278
        %v3420 = vmul.f32 %v3279, %v3279
        %v3421 = vmul.f32 %v3280, %v3280
        %v3422 = vmul.f32 %v3281, %v3281
        %v3423 = vmul.f32 %v3282, %v3282
        %v3424 = vmul.f32 %v3283, %v3283
        %v3425 = vmul.f32 %v3284, %v3284
        %v3426 = vmul.f32 %v3285, %v3285
        %v3427 = vsel %vm3288, %v3395, 0.0
        %v3428 = vsel %vm3288, %v3396, 0.0
        %v3429 = vadd.f32 %v3427, %v3428
        %v3430 = vsel %vm3288, %v3397, 0.0
        %v3431 = vadd.f32 %v3429, %v3430
        %v3432 = vsel %vm3288, %v3398, 0.0
        %v3433 = vadd.f32 %v3431, %v3432
        %v3434 = vsel %vm3288, %v3399, 0.0
        %v3435 = vadd.f32 %v3433, %v3434
        %v3436 = vsel %vm3288, %v3400, 0.0
        %v3437 = vadd.f32 %v3435, %v3436
        %v3438 = vsel %vm3288, %v3401, 0.0
        %v3439 = vadd.f32 %v3437, %v3438
        %v3440 = vsel %vm3288, %v3402, 0.0
        %v3441 = vadd.f32 %v3439, %v3440
        %v3442 = vsel %vm3288, %v3403, 0.0
        %v3443 = vadd.f32 %v3441, %v3442
        %v3444 = vsel %vm3288, %v3404, 0.0
        %v3445 = vadd.f32 %v3443, %v3444
        %v3446 = vsel %vm3288, %v3405, 0.0
        %v3447 = vadd.f32 %v3445, %v3446
        %v3448 = vsel %vm3288, %v3406, 0.0
        %v3449 = vadd.f32 %v3447, %v3448
        %v3450 = vsel %vm3288, %v3407, 0.0
        %v3451 = vadd.f32 %v3449, %v3450
        %v3452 = vsel %vm3288, %v3408, 0.0
        %v3453 = vadd.f32 %v3451, %v3452
        %v3454 = vsel %vm3288, %v3409, 0.0
        %v3455 = vadd.f32 %v3453, %v3454
        %v3456 = vsel %vm3288, %v3410, 0.0
        %v3457 = vadd.f32 %v3455, %v3456
        %v3458 = vsel %vm3288, %v3411, 0.0
        %v3459 = vadd.f32 %v3457, %v3458
        %v3460 = vsel %vm3288, %v3412, 0.0
        %v3461 = vadd.f32 %v3459, %v3460
        %v3462 = vsel %vm3288, %v3413, 0.0
        %v3463 = vadd.f32 %v3461, %v3462
        %v3464 = vsel %vm3288, %v3414, 0.0
        %v3465 = vadd.f32 %v3463, %v3464
        %v3466 = vsel %vm3288, %v3415, 0.0
        %v3467 = vadd.f32 %v3465, %v3466
        %v3468 = vsel %vm3288, %v3416, 0.0
        %v3469 = vadd.f32 %v3467, %v3468
        %v3470 = vsel %vm3288, %v3417, 0.0
        %v3471 = vadd.f32 %v3469, %v3470
        %v3472 = vsel %vm3288, %v3418, 0.0
        %v3473 = vadd.f32 %v3471, %v3472
        %v3474 = vsel %vm3288, %v3419, 0.0
        %v3475 = vadd.f32 %v3473, %v3474
        %v3476 = vsel %vm3288, %v3420, 0.0
        %v3477 = vadd.f32 %v3475, %v3476
        %v3478 = vsel %vm3288, %v3421, 0.0
        %v3479 = vadd.f32 %v3477, %v3478
        %v3480 = vsel %vm3288, %v3422, 0.0
        %v3481 = vadd.f32 %v3479, %v3480
        %v3482 = vsel %vm3288, %v3423, 0.0
        %v3483 = vadd.f32 %v3481, %v3482
        %v3484 = vsel %vm3288, %v3424, 0.0
        %v3485 = vadd.f32 %v3483, %v3484
        %v3486 = vsel %vm3288, %v3425, 0.0
        %v3487 = vadd.f32 %v3485, %v3486
        %v3488 = vsel %vm3288, %v3426, 0.0
        %v3489 = vadd.f32 %v3487, %v3488
        %v3490 = vrot.slane %v3489, 4
        %v3491 = vadd.f32 %v3489, %v3490
        %v3492 = vrot.slane %v3491, 2
        %v3493 = vadd.f32 %v3491, %v3492
        %v3494 = vrot.slane %v3493, 1
        %v3495 = vadd.f32 %v3493, %v3494
        %v3496 = vadd.f32 %v3394, %v3495
        %3497 = vst.msk [vmem:[#allocation4] sm:$0x1] %vm3392, %v3496
        %p3498 = scmp.eq.s32.totalorder %s17, 1
        // Predicated region
        $region45: #{basic_conv_forward.1} parent=39 // pred_check
          %p3499 = pneg %p3498
        $region46: #{basic_conv_forward.1} parent=39 // pred_check_branch
          %3501 = sbr.rel (%p3499) target = $region48
        $region47: #{basic_conv_forward.1} parent=39 // pred_region
          %v3502 = vld [vmem:[#allocation3] sm:$0x1]
          %v3503 = vmul.f32 %v3502, 0.001953125
          %v3504 = vld [vmem:[#allocation4] sm:$0x1]
          %v3505 = vmul.f32 %v3504, 0.001953125
          %v3506 = vmul.f32 %v3503, %v3503
          %v3507 = vsub.f32 %v3505, %v3506
          %v3508 = vmax.f32 %v3507, 0.0
          %v3509 = vld [vmem:[%s3] sm:$0x1]
          %v3510 = vadd.f32 %v3508, 1e-05
          %v3511 = vrsqrt.pop %v3510
          %v3512 = vmul.f32 %v3511, %v3510
          %v3513 = vmul.f32 %v3512, %v3511
          %v3514 = vmul.f32 0.5, %v3513
          %v3515 = vsub.f32 1.5, %v3514
          %v3516 = vmul.f32 %v3511, %v3515
          %vm3517 = vweird.f32 %v3510
          %vm3518 = vweird.f32 %v3511
          %vm3519 = vmor %vm3517, %vm3518
          %v3520 = vsel %vm3519, %v3511, %v3516
          %v3521 = vmul.f32 %v3509, %v3520
          %v3522 = vld [vmem:[%s4] sm:$0x1]
          %v3523 = vmul.f32 %v3503, %v3521
          %v3524 = vsub.f32 %v3522, %v3523
          %v3525 = vld [vmem:[#allocation5] sm:$0xff]
          %v3526 = vld [vmem:[#allocation5 + $0x8] sm:$0xff]
          %v3527 = vld [vmem:[#allocation5 + $0x10] sm:$0xff]
          %v3528 = vld [vmem:[#allocation5 + $0x18] sm:$0xff]
          %v3529 = vld [vmem:[#allocation5 + $0x20] sm:$0xff]
          %v3530 = vld [vmem:[#allocation5 + $0x28] sm:$0xff]
          %v3531 = vld [vmem:[#allocation5 + $0x30] sm:$0xff]
          %v3532 = vld [vmem:[#allocation5 + $0x38] sm:$0xff]
          %v3533 = vld [vmem:[#allocation5 + $0x40] sm:$0xff]
          %v3534 = vld [vmem:[#allocation5 + $0x48] sm:$0xff]
          %v3535 = vld [vmem:[#allocation5 + $0x50] sm:$0xff]
          %v3536 = vld [vmem:[#allocation5 + $0x58] sm:$0xff]
          %v3537 = vld [vmem:[#allocation5 + $0x60] sm:$0xff]
          %v3538 = vld [vmem:[#allocation5 + $0x68] sm:$0xff]
          %v3539 = vld [vmem:[#allocation5 + $0x70] sm:$0xff]
          %v3540 = vld [vmem:[#allocation5 + $0x78] sm:$0xff]
          %v3541 = vld [vmem:[#allocation5 + $0x80] sm:$0xff]
          %v3542 = vld [vmem:[#allocation5 + $0x88] sm:$0xff]
          %v3543 = vld [vmem:[#allocation5 + $0x90] sm:$0xff]
          %v3544 = vld [vmem:[#allocation5 + $0x98] sm:$0xff]
          %v3545 = vld [vmem:[#allocation5 + $0xa0] sm:$0xff]
          %v3546 = vld [vmem:[#allocation5 + $0xa8] sm:$0xff]
          %v3547 = vld [vmem:[#allocation5 + $0xb0] sm:$0xff]
          %v3548 = vld [vmem:[#allocation5 + $0xb8] sm:$0xff]
          %v3549 = vld [vmem:[#allocation5 + $0xc0] sm:$0xff]
          %v3550 = vld [vmem:[#allocation5 + $0xc8] sm:$0xff]
          %v3551 = vld [vmem:[#allocation5 + $0xd0] sm:$0xff]
          %v3552 = vld [vmem:[#allocation5 + $0xd8] sm:$0xff]
          %v3553 = vld [vmem:[#allocation5 + $0xe0] sm:$0xff]
          %v3554 = vld [vmem:[#allocation5 + $0xe8] sm:$0xff]
          %v3555 = vld [vmem:[#allocation5 + $0xf0] sm:$0xff]
          %v3556 = vld [vmem:[#allocation5 + $0xf8] sm:$0xff]
          %v3558 = vperm.slane %v3521, 0
          %v3560 = vmul.f32 %v3525, %v3558
          %v3561 = vmul.f32 %v3526, %v3558
          %v3562 = vmul.f32 %v3527, %v3558
          %v3563 = vmul.f32 %v3528, %v3558
          %v3564 = vmul.f32 %v3529, %v3558
          %v3565 = vmul.f32 %v3530, %v3558
          %v3566 = vmul.f32 %v3531, %v3558
          %v3567 = vmul.f32 %v3532, %v3558
          %v3568 = vmul.f32 %v3533, %v3558
          %v3569 = vmul.f32 %v3534, %v3558
          %v3570 = vmul.f32 %v3535, %v3558
          %v3571 = vmul.f32 %v3536, %v3558
          %v3572 = vmul.f32 %v3537, %v3558
          %v3573 = vmul.f32 %v3538, %v3558
          %v3574 = vmul.f32 %v3539, %v3558
          %v3575 = vmul.f32 %v3540, %v3558
          %v3576 = vmul.f32 %v3541, %v3558
          %v3577 = vmul.f32 %v3542, %v3558
          %v3578 = vmul.f32 %v3543, %v3558
          %v3579 = vmul.f32 %v3544, %v3558
          %v3580 = vmul.f32 %v3545, %v3558
          %v3581 = vmul.f32 %v3546, %v3558
          %v3582 = vmul.f32 %v3547, %v3558
          %v3583 = vmul.f32 %v3548, %v3558
          %v3584 = vmul.f32 %v3549, %v3558
          %v3585 = vmul.f32 %v3550, %v3558
          %v3586 = vmul.f32 %v3551, %v3558
          %v3587 = vmul.f32 %v3552, %v3558
          %v3588 = vmul.f32 %v3553, %v3558
          %v3589 = vmul.f32 %v3554, %v3558
          %v3590 = vmul.f32 %v3555, %v3558
          %v3591 = vmul.f32 %v3556, %v3558
          %v3593 = vperm.slane %v3524, 0
          %v3595 = vadd.f32 %v3560, %v3593
          %v3596 = vadd.f32 %v3561, %v3593
          %v3597 = vadd.f32 %v3562, %v3593
          %v3598 = vadd.f32 %v3563, %v3593
          %v3599 = vadd.f32 %v3564, %v3593
          %v3600 = vadd.f32 %v3565, %v3593
          %v3601 = vadd.f32 %v3566, %v3593
          %v3602 = vadd.f32 %v3567, %v3593
          %v3603 = vadd.f32 %v3568, %v3593
          %v3604 = vadd.f32 %v3569, %v3593
          %v3605 = vadd.f32 %v3570, %v3593
          %v3606 = vadd.f32 %v3571, %v3593
          %v3607 = vadd.f32 %v3572, %v3593
          %v3608 = vadd.f32 %v3573, %v3593
          %v3609 = vadd.f32 %v3574, %v3593
          %v3610 = vadd.f32 %v3575, %v3593
          %v3611 = vadd.f32 %v3576, %v3593
          %v3612 = vadd.f32 %v3577, %v3593
          %v3613 = vadd.f32 %v3578, %v3593
          %v3614 = vadd.f32 %v3579, %v3593
          %v3615 = vadd.f32 %v3580, %v3593
          %v3616 = vadd.f32 %v3581, %v3593
          %v3617 = vadd.f32 %v3582, %v3593
          %v3618 = vadd.f32 %v3583, %v3593
          %v3619 = vadd.f32 %v3584, %v3593
          %v3620 = vadd.f32 %v3585, %v3593
          %v3621 = vadd.f32 %v3586, %v3593
          %v3622 = vadd.f32 %v3587, %v3593
          %v3623 = vadd.f32 %v3588, %v3593
          %v3624 = vadd.f32 %v3589, %v3593
          %v3625 = vadd.f32 %v3590, %v3593
          %v3626 = vadd.f32 %v3591, %v3593
          %v3627 = vmax.f32 %v3595, 0.0
          %v3628 = vmax.f32 %v3596, 0.0
          %v3629 = vmax.f32 %v3597, 0.0
          %v3630 = vmax.f32 %v3598, 0.0
          %v3631 = vmax.f32 %v3599, 0.0
          %v3632 = vmax.f32 %v3600, 0.0
          %v3633 = vmax.f32 %v3601, 0.0
          %v3634 = vmax.f32 %v3602, 0.0
          %v3635 = vmax.f32 %v3603, 0.0
          %v3636 = vmax.f32 %v3604, 0.0
          %v3637 = vmax.f32 %v3605, 0.0
          %v3638 = vmax.f32 %v3606, 0.0
          %v3639 = vmax.f32 %v3607, 0.0
          %v3640 = vmax.f32 %v3608, 0.0
          %v3641 = vmax.f32 %v3609, 0.0
          %v3642 = vmax.f32 %v3610, 0.0
          %v3643 = vmax.f32 %v3611, 0.0
          %v3644 = vmax.f32 %v3612, 0.0
          %v3645 = vmax.f32 %v3613, 0.0
          %v3646 = vmax.f32 %v3614, 0.0
          %v3647 = vmax.f32 %v3615, 0.0
          %v3648 = vmax.f32 %v3616, 0.0
          %v3649 = vmax.f32 %v3617, 0.0
          %v3650 = vmax.f32 %v3618, 0.0
          %v3651 = vmax.f32 %v3619, 0.0
          %v3652 = vmax.f32 %v3620, 0.0
          %v3653 = vmax.f32 %v3621, 0.0
          %v3654 = vmax.f32 %v3622, 0.0
          %v3655 = vmax.f32 %v3623, 0.0
          %v3656 = vmax.f32 %v3624, 0.0
          %v3657 = vmax.f32 %v3625, 0.0
          %v3658 = vmax.f32 %v3626, 0.0
          %3659 = vst.msk [vmem:[#allocation5] sm:$0xff] %vm3288, %v3627
          %3660 = vst.msk [vmem:[#allocation5 + $0x8] sm:$0xff] %vm3288, %v3628
          %3661 = vst.msk [vmem:[#allocation5 + $0x10] sm:$0xff] %vm3288, %v3629
          %3662 = vst.msk [vmem:[#allocation5 + $0x18] sm:$0xff] %vm3288, %v3630
          %3663 = vst.msk [vmem:[#allocation5 + $0x20] sm:$0xff] %vm3288, %v3631
          %3664 = vst.msk [vmem:[#allocation5 + $0x28] sm:$0xff] %vm3288, %v3632
          %3665 = vst.msk [vmem:[#allocation5 + $0x30] sm:$0xff] %vm3288, %v3633
          %3666 = vst.msk [vmem:[#allocation5 + $0x38] sm:$0xff] %vm3288, %v3634
          %3667 = vst.msk [vmem:[#allocation5 + $0x40] sm:$0xff] %vm3288, %v3635
          %3668 = vst.msk [vmem:[#allocation5 + $0x48] sm:$0xff] %vm3288, %v3636
          %3669 = vst.msk [vmem:[#allocation5 + $0x50] sm:$0xff] %vm3288, %v3637
          %3670 = vst.msk [vmem:[#allocation5 + $0x58] sm:$0xff] %vm3288, %v3638
          %3671 = vst.msk [vmem:[#allocation5 + $0x60] sm:$0xff] %vm3288, %v3639
          %3672 = vst.msk [vmem:[#allocation5 + $0x68] sm:$0xff] %vm3288, %v3640
          %3673 = vst.msk [vmem:[#allocation5 + $0x70] sm:$0xff] %vm3288, %v3641
          %3674 = vst.msk [vmem:[#allocation5 + $0x78] sm:$0xff] %vm3288, %v3642
          %3675 = vst.msk [vmem:[#allocation5 + $0x80] sm:$0xff] %vm3288, %v3643
          %3676 = vst.msk [vmem:[#allocation5 + $0x88] sm:$0xff] %vm3288, %v3644
          %3677 = vst.msk [vmem:[#allocation5 + $0x90] sm:$0xff] %vm3288, %v3645
          %3678 = vst.msk [vmem:[#allocation5 + $0x98] sm:$0xff] %vm3288, %v3646
          %3679 = vst.msk [vmem:[#allocation5 + $0xa0] sm:$0xff] %vm3288, %v3647
          %3680 = vst.msk [vmem:[#allocation5 + $0xa8] sm:$0xff] %vm3288, %v3648
          %3681 = vst.msk [vmem:[#allocation5 + $0xb0] sm:$0xff] %vm3288, %v3649
          %3682 = vst.msk [vmem:[#allocation5 + $0xb8] sm:$0xff] %vm3288, %v3650
          %3683 = vst.msk [vmem:[#allocation5 + $0xc0] sm:$0xff] %vm3288, %v3651
          %3684 = vst.msk [vmem:[#allocation5 + $0xc8] sm:$0xff] %vm3288, %v3652
          %3685 = vst.msk [vmem:[#allocation5 + $0xd0] sm:$0xff] %vm3288, %v3653
          %3686 = vst.msk [vmem:[#allocation5 + $0xd8] sm:$0xff] %vm3288, %v3654
          %3687 = vst.msk [vmem:[#allocation5 + $0xe0] sm:$0xff] %vm3288, %v3655
          %3688 = vst.msk [vmem:[#allocation5 + $0xe8] sm:$0xff] %vm3288, %v3656
          %3689 = vst.msk [vmem:[#allocation5 + $0xf0] sm:$0xff] %vm3288, %v3657
          %3690 = vst.msk [vmem:[#allocation5 + $0xf8] sm:$0xff] %vm3288, %v3658
          %v3691 = vld [vmem:[#allocation5 + $0x100] sm:$0xff]
          %v3692 = vld [vmem:[#allocation5 + $0x108] sm:$0xff]
          %v3693 = vld [vmem:[#allocation5 + $0x110] sm:$0xff]
          %v3694 = vld [vmem:[#allocation5 + $0x118] sm:$0xff]
          %v3695 = vld [vmem:[#allocation5 + $0x120] sm:$0xff]
          %v3696 = vld [vmem:[#allocation5 + $0x128] sm:$0xff]
          %v3697 = vld [vmem:[#allocation5 + $0x130] sm:$0xff]
          %v3698 = vld [vmem:[#allocation5 + $0x138] sm:$0xff]
          %v3699 = vld [vmem:[#allocation5 + $0x140] sm:$0xff]
          %v3700 = vld [vmem:[#allocation5 + $0x148] sm:$0xff]
          %v3701 = vld [vmem:[#allocation5 + $0x150] sm:$0xff]
          %v3702 = vld [vmem:[#allocation5 + $0x158] sm:$0xff]
          %v3703 = vld [vmem:[#allocation5 + $0x160] sm:$0xff]
          %v3704 = vld [vmem:[#allocation5 + $0x168] sm:$0xff]
          %v3705 = vld [vmem:[#allocation5 + $0x170] sm:$0xff]
          %v3706 = vld [vmem:[#allocation5 + $0x178] sm:$0xff]
          %v3707 = vld [vmem:[#allocation5 + $0x180] sm:$0xff]
          %v3708 = vld [vmem:[#allocation5 + $0x188] sm:$0xff]
          %v3709 = vld [vmem:[#allocation5 + $0x190] sm:$0xff]
          %v3710 = vld [vmem:[#allocation5 + $0x198] sm:$0xff]
          %v3711 = vld [vmem:[#allocation5 + $0x1a0] sm:$0xff]
          %v3712 = vld [vmem:[#allocation5 + $0x1a8] sm:$0xff]
          %v3713 = vld [vmem:[#allocation5 + $0x1b0] sm:$0xff]
          %v3714 = vld [vmem:[#allocation5 + $0x1b8] sm:$0xff]
          %v3715 = vld [vmem:[#allocation5 + $0x1c0] sm:$0xff]
          %v3716 = vld [vmem:[#allocation5 + $0x1c8] sm:$0xff]
          %v3717 = vld [vmem:[#allocation5 + $0x1d0] sm:$0xff]
          %v3718 = vld [vmem:[#allocation5 + $0x1d8] sm:$0xff]
          %v3719 = vld [vmem:[#allocation5 + $0x1e0] sm:$0xff]
          %v3720 = vld [vmem:[#allocation5 + $0x1e8] sm:$0xff]
          %v3721 = vld [vmem:[#allocation5 + $0x1f0] sm:$0xff]
          %v3722 = vld [vmem:[#allocation5 + $0x1f8] sm:$0xff]
          %v3723 = vmul.f32 %v3691, %v3558
          %v3724 = vmul.f32 %v3692, %v3558
          %v3725 = vmul.f32 %v3693, %v3558
          %v3726 = vmul.f32 %v3694, %v3558
          %v3727 = vmul.f32 %v3695, %v3558
          %v3728 = vmul.f32 %v3696, %v3558
          %v3729 = vmul.f32 %v3697, %v3558
          %v3730 = vmul.f32 %v3698, %v3558
          %v3731 = vmul.f32 %v3699, %v3558
          %v3732 = vmul.f32 %v3700, %v3558
          %v3733 = vmul.f32 %v3701, %v3558
          %v3734 = vmul.f32 %v3702, %v3558
          %v3735 = vmul.f32 %v3703, %v3558
          %v3736 = vmul.f32 %v3704, %v3558
          %v3737 = vmul.f32 %v3705, %v3558
          %v3738 = vmul.f32 %v3706, %v3558
          %v3739 = vmul.f32 %v3707, %v3558
          %v3740 = vmul.f32 %v3708, %v3558
          %v3741 = vmul.f32 %v3709, %v3558
          %v3742 = vmul.f32 %v3710, %v3558
          %v3743 = vmul.f32 %v3711, %v3558
          %v3744 = vmul.f32 %v3712, %v3558
          %v3745 = vmul.f32 %v3713, %v3558
          %v3746 = vmul.f32 %v3714, %v3558
          %v3747 = vmul.f32 %v3715, %v3558
          %v3748 = vmul.f32 %v3716, %v3558
          %v3749 = vmul.f32 %v3717, %v3558
          %v3750 = vmul.f32 %v3718, %v3558
          %v3751 = vmul.f32 %v3719, %v3558
          %v3752 = vmul.f32 %v3720, %v3558
          %v3753 = vmul.f32 %v3721, %v3558
          %v3754 = vmul.f32 %v3722, %v3558
          %v3755 = vadd.f32 %v3723, %v3593
          %v3756 = vadd.f32 %v3724, %v3593
          %v3757 = vadd.f32 %v3725, %v3593
          %v3758 = vadd.f32 %v3726, %v3593
          %v3759 = vadd.f32 %v3727, %v3593
          %v3760 = vadd.f32 %v3728, %v3593
          %v3761 = vadd.f32 %v3729, %v3593
          %v3762 = vadd.f32 %v3730, %v3593
          %v3763 = vadd.f32 %v3731, %v3593
          %v3764 = vadd.f32 %v3732, %v3593
          %v3765 = vadd.f32 %v3733, %v3593
          %v3766 = vadd.f32 %v3734, %v3593
          %v3767 = vadd.f32 %v3735, %v3593
          %v3768 = vadd.f32 %v3736, %v3593
          %v3769 = vadd.f32 %v3737, %v3593
          %v3770 = vadd.f32 %v3738, %v3593
          %v3771 = vadd.f32 %v3739, %v3593
          %v3772 = vadd.f32 %v3740, %v3593
          %v3773 = vadd.f32 %v3741, %v3593
          %v3774 = vadd.f32 %v3742, %v3593
          %v3775 = vadd.f32 %v3743, %v3593
          %v3776 = vadd.f32 %v3744, %v3593
          %v3777 = vadd.f32 %v3745, %v3593
          %v3778 = vadd.f32 %v3746, %v3593
          %v3779 = vadd.f32 %v3747, %v3593
          %v3780 = vadd.f32 %v3748, %v3593
          %v3781 = vadd.f32 %v3749, %v3593
          %v3782 = vadd.f32 %v3750, %v3593
          %v3783 = vadd.f32 %v3751, %v3593
          %v3784 = vadd.f32 %v3752, %v3593
          %v3785 = vadd.f32 %v3753, %v3593
          %v3786 = vadd.f32 %v3754, %v3593
          %v3787 = vmax.f32 %v3755, 0.0
          %v3788 = vmax.f32 %v3756, 0.0
          %v3789 = vmax.f32 %v3757, 0.0
          %v3790 = vmax.f32 %v3758, 0.0
          %v3791 = vmax.f32 %v3759, 0.0
          %v3792 = vmax.f32 %v3760, 0.0
          %v3793 = vmax.f32 %v3761, 0.0
          %v3794 = vmax.f32 %v3762, 0.0
          %v3795 = vmax.f32 %v3763, 0.0
          %v3796 = vmax.f32 %v3764, 0.0
          %v3797 = vmax.f32 %v3765, 0.0
          %v3798 = vmax.f32 %v3766, 0.0
          %v3799 = vmax.f32 %v3767, 0.0
          %v3800 = vmax.f32 %v3768, 0.0
          %v3801 = vmax.f32 %v3769, 0.0
          %v3802 = vmax.f32 %v3770, 0.0
          %v3803 = vmax.f32 %v3771, 0.0
          %v3804 = vmax.f32 %v3772, 0.0
          %v3805 = vmax.f32 %v3773, 0.0
          %v3806 = vmax.f32 %v3774, 0.0
          %v3807 = vmax.f32 %v3775, 0.0
          %v3808 = vmax.f32 %v3776, 0.0
          %v3809 = vmax.f32 %v3777, 0.0
          %v3810 = vmax.f32 %v3778, 0.0
          %v3811 = vmax.f32 %v3779, 0.0
          %v3812 = vmax.f32 %v3780, 0.0
          %v3813 = vmax.f32 %v3781, 0.0
          %v3814 = vmax.f32 %v3782, 0.0
          %v3815 = vmax.f32 %v3783, 0.0
          %v3816 = vmax.f32 %v3784, 0.0
          %v3817 = vmax.f32 %v3785, 0.0
          %v3818 = vmax.f32 %v3786, 0.0
          %3819 = vst.msk [vmem:[#allocation5 + $0x100] sm:$0xff] %vm3288, %v3787
          %3820 = vst.msk [vmem:[#allocation5 + $0x108] sm:$0xff] %vm3288, %v3788
          %3821 = vst.msk [vmem:[#allocation5 + $0x110] sm:$0xff] %vm3288, %v3789
          %3822 = vst.msk [vmem:[#allocation5 + $0x118] sm:$0xff] %vm3288, %v3790
          %3823 = vst.msk [vmem:[#allocation5 + $0x120] sm:$0xff] %vm3288, %v3791
          %3824 = vst.msk [vmem:[#allocation5 + $0x128] sm:$0xff] %vm3288, %v3792
          %3825 = vst.msk [vmem:[#allocation5 + $0x130] sm:$0xff] %vm3288, %v3793
          %3826 = vst.msk [vmem:[#allocation5 + $0x138] sm:$0xff] %vm3288, %v3794
          %3827 = vst.msk [vmem:[#allocation5 + $0x140] sm:$0xff] %vm3288, %v3795
          %3828 = vst.msk [vmem:[#allocation5 + $0x148] sm:$0xff] %vm3288, %v3796
          %3829 = vst.msk [vmem:[#allocation5 + $0x150] sm:$0xff] %vm3288, %v3797
          %3830 = vst.msk [vmem:[#allocation5 + $0x158] sm:$0xff] %vm3288, %v3798
          %3831 = vst.msk [vmem:[#allocation5 + $0x160] sm:$0xff] %vm3288, %v3799
          %3832 = vst.msk [vmem:[#allocation5 + $0x168] sm:$0xff] %vm3288, %v3800
          %3833 = vst.msk [vmem:[#allocation5 + $0x170] sm:$0xff] %vm3288, %v3801
          %3834 = vst.msk [vmem:[#allocation5 + $0x178] sm:$0xff] %vm3288, %v3802
          %3835 = vst.msk [vmem:[#allocation5 + $0x180] sm:$0xff] %vm3288, %v3803
          %3836 = vst.msk [vmem:[#allocation5 + $0x188] sm:$0xff] %vm3288, %v3804
          %3837 = vst.msk [vmem:[#allocation5 + $0x190] sm:$0xff] %vm3288, %v3805
          %3838 = vst.msk [vmem:[#allocation5 + $0x198] sm:$0xff] %vm3288, %v3806
          %3839 = vst.msk [vmem:[#allocation5 + $0x1a0] sm:$0xff] %vm3288, %v3807
          %3840 = vst.msk [vmem:[#allocation5 + $0x1a8] sm:$0xff] %vm3288, %v3808
          %3841 = vst.msk [vmem:[#allocation5 + $0x1b0] sm:$0xff] %vm3288, %v3809
          %3842 = vst.msk [vmem:[#allocation5 + $0x1b8] sm:$0xff] %vm3288, %v3810
          %3843 = vst.msk [vmem:[#allocation5 + $0x1c0] sm:$0xff] %vm3288, %v3811
          %3844 = vst.msk [vmem:[#allocation5 + $0x1c8] sm:$0xff] %vm3288, %v3812
          %3845 = vst.msk [vmem:[#allocation5 + $0x1d0] sm:$0xff] %vm3288, %v3813
          %3846 = vst.msk [vmem:[#allocation5 + $0x1d8] sm:$0xff] %vm3288, %v3814
          %3847 = vst.msk [vmem:[#allocation5 + $0x1e0] sm:$0xff] %vm3288, %v3815
          %3848 = vst.msk [vmem:[#allocation5 + $0x1e8] sm:$0xff] %vm3288, %v3816
          %3849 = vst.msk [vmem:[#allocation5 + $0x1f0] sm:$0xff] %vm3288, %v3817
          %3850 = vst.msk [vmem:[#allocation5 + $0x1f8] sm:$0xff] %vm3288, %v3818
        $region48: #{basic_conv_forward.1} parent=39 // pred_fallthru
          _
        // Predicated region
        $region49: #{basic_conv_forward.1} parent=39 // pred_check
          %p3851 = pneg %p140
        $region50: #{basic_conv_forward.1} parent=39 // pred_check_branch
          %3853 = sbr.rel (%p3851) target = $region52
        $region51: #{basic_conv_forward.1} parent=39 // pred_region
          %3855 = vsyncadd [#allocation6], 0
          %s3856 = sshll.u32 [#allocation5], 4
          %s3857 = int_to_ptr.vmem [resolvable:$true] %s3856
          %s3858 = sshll.u32 %s5, 4
          %s3859 = int_to_ptr.hbm [resolvable:$true] %s3858
          %3864 = dma.vmem_to_hbm [thread:$0]  %s3857, 8192, %s3859, [#allocation6], 128, 128, 8
        $region52: #{basic_conv_forward.1} parent=39 // pred_fallthru
          _
        // Predicated region
        $region53: #{basic_conv_forward.1} parent=39 // pred_check
          %p3865 = pneg %p140
        $region54: #{basic_conv_forward.1} parent=39 // pred_check_branch
          %3867 = sbr.rel (%p3865) target = $region56
        $region55: #{basic_conv_forward.1} parent=39 // pred_region
          %3869 = dma.done [#allocation6], 8192
        $region56: #{basic_conv_forward.1} parent=39 // pred_fallthru
          _
      $region40: #{basic_conv_forward.1} parent=5 // pred_fallthru
        _
      %p3870 = scmp.le.s32.totalorder 2, %s12
      // Predicated region
      $region57: #{basic_conv_forward.1} parent=5 // pred_check
        %p3871 = pneg %p3870
      $region58: #{basic_conv_forward.1} parent=5 // pred_check_branch
        %3873 = sbr.rel (%p3871) target = $region60
      $region59: #{basic_conv_forward.1} parent=5 // pred_region
        %s3874 = ssub.s32 %s12, 2
      $region60: #{basic_conv_forward.1} parent=5 // pred_fallthru
        _
    $region6: #{basic_conv_forward.1} parent=1 // loop_footer
      %s16 = sadd.s32 1, %s12
    $region7: #{basic_conv_forward.1} parent=1 // loop_footer_branch
      %11 = sbr.rel target = $region3
    $region8: #{basic_conv_forward.1} parent=1 // loop_exit
      _
    %3875 = vsyncpa [#allocation6], 1
    %s3876 = scalar_lea.sflag [#allocation6], 1
    %3877 = vsyncpa %s3876, 1

</llo_original>
